<compile_context>
chip_gen: v7x
topology: tpu7x:2x2x1
jax: 0.10.0
libtpu: 0.0.40
codegen_flags: <defaults>
</compile_context>

<pallas_src>
import jax
import jax.numpy as jnp
from jax.experimental import pallas as pl
from jax.experimental.pallas import tpu as pltpu


def _round_up(x, m):
    return (x + m - 1) // m * m


# ----------------------------------------------------------------------------
# Conv2d(5x5, valid) + AvgPool2d(2) 2x2-sum, fused (BN scale folded in weights)
# ----------------------------------------------------------------------------
def _make_conv_pool_kernel(offsets, ci, a_len, r_len, wi):
    def kernel(x_ref, w_ref, o_ref, p_ref):
        X = x_ref[0]                                   # (Ci, XF) bf16
        # build the (25*Ci, A) im2col patch matrix in VMEM from shifted slices
        for t, off in enumerate(offsets):
            p_ref[t * ci:(t + 1) * ci, :] = X[:, off:off + a_len]
        acc = jnp.dot(w_ref[...], p_ref[...],
                      preferred_element_type=jnp.float32)     # (Cout, A) f32
        # fused 2x2 AvgPool *sum* (vertical then horizontal shifted adds)
        v = acc[:, 0:r_len + 8] + acc[:, wi:wi + r_len + 8]
        s = v[:, 0:r_len] + v[:, 1:r_len + 1]                 # (Cout, Ho*Wi)
        o_ref[0] = s.astype(o_ref.dtype)
    return kernel


def conv_pool_relu(x_cm, w_mat, bias, hi, wi):
    """One Conv(5x5) + AvgPool2d(2) + folded-BN + ReLU stage.

    x_cm : (B, Ci, Hi*Wi) bf16, channel-major flattened spatial.
    w_mat: (Cout, 25*Ci) bf16, BN scale folded, column order (kh, kw, ci).
    bias : (Cout,) f32, applied after the (linear) average pool.
    Returns (B, Cout, Hp*Wp) bf16 and the new spatial dims.
    """
    B, ci, _ = x_cm.shape
    cout = w_mat.shape[0]
    ho, wo = hi - 4, wi - 4
    hp, wp = ho // 2, wo // 2
    r_len = ho * wi
    a_len = r_len + wi + 8
    xf = (hi + 1) * wi + 16
    x_pad = jnp.pad(x_cm, ((0, 0), (0, 0), (0, xf - hi * wi)))
    offsets = tuple(kh * wi + kw for kh in range(5) for kw in range(5))

    s = pl.pallas_call(
        _make_conv_pool_kernel(offsets, ci, a_len, r_len, wi),
        out_shape=jax.ShapeDtypeStruct((B, cout, r_len), jnp.bfloat16),
        grid=(B,),
        in_specs=[pl.BlockSpec((1, ci, xf), lambda b: (b, 0, 0)),
                  pl.BlockSpec((cout, 25 * ci), lambda b: (0, 0))],
        out_specs=pl.BlockSpec((1, cout, r_len), lambda b: (b, 0, 0)),
        scratch_shapes=[pltpu.VMEM((25 * ci, a_len), jnp.bfloat16)],
        compiler_params=pltpu.CompilerParams(
            dimension_semantics=("parallel",)),
    )(x_pad, w_mat)

    # stride-2 decimation of the 2x2 sums + bias + ReLU (fused by XLA)
    s4 = s.reshape(B, cout, ho, wi)[:, :, 0:2 * hp:2, 0:2 * wp:2]
    y = jnp.maximum(s4.astype(jnp.float32) * 0.25
                    + bias[None, :, None, None], 0.0)
    return y.astype(jnp.bfloat16).reshape(B, cout, hp * wp), hp, wp


# ----------------------------------------------------------------------------
# Tiled matmul + bias (LSTM input projection, bf16 operands, f32 accumulate)
# ----------------------------------------------------------------------------
def _matmul_bias_kernel(x_ref, w_ref, b_ref, o_ref):
    o_ref[...] = (jnp.dot(x_ref[...], w_ref[...],
                          preferred_element_type=jnp.float32) + b_ref[...])


def matmul_bias(x, w, b, tm=256):
    M, K = x.shape
    Nc = w.shape[1]
    Mp = _round_up(M, tm)
    if Mp != M:
        x = jnp.pad(x, ((0, Mp - M), (0, 0)))
    out = pl.pallas_call(
        _matmul_bias_kernel,
        out_shape=jax.ShapeDtypeStruct((Mp, Nc), jnp.float32),
        grid=(Mp // tm,),
        in_specs=[pl.BlockSpec((tm, K), lambda i: (i, 0)),
                  pl.BlockSpec((K, Nc), lambda i: (0, 0)),
                  pl.BlockSpec((1, Nc), lambda i: (0, 0))],
        out_specs=pl.BlockSpec((tm, Nc), lambda i: (i, 0)),
        compiler_params=pltpu.CompilerParams(
            dimension_semantics=("parallel",)),
    )(x, w, b)
    return out[:M]


# ----------------------------------------------------------------------------
# LSTM recurrence (input projection already applied); grid = (batch_blk, time)
# ----------------------------------------------------------------------------
def _make_lstm_kernel(bn, H):
    def kernel(gx_ref, whh_ref, o_ref, h_ref, c_ref):
        t = pl.program_id(1)

        @pl.when(t == 0)
        def _():
            h_ref[...] = jnp.zeros_like(h_ref)
            c_ref[...] = jnp.zeros_like(c_ref)

        h = h_ref[...]                     # (bn, H)
        g = gx_ref[0, 0]                   # (4*bn, H): [i | f | g | o]
        w = whh_ref[...]                   # (4*H, H), per-gate pre-transposed
        i_g = jax.nn.sigmoid(g[0:bn] + jnp.dot(
            h, w[0:H], preferred_element_type=jnp.float32))
        f_g = jax.nn.sigmoid(g[bn:2 * bn] + jnp.dot(
            h, w[H:2 * H], preferred_element_type=jnp.float32))
        g_g = jnp.tanh(g[2 * bn:3 * bn] + jnp.dot(
            h, w[2 * H:3 * H], preferred_element_type=jnp.float32))
        o_g = jax.nn.sigmoid(g[3 * bn:4 * bn] + jnp.dot(
            h, w[3 * H:4 * H], preferred_element_type=jnp.float32))
        c_new = f_g * c_ref[...] + i_g * g_g
        h_new = o_g * jnp.tanh(c_new)
        c_ref[...] = c_new
        h_ref[...] = h_new
        o_ref[0, 0] = h_new
    return kernel


def lstm_recurrence(gates_x, whh, N, L, H):
    """gates_x: (N*L, 4H) f32 (= x@W_ih^T + b_ih + b_hh).  whh: (4H, H) f32."""
    nblk = 2 if N >= 2 else 1
    bn = -(-N // nblk)
    np_ = nblk * bn
    gx = gates_x.reshape(N, L, 4, H)
    if np_ != N:
        gx = jnp.pad(gx, ((0, np_ - N), (0, 0), (0, 0), (0, 0)))
    gx = gx.reshape(nblk, bn, L, 4, H).transpose(0, 2, 3, 1, 4)
    gx = gx.reshape(nblk, L, 4 * bn, H)

    out = pl.pallas_call(
        _make_lstm_kernel(bn, H),
        out_shape=jax.ShapeDtypeStruct((nblk, L, bn, H), jnp.float32),
        grid=(nblk, L),
        in_specs=[pl.BlockSpec((1, 1, 4 * bn, H), lambda b, t: (b, t, 0, 0)),
                  pl.BlockSpec((4 * H, H), lambda b, t: (0, 0))],
        out_specs=pl.BlockSpec((1, 1, bn, H), lambda b, t: (b, t, 0, 0)),
        scratch_shapes=[pltpu.VMEM((bn, H), jnp.float32),
                        pltpu.VMEM((bn, H), jnp.float32)],
        compiler_params=pltpu.CompilerParams(
            dimension_semantics=("parallel", "arbitrary")),
    )(gx, whh)
    return out.transpose(0, 2, 1, 3).reshape(np_, L, H)[:N]


# ----------------------------------------------------------------------------
# fc1 (Linear+ReLU) + regression (Linear+ReLU), fused; regression via lane sum
# ----------------------------------------------------------------------------
def _head_kernel(x_ref, w1_ref, b1_ref, w2_ref, b2_ref, o_ref):
    h = jnp.maximum(jnp.dot(x_ref[...], w1_ref[...],
                            preferred_element_type=jnp.float32)
                    + b1_ref[...], 0.0)
    r = jnp.sum(h * w2_ref[...], axis=1, keepdims=True) + b2_ref[...]
    o_ref[...] = jnp.maximum(r, 0.0)


def head_forward(x, w1, b1, w2, b2, tm=256):
    M, H = x.shape
    Mp = _round_up(M, tm)
    if Mp != M:
        x = jnp.pad(x, ((0, Mp - M), (0, 0)))
    out = pl.pallas_call(
        _head_kernel,
        out_shape=jax.ShapeDtypeStruct((Mp, 1), jnp.float32),
        grid=(Mp // tm,),
        in_specs=[pl.BlockSpec((tm, H), lambda i: (i, 0)),
                  pl.BlockSpec((H, H), lambda i: (0, 0)),
                  pl.BlockSpec((1, H), lambda i: (0, 0)),
                  pl.BlockSpec((1, H), lambda i: (0, 0)),
                  pl.BlockSpec((1, 1), lambda i: (0, 0))],
        out_specs=pl.BlockSpec((tm, 1), lambda i: (i, 0)),
        compiler_params=pltpu.CompilerParams(
            dimension_semantics=("parallel",)),
    )(x, w1, b1, w2, b2)
    return out[:M]


# ----------------------------------------------------------------------------
# Parameters (deterministic synthetic init, PyTorch layouts)
# ----------------------------------------------------------------------------
def init_params(key, cin, d_lstm, hidden=64):
    ks = jax.random.split(key, 20)

    def nrm(k, shape, scale=0.1):
        return scale * jax.random.normal(k, shape, jnp.float32)

    p = {}
    chans = [cin, 12, 12]
    for i in range(3):
        p[f"conv{i+1}_w"] = nrm(ks[i], (12, chans[i], 5, 5))   # (O, Cin, 5, 5)
        p[f"conv{i+1}_b"] = nrm(ks[3 + i], (12,))
        p[f"bn{i+1}_gamma"] = 1.0 + nrm(ks[6 + i], (12,))
        p[f"bn{i+1}_beta"] = nrm(ks[9 + i], (12,))
        p[f"bn{i+1}_mean"] = jnp.zeros((12,), jnp.float32)     # running stats
        p[f"bn{i+1}_var"] = jnp.ones((12,), jnp.float32)
    p["lstm_w_ih"] = nrm(ks[12], (4 * hidden, d_lstm))         # torch layout
    p["lstm_w_hh"] = nrm(ks[13], (4 * hidden, hidden))
    p["lstm_b_ih"] = nrm(ks[14], (4 * hidden,))
    p["lstm_b_hh"] = nrm(ks[15], (4 * hidden,))
    p["fc1_w"] = nrm(ks[16], (hidden, hidden))
    p["fc1_b"] = nrm(ks[17], (hidden,))
    p["reg_w"] = nrm(ks[18], (1, hidden))
    p["reg_b"] = nrm(ks[19], (1,))
    return p


# ----------------------------------------------------------------------------
# Full forward pass
# ----------------------------------------------------------------------------
def dof_cnn_lstm_forward(x, params):
    # x: (N, L, Cin, H, W) -- same axis convention as the torch module.
    N, L, cin, H, W = x.shape
    B = N * L
    eps = 1e-5
    hidden = params["lstm_w_hh"].shape[1]

    # torch NCHW frames are already channel-major; just flatten spatial.
    h = x.reshape(B, cin, H * W).astype(jnp.bfloat16)
    hi, wi = H, W
    for i in (1, 2, 3):
        w = params[f"conv{i}_w"]
        gamma, beta = params[f"bn{i}_gamma"], params[f"bn{i}_beta"]
        mean, var = params[f"bn{i}_mean"], params[f"bn{i}_var"]
        scale = gamma / jnp.sqrt(var + eps)
        ci = w.shape[1]
        # rows = Cout, columns ordered (kh, kw, ci); fold eval-mode BN scale.
        w_mat = (w.transpose(0, 2, 3, 1).reshape(12, 25 * ci)
                 * scale[:, None]).astype(jnp.bfloat16)
        # conv bias + eval-mode BN shift, applied after the linear avg-pool.
        bias = (params[f"conv{i}_b"] - mean) * scale + beta
        h, hi, wi = conv_pool_relu(h, w_mat, bias, hi, wi)

    # channel-major flatten == torch x4.reshape(N, L, -1) on an NCHW tensor.
    feats = h.reshape(B, 12 * hi * wi)                         # (N*L, D) bf16

    # LSTM input projection hoisted out of the recurrence as one big matmul.
    wih_t = params["lstm_w_ih"].T.astype(jnp.bfloat16)         # (D, 4H)
    lstm_bias = (params["lstm_b_ih"] + params["lstm_b_hh"]).reshape(1, -1)
    gates_x = matmul_bias(feats, wih_t, lstm_bias)             # (N*L, 4H) f32

    # recurrent weights: rows k*H:(k+1)*H hold W_h{gate}^T (gate order i,f,g,o)
    whh = params["lstm_w_hh"].reshape(4, hidden, hidden).transpose(0, 2, 1)
    whh = whh.reshape(4 * hidden, hidden)
    x5 = lstm_recurrence(gates_x, whh, N, L, hidden)           # (N, L, 64)

    x7 = head_forward(x5.reshape(N * L, hidden),
                      params["fc1_w"].T, params["fc1_b"].reshape(1, -1),
                      params["reg_w"], params["reg_b"].reshape(1, 1))
    return x7.reshape(N, L)                                    # == .squeeze()


if __name__ == "__main__":
    # 'depth_opticalflow' -> channels_in = 4.  Small spatial size so the three
    # conv+pool stages stay valid (44 -> 20 -> 8 -> 2) and D = 12*2*2 = 48.
    N, L, Cin, H, W = 2, 4, 4, 44, 44

    def _stage(s):
        return (s - 4) // 2

    h3 = _stage(_stage(_stage(H)))
    w3 = _stage(_stage(_stage(W)))
    d_lstm = 12 * h3 * w3

    key = jax.random.PRNGKey(0)
    kx, kp = jax.random.split(key)
    x = jax.random.normal(kx, (N, L, Cin, H, W), jnp.float32)
    params = init_params(kp, Cin, d_lstm)

    out = jax.jit(dof_cnn_lstm_forward)(x, params)
    out = jax.block_until_ready(out)
    assert out.shape == (N, L), out.shape
    assert bool(jnp.all(jnp.isfinite(out)))
    print("KERNEL_OK")
</pallas_src>

<mosaic_0001>
module attributes {stable_mosaic.version = 11 : i64} {
  func.func @kernel(%arg0: i32, %arg1: memref<1x4x1996xbf16, #tpu.memory_space<vmem>>, %arg2: memref<12x100xbf16, #tpu.memory_space<vmem>>, %arg3: memref<1x12x1760xbf16, #tpu.memory_space<vmem>>, %arg4: memref<100x1812xbf16, #tpu.memory_space<vmem>>) attributes {dimension_semantics = [#tpu.dimension_semantics<parallel>], iteration_bounds = array<i64: 8>, scalar_prefetch = 0 : i64, scratch_operands = 1 : i64, tpu.core_type = #tpu.core_type<tc>, window_params = [{transform_indices = @transform_0, window_bounds = array<i64: 1, 4, 1996>}, {pipeline_mode = #tpu.pipeline_mode<synchronous>, transform_indices = @transform_1, window_bounds = array<i64: 12, 100>}, {transform_indices = @transform_2, window_bounds = array<i64: 1, 12, 1760>}]} {
    %c0 = arith.constant 0 : index
    %c0_0 = arith.constant 0 : index
    %c0_1 = arith.constant 0 : index
    %0 = vector.load %arg1[%c0, %c0_0, %c0_1] : memref<1x4x1996xbf16, #tpu.memory_space<vmem>>, vector<1x4x1996xbf16>
    %1 = vector.shape_cast %0 : vector<1x4x1996xbf16> to vector<4x1996xbf16>
    %2 = vector.extract_strided_slice %1 {offsets = [0, 0], sizes = [4, 1812], strides = [1, 1]} : vector<4x1996xbf16> to vector<4x1812xbf16>
    %c0_2 = arith.constant 0 : index
    %c0_3 = arith.constant 0 : index
    %3 = vector.load %arg4[%c0_2, %c0_3] : memref<100x1812xbf16, #tpu.memory_space<vmem>>, vector<4x1812xbf16>
    tpu.vector_store %arg4[%c0_2, %c0_3], %2 {strides = array<i32>} : memref<100x1812xbf16, #tpu.memory_space<vmem>>, vector<4x1812xbf16>,
    %4 = vector.extract_strided_slice %1 {offsets = [0, 1], sizes = [4, 1812], strides = [1, 1]} : vector<4x1996xbf16> to vector<4x1812xbf16>
    %c4 = arith.constant 4 : index
    %c0_4 = arith.constant 0 : index
    %5 = vector.load %arg4[%c4, %c0_4] : memref<100x1812xbf16, #tpu.memory_space<vmem>>, vector<4x1812xbf16>
    tpu.vector_store %arg4[%c4, %c0_4], %4 {strides = array<i32>} : memref<100x1812xbf16, #tpu.memory_space<vmem>>, vector<4x1812xbf16>,
    %6 = vector.extract_strided_slice %1 {offsets = [0, 2], sizes = [4, 1812], strides = [1, 1]} : vector<4x1996xbf16> to vector<4x1812xbf16>
    %c8 = arith.constant 8 : index
    %c0_5 = arith.constant 0 : index
    %7 = vector.load %arg4[%c8, %c0_5] : memref<100x1812xbf16, #tpu.memory_space<vmem>>, vector<4x1812xbf16>
    tpu.vector_store %arg4[%c8, %c0_5], %6 {strides = array<i32>} : memref<100x1812xbf16, #tpu.memory_space<vmem>>, vector<4x1812xbf16>,
    %8 = vector.extract_strided_slice %1 {offsets = [0, 3], sizes = [4, 1812], strides = [1, 1]} : vector<4x1996xbf16> to vector<4x1812xbf16>
    %c12 = arith.constant 12 : index
    %c0_6 = arith.constant 0 : index
    %9 = vector.load %arg4[%c12, %c0_6] : memref<100x1812xbf16, #tpu.memory_space<vmem>>, vector<4x1812xbf16>
    tpu.vector_store %arg4[%c12, %c0_6], %8 {strides = array<i32>} : memref<100x1812xbf16, #tpu.memory_space<vmem>>, vector<4x1812xbf16>,
    %10 = vector.extract_strided_slice %1 {offsets = [0, 4], sizes = [4, 1812], strides = [1, 1]} : vector<4x1996xbf16> to vector<4x1812xbf16>
    %c16 = arith.constant 16 : index
    %c0_7 = arith.constant 0 : index
    %11 = vector.load %arg4[%c16, %c0_7] : memref<100x1812xbf16, #tpu.memory_space<vmem>>, vector<4x1812xbf16>
    tpu.vector_store %arg4[%c16, %c0_7], %10 {strides = array<i32>} : memref<100x1812xbf16, #tpu.memory_space<vmem>>, vector<4x1812xbf16>,
    %12 = vector.extract_strided_slice %1 {offsets = [0, 44], sizes = [4, 1812], strides = [1, 1]} : vector<4x1996xbf16> to vector<4x1812xbf16>
    %c20 = arith.constant 20 : index
    %c0_8 = arith.constant 0 : index
    %13 = vector.load %arg4[%c20, %c0_8] : memref<100x1812xbf16, #tpu.memory_space<vmem>>, vector<4x1812xbf16>
    tpu.vector_store %arg4[%c20, %c0_8], %12 {strides = array<i32>} : memref<100x1812xbf16, #tpu.memory_space<vmem>>, vector<4x1812xbf16>,
    %14 = vector.extract_strided_slice %1 {offsets = [0, 45], sizes = [4, 1812], strides = [1, 1]} : vector<4x1996xbf16> to vector<4x1812xbf16>
    %c24 = arith.constant 24 : index
    %c0_9 = arith.constant 0 : index
    %15 = vector.load %arg4[%c24, %c0_9] : memref<100x1812xbf16, #tpu.memory_space<vmem>>, vector<4x1812xbf16>
    tpu.vector_store %arg4[%c24, %c0_9], %14 {strides = array<i32>} : memref<100x1812xbf16, #tpu.memory_space<vmem>>, vector<4x1812xbf16>,
    %16 = vector.extract_strided_slice %1 {offsets = [0, 46], sizes = [4, 1812], strides = [1, 1]} : vector<4x1996xbf16> to vector<4x1812xbf16>
    %c28 = arith.constant 28 : index
    %c0_10 = arith.constant 0 : index
    %17 = vector.load %arg4[%c28, %c0_10] : memref<100x1812xbf16, #tpu.memory_space<vmem>>, vector<4x1812xbf16>
    tpu.vector_store %arg4[%c28, %c0_10], %16 {strides = array<i32>} : memref<100x1812xbf16, #tpu.memory_space<vmem>>, vector<4x1812xbf16>,
    %18 = vector.extract_strided_slice %1 {offsets = [0, 47], sizes = [4, 1812], strides = [1, 1]} : vector<4x1996xbf16> to vector<4x1812xbf16>
    %c32 = arith.constant 32 : index
    %c0_11 = arith.constant 0 : index
    %19 = vector.load %arg4[%c32, %c0_11] : memref<100x1812xbf16, #tpu.memory_space<vmem>>, vector<4x1812xbf16>
    tpu.vector_store %arg4[%c32, %c0_11], %18 {strides = array<i32>} : memref<100x1812xbf16, #tpu.memory_space<vmem>>, vector<4x1812xbf16>,
    %20 = vector.extract_strided_slice %1 {offsets = [0, 48], sizes = [4, 1812], strides = [1, 1]} : vector<4x1996xbf16> to vector<4x1812xbf16>
    %c36 = arith.constant 36 : index
    %c0_12 = arith.constant 0 : index
    %21 = vector.load %arg4[%c36, %c0_12] : memref<100x1812xbf16, #tpu.memory_space<vmem>>, vector<4x1812xbf16>
    tpu.vector_store %arg4[%c36, %c0_12], %20 {strides = array<i32>} : memref<100x1812xbf16, #tpu.memory_space<vmem>>, vector<4x1812xbf16>,
    %22 = vector.extract_strided_slice %1 {offsets = [0, 88], sizes = [4, 1812], strides = [1, 1]} : vector<4x1996xbf16> to vector<4x1812xbf16>
    %c40 = arith.constant 40 : index
    %c0_13 = arith.constant 0 : index
    %23 = vector.load %arg4[%c40, %c0_13] : memref<100x1812xbf16, #tpu.memory_space<vmem>>, vector<4x1812xbf16>
    tpu.vector_store %arg4[%c40, %c0_13], %22 {strides = array<i32>} : memref<100x1812xbf16, #tpu.memory_space<vmem>>, vector<4x1812xbf16>,
    %24 = vector.extract_strided_slice %1 {offsets = [0, 89], sizes = [4, 1812], strides = [1, 1]} : vector<4x1996xbf16> to vector<4x1812xbf16>
    %c44 = arith.constant 44 : index
    %c0_14 = arith.constant 0 : index
    %25 = vector.load %arg4[%c44, %c0_14] : memref<100x1812xbf16, #tpu.memory_space<vmem>>, vector<4x1812xbf16>
    tpu.vector_store %arg4[%c44, %c0_14], %24 {strides = array<i32>} : memref<100x1812xbf16, #tpu.memory_space<vmem>>, vector<4x1812xbf16>,
    %26 = vector.extract_strided_slice %1 {offsets = [0, 90], sizes = [4, 1812], strides = [1, 1]} : vector<4x1996xbf16> to vector<4x1812xbf16>
    %c48 = arith.constant 48 : index
    %c0_15 = arith.constant 0 : index
    %27 = vector.load %arg4[%c48, %c0_15] : memref<100x1812xbf16, #tpu.memory_space<vmem>>, vector<4x1812xbf16>
    tpu.vector_store %arg4[%c48, %c0_15], %26 {strides = array<i32>} : memref<100x1812xbf16, #tpu.memory_space<vmem>>, vector<4x1812xbf16>,
    %28 = vector.extract_strided_slice %1 {offsets = [0, 91], sizes = [4, 1812], strides = [1, 1]} : vector<4x1996xbf16> to vector<4x1812xbf16>
    %c52 = arith.constant 52 : index
    %c0_16 = arith.constant 0 : index
    %29 = vector.load %arg4[%c52, %c0_16] : memref<100x1812xbf16, #tpu.memory_space<vmem>>, vector<4x1812xbf16>
    tpu.vector_store %arg4[%c52, %c0_16], %28 {strides = array<i32>} : memref<100x1812xbf16, #tpu.memory_space<vmem>>, vector<4x1812xbf16>,
    %30 = vector.extract_strided_slice %1 {offsets = [0, 92], sizes = [4, 1812], strides = [1, 1]} : vector<4x1996xbf16> to vector<4x1812xbf16>
    %c56 = arith.constant 56 : index
    %c0_17 = arith.constant 0 : index
    %31 = vector.load %arg4[%c56, %c0_17] : memref<100x1812xbf16, #tpu.memory_space<vmem>>, vector<4x1812xbf16>
    tpu.vector_store %arg4[%c56, %c0_17], %30 {strides = array<i32>} : memref<100x1812xbf16, #tpu.memory_space<vmem>>, vector<4x1812xbf16>,
    %32 = vector.extract_strided_slice %1 {offsets = [0, 132], sizes = [4, 1812], strides = [1, 1]} : vector<4x1996xbf16> to vector<4x1812xbf16>
    %c60 = arith.constant 60 : index
    %c0_18 = arith.constant 0 : index
    %33 = vector.load %arg4[%c60, %c0_18] : memref<100x1812xbf16, #tpu.memory_space<vmem>>, vector<4x1812xbf16>
    tpu.vector_store %arg4[%c60, %c0_18], %32 {strides = array<i32>} : memref<100x1812xbf16, #tpu.memory_space<vmem>>, vector<4x1812xbf16>,
    %34 = vector.extract_strided_slice %1 {offsets = [0, 133], sizes = [4, 1812], strides = [1, 1]} : vector<4x1996xbf16> to vector<4x1812xbf16>
    %c64 = arith.constant 64 : index
    %c0_19 = arith.constant 0 : index
    %35 = vector.load %arg4[%c64, %c0_19] : memref<100x1812xbf16, #tpu.memory_space<vmem>>, vector<4x1812xbf16>
    tpu.vector_store %arg4[%c64, %c0_19], %34 {strides = array<i32>} : memref<100x1812xbf16, #tpu.memory_space<vmem>>, vector<4x1812xbf16>,
    %36 = vector.extract_strided_slice %1 {offsets = [0, 134], sizes = [4, 1812], strides = [1, 1]} : vector<4x1996xbf16> to vector<4x1812xbf16>
    %c68 = arith.constant 68 : index
    %c0_20 = arith.constant 0 : index
    %37 = vector.load %arg4[%c68, %c0_20] : memref<100x1812xbf16, #tpu.memory_space<vmem>>, vector<4x1812xbf16>
    tpu.vector_store %arg4[%c68, %c0_20], %36 {strides = array<i32>} : memref<100x1812xbf16, #tpu.memory_space<vmem>>, vector<4x1812xbf16>,
    %38 = vector.extract_strided_slice %1 {offsets = [0, 135], sizes = [4, 1812], strides = [1, 1]} : vector<4x1996xbf16> to vector<4x1812xbf16>
    %c72 = arith.constant 72 : index
    %c0_21 = arith.constant 0 : index
    %39 = vector.load %arg4[%c72, %c0_21] : memref<100x1812xbf16, #tpu.memory_space<vmem>>, vector<4x1812xbf16>
    tpu.vector_store %arg4[%c72, %c0_21], %38 {strides = array<i32>} : memref<100x1812xbf16, #tpu.memory_space<vmem>>, vector<4x1812xbf16>,
    %40 = vector.extract_strided_slice %1 {offsets = [0, 136], sizes = [4, 1812], strides = [1, 1]} : vector<4x1996xbf16> to vector<4x1812xbf16>
    %c76 = arith.constant 76 : index
    %c0_22 = arith.constant 0 : index
    %41 = vector.load %arg4[%c76, %c0_22] : memref<100x1812xbf16, #tpu.memory_space<vmem>>, vector<4x1812xbf16>
    tpu.vector_store %arg4[%c76, %c0_22], %40 {strides = array<i32>} : memref<100x1812xbf16, #tpu.memory_space<vmem>>, vector<4x1812xbf16>,
    %42 = vector.extract_strided_slice %1 {offsets = [0, 176], sizes = [4, 1812], strides = [1, 1]} : vector<4x1996xbf16> to vector<4x1812xbf16>
    %c80 = arith.constant 80 : index
    %c0_23 = arith.constant 0 : index
    %43 = vector.load %arg4[%c80, %c0_23] : memref<100x1812xbf16, #tpu.memory_space<vmem>>, vector<4x1812xbf16>
    tpu.vector_store %arg4[%c80, %c0_23], %42 {strides = array<i32>} : memref<100x1812xbf16, #tpu.memory_space<vmem>>, vector<4x1812xbf16>,
    %44 = vector.extract_strided_slice %1 {offsets = [0, 177], sizes = [4, 1812], strides = [1, 1]} : vector<4x1996xbf16> to vector<4x1812xbf16>
    %c84 = arith.constant 84 : index
    %c0_24 = arith.constant 0 : index
    %45 = vector.load %arg4[%c84, %c0_24] : memref<100x1812xbf16, #tpu.memory_space<vmem>>, vector<4x1812xbf16>
    tpu.vector_store %arg4[%c84, %c0_24], %44 {strides = array<i32>} : memref<100x1812xbf16, #tpu.memory_space<vmem>>, vector<4x1812xbf16>,
    %46 = vector.extract_strided_slice %1 {offsets = [0, 178], sizes = [4, 1812], strides = [1, 1]} : vector<4x1996xbf16> to vector<4x1812xbf16>
    %c88 = arith.constant 88 : index
    %c0_25 = arith.constant 0 : index
    %47 = vector.load %arg4[%c88, %c0_25] : memref<100x1812xbf16, #tpu.memory_space<vmem>>, vector<4x1812xbf16>
    tpu.vector_store %arg4[%c88, %c0_25], %46 {strides = array<i32>} : memref<100x1812xbf16, #tpu.memory_space<vmem>>, vector<4x1812xbf16>,
    %48 = vector.extract_strided_slice %1 {offsets = [0, 179], sizes = [4, 1812], strides = [1, 1]} : vector<4x1996xbf16> to vector<4x1812xbf16>
    %c92 = arith.constant 92 : index
    %c0_26 = arith.constant 0 : index
    %49 = vector.load %arg4[%c92, %c0_26] : memref<100x1812xbf16, #tpu.memory_space<vmem>>, vector<4x1812xbf16>
    tpu.vector_store %arg4[%c92, %c0_26], %48 {strides = array<i32>} : memref<100x1812xbf16, #tpu.memory_space<vmem>>, vector<4x1812xbf16>,
    %50 = vector.extract_strided_slice %1 {offsets = [0, 180], sizes = [4, 1812], strides = [1, 1]} : vector<4x1996xbf16> to vector<4x1812xbf16>
    %c96 = arith.constant 96 : index
    %c0_27 = arith.constant 0 : index
    %51 = vector.load %arg4[%c96, %c0_27] : memref<100x1812xbf16, #tpu.memory_space<vmem>>, vector<4x1812xbf16>
    tpu.vector_store %arg4[%c96, %c0_27], %50 {strides = array<i32>} : memref<100x1812xbf16, #tpu.memory_space<vmem>>, vector<4x1812xbf16>,
    %c0_28 = arith.constant 0 : index
    %c0_29 = arith.constant 0 : index
    %52 = vector.load %arg2[%c0_28, %c0_29] : memref<12x100xbf16, #tpu.memory_space<vmem>>, vector<12x100xbf16>
    %c0_30 = arith.constant 0 : index
    %c0_31 = arith.constant 0 : index
    %53 = vector.load %arg4[%c0_30, %c0_31] : memref<100x1812xbf16, #tpu.memory_space<vmem>>, vector<100x1812xbf16>
    %cst = arith.constant dense<0.000000e+00> : vector<12x1812xf32>
    %54 = tpu.matmul %52, %53, %cst {dimension_numbers = #tpu.dot_dimension_numbers<[1], [0], [0], [1], [0, 0, 1, 1], [], []>} : vector<12x100xbf16>, vector<100x1812xbf16>, vector<12x1812xf32> -> vector<12x1812xf32>
    %55 = vector.extract_strided_slice %54 {offsets = [0, 0], sizes = [12, 1768], strides = [1, 1]} : vector<12x1812xf32> to vector<12x1768xf32>
    %56 = vector.extract_strided_slice %54 {offsets = [0, 44], sizes = [12, 1768], strides = [1, 1]} : vector<12x1812xf32> to vector<12x1768xf32>
    %57 = arith.addf %55, %56 : vector<12x1768xf32>
    %58 = vector.extract_strided_slice %57 {offsets = [0, 0], sizes = [12, 1760], strides = [1, 1]} : vector<12x1768xf32> to vector<12x1760xf32>
    %59 = vector.extract_strided_slice %57 {offsets = [0, 1], sizes = [12, 1760], strides = [1, 1]} : vector<12x1768xf32> to vector<12x1760xf32>
    %60 = arith.addf %58, %59 : vector<12x1760xf32>
    %61 = arith.truncf %60 : vector<12x1760xf32> to vector<12x1760xbf16>
    %c0_32 = arith.constant 0 : index
    %c0_33 = arith.constant 0 : index
    %c0_34 = arith.constant 0 : index
    %62 = vector.load %arg3[%c0_32, %c0_33, %c0_34] : memref<1x12x1760xbf16, #tpu.memory_space<vmem>>, vector<1x12x1760xbf16>
    %63 = vector.shape_cast %62 : vector<1x12x1760xbf16> to vector<12x1760xbf16>
    %64 = vector.shape_cast %61 : vector<12x1760xbf16> to vector<1x12x1760xbf16>
    tpu.vector_store %arg3[%c0_32, %c0_33, %c0_34], %64 {strides = array<i32>} : memref<1x12x1760xbf16, #tpu.memory_space<vmem>>, vector<1x12x1760xbf16>,
    return
  }
  func.func @transform_0(%arg0: i32) -> (i32, i32, i32) {
    %c0_i32 = arith.constant 0 : i32
    %c0_i32_0 = arith.constant 0 : i32
    %c0_i32_1 = arith.constant 0 : i32
    return %arg0, %c0_i32, %c0_i32_0 : i32, i32, i32
  }
  func.func @transform_1(%arg0: i32) -> (i32, i32) {
    %c0_i32 = arith.constant 0 : i32
    %c0_i32_0 = arith.constant 0 : i32
    %c0_i32_1 = arith.constant 0 : i32
    return %c0_i32, %c0_i32_0 : i32, i32
  }
  func.func @transform_2(%arg0: i32) -> (i32, i32, i32) {
    %c0_i32 = arith.constant 0 : i32
    %c0_i32_0 = arith.constant 0 : i32
    %c0_i32_1 = arith.constant 0 : i32
    return %arg0, %c0_i32, %c0_i32_0 : i32, i32, i32
  }
}

module attributes {stable_mosaic.version = 11 : i64} {
  func.func @kernel(%arg0: i32, %arg1: memref<1x12x436xbf16, #tpu.memory_space<vmem>>, %arg2: memref<12x300xbf16, #tpu.memory_space<vmem>>, %arg3: memref<1x12x320xbf16, #tpu.memory_space<vmem>>, %arg4: memref<300x348xbf16, #tpu.memory_space<vmem>>) attributes {dimension_semantics = [#tpu.dimension_semantics<parallel>], iteration_bounds = array<i64: 8>, scalar_prefetch = 0 : i64, scratch_operands = 1 : i64, tpu.core_type = #tpu.core_type<tc>, window_params = [{transform_indices = @transform_0, window_bounds = array<i64: 1, 12, 436>}, {pipeline_mode = #tpu.pipeline_mode<synchronous>, transform_indices = @transform_1, window_bounds = array<i64: 12, 300>}, {transform_indices = @transform_2, window_bounds = array<i64: 1, 12, 320>}]} {
    %c0 = arith.constant 0 : index
    %c0_0 = arith.constant 0 : index
    %c0_1 = arith.constant 0 : index
    %0 = vector.load %arg1[%c0, %c0_0, %c0_1] : memref<1x12x436xbf16, #tpu.memory_space<vmem>>, vector<1x12x436xbf16>
    %1 = vector.shape_cast %0 : vector<1x12x436xbf16> to vector<12x436xbf16>
    %2 = vector.extract_strided_slice %1 {offsets = [0, 0], sizes = [12, 348], strides = [1, 1]} : vector<12x436xbf16> to vector<12x348xbf16>
    %c0_2 = arith.constant 0 : index
    %c0_3 = arith.constant 0 : index
    %3 = vector.load %arg4[%c0_2, %c0_3] : memref<300x348xbf16, #tpu.memory_space<vmem>>, vector<12x348xbf16>
    tpu.vector_store %arg4[%c0_2, %c0_3], %2 {strides = array<i32>} : memref<300x348xbf16, #tpu.memory_space<vmem>>, vector<12x348xbf16>,
    %4 = vector.extract_strided_slice %1 {offsets = [0, 1], sizes = [12, 348], strides = [1, 1]} : vector<12x436xbf16> to vector<12x348xbf16>
    %c12 = arith.constant 12 : index
    %c0_4 = arith.constant 0 : index
    %5 = vector.load %arg4[%c12, %c0_4] : memref<300x348xbf16, #tpu.memory_space<vmem>>, vector<12x348xbf16>
    tpu.vector_store %arg4[%c12, %c0_4], %4 {strides = array<i32>} : memref<300x348xbf16, #tpu.memory_space<vmem>>, vector<12x348xbf16>,
    %6 = vector.extract_strided_slice %1 {offsets = [0, 2], sizes = [12, 348], strides = [1, 1]} : vector<12x436xbf16> to vector<12x348xbf16>
    %c24 = arith.constant 24 : index
    %c0_5 = arith.constant 0 : index
    %7 = vector.load %arg4[%c24, %c0_5] : memref<300x348xbf16, #tpu.memory_space<vmem>>, vector<12x348xbf16>
    tpu.vector_store %arg4[%c24, %c0_5], %6 {strides = array<i32>} : memref<300x348xbf16, #tpu.memory_space<vmem>>, vector<12x348xbf16>,
    %8 = vector.extract_strided_slice %1 {offsets = [0, 3], sizes = [12, 348], strides = [1, 1]} : vector<12x436xbf16> to vector<12x348xbf16>
    %c36 = arith.constant 36 : index
    %c0_6 = arith.constant 0 : index
    %9 = vector.load %arg4[%c36, %c0_6] : memref<300x348xbf16, #tpu.memory_space<vmem>>, vector<12x348xbf16>
    tpu.vector_store %arg4[%c36, %c0_6], %8 {strides = array<i32>} : memref<300x348xbf16, #tpu.memory_space<vmem>>, vector<12x348xbf16>,
    %10 = vector.extract_strided_slice %1 {offsets = [0, 4], sizes = [12, 348], strides = [1, 1]} : vector<12x436xbf16> to vector<12x348xbf16>
    %c48 = arith.constant 48 : index
    %c0_7 = arith.constant 0 : index
    %11 = vector.load %arg4[%c48, %c0_7] : memref<300x348xbf16, #tpu.memory_space<vmem>>, vector<12x348xbf16>
    tpu.vector_store %arg4[%c48, %c0_7], %10 {strides = array<i32>} : memref<300x348xbf16, #tpu.memory_space<vmem>>, vector<12x348xbf16>,
    %12 = vector.extract_strided_slice %1 {offsets = [0, 20], sizes = [12, 348], strides = [1, 1]} : vector<12x436xbf16> to vector<12x348xbf16>
    %c60 = arith.constant 60 : index
    %c0_8 = arith.constant 0 : index
    %13 = vector.load %arg4[%c60, %c0_8] : memref<300x348xbf16, #tpu.memory_space<vmem>>, vector<12x348xbf16>
    tpu.vector_store %arg4[%c60, %c0_8], %12 {strides = array<i32>} : memref<300x348xbf16, #tpu.memory_space<vmem>>, vector<12x348xbf16>,
    %14 = vector.extract_strided_slice %1 {offsets = [0, 21], sizes = [12, 348], strides = [1, 1]} : vector<12x436xbf16> to vector<12x348xbf16>
    %c72 = arith.constant 72 : index
    %c0_9 = arith.constant 0 : index
    %15 = vector.load %arg4[%c72, %c0_9] : memref<300x348xbf16, #tpu.memory_space<vmem>>, vector<12x348xbf16>
    tpu.vector_store %arg4[%c72, %c0_9], %14 {strides = array<i32>} : memref<300x348xbf16, #tpu.memory_space<vmem>>, vector<12x348xbf16>,
    %16 = vector.extract_strided_slice %1 {offsets = [0, 22], sizes = [12, 348], strides = [1, 1]} : vector<12x436xbf16> to vector<12x348xbf16>
    %c84 = arith.constant 84 : index
    %c0_10 = arith.constant 0 : index
    %17 = vector.load %arg4[%c84, %c0_10] : memref<300x348xbf16, #tpu.memory_space<vmem>>, vector<12x348xbf16>
    tpu.vector_store %arg4[%c84, %c0_10], %16 {strides = array<i32>} : memref<300x348xbf16, #tpu.memory_space<vmem>>, vector<12x348xbf16>,
    %18 = vector.extract_strided_slice %1 {offsets = [0, 23], sizes = [12, 348], strides = [1, 1]} : vector<12x436xbf16> to vector<12x348xbf16>
    %c96 = arith.constant 96 : index
    %c0_11 = arith.constant 0 : index
    %19 = vector.load %arg4[%c96, %c0_11] : memref<300x348xbf16, #tpu.memory_space<vmem>>, vector<12x348xbf16>
    tpu.vector_store %arg4[%c96, %c0_11], %18 {strides = array<i32>} : memref<300x348xbf16, #tpu.memory_space<vmem>>, vector<12x348xbf16>,
    %20 = vector.extract_strided_slice %1 {offsets = [0, 24], sizes = [12, 348], strides = [1, 1]} : vector<12x436xbf16> to vector<12x348xbf16>
    %c108 = arith.constant 108 : index
    %c0_12 = arith.constant 0 : index
    %21 = vector.load %arg4[%c108, %c0_12] : memref<300x348xbf16, #tpu.memory_space<vmem>>, vector<12x348xbf16>
    tpu.vector_store %arg4[%c108, %c0_12], %20 {strides = array<i32>} : memref<300x348xbf16, #tpu.memory_space<vmem>>, vector<12x348xbf16>,
    %22 = vector.extract_strided_slice %1 {offsets = [0, 40], sizes = [12, 348], strides = [1, 1]} : vector<12x436xbf16> to vector<12x348xbf16>
    %c120 = arith.constant 120 : index
    %c0_13 = arith.constant 0 : index
    %23 = vector.load %arg4[%c120, %c0_13] : memref<300x348xbf16, #tpu.memory_space<vmem>>, vector<12x348xbf16>
    tpu.vector_store %arg4[%c120, %c0_13], %22 {strides = array<i32>} : memref<300x348xbf16, #tpu.memory_space<vmem>>, vector<12x348xbf16>,
    %24 = vector.extract_strided_slice %1 {offsets = [0, 41], sizes = [12, 348], strides = [1, 1]} : vector<12x436xbf16> to vector<12x348xbf16>
    %c132 = arith.constant 132 : index
    %c0_14 = arith.constant 0 : index
    %25 = vector.load %arg4[%c132, %c0_14] : memref<300x348xbf16, #tpu.memory_space<vmem>>, vector<12x348xbf16>
    tpu.vector_store %arg4[%c132, %c0_14], %24 {strides = array<i32>} : memref<300x348xbf16, #tpu.memory_space<vmem>>, vector<12x348xbf16>,
    %26 = vector.extract_strided_slice %1 {offsets = [0, 42], sizes = [12, 348], strides = [1, 1]} : vector<12x436xbf16> to vector<12x348xbf16>
    %c144 = arith.constant 144 : index
    %c0_15 = arith.constant 0 : index
    %27 = vector.load %arg4[%c144, %c0_15] : memref<300x348xbf16, #tpu.memory_space<vmem>>, vector<12x348xbf16>
    tpu.vector_store %arg4[%c144, %c0_15], %26 {strides = array<i32>} : memref<300x348xbf16, #tpu.memory_space<vmem>>, vector<12x348xbf16>,
    %28 = vector.extract_strided_slice %1 {offsets = [0, 43], sizes = [12, 348], strides = [1, 1]} : vector<12x436xbf16> to vector<12x348xbf16>
    %c156 = arith.constant 156 : index
    %c0_16 = arith.constant 0 : index
    %29 = vector.load %arg4[%c156, %c0_16] : memref<300x348xbf16, #tpu.memory_space<vmem>>, vector<12x348xbf16>
    tpu.vector_store %arg4[%c156, %c0_16], %28 {strides = array<i32>} : memref<300x348xbf16, #tpu.memory_space<vmem>>, vector<12x348xbf16>,
    %30 = vector.extract_strided_slice %1 {offsets = [0, 44], sizes = [12, 348], strides = [1, 1]} : vector<12x436xbf16> to vector<12x348xbf16>
    %c168 = arith.constant 168 : index
    %c0_17 = arith.constant 0 : index
    %31 = vector.load %arg4[%c168, %c0_17] : memref<300x348xbf16, #tpu.memory_space<vmem>>, vector<12x348xbf16>
    tpu.vector_store %arg4[%c168, %c0_17], %30 {strides = array<i32>} : memref<300x348xbf16, #tpu.memory_space<vmem>>, vector<12x348xbf16>,
    %32 = vector.extract_strided_slice %1 {offsets = [0, 60], sizes = [12, 348], strides = [1, 1]} : vector<12x436xbf16> to vector<12x348xbf16>
    %c180 = arith.constant 180 : index
    %c0_18 = arith.constant 0 : index
    %33 = vector.load %arg4[%c180, %c0_18] : memref<300x348xbf16, #tpu.memory_space<vmem>>, vector<12x348xbf16>
    tpu.vector_store %arg4[%c180, %c0_18], %32 {strides = array<i32>} : memref<300x348xbf16, #tpu.memory_space<vmem>>, vector<12x348xbf16>,
    %34 = vector.extract_strided_slice %1 {offsets = [0, 61], sizes = [12, 348], strides = [1, 1]} : vector<12x436xbf16> to vector<12x348xbf16>
    %c192 = arith.constant 192 : index
    %c0_19 = arith.constant 0 : index
    %35 = vector.load %arg4[%c192, %c0_19] : memref<300x348xbf16, #tpu.memory_space<vmem>>, vector<12x348xbf16>
    tpu.vector_store %arg4[%c192, %c0_19], %34 {strides = array<i32>} : memref<300x348xbf16, #tpu.memory_space<vmem>>, vector<12x348xbf16>,
    %36 = vector.extract_strided_slice %1 {offsets = [0, 62], sizes = [12, 348], strides = [1, 1]} : vector<12x436xbf16> to vector<12x348xbf16>
    %c204 = arith.constant 204 : index
    %c0_20 = arith.constant 0 : index
    %37 = vector.load %arg4[%c204, %c0_20] : memref<300x348xbf16, #tpu.memory_space<vmem>>, vector<12x348xbf16>
    tpu.vector_store %arg4[%c204, %c0_20], %36 {strides = array<i32>} : memref<300x348xbf16, #tpu.memory_space<vmem>>, vector<12x348xbf16>,
    %38 = vector.extract_strided_slice %1 {offsets = [0, 63], sizes = [12, 348], strides = [1, 1]} : vector<12x436xbf16> to vector<12x348xbf16>
    %c216 = arith.constant 216 : index
    %c0_21 = arith.constant 0 : index
    %39 = vector.load %arg4[%c216, %c0_21] : memref<300x348xbf16, #tpu.memory_space<vmem>>, vector<12x348xbf16>
    tpu.vector_store %arg4[%c216, %c0_21], %38 {strides = array<i32>} : memref<300x348xbf16, #tpu.memory_space<vmem>>, vector<12x348xbf16>,
    %40 = vector.extract_strided_slice %1 {offsets = [0, 64], sizes = [12, 348], strides = [1, 1]} : vector<12x436xbf16> to vector<12x348xbf16>
    %c228 = arith.constant 228 : index
    %c0_22 = arith.constant 0 : index
    %41 = vector.load %arg4[%c228, %c0_22] : memref<300x348xbf16, #tpu.memory_space<vmem>>, vector<12x348xbf16>
    tpu.vector_store %arg4[%c228, %c0_22], %40 {strides = array<i32>} : memref<300x348xbf16, #tpu.memory_space<vmem>>, vector<12x348xbf16>,
    %42 = vector.extract_strided_slice %1 {offsets = [0, 80], sizes = [12, 348], strides = [1, 1]} : vector<12x436xbf16> to vector<12x348xbf16>
    %c240 = arith.constant 240 : index
    %c0_23 = arith.constant 0 : index
    %43 = vector.load %arg4[%c240, %c0_23] : memref<300x348xbf16, #tpu.memory_space<vmem>>, vector<12x348xbf16>
    tpu.vector_store %arg4[%c240, %c0_23], %42 {strides = array<i32>} : memref<300x348xbf16, #tpu.memory_space<vmem>>, vector<12x348xbf16>,
    %44 = vector.extract_strided_slice %1 {offsets = [0, 81], sizes = [12, 348], strides = [1, 1]} : vector<12x436xbf16> to vector<12x348xbf16>
    %c252 = arith.constant 252 : index
    %c0_24 = arith.constant 0 : index
    %45 = vector.load %arg4[%c252, %c0_24] : memref<300x348xbf16, #tpu.memory_space<vmem>>, vector<12x348xbf16>
    tpu.vector_store %arg4[%c252, %c0_24], %44 {strides = array<i32>} : memref<300x348xbf16, #tpu.memory_space<vmem>>, vector<12x348xbf16>,
    %46 = vector.extract_strided_slice %1 {offsets = [0, 82], sizes = [12, 348], strides = [1, 1]} : vector<12x436xbf16> to vector<12x348xbf16>
    %c264 = arith.constant 264 : index
    %c0_25 = arith.constant 0 : index
    %47 = vector.load %arg4[%c264, %c0_25] : memref<300x348xbf16, #tpu.memory_space<vmem>>, vector<12x348xbf16>
    tpu.vector_store %arg4[%c264, %c0_25], %46 {strides = array<i32>} : memref<300x348xbf16, #tpu.memory_space<vmem>>, vector<12x348xbf16>,
    %48 = vector.extract_strided_slice %1 {offsets = [0, 83], sizes = [12, 348], strides = [1, 1]} : vector<12x436xbf16> to vector<12x348xbf16>
    %c276 = arith.constant 276 : index
    %c0_26 = arith.constant 0 : index
    %49 = vector.load %arg4[%c276, %c0_26] : memref<300x348xbf16, #tpu.memory_space<vmem>>, vector<12x348xbf16>
    tpu.vector_store %arg4[%c276, %c0_26], %48 {strides = array<i32>} : memref<300x348xbf16, #tpu.memory_space<vmem>>, vector<12x348xbf16>,
    %50 = vector.extract_strided_slice %1 {offsets = [0, 84], sizes = [12, 348], strides = [1, 1]} : vector<12x436xbf16> to vector<12x348xbf16>
    %c288 = arith.constant 288 : index
    %c0_27 = arith.constant 0 : index
    %51 = vector.load %arg4[%c288, %c0_27] : memref<300x348xbf16, #tpu.memory_space<vmem>>, vector<12x348xbf16>
    tpu.vector_store %arg4[%c288, %c0_27], %50 {strides = array<i32>} : memref<300x348xbf16, #tpu.memory_space<vmem>>, vector<12x348xbf16>,
    %c0_28 = arith.constant 0 : index
    %c0_29 = arith.constant 0 : index
    %52 = vector.load %arg2[%c0_28, %c0_29] : memref<12x300xbf16, #tpu.memory_space<vmem>>, vector<12x300xbf16>
    %c0_30 = arith.constant 0 : index
    %c0_31 = arith.constant 0 : index
    %53 = vector.load %arg4[%c0_30, %c0_31] : memref<300x348xbf16, #tpu.memory_space<vmem>>, vector<300x348xbf16>
    %cst = arith.constant dense<0.000000e+00> : vector<12x348xf32>
    %54 = tpu.matmul %52, %53, %cst {dimension_numbers = #tpu.dot_dimension_numbers<[1], [0], [0], [1], [0, 0, 1, 1], [], []>} : vector<12x300xbf16>, vector<300x348xbf16>, vector<12x348xf32> -> vector<12x348xf32>
    %55 = vector.extract_strided_slice %54 {offsets = [0, 0], sizes = [12, 328], strides = [1, 1]} : vector<12x348xf32> to vector<12x328xf32>
    %56 = vector.extract_strided_slice %54 {offsets = [0, 20], sizes = [12, 328], strides = [1, 1]} : vector<12x348xf32> to vector<12x328xf32>
    %57 = arith.addf %55, %56 : vector<12x328xf32>
    %58 = vector.extract_strided_slice %57 {offsets = [0, 0], sizes = [12, 320], strides = [1, 1]} : vector<12x328xf32> to vector<12x320xf32>
    %59 = vector.extract_strided_slice %57 {offsets = [0, 1], sizes = [12, 320], strides = [1, 1]} : vector<12x328xf32> to vector<12x320xf32>
    %60 = arith.addf %58, %59 : vector<12x320xf32>
    %61 = arith.truncf %60 : vector<12x320xf32> to vector<12x320xbf16>
    %c0_32 = arith.constant 0 : index
    %c0_33 = arith.constant 0 : index
    %c0_34 = arith.constant 0 : index
    %62 = vector.load %arg3[%c0_32, %c0_33, %c0_34] : memref<1x12x320xbf16, #tpu.memory_space<vmem>>, vector<1x12x320xbf16>
    %63 = vector.shape_cast %62 : vector<1x12x320xbf16> to vector<12x320xbf16>
    %64 = vector.shape_cast %61 : vector<12x320xbf16> to vector<1x12x320xbf16>
    tpu.vector_store %arg3[%c0_32, %c0_33, %c0_34], %64 {strides = array<i32>} : memref<1x12x320xbf16, #tpu.memory_space<vmem>>, vector<1x12x320xbf16>,
    return
  }
  func.func @transform_0(%arg0: i32) -> (i32, i32, i32) {
    %c0_i32 = arith.constant 0 : i32
    %c0_i32_0 = arith.constant 0 : i32
    %c0_i32_1 = arith.constant 0 : i32
    return %arg0, %c0_i32, %c0_i32_0 : i32, i32, i32
  }
  func.func @transform_1(%arg0: i32) -> (i32, i32) {
    %c0_i32 = arith.constant 0 : i32
    %c0_i32_0 = arith.constant 0 : i32
    %c0_i32_1 = arith.constant 0 : i32
    return %c0_i32, %c0_i32_0 : i32, i32
  }
  func.func @transform_2(%arg0: i32) -> (i32, i32, i32) {
    %c0_i32 = arith.constant 0 : i32
    %c0_i32_0 = arith.constant 0 : i32
    %c0_i32_1 = arith.constant 0 : i32
    return %arg0, %c0_i32, %c0_i32_0 : i32, i32, i32
  }
}

module attributes {stable_mosaic.version = 11 : i64} {
  func.func @kernel(%arg0: i32, %arg1: memref<1x12x88xbf16, #tpu.memory_space<vmem>>, %arg2: memref<12x300xbf16, #tpu.memory_space<vmem>>, %arg3: memref<1x12x32xbf16, #tpu.memory_space<vmem>>, %arg4: memref<300x48xbf16, #tpu.memory_space<vmem>>) attributes {dimension_semantics = [#tpu.dimension_semantics<parallel>], iteration_bounds = array<i64: 8>, scalar_prefetch = 0 : i64, scratch_operands = 1 : i64, tpu.core_type = #tpu.core_type<tc>, window_params = [{transform_indices = @transform_0, window_bounds = array<i64: 1, 12, 88>}, {pipeline_mode = #tpu.pipeline_mode<synchronous>, transform_indices = @transform_1, window_bounds = array<i64: 12, 300>}, {transform_indices = @transform_2, window_bounds = array<i64: 1, 12, 32>}]} {
    %c0 = arith.constant 0 : index
    %c0_0 = arith.constant 0 : index
    %c0_1 = arith.constant 0 : index
    %0 = vector.load %arg1[%c0, %c0_0, %c0_1] : memref<1x12x88xbf16, #tpu.memory_space<vmem>>, vector<1x12x88xbf16>
    %1 = vector.shape_cast %0 : vector<1x12x88xbf16> to vector<12x88xbf16>
    %2 = vector.extract_strided_slice %1 {offsets = [0, 0], sizes = [12, 48], strides = [1, 1]} : vector<12x88xbf16> to vector<12x48xbf16>
    %c0_2 = arith.constant 0 : index
    %c0_3 = arith.constant 0 : index
    %3 = vector.load %arg4[%c0_2, %c0_3] : memref<300x48xbf16, #tpu.memory_space<vmem>>, vector<12x48xbf16>
    tpu.vector_store %arg4[%c0_2, %c0_3], %2 {strides = array<i32>} : memref<300x48xbf16, #tpu.memory_space<vmem>>, vector<12x48xbf16>,
    %4 = vector.extract_strided_slice %1 {offsets = [0, 1], sizes = [12, 48], strides = [1, 1]} : vector<12x88xbf16> to vector<12x48xbf16>
    %c12 = arith.constant 12 : index
    %c0_4 = arith.constant 0 : index
    %5 = vector.load %arg4[%c12, %c0_4] : memref<300x48xbf16, #tpu.memory_space<vmem>>, vector<12x48xbf16>
    tpu.vector_store %arg4[%c12, %c0_4], %4 {strides = array<i32>} : memref<300x48xbf16, #tpu.memory_space<vmem>>, vector<12x48xbf16>,
    %6 = vector.extract_strided_slice %1 {offsets = [0, 2], sizes = [12, 48], strides = [1, 1]} : vector<12x88xbf16> to vector<12x48xbf16>
    %c24 = arith.constant 24 : index
    %c0_5 = arith.constant 0 : index
    %7 = vector.load %arg4[%c24, %c0_5] : memref<300x48xbf16, #tpu.memory_space<vmem>>, vector<12x48xbf16>
    tpu.vector_store %arg4[%c24, %c0_5], %6 {strides = array<i32>} : memref<300x48xbf16, #tpu.memory_space<vmem>>, vector<12x48xbf16>,
    %8 = vector.extract_strided_slice %1 {offsets = [0, 3], sizes = [12, 48], strides = [1, 1]} : vector<12x88xbf16> to vector<12x48xbf16>
    %c36 = arith.constant 36 : index
    %c0_6 = arith.constant 0 : index
    %9 = vector.load %arg4[%c36, %c0_6] : memref<300x48xbf16, #tpu.memory_space<vmem>>, vector<12x48xbf16>
    tpu.vector_store %arg4[%c36, %c0_6], %8 {strides = array<i32>} : memref<300x48xbf16, #tpu.memory_space<vmem>>, vector<12x48xbf16>,
    %10 = vector.extract_strided_slice %1 {offsets = [0, 4], sizes = [12, 48], strides = [1, 1]} : vector<12x88xbf16> to vector<12x48xbf16>
    %c48 = arith.constant 48 : index
    %c0_7 = arith.constant 0 : index
    %11 = vector.load %arg4[%c48, %c0_7] : memref<300x48xbf16, #tpu.memory_space<vmem>>, vector<12x48xbf16>
    tpu.vector_store %arg4[%c48, %c0_7], %10 {strides = array<i32>} : memref<300x48xbf16, #tpu.memory_space<vmem>>, vector<12x48xbf16>,
    %12 = vector.extract_strided_slice %1 {offsets = [0, 8], sizes = [12, 48], strides = [1, 1]} : vector<12x88xbf16> to vector<12x48xbf16>
    %c60 = arith.constant 60 : index
    %c0_8 = arith.constant 0 : index
    %13 = vector.load %arg4[%c60, %c0_8] : memref<300x48xbf16, #tpu.memory_space<vmem>>, vector<12x48xbf16>
    tpu.vector_store %arg4[%c60, %c0_8], %12 {strides = array<i32>} : memref<300x48xbf16, #tpu.memory_space<vmem>>, vector<12x48xbf16>,
    %14 = vector.extract_strided_slice %1 {offsets = [0, 9], sizes = [12, 48], strides = [1, 1]} : vector<12x88xbf16> to vector<12x48xbf16>
    %c72 = arith.constant 72 : index
    %c0_9 = arith.constant 0 : index
    %15 = vector.load %arg4[%c72, %c0_9] : memref<300x48xbf16, #tpu.memory_space<vmem>>, vector<12x48xbf16>
    tpu.vector_store %arg4[%c72, %c0_9], %14 {strides = array<i32>} : memref<300x48xbf16, #tpu.memory_space<vmem>>, vector<12x48xbf16>,
    %16 = vector.extract_strided_slice %1 {offsets = [0, 10], sizes = [12, 48], strides = [1, 1]} : vector<12x88xbf16> to vector<12x48xbf16>
    %c84 = arith.constant 84 : index
    %c0_10 = arith.constant 0 : index
    %17 = vector.load %arg4[%c84, %c0_10] : memref<300x48xbf16, #tpu.memory_space<vmem>>, vector<12x48xbf16>
    tpu.vector_store %arg4[%c84, %c0_10], %16 {strides = array<i32>} : memref<300x48xbf16, #tpu.memory_space<vmem>>, vector<12x48xbf16>,
    %18 = vector.extract_strided_slice %1 {offsets = [0, 11], sizes = [12, 48], strides = [1, 1]} : vector<12x88xbf16> to vector<12x48xbf16>
    %c96 = arith.constant 96 : index
    %c0_11 = arith.constant 0 : index
    %19 = vector.load %arg4[%c96, %c0_11] : memref<300x48xbf16, #tpu.memory_space<vmem>>, vector<12x48xbf16>
    tpu.vector_store %arg4[%c96, %c0_11], %18 {strides = array<i32>} : memref<300x48xbf16, #tpu.memory_space<vmem>>, vector<12x48xbf16>,
    %20 = vector.extract_strided_slice %1 {offsets = [0, 12], sizes = [12, 48], strides = [1, 1]} : vector<12x88xbf16> to vector<12x48xbf16>
    %c108 = arith.constant 108 : index
    %c0_12 = arith.constant 0 : index
    %21 = vector.load %arg4[%c108, %c0_12] : memref<300x48xbf16, #tpu.memory_space<vmem>>, vector<12x48xbf16>
    tpu.vector_store %arg4[%c108, %c0_12], %20 {strides = array<i32>} : memref<300x48xbf16, #tpu.memory_space<vmem>>, vector<12x48xbf16>,
    %22 = vector.extract_strided_slice %1 {offsets = [0, 16], sizes = [12, 48], strides = [1, 1]} : vector<12x88xbf16> to vector<12x48xbf16>
    %c120 = arith.constant 120 : index
    %c0_13 = arith.constant 0 : index
    %23 = vector.load %arg4[%c120, %c0_13] : memref<300x48xbf16, #tpu.memory_space<vmem>>, vector<12x48xbf16>
    tpu.vector_store %arg4[%c120, %c0_13], %22 {strides = array<i32>} : memref<300x48xbf16, #tpu.memory_space<vmem>>, vector<12x48xbf16>,
    %24 = vector.extract_strided_slice %1 {offsets = [0, 17], sizes = [12, 48], strides = [1, 1]} : vector<12x88xbf16> to vector<12x48xbf16>
    %c132 = arith.constant 132 : index
    %c0_14 = arith.constant 0 : index
    %25 = vector.load %arg4[%c132, %c0_14] : memref<300x48xbf16, #tpu.memory_space<vmem>>, vector<12x48xbf16>
    tpu.vector_store %arg4[%c132, %c0_14], %24 {strides = array<i32>} : memref<300x48xbf16, #tpu.memory_space<vmem>>, vector<12x48xbf16>,
    %26 = vector.extract_strided_slice %1 {offsets = [0, 18], sizes = [12, 48], strides = [1, 1]} : vector<12x88xbf16> to vector<12x48xbf16>
    %c144 = arith.constant 144 : index
    %c0_15 = arith.constant 0 : index
    %27 = vector.load %arg4[%c144, %c0_15] : memref<300x48xbf16, #tpu.memory_space<vmem>>, vector<12x48xbf16>
    tpu.vector_store %arg4[%c144, %c0_15], %26 {strides = array<i32>} : memref<300x48xbf16, #tpu.memory_space<vmem>>, vector<12x48xbf16>,
    %28 = vector.extract_strided_slice %1 {offsets = [0, 19], sizes = [12, 48], strides = [1, 1]} : vector<12x88xbf16> to vector<12x48xbf16>
    %c156 = arith.constant 156 : index
    %c0_16 = arith.constant 0 : index
    %29 = vector.load %arg4[%c156, %c0_16] : memref<300x48xbf16, #tpu.memory_space<vmem>>, vector<12x48xbf16>
    tpu.vector_store %arg4[%c156, %c0_16], %28 {strides = array<i32>} : memref<300x48xbf16, #tpu.memory_space<vmem>>, vector<12x48xbf16>,
    %30 = vector.extract_strided_slice %1 {offsets = [0, 20], sizes = [12, 48], strides = [1, 1]} : vector<12x88xbf16> to vector<12x48xbf16>
    %c168 = arith.constant 168 : index
    %c0_17 = arith.constant 0 : index
    %31 = vector.load %arg4[%c168, %c0_17] : memref<300x48xbf16, #tpu.memory_space<vmem>>, vector<12x48xbf16>
    tpu.vector_store %arg4[%c168, %c0_17], %30 {strides = array<i32>} : memref<300x48xbf16, #tpu.memory_space<vmem>>, vector<12x48xbf16>,
    %32 = vector.extract_strided_slice %1 {offsets = [0, 24], sizes = [12, 48], strides = [1, 1]} : vector<12x88xbf16> to vector<12x48xbf16>
    %c180 = arith.constant 180 : index
    %c0_18 = arith.constant 0 : index
    %33 = vector.load %arg4[%c180, %c0_18] : memref<300x48xbf16, #tpu.memory_space<vmem>>, vector<12x48xbf16>
    tpu.vector_store %arg4[%c180, %c0_18], %32 {strides = array<i32>} : memref<300x48xbf16, #tpu.memory_space<vmem>>, vector<12x48xbf16>,
    %34 = vector.extract_strided_slice %1 {offsets = [0, 25], sizes = [12, 48], strides = [1, 1]} : vector<12x88xbf16> to vector<12x48xbf16>
    %c192 = arith.constant 192 : index
    %c0_19 = arith.constant 0 : index
    %35 = vector.load %arg4[%c192, %c0_19] : memref<300x48xbf16, #tpu.memory_space<vmem>>, vector<12x48xbf16>
    tpu.vector_store %arg4[%c192, %c0_19], %34 {strides = array<i32>} : memref<300x48xbf16, #tpu.memory_space<vmem>>, vector<12x48xbf16>,
    %36 = vector.extract_strided_slice %1 {offsets = [0, 26], sizes = [12, 48], strides = [1, 1]} : vector<12x88xbf16> to vector<12x48xbf16>
    %c204 = arith.constant 204 : index
    %c0_20 = arith.constant 0 : index
    %37 = vector.load %arg4[%c204, %c0_20] : memref<300x48xbf16, #tpu.memory_space<vmem>>, vector<12x48xbf16>
    tpu.vector_store %arg4[%c204, %c0_20], %36 {strides = array<i32>} : memref<300x48xbf16, #tpu.memory_space<vmem>>, vector<12x48xbf16>,
    %38 = vector.extract_strided_slice %1 {offsets = [0, 27], sizes = [12, 48], strides = [1, 1]} : vector<12x88xbf16> to vector<12x48xbf16>
    %c216 = arith.constant 216 : index
    %c0_21 = arith.constant 0 : index
    %39 = vector.load %arg4[%c216, %c0_21] : memref<300x48xbf16, #tpu.memory_space<vmem>>, vector<12x48xbf16>
    tpu.vector_store %arg4[%c216, %c0_21], %38 {strides = array<i32>} : memref<300x48xbf16, #tpu.memory_space<vmem>>, vector<12x48xbf16>,
    %40 = vector.extract_strided_slice %1 {offsets = [0, 28], sizes = [12, 48], strides = [1, 1]} : vector<12x88xbf16> to vector<12x48xbf16>
    %c228 = arith.constant 228 : index
    %c0_22 = arith.constant 0 : index
    %41 = vector.load %arg4[%c228, %c0_22] : memref<300x48xbf16, #tpu.memory_space<vmem>>, vector<12x48xbf16>
    tpu.vector_store %arg4[%c228, %c0_22], %40 {strides = array<i32>} : memref<300x48xbf16, #tpu.memory_space<vmem>>, vector<12x48xbf16>,
    %42 = vector.extract_strided_slice %1 {offsets = [0, 32], sizes = [12, 48], strides = [1, 1]} : vector<12x88xbf16> to vector<12x48xbf16>
    %c240 = arith.constant 240 : index
    %c0_23 = arith.constant 0 : index
    %43 = vector.load %arg4[%c240, %c0_23] : memref<300x48xbf16, #tpu.memory_space<vmem>>, vector<12x48xbf16>
    tpu.vector_store %arg4[%c240, %c0_23], %42 {strides = array<i32>} : memref<300x48xbf16, #tpu.memory_space<vmem>>, vector<12x48xbf16>,
    %44 = vector.extract_strided_slice %1 {offsets = [0, 33], sizes = [12, 48], strides = [1, 1]} : vector<12x88xbf16> to vector<12x48xbf16>
    %c252 = arith.constant 252 : index
    %c0_24 = arith.constant 0 : index
    %45 = vector.load %arg4[%c252, %c0_24] : memref<300x48xbf16, #tpu.memory_space<vmem>>, vector<12x48xbf16>
    tpu.vector_store %arg4[%c252, %c0_24], %44 {strides = array<i32>} : memref<300x48xbf16, #tpu.memory_space<vmem>>, vector<12x48xbf16>,
    %46 = vector.extract_strided_slice %1 {offsets = [0, 34], sizes = [12, 48], strides = [1, 1]} : vector<12x88xbf16> to vector<12x48xbf16>
    %c264 = arith.constant 264 : index
    %c0_25 = arith.constant 0 : index
    %47 = vector.load %arg4[%c264, %c0_25] : memref<300x48xbf16, #tpu.memory_space<vmem>>, vector<12x48xbf16>
    tpu.vector_store %arg4[%c264, %c0_25], %46 {strides = array<i32>} : memref<300x48xbf16, #tpu.memory_space<vmem>>, vector<12x48xbf16>,
    %48 = vector.extract_strided_slice %1 {offsets = [0, 35], sizes = [12, 48], strides = [1, 1]} : vector<12x88xbf16> to vector<12x48xbf16>
    %c276 = arith.constant 276 : index
    %c0_26 = arith.constant 0 : index
    %49 = vector.load %arg4[%c276, %c0_26] : memref<300x48xbf16, #tpu.memory_space<vmem>>, vector<12x48xbf16>
    tpu.vector_store %arg4[%c276, %c0_26], %48 {strides = array<i32>} : memref<300x48xbf16, #tpu.memory_space<vmem>>, vector<12x48xbf16>,
    %50 = vector.extract_strided_slice %1 {offsets = [0, 36], sizes = [12, 48], strides = [1, 1]} : vector<12x88xbf16> to vector<12x48xbf16>
    %c288 = arith.constant 288 : index
    %c0_27 = arith.constant 0 : index
    %51 = vector.load %arg4[%c288, %c0_27] : memref<300x48xbf16, #tpu.memory_space<vmem>>, vector<12x48xbf16>
    tpu.vector_store %arg4[%c288, %c0_27], %50 {strides = array<i32>} : memref<300x48xbf16, #tpu.memory_space<vmem>>, vector<12x48xbf16>,
    %c0_28 = arith.constant 0 : index
    %c0_29 = arith.constant 0 : index
    %52 = vector.load %arg2[%c0_28, %c0_29] : memref<12x300xbf16, #tpu.memory_space<vmem>>, vector<12x300xbf16>
    %c0_30 = arith.constant 0 : index
    %c0_31 = arith.constant 0 : index
    %53 = vector.load %arg4[%c0_30, %c0_31] : memref<300x48xbf16, #tpu.memory_space<vmem>>, vector<300x48xbf16>
    %cst = arith.constant dense<0.000000e+00> : vector<12x48xf32>
    %54 = tpu.matmul %52, %53, %cst {dimension_numbers = #tpu.dot_dimension_numbers<[1], [0], [0], [1], [0, 0, 1, 1], [], []>} : vector<12x300xbf16>, vector<300x48xbf16>, vector<12x48xf32> -> vector<12x48xf32>
    %55 = vector.extract_strided_slice %54 {offsets = [0, 0], sizes = [12, 40], strides = [1, 1]} : vector<12x48xf32> to vector<12x40xf32>
    %56 = vector.extract_strided_slice %54 {offsets = [0, 8], sizes = [12, 40], strides = [1, 1]} : vector<12x48xf32> to vector<12x40xf32>
    %57 = arith.addf %55, %56 : vector<12x40xf32>
    %58 = vector.extract_strided_slice %57 {offsets = [0, 0], sizes = [12, 32], strides = [1, 1]} : vector<12x40xf32> to vector<12x32xf32>
    %59 = vector.extract_strided_slice %57 {offsets = [0, 1], sizes = [12, 32], strides = [1, 1]} : vector<12x40xf32> to vector<12x32xf32>
    %60 = arith.addf %58, %59 : vector<12x32xf32>
    %61 = arith.truncf %60 : vector<12x32xf32> to vector<12x32xbf16>
    %c0_32 = arith.constant 0 : index
    %c0_33 = arith.constant 0 : index
    %c0_34 = arith.constant 0 : index
    %62 = vector.load %arg3[%c0_32, %c0_33, %c0_34] : memref<1x12x32xbf16, #tpu.memory_space<vmem>>, vector<1x12x32xbf16>
    %63 = vector.shape_cast %62 : vector<1x12x32xbf16> to vector<12x32xbf16>
    %64 = vector.shape_cast %61 : vector<12x32xbf16> to vector<1x12x32xbf16>
    tpu.vector_store %arg3[%c0_32, %c0_33, %c0_34], %64 {strides = array<i32>} : memref<1x12x32xbf16, #tpu.memory_space<vmem>>, vector<1x12x32xbf16>,
    return
  }
  func.func @transform_0(%arg0: i32) -> (i32, i32, i32) {
    %c0_i32 = arith.constant 0 : i32
    %c0_i32_0 = arith.constant 0 : i32
    %c0_i32_1 = arith.constant 0 : i32
    return %arg0, %c0_i32, %c0_i32_0 : i32, i32, i32
  }
  func.func @transform_1(%arg0: i32) -> (i32, i32) {
    %c0_i32 = arith.constant 0 : i32
    %c0_i32_0 = arith.constant 0 : i32
    %c0_i32_1 = arith.constant 0 : i32
    return %c0_i32, %c0_i32_0 : i32, i32
  }
  func.func @transform_2(%arg0: i32) -> (i32, i32, i32) {
    %c0_i32 = arith.constant 0 : i32
    %c0_i32_0 = arith.constant 0 : i32
    %c0_i32_1 = arith.constant 0 : i32
    return %arg0, %c0_i32, %c0_i32_0 : i32, i32, i32
  }
}

module attributes {stable_mosaic.version = 11 : i64} {
  func.func @_head_kernel(%arg0: i32, %arg1: memref<256x64xf32, #tpu.memory_space<vmem>>, %arg2: memref<64x64xf32, #tpu.memory_space<vmem>>, %arg3: memref<1x64xf32, #tpu.memory_space<vmem>>, %arg4: memref<1x64xf32, #tpu.memory_space<vmem>>, %arg5: memref<1x1xf32, #tpu.memory_space<vmem>>, %arg6: memref<256x1xf32, #tpu.memory_space<vmem>>) attributes {dimension_semantics = [#tpu.dimension_semantics<parallel>], iteration_bounds = array<i64: 1>, scalar_prefetch = 0 : i64, scratch_operands = 0 : i64, tpu.core_type = #tpu.core_type<tc>, window_params = [{transform_indices = @transform_0, window_bounds = array<i64: 256, 64>}, {pipeline_mode = #tpu.pipeline_mode<synchronous>, transform_indices = @transform_1, window_bounds = array<i64: 64, 64>}, {pipeline_mode = #tpu.pipeline_mode<synchronous>, transform_indices = @transform_2, window_bounds = array<i64: 1, 64>}, {pipeline_mode = #tpu.pipeline_mode<synchronous>, transform_indices = @transform_3, window_bounds = array<i64: 1, 64>}, {pipeline_mode = #tpu.pipeline_mode<synchronous>, transform_indices = @transform_4, window_bounds = array<i64: 1, 1>}, {transform_indices = @transform_5, window_bounds = array<i64: 256, 1>}]} {
    %c0 = arith.constant 0 : index
    %c0_0 = arith.constant 0 : index
    %0 = vector.load %arg1[%c0, %c0_0] : memref<256x64xf32, #tpu.memory_space<vmem>>, vector<256x64xf32>
    %c0_1 = arith.constant 0 : index
    %c0_2 = arith.constant 0 : index
    %1 = vector.load %arg2[%c0_1, %c0_2] : memref<64x64xf32, #tpu.memory_space<vmem>>, vector<64x64xf32>
    %cst = arith.constant dense<0.000000e+00> : vector<256x64xf32>
    %2 = tpu.matmul %0, %1, %cst {dimension_numbers = #tpu.dot_dimension_numbers<[1], [0], [0], [1], [0, 0, 1, 1], [], []>} : vector<256x64xf32>, vector<64x64xf32>, vector<256x64xf32> -> vector<256x64xf32>
    %c0_3 = arith.constant 0 : index
    %c0_4 = arith.constant 0 : index
    %3 = vector.load %arg3[%c0_3, %c0_4] : memref<1x64xf32, #tpu.memory_space<vmem>>, vector<1x64xf32>
    %4 = vector.broadcast %3 : vector<1x64xf32> to vector<256x64xf32>
    %5 = arith.addf %2, %4 : vector<256x64xf32>
    %cst_5 = arith.constant 0.000000e+00 : f32
    %6 = vector.broadcast %cst_5 : f32 to vector<256x64xf32>
    %7 = arith.maximumf %5, %6 : vector<256x64xf32>
    %c0_6 = arith.constant 0 : index
    %c0_7 = arith.constant 0 : index
    %8 = vector.load %arg4[%c0_6, %c0_7] : memref<1x64xf32, #tpu.memory_space<vmem>>, vector<1x64xf32>
    %9 = vector.broadcast %8 : vector<1x64xf32> to vector<256x64xf32>
    %10 = arith.mulf %7, %9 : vector<256x64xf32>
    %cst_8 = arith.constant dense<0.000000e+00> : vector<256xf32>
    %11 = vector.multi_reduction <add>, %10, %cst_8 [1] : vector<256x64xf32> to vector<256xf32>
    %12 = vector.shape_cast %11 : vector<256xf32> to vector<256x1xf32>
    %c0_9 = arith.constant 0 : index
    %c0_10 = arith.constant 0 : index
    %13 = vector.load %arg5[%c0_9, %c0_10] : memref<1x1xf32, #tpu.memory_space<vmem>>, vector<1x1xf32>
    %14 = vector.broadcast %13 : vector<1x1xf32> to vector<256x1xf32>
    %15 = arith.addf %12, %14 : vector<256x1xf32>
    %cst_11 = arith.constant 0.000000e+00 : f32
    %16 = vector.broadcast %cst_11 : f32 to vector<256x1xf32>
    %17 = arith.maximumf %15, %16 : vector<256x1xf32>
    %c0_12 = arith.constant 0 : index
    %c0_13 = arith.constant 0 : index
    %18 = vector.load %arg6[%c0_12, %c0_13] : memref<256x1xf32, #tpu.memory_space<vmem>>, vector<256x1xf32>
    tpu.vector_store %arg6[%c0_12, %c0_13], %17 {strides = array<i32>} : memref<256x1xf32, #tpu.memory_space<vmem>>, vector<256x1xf32>,
    return
  }
  func.func @transform_0(%arg0: i32) -> (i32, i32) {
    %c0_i32 = arith.constant 0 : i32
    %c0_i32_0 = arith.constant 0 : i32
    return %arg0, %c0_i32 : i32, i32
  }
  func.func @transform_1(%arg0: i32) -> (i32, i32) {
    %c0_i32 = arith.constant 0 : i32
    %c0_i32_0 = arith.constant 0 : i32
    %c0_i32_1 = arith.constant 0 : i32
    return %c0_i32, %c0_i32_0 : i32, i32
  }
  func.func @transform_2(%arg0: i32) -> (i32, i32) {
    %c0_i32 = arith.constant 0 : i32
    %c0_i32_0 = arith.constant 0 : i32
    %c0_i32_1 = arith.constant 0 : i32
    return %c0_i32, %c0_i32_0 : i32, i32
  }
  func.func @transform_3(%arg0: i32) -> (i32, i32) {
    %c0_i32 = arith.constant 0 : i32
    %c0_i32_0 = arith.constant 0 : i32
    %c0_i32_1 = arith.constant 0 : i32
    return %c0_i32, %c0_i32_0 : i32, i32
  }
  func.func @transform_4(%arg0: i32) -> (i32, i32) {
    %c0_i32 = arith.constant 0 : i32
    %c0_i32_0 = arith.constant 0 : i32
    %c0_i32_1 = arith.constant 0 : i32
    return %c0_i32, %c0_i32_0 : i32, i32
  }
  func.func @transform_5(%arg0: i32) -> (i32, i32) {
    %c0_i32 = arith.constant 0 : i32
    %c0_i32_0 = arith.constant 0 : i32
    return %arg0, %c0_i32 : i32, i32
  }
}

module attributes {stable_mosaic.version = 11 : i64} {
  func.func @kernel(%arg0: i32, %arg1: i32, %arg2: memref<1x1x4x64xf32, #tpu.memory_space<vmem>>, %arg3: memref<256x64xf32, #tpu.memory_space<vmem>>, %arg4: memref<1x1x1x64xf32, #tpu.memory_space<vmem>>, %arg5: memref<1x64xf32, #tpu.memory_space<vmem>>, %arg6: memref<1x64xf32, #tpu.memory_space<vmem>>) attributes {dimension_semantics = [#tpu.dimension_semantics<parallel>, #tpu.dimension_semantics<arbitrary>], iteration_bounds = array<i64: 2, 4>, scalar_prefetch = 0 : i64, scratch_operands = 2 : i64, tpu.core_type = #tpu.core_type<tc>, window_params = [{transform_indices = @transform_0, window_bounds = array<i64: 1, 1, 4, 64>}, {pipeline_mode = #tpu.pipeline_mode<synchronous>, transform_indices = @transform_1, window_bounds = array<i64: 256, 64>}, {transform_indices = @transform_2, window_bounds = array<i64: 1, 1, 1, 64>}]} {
    %c0_i32 = arith.constant 0 : i32
    %0 = arith.cmpi eq, %arg1, %c0_i32 : i32
    %1 = arith.extui %0 : i1 to i32
    %c0_i32_0 = arith.constant 0 : i32
    %2 = arith.cmpi ne, %1, %c0_i32_0 : i32
    scf.if %2 {
      %cst_24 = arith.constant 0.000000e+00 : f32
      %50 = vector.broadcast %cst_24 : f32 to vector<1x64xf32>
      %c0_25 = arith.constant 0 : index
      %c0_26 = arith.constant 0 : index
      %51 = vector.load %arg5[%c0_25, %c0_26] : memref<1x64xf32, #tpu.memory_space<vmem>>, vector<1x64xf32>
      tpu.vector_store %arg5[%c0_25, %c0_26], %50 {strides = array<i32>} : memref<1x64xf32, #tpu.memory_space<vmem>>, vector<1x64xf32>,
      %cst_27 = arith.constant 0.000000e+00 : f32
      %52 = vector.broadcast %cst_27 : f32 to vector<1x64xf32>
      %c0_28 = arith.constant 0 : index
      %c0_29 = arith.constant 0 : index
      %53 = vector.load %arg6[%c0_28, %c0_29] : memref<1x64xf32, #tpu.memory_space<vmem>>, vector<1x64xf32>
      tpu.vector_store %arg6[%c0_28, %c0_29], %52 {strides = array<i32>} : memref<1x64xf32, #tpu.memory_space<vmem>>, vector<1x64xf32>,
    } else {
    }
    %c0 = arith.constant 0 : index
    %c0_1 = arith.constant 0 : index
    %3 = vector.load %arg5[%c0, %c0_1] : memref<1x64xf32, #tpu.memory_space<vmem>>, vector<1x64xf32>
    %c0_2 = arith.constant 0 : index
    %c0_3 = arith.constant 0 : index
    %c0_4 = arith.constant 0 : index
    %c0_5 = arith.constant 0 : index
    %4 = vector.load %arg2[%c0_2, %c0_3, %c0_4, %c0_5] : memref<1x1x4x64xf32, #tpu.memory_space<vmem>>, vector<1x1x4x64xf32>
    %5 = vector.shape_cast %4 : vector<1x1x4x64xf32> to vector<4x64xf32>
    %c0_6 = arith.constant 0 : index
    %c0_7 = arith.constant 0 : index
    %6 = vector.load %arg3[%c0_6, %c0_7] : memref<256x64xf32, #tpu.memory_space<vmem>>, vector<256x64xf32>
    %7 = vector.extract_strided_slice %5 {offsets = [0, 0], sizes = [1, 64], strides = [1, 1]} : vector<4x64xf32> to vector<1x64xf32>
    %8 = vector.extract_strided_slice %6 {offsets = [0, 0], sizes = [64, 64], strides = [1, 1]} : vector<256x64xf32> to vector<64x64xf32>
    %cst = arith.constant dense<0.000000e+00> : vector<1x64xf32>
    %9 = tpu.matmul %3, %8, %cst {dimension_numbers = #tpu.dot_dimension_numbers<[1], [0], [0], [1], [0, 0, 1, 1], [], []>} : vector<1x64xf32>, vector<64x64xf32>, vector<1x64xf32> -> vector<1x64xf32>
    %10 = arith.addf %7, %9 : vector<1x64xf32>
    %11 = arith.negf %10 : vector<1x64xf32>
    %12 = math.exp %11 : vector<1x64xf32>
    %cst_8 = arith.constant 1.000000e+00 : f32
    %13 = vector.broadcast %cst_8 : f32 to vector<1x64xf32>
    %14 = arith.addf %13, %12 : vector<1x64xf32>
    %15 = arith.divf %13, %14 : vector<1x64xf32>
    %16 = vector.extract_strided_slice %5 {offsets = [1, 0], sizes = [1, 64], strides = [1, 1]} : vector<4x64xf32> to vector<1x64xf32>
    %17 = vector.extract_strided_slice %6 {offsets = [64, 0], sizes = [64, 64], strides = [1, 1]} : vector<256x64xf32> to vector<64x64xf32>
    %cst_9 = arith.constant dense<0.000000e+00> : vector<1x64xf32>
    %18 = tpu.matmul %3, %17, %cst_9 {dimension_numbers = #tpu.dot_dimension_numbers<[1], [0], [0], [1], [0, 0, 1, 1], [], []>} : vector<1x64xf32>, vector<64x64xf32>, vector<1x64xf32> -> vector<1x64xf32>
    %19 = arith.addf %16, %18 : vector<1x64xf32>
    %20 = arith.negf %19 : vector<1x64xf32>
    %21 = math.exp %20 : vector<1x64xf32>
    %cst_10 = arith.constant 1.000000e+00 : f32
    %22 = vector.broadcast %cst_10 : f32 to vector<1x64xf32>
    %23 = arith.addf %22, %21 : vector<1x64xf32>
    %24 = arith.divf %22, %23 : vector<1x64xf32>
    %25 = vector.extract_strided_slice %5 {offsets = [2, 0], sizes = [1, 64], strides = [1, 1]} : vector<4x64xf32> to vector<1x64xf32>
    %26 = vector.extract_strided_slice %6 {offsets = [128, 0], sizes = [64, 64], strides = [1, 1]} : vector<256x64xf32> to vector<64x64xf32>
    %cst_11 = arith.constant dense<0.000000e+00> : vector<1x64xf32>
    %27 = tpu.matmul %3, %26, %cst_11 {dimension_numbers = #tpu.dot_dimension_numbers<[1], [0], [0], [1], [0, 0, 1, 1], [], []>} : vector<1x64xf32>, vector<64x64xf32>, vector<1x64xf32> -> vector<1x64xf32>
    %28 = arith.addf %25, %27 : vector<1x64xf32>
    %29 = math.tanh %28 : vector<1x64xf32>
    %30 = vector.extract_strided_slice %5 {offsets = [3, 0], sizes = [1, 64], strides = [1, 1]} : vector<4x64xf32> to vector<1x64xf32>
    %31 = vector.extract_strided_slice %6 {offsets = [192, 0], sizes = [64, 64], strides = [1, 1]} : vector<256x64xf32> to vector<64x64xf32>
    %cst_12 = arith.constant dense<0.000000e+00> : vector<1x64xf32>
    %32 = tpu.matmul %3, %31, %cst_12 {dimension_numbers = #tpu.dot_dimension_numbers<[1], [0], [0], [1], [0, 0, 1, 1], [], []>} : vector<1x64xf32>, vector<64x64xf32>, vector<1x64xf32> -> vector<1x64xf32>
    %33 = arith.addf %30, %32 : vector<1x64xf32>
    %34 = arith.negf %33 : vector<1x64xf32>
    %35 = math.exp %34 : vector<1x64xf32>
    %cst_13 = arith.constant 1.000000e+00 : f32
    %36 = vector.broadcast %cst_13 : f32 to vector<1x64xf32>
    %37 = arith.addf %36, %35 : vector<1x64xf32>
    %38 = arith.divf %36, %37 : vector<1x64xf32>
    %c0_14 = arith.constant 0 : index
    %c0_15 = arith.constant 0 : index
    %39 = vector.load %arg6[%c0_14, %c0_15] : memref<1x64xf32, #tpu.memory_space<vmem>>, vector<1x64xf32>
    %40 = arith.mulf %24, %39 : vector<1x64xf32>
    %41 = arith.mulf %15, %29 : vector<1x64xf32>
    %42 = arith.addf %40, %41 : vector<1x64xf32>
    %43 = math.tanh %42 : vector<1x64xf32>
    %44 = arith.mulf %38, %43 : vector<1x64xf32>
    %c0_16 = arith.constant 0 : index
    %c0_17 = arith.constant 0 : index
    %45 = vector.load %arg6[%c0_16, %c0_17] : memref<1x64xf32, #tpu.memory_space<vmem>>, vector<1x64xf32>
    tpu.vector_store %arg6[%c0_16, %c0_17], %42 {strides = array<i32>} : memref<1x64xf32, #tpu.memory_space<vmem>>, vector<1x64xf32>,
    %c0_18 = arith.constant 0 : index
    %c0_19 = arith.constant 0 : index
    %46 = vector.load %arg5[%c0_18, %c0_19] : memref<1x64xf32, #tpu.memory_space<vmem>>, vector<1x64xf32>
    tpu.vector_store %arg5[%c0_18, %c0_19], %44 {strides = array<i32>} : memref<1x64xf32, #tpu.memory_space<vmem>>, vector<1x64xf32>,
    %c0_20 = arith.constant 0 : index
    %c0_21 = arith.constant 0 : index
    %c0_22 = arith.constant 0 : index
    %c0_23 = arith.constant 0 : index
    %47 = vector.load %arg4[%c0_20, %c0_21, %c0_22, %c0_23] : memref<1x1x1x64xf32, #tpu.memory_space<vmem>>, vector<1x1x1x64xf32>
    %48 = vector.shape_cast %47 : vector<1x1x1x64xf32> to vector<1x64xf32>
    %49 = vector.shape_cast %44 : vector<1x64xf32> to vector<1x1x1x64xf32>
    tpu.vector_store %arg4[%c0_20, %c0_21, %c0_22, %c0_23], %49 {strides = array<i32>} : memref<1x1x1x64xf32, #tpu.memory_space<vmem>>, vector<1x1x1x64xf32>,
    return
  }
  func.func @transform_0(%arg0: i32, %arg1: i32) -> (i32, i32, i32, i32) {
    %c0_i32 = arith.constant 0 : i32
    %c0_i32_0 = arith.constant 0 : i32
    %c0_i32_1 = arith.constant 0 : i32
    return %arg0, %arg1, %c0_i32, %c0_i32_0 : i32, i32, i32, i32
  }
  func.func @transform_1(%arg0: i32, %arg1: i32) -> (i32, i32) {
    %c0_i32 = arith.constant 0 : i32
    %c0_i32_0 = arith.constant 0 : i32
    %c0_i32_1 = arith.constant 0 : i32
    return %c0_i32, %c0_i32_0 : i32, i32
  }
  func.func @transform_2(%arg0: i32, %arg1: i32) -> (i32, i32, i32, i32) {
    %c0_i32 = arith.constant 0 : i32
    %c0_i32_0 = arith.constant 0 : i32
    %c0_i32_1 = arith.constant 0 : i32
    return %arg0, %arg1, %c0_i32, %c0_i32_0 : i32, i32, i32, i32
  }
}

module attributes {stable_mosaic.version = 11 : i64} {
  func.func @_matmul_bias_kernel(%arg0: i32, %arg1: memref<256x48xbf16, #tpu.memory_space<vmem>>, %arg2: memref<48x256xbf16, #tpu.memory_space<vmem>>, %arg3: memref<1x256xf32, #tpu.memory_space<vmem>>, %arg4: memref<256x256xf32, #tpu.memory_space<vmem>>) attributes {dimension_semantics = [#tpu.dimension_semantics<parallel>], iteration_bounds = array<i64: 1>, scalar_prefetch = 0 : i64, scratch_operands = 0 : i64, tpu.core_type = #tpu.core_type<tc>, window_params = [{transform_indices = @transform_0, window_bounds = array<i64: 256, 48>}, {pipeline_mode = #tpu.pipeline_mode<synchronous>, transform_indices = @transform_1, window_bounds = array<i64: 48, 256>}, {pipeline_mode = #tpu.pipeline_mode<synchronous>, transform_indices = @transform_2, window_bounds = array<i64: 1, 256>}, {transform_indices = @transform_3, window_bounds = array<i64: 256, 256>}]} {
    %c0 = arith.constant 0 : index
    %c0_0 = arith.constant 0 : index
    %0 = vector.load %arg1[%c0, %c0_0] : memref<256x48xbf16, #tpu.memory_space<vmem>>, vector<256x48xbf16>
    %c0_1 = arith.constant 0 : index
    %c0_2 = arith.constant 0 : index
    %1 = vector.load %arg2[%c0_1, %c0_2] : memref<48x256xbf16, #tpu.memory_space<vmem>>, vector<48x256xbf16>
    %cst = arith.constant dense<0.000000e+00> : vector<256x256xf32>
    %2 = tpu.matmul %0, %1, %cst {dimension_numbers = #tpu.dot_dimension_numbers<[1], [0], [0], [1], [0, 0, 1, 1], [], []>} : vector<256x48xbf16>, vector<48x256xbf16>, vector<256x256xf32> -> vector<256x256xf32>
    %c0_3 = arith.constant 0 : index
    %c0_4 = arith.constant 0 : index
    %3 = vector.load %arg3[%c0_3, %c0_4] : memref<1x256xf32, #tpu.memory_space<vmem>>, vector<1x256xf32>
    %4 = vector.broadcast %3 : vector<1x256xf32> to vector<256x256xf32>
    %5 = arith.addf %2, %4 : vector<256x256xf32>
    %c0_5 = arith.constant 0 : index
    %c0_6 = arith.constant 0 : index
    %6 = vector.load %arg4[%c0_5, %c0_6] : memref<256x256xf32, #tpu.memory_space<vmem>>, vector<256x256xf32>
    tpu.vector_store %arg4[%c0_5, %c0_6], %5 {strides = array<i32>} : memref<256x256xf32, #tpu.memory_space<vmem>>, vector<256x256xf32>,
    return
  }
  func.func @transform_0(%arg0: i32) -> (i32, i32) {
    %c0_i32 = arith.constant 0 : i32
    %c0_i32_0 = arith.constant 0 : i32
    return %arg0, %c0_i32 : i32, i32
  }
  func.func @transform_1(%arg0: i32) -> (i32, i32) {
    %c0_i32 = arith.constant 0 : i32
    %c0_i32_0 = arith.constant 0 : i32
    %c0_i32_1 = arith.constant 0 : i32
    return %c0_i32, %c0_i32_0 : i32, i32
  }
  func.func @transform_2(%arg0: i32) -> (i32, i32) {
    %c0_i32 = arith.constant 0 : i32
    %c0_i32_0 = arith.constant 0 : i32
    %c0_i32_1 = arith.constant 0 : i32
    return %c0_i32, %c0_i32_0 : i32, i32
  }
  func.func @transform_3(%arg0: i32) -> (i32, i32) {
    %c0_i32 = arith.constant 0 : i32
    %c0_i32_0 = arith.constant 0 : i32
    return %arg0, %c0_i32 : i32, i32
  }
}

</mosaic_0001>

<llo_original>
// kernel: dof_cnn_lstm_forward.6
$region0: #{dof_cnn_lstm_forward.6}
  #allocation0 [shape = 'u32[]', space=smem, size = 0x4, offset = 0x4, fixed_abs, tag = 'smem constant byte address 0x4 - core index']
  #allocation1 [shape = 'u32[144,128]{1,0:T(1,128)}', space=vmem, size = 0x12000, scoped, tag = 'internal scratch']
  #allocation2 [shape = 'bf16[100,1812]{1,0:T(8,128)(2,1)}', space=vmem, size = 0x61800, scoped, tag = 'scratch operand']
  %s0 = inlined_call_operand.vmem [shape: bf16[8,4,1996], index: 0, kind: input, shape index: {}]
  %s1 = inlined_call_operand.vmem [shape: bf16[12,100], index: 1, kind: input, shape index: {}]
  %s2 = inlined_call_operand.vmem [shape: bf16[8,12,1760], index: 2, kind: output, shape index: {}]
  %s3 = sld [smem:[#allocation0]]
  $region41: #{dof_cnn_lstm_forward.6} parent=0
    _
  %s5 = ssub.s32 1, %s3
  %s6 = scalar_select 0, %s5, %s3
  loop: start=0, step=1, limit=10
  $region2: #{dof_cnn_lstm_forward.6} parent=0 // loop_pre_header
    _
  $region3: #{dof_cnn_lstm_forward.6} parent=0 // loop_header
    %s8 = sphi 0, %s12
    %p9 = scmp.ge.s32.totalorder %s8, 10
    %s18 = sphi 0, %s20
    %s21 = sphi 0, %s18
    %s22 = sphi 0, %s21
    %s38 = sphi 0, %s22
    %s42 = sphi 0, %s42
    %s44 = sphi 0, %s42
    %s45 = sphi 0, %s44
    %s59 = sphi 0, %s45
    %s65 = sphi 0, %s67
    %s68 = sphi 0, %s65
    %s69 = sphi 0, %s68
    %s85 = sphi 0, %s69
  $region4: #{dof_cnn_lstm_forward.6} parent=0 // loop_header_branch
    %11 = sbr.rel (%p9) target = $region8
  $region5: #{dof_cnn_lstm_forward.6} parent=0 // loop_body
    %s13 = ssub.s32 %s8, 1
    %s14 = ssub.s32 %s8, 2
    %s15 = sadd.s32 %s8, 1
    %s16 = ssub.s32 %s8, %s15
    %p17 = scmp.eq.s32.totalorder %s16, 0
    %s19 = sadd.s32 %s18, 1
    %s20 = scalar_select %p17, %s18, %s19
    %p23 = pneg %p17
    %p24 = scmp.eq.s32.totalorder %s8, 7
    %p25 = por %p23, %p24
    %p26 = scmp.ne.s32.totalorder %s18, %s21
    %p27 = scmp.eq.s32.totalorder %s8, 0
    %p28 = por %p26, %p27
    %p29 = scmp.ne.s32.totalorder %s18, %s21
    %p30 = scmp.eq.s32.totalorder %s13, 7
    %p31 = por %p29, %p30
    %p32 = scmp.ne.s32.totalorder %s21, %s22
    %p33 = scmp.eq.s32.totalorder %s13, 0
    %p34 = por %p32, %p33
    %p35 = scmp.ne.s32.totalorder %s21, %s22
    %p36 = scmp.eq.s32.totalorder %s14, 7
    %p37 = por %p35, %p36
    %p39 = scmp.ne.s32.totalorder %s22, %s38
    %p40 = scmp.eq.s32.totalorder %s14, 0
    %p41 = por %p39, %p40
    %s43 = sadd.s32 %s42, 1
    %p46 = scmp.eq.s32.totalorder %s8, 7
    %p47 = scmp.ne.s32.totalorder %s42, %s44
    %p48 = scmp.eq.s32.totalorder %s8, 0
    %p49 = por %p47, %p48
    %p50 = scmp.ne.s32.totalorder %s42, %s44
    %p51 = scmp.eq.s32.totalorder %s13, 7
    %p52 = por %p50, %p51
    %p53 = scmp.ne.s32.totalorder %s44, %s45
    %p54 = scmp.eq.s32.totalorder %s13, 0
    %p55 = por %p53, %p54
    %p56 = scmp.ne.s32.totalorder %s44, %s45
    %p57 = scmp.eq.s32.totalorder %s14, 7
    %p58 = por %p56, %p57
    %p60 = scmp.ne.s32.totalorder %s45, %s59
    %p61 = scmp.eq.s32.totalorder %s14, 0
    %p62 = por %p60, %p61
    %s63 = ssub.s32 %s8, %s15
    %p64 = scmp.eq.s32.totalorder %s63, 0
    %s66 = sadd.s32 %s65, 1
    %s67 = scalar_select %p64, %s65, %s66
    %p70 = pneg %p64
    %p71 = scmp.eq.s32.totalorder %s8, 7
    %p72 = por %p70, %p71
    %p73 = scmp.ne.s32.totalorder %s65, %s68
    %p74 = scmp.eq.s32.totalorder %s8, 0
    %p75 = por %p73, %p74
    %p76 = scmp.ne.s32.totalorder %s65, %s68
    %p77 = scmp.eq.s32.totalorder %s13, 7
    %p78 = por %p76, %p77
    %p79 = scmp.ne.s32.totalorder %s68, %s69
    %p80 = scmp.eq.s32.totalorder %s13, 0
    %p81 = por %p79, %p80
    %p82 = scmp.ne.s32.totalorder %s68, %s69
    %p83 = scmp.eq.s32.totalorder %s14, 7
    %p84 = por %p82, %p83
    %p86 = scmp.ne.s32.totalorder %s69, %s85
    %p87 = scmp.eq.s32.totalorder %s14, 0
    %p88 = por %p86, %p87
    %p89 = scmp.le.s32.totalorder 1, %s8
    %p90 = scmp.lt.s32.totalorder %s8, 9
    %p91 = pnand %p89, %p90
    %p92 = pneg %p91
    // Predicated region
    $region9: #{dof_cnn_lstm_forward.6} parent=5 // pred_check
      _
    $region10: #{dof_cnn_lstm_forward.6} parent=5 // pred_check_branch
      %94 = sbr.rel (%p91) target = $region12
    $region11: #{dof_cnn_lstm_forward.6} parent=5 // pred_region
      %s95 = ssub.s32 %s8, 1
      // Predicated region
      $region13: #{dof_cnn_lstm_forward.6} parent=11 // pred_check
        %p96 = pneg %p55
      $region14: #{dof_cnn_lstm_forward.6} parent=11 // pred_check_branch
        %98 = sbr.rel (%p96) target = $region16
      $region15: #{dof_cnn_lstm_forward.6} parent=11 // pred_region
        _
      $region16: #{dof_cnn_lstm_forward.6} parent=11 // pred_fallthru
        _
    $region12: #{dof_cnn_lstm_forward.6} parent=5 // pred_fallthru
      _
    %p99 = scmp.lt.s32.totalorder %s8, 8
    // Predicated region
    $region17: #{dof_cnn_lstm_forward.6} parent=5 // pred_check
      %p100 = pneg %p99
    $region18: #{dof_cnn_lstm_forward.6} parent=5 // pred_check_branch
      %102 = sbr.rel (%p100) target = $region20
    $region19: #{dof_cnn_lstm_forward.6} parent=5 // pred_region
      // Predicated region
      $region21: #{dof_cnn_lstm_forward.6} parent=19 // pred_check
        %p103 = pneg %p28
      $region22: #{dof_cnn_lstm_forward.6} parent=19 // pred_check_branch
        %105 = sbr.rel (%p103) target = $region24
      $region23: #{dof_cnn_lstm_forward.6} parent=19 // pred_region
        %p106 = scmp.lt.s32.totalorder %s8, 7
        %s107 = scalar_select %p106, %s8, 7
        %s108 = smul.addr %s107, 16
        %s109 = smul.addr %s108, 2
        %s110 = scalar_lea.vmem %s0, %s109
      $region24: #{dof_cnn_lstm_forward.6} parent=19 // pred_fallthru
        _
    $region20: #{dof_cnn_lstm_forward.6} parent=5 // pred_fallthru
      _
    %p111 = scmp.le.s32.totalorder 1, %s8
    %p112 = scmp.lt.s32.totalorder %s8, 9
    %p113 = pnand %p111, %p112
    %p114 = pneg %p113
    // Predicated region
    $region25: #{dof_cnn_lstm_forward.6} parent=5 // pred_check
      _
    $region26: #{dof_cnn_lstm_forward.6} parent=5 // pred_check_branch
      %116 = sbr.rel (%p113) target = $region28
    $region27: #{dof_cnn_lstm_forward.6} parent=5 // pred_region
      %s117 = ssub.s32 %s8, 1
      %p118 = scmp.lt.s32.totalorder %s13, 7
      %s119 = scalar_select %p118, %s13, 7
      %s120 = smul.addr %s119, 16
      %s121 = smul.addr %s120, 2
      %s122 = scalar_lea.vmem %s0, %s121
      %p123 = pneg %p34
      %p124 = pneg %p31
      %p125 = pneg %p55
      %p126 = pneg %p52
      %p127 = pneg %p81
      %p128 = pneg %p78
      %p129 = scmp.lt.s32.totalorder %s13, 7
      %s130 = scalar_select %p129, %s13, 7
      %s131 = smul.addr %s130, 28
      %s132 = smul.addr %s131, 4
      %s133 = scalar_lea.vmem %s2, %s132
      %p134 = scmp.lt.s32.totalorder %s13, 7
      %s135 = scalar_select %p134, %s13, 7
      %s136 = smul.addr %s135, 16
      %s137 = smul.addr %s136, 2
      %s138 = scalar_lea.vmem %s0, %s137
      %p139 = scmp.lt.s32.totalorder %s13, 7
      %s140 = scalar_select %p139, %s13, 7
      %s141 = smul.addr %s140, 28
      %s142 = smul.addr %s141, 4
      %s143 = scalar_lea.vmem %s2, %s142
      %v145 = vld [vmem:[%s138] sm:$0xff]
      %v146 = vld [vmem:[%s138 + $0x8] sm:$0xff]
      %v147 = vld [vmem:[%s138 + $0x10] sm:$0xff]
      %v148 = vld [vmem:[%s138 + $0x18] sm:$0xff]
      %v153 = vcombine.high %v145, %v145
      %v155 = vunpack.c.l.s4 1983009808
      %v156 = vunpack.c.0.s8 %v155
      %v157 = vlaneseq
      %v158 = vshrl.u32 %v157, 7
      %v159 = vsub.s32 %v156, %v158
      %v160 = vrot.slane %v145, %v159
      %v162 = vunpack.c.l.s4 1983009808
      %v163 = vunpack.c.0.s8 %v162
      %v164 = vlaneseq
      %v165 = vshrl.u32 %v164, 7
      %v166 = vsub.s32 %v163, %v165
      %v167 = vrot.slane %v153, %v166
      %v168 = vcombine.high %v146, %v146
      %v170 = vunpack.c.l.s4 1983009808
      %v171 = vunpack.c.0.s8 %v170
      %v172 = vlaneseq
      %v173 = vshrl.u32 %v172, 7
      %v174 = vsub.s32 %v171, %v173
      %v175 = vrot.slane %v146, %v174
      %v177 = vunpack.c.l.s4 1983009808
      %v178 = vunpack.c.0.s8 %v177
      %v179 = vlaneseq
      %v180 = vshrl.u32 %v179, 7
      %v181 = vsub.s32 %v178, %v180
      %v182 = vrot.slane %v168, %v181
      %v183 = vcombine.high %v147, %v147
      %v185 = vunpack.c.l.s4 1983009808
      %v186 = vunpack.c.0.s8 %v185
      %v187 = vlaneseq
      %v188 = vshrl.u32 %v187, 7
      %v189 = vsub.s32 %v186, %v188
      %v190 = vrot.slane %v147, %v189
      %v192 = vunpack.c.l.s4 1983009808
      %v193 = vunpack.c.0.s8 %v192
      %v194 = vlaneseq
      %v195 = vshrl.u32 %v194, 7
      %v196 = vsub.s32 %v193, %v195
      %v197 = vrot.slane %v183, %v196
      %v198 = vcombine.high %v148, %v148
      %v200 = vunpack.c.l.s4 1983009808
      %v201 = vunpack.c.0.s8 %v200
      %v202 = vlaneseq
      %v203 = vshrl.u32 %v202, 7
      %v204 = vsub.s32 %v201, %v203
      %v205 = vrot.slane %v148, %v204
      %v207 = vunpack.c.l.s4 1983009808
      %v208 = vunpack.c.0.s8 %v207
      %v209 = vlaneseq
      %v210 = vshrl.u32 %v209, 7
      %v211 = vsub.s32 %v208, %v210
      %v212 = vrot.slane %v198, %v211
      %221 = vst [vmem:[#allocation2] sm:$0x33] %v160
      %222 = vst [vmem:[#allocation2 + $0x8] sm:$0x33] %v167
      %223 = vst [vmem:[#allocation2 + $0x10] sm:$0x33] %v175
      %224 = vst [vmem:[#allocation2 + $0x18] sm:$0x33] %v182
      %225 = vst [vmem:[#allocation2 + $0x20] sm:$0x33] %v190
      %226 = vst [vmem:[#allocation2 + $0x28] sm:$0x33] %v197
      %227 = vst [vmem:[#allocation2 + $0x30] sm:$0x33] %v205
      %vm228 = vcmask 156672
      %229 = vst.msk [vmem:[#allocation2 + $0x38] sm:$0x3] %vm228, %v212
      %v230 = vcombine.low %v145, %v145
      %v232 = vunpack.c.l.s4 1983009808
      %v233 = vunpack.c.0.s8 %v232
      %v234 = vlaneseq
      %v235 = vshrl.u32 %v234, 7
      %v236 = vsub.s32 %v233, %v235
      %v237 = vrot.slane %v230, %v236
      %v238 = vcombine.low %v146, %v146
      %v240 = vunpack.c.l.s4 1983009808
      %v241 = vunpack.c.0.s8 %v240
      %v242 = vlaneseq
      %v243 = vshrl.u32 %v242, 7
      %v244 = vsub.s32 %v241, %v243
      %v245 = vrot.slane %v238, %v244
      %v246 = vcombine.low %v147, %v147
      %v248 = vunpack.c.l.s4 1983009808
      %v249 = vunpack.c.0.s8 %v248
      %v250 = vlaneseq
      %v251 = vshrl.u32 %v250, 7
      %v252 = vsub.s32 %v249, %v251
      %v253 = vrot.slane %v246, %v252
      %v254 = vcombine.low %v148, %v148
      %v256 = vunpack.c.l.s4 1983009808
      %v257 = vunpack.c.0.s8 %v256
      %v258 = vlaneseq
      %v259 = vshrl.u32 %v258, 7
      %v260 = vsub.s32 %v257, %v259
      %v261 = vrot.slane %v254, %v260
      %262 = vrot.lane.b32.xlu0 %v237, 127
      %v263 = vpop.permute.xlu0 %262
      %264 = vrot.lane.b32.xlu0 %v160, 127
      %v265 = vpop.permute.xlu0 %264
      %266 = vrot.lane.b32.xlu0 %v245, 127
      %v267 = vpop.permute.xlu0 %266
      %268 = vrot.lane.b32.xlu0 %v175, 127
      %v269 = vpop.permute.xlu0 %268
      %270 = vrot.lane.b32.xlu0 %v253, 127
      %v271 = vpop.permute.xlu0 %270
      %272 = vrot.lane.b32.xlu0 %v190, 127
      %v273 = vpop.permute.xlu0 %272
      %274 = vrot.lane.b32.xlu0 %v261, 127
      %v275 = vpop.permute.xlu0 %274
      %276 = vrot.lane.b32.xlu0 %v205, 127
      %v277 = vpop.permute.xlu0 %276
      %v278 = vrot.slane %v263, 4
      %v279 = vrot.slane %v265, 4
      %v280 = vrot.slane %v267, 4
      %v281 = vrot.slane %v269, 4
      %v282 = vrot.slane %v271, 4
      %v283 = vrot.slane %v273, 4
      %v284 = vrot.slane %v275, 4
      %v285 = vrot.slane %v277, 4
      %vm286 = vcmask 1043456
      %v287 = vsel %vm286, %v278, %v279
      %vm288 = vcmask 1039360
      %v289 = vsel %vm288, %v263, %v287
      %v290 = vsel %vm286, %v279, %v280
      %v291 = vsel %vm288, %v265, %v290
      %v292 = vsel %vm286, %v280, %v281
      %v293 = vsel %vm288, %v267, %v292
      %v294 = vsel %vm286, %v281, %v282
      %v295 = vsel %vm288, %v269, %v294
      %v296 = vsel %vm286, %v282, %v283
      %v297 = vsel %vm288, %v271, %v296
      %v298 = vsel %vm286, %v283, %v284
      %v299 = vsel %vm288, %v273, %v298
      %v300 = vsel %vm286, %v284, %v285
      %v301 = vsel %vm288, %v275, %v300
      %310 = vst [vmem:[#allocation2] sm:$0xcc] %v289
      %311 = vst [vmem:[#allocation2 + $0x8] sm:$0xcc] %v291
      %312 = vst [vmem:[#allocation2 + $0x10] sm:$0xcc] %v293
      %313 = vst [vmem:[#allocation2 + $0x18] sm:$0xcc] %v295
      %314 = vst [vmem:[#allocation2 + $0x20] sm:$0xcc] %v297
      %315 = vst [vmem:[#allocation2 + $0x28] sm:$0xcc] %v299
      %316 = vst [vmem:[#allocation2 + $0x30] sm:$0xcc] %v301
      %vm317 = vcmask 158722
      %318 = vst.msk [vmem:[#allocation2 + $0x38] sm:$0xc] %vm317, %v277
      %319 = vrot.lane.b32.xlu0 %v160, 126
      %v320 = vpop.permute.xlu0 %319
      %321 = vrot.lane.b32.xlu0 %v167, 126
      %v322 = vpop.permute.xlu0 %321
      %323 = vrot.lane.b32.xlu0 %v175, 126
      %v324 = vpop.permute.xlu0 %323
      %325 = vrot.lane.b32.xlu0 %v182, 126
      %v326 = vpop.permute.xlu0 %325
      %327 = vrot.lane.b32.xlu0 %v190, 126
      %v328 = vpop.permute.xlu0 %327
      %329 = vrot.lane.b32.xlu0 %v197, 126
      %v330 = vpop.permute.xlu0 %329
      %331 = vrot.lane.b32.xlu0 %v205, 126
      %v332 = vpop.permute.xlu0 %331
      %333 = vrot.lane.b32.xlu0 %v212, 126
      %v334 = vpop.permute.xlu0 %333
      %v335 = vrot.slane %v320, 4
      %v336 = vrot.slane %v322, 4
      %v337 = vrot.slane %v324, 4
      %v338 = vrot.slane %v326, 4
      %v339 = vrot.slane %v328, 4
      %v340 = vrot.slane %v330, 4
      %v341 = vrot.slane %v332, 4
      %v342 = vrot.slane %v334, 4
      %v343 = vsel %vm286, %v335, %v336
      %vm344 = vcmask 1031168
      %v345 = vsel %vm344, %v320, %v343
      %v346 = vsel %vm286, %v336, %v337
      %v347 = vsel %vm344, %v322, %v346
      %v348 = vsel %vm286, %v337, %v338
      %v349 = vsel %vm344, %v324, %v348
      %v350 = vsel %vm286, %v338, %v339
      %v351 = vsel %vm344, %v326, %v350
      %v352 = vsel %vm286, %v339, %v340
      %v353 = vsel %vm344, %v328, %v352
      %v354 = vsel %vm286, %v340, %v341
      %v355 = vsel %vm344, %v330, %v354
      %v356 = vsel %vm286, %v341, %v342
      %v357 = vsel %vm344, %v332, %v356
      %366 = vst [vmem:[#allocation2 + $0x3c] sm:$0x33] %v345
      %367 = vst [vmem:[#allocation2 + $0x44] sm:$0x33] %v347
      %368 = vst [vmem:[#allocation2 + $0x4c] sm:$0x33] %v349
      %369 = vst [vmem:[#allocation2 + $0x54] sm:$0x33] %v351
      %370 = vst [vmem:[#allocation2 + $0x5c] sm:$0x33] %v353
      %371 = vst [vmem:[#allocation2 + $0x64] sm:$0x33] %v355
      %372 = vst [vmem:[#allocation2 + $0x6c] sm:$0x33] %v357
      %373 = vst.msk [vmem:[#allocation2 + $0x74] sm:$0x3] %vm228, %v334
      %374 = vrot.lane.b32.xlu0 %v237, 125
      %v375 = vpop.permute.xlu0 %374
      %376 = vrot.lane.b32.xlu0 %v160, 125
      %v377 = vpop.permute.xlu0 %376
      %378 = vrot.lane.b32.xlu0 %v245, 125
      %v379 = vpop.permute.xlu0 %378
      %380 = vrot.lane.b32.xlu0 %v175, 125
      %v381 = vpop.permute.xlu0 %380
      %382 = vrot.lane.b32.xlu0 %v253, 125
      %v383 = vpop.permute.xlu0 %382
      %384 = vrot.lane.b32.xlu0 %v190, 125
      %v385 = vpop.permute.xlu0 %384
      %386 = vrot.lane.b32.xlu0 %v261, 125
      %v387 = vpop.permute.xlu0 %386
      %388 = vrot.lane.b32.xlu0 %v205, 125
      %v389 = vpop.permute.xlu0 %388
      %v390 = vrot.slane %v375, 4
      %v391 = vrot.slane %v377, 4
      %v392 = vrot.slane %v379, 4
      %v393 = vrot.slane %v381, 4
      %v394 = vrot.slane %v383, 4
      %v395 = vrot.slane %v385, 4
      %v396 = vrot.slane %v387, 4
      %v397 = vrot.slane %v389, 4
      %v398 = vsel %vm286, %v390, %v391
      %vm399 = vcmask 1022976
      %v400 = vsel %vm399, %v375, %v398
      %v401 = vsel %vm286, %v391, %v392
      %v402 = vsel %vm399, %v377, %v401
      %v403 = vsel %vm286, %v392, %v393
      %v404 = vsel %vm399, %v379, %v403
      %v405 = vsel %vm286, %v393, %v394
      %v406 = vsel %vm399, %v381, %v405
      %v407 = vsel %vm286, %v394, %v395
      %v408 = vsel %vm399, %v383, %v407
      %v409 = vsel %vm286, %v395, %v396
      %v410 = vsel %vm399, %v385, %v409
      %v411 = vsel %vm286, %v396, %v397
      %v412 = vsel %vm399, %v387, %v411
      %421 = vst [vmem:[#allocation2 + $0x3c] sm:$0xcc] %v400
      %422 = vst [vmem:[#allocation2 + $0x44] sm:$0xcc] %v402
      %423 = vst [vmem:[#allocation2 + $0x4c] sm:$0xcc] %v404
      %424 = vst [vmem:[#allocation2 + $0x54] sm:$0xcc] %v406
      %425 = vst [vmem:[#allocation2 + $0x5c] sm:$0xcc] %v408
      %426 = vst [vmem:[#allocation2 + $0x64] sm:$0xcc] %v410
      %427 = vst [vmem:[#allocation2 + $0x6c] sm:$0xcc] %v412
      %428 = vst.msk [vmem:[#allocation2 + $0x74] sm:$0xc] %vm317, %v389
      %429 = vrot.lane.b32.xlu0 %v160, 124
      %v430 = vpop.permute.xlu0 %429
      %431 = vrot.lane.b32.xlu0 %v167, 124
      %v432 = vpop.permute.xlu0 %431
      %433 = vrot.lane.b32.xlu0 %v175, 124
      %v434 = vpop.permute.xlu0 %433
      %435 = vrot.lane.b32.xlu0 %v182, 124
      %v436 = vpop.permute.xlu0 %435
      %437 = vrot.lane.b32.xlu0 %v190, 124
      %v438 = vpop.permute.xlu0 %437
      %439 = vrot.lane.b32.xlu0 %v197, 124
      %v440 = vpop.permute.xlu0 %439
      %441 = vrot.lane.b32.xlu0 %v205, 124
      %v442 = vpop.permute.xlu0 %441
      %443 = vrot.lane.b32.xlu0 %v212, 124
      %v444 = vpop.permute.xlu0 %443
      %v445 = vrot.slane %v430, 4
      %v446 = vrot.slane %v432, 4
      %v447 = vrot.slane %v434, 4
      %v448 = vrot.slane %v436, 4
      %v449 = vrot.slane %v438, 4
      %v450 = vrot.slane %v440, 4
      %v451 = vrot.slane %v442, 4
      %v452 = vrot.slane %v444, 4
      %v453 = vsel %vm286, %v445, %v446
      %vm454 = vcmask 1014784
      %v455 = vsel %vm454, %v430, %v453
      %v456 = vsel %vm286, %v446, %v447
      %v457 = vsel %vm454, %v432, %v456
      %v458 = vsel %vm286, %v447, %v448
      %v459 = vsel %vm454, %v434, %v458
      %v460 = vsel %vm286, %v448, %v449
      %v461 = vsel %vm454, %v436, %v460
      %v462 = vsel %vm286, %v449, %v450
      %v463 = vsel %vm454, %v438, %v462
      %v464 = vsel %vm286, %v450, %v451
      %v465 = vsel %vm454, %v440, %v464
      %v466 = vsel %vm286, %v451, %v452
      %v467 = vsel %vm454, %v442, %v466
      %476 = vst [vmem:[#allocation2 + $0x78] sm:$0x33] %v455
      %477 = vst [vmem:[#allocation2 + $0x80] sm:$0x33] %v457
      %478 = vst [vmem:[#allocation2 + $0x88] sm:$0x33] %v459
      %479 = vst [vmem:[#allocation2 + $0x90] sm:$0x33] %v461
      %480 = vst [vmem:[#allocation2 + $0x98] sm:$0x33] %v463
      %481 = vst [vmem:[#allocation2 + $0xa0] sm:$0x33] %v465
      %482 = vst [vmem:[#allocation2 + $0xa8] sm:$0x33] %v467
      %483 = vst.msk [vmem:[#allocation2 + $0xb0] sm:$0x3] %vm228, %v444
      %484 = vrot.lane.b32.xlu0 %v237, 84
      %v485 = vpop.permute.xlu0 %484
      %486 = vrot.lane.b32.xlu0 %v160, 84
      %v487 = vpop.permute.xlu0 %486
      %488 = vrot.lane.b32.xlu0 %v245, 84
      %v489 = vpop.permute.xlu0 %488
      %490 = vrot.lane.b32.xlu0 %v175, 84
      %v491 = vpop.permute.xlu0 %490
      %492 = vrot.lane.b32.xlu0 %v253, 84
      %v493 = vpop.permute.xlu0 %492
      %494 = vrot.lane.b32.xlu0 %v190, 84
      %v495 = vpop.permute.xlu0 %494
      %496 = vrot.lane.b32.xlu0 %v261, 84
      %v497 = vpop.permute.xlu0 %496
      %498 = vrot.lane.b32.xlu0 %v205, 84
      %v499 = vpop.permute.xlu0 %498
      %v500 = vrot.slane %v485, 4
      %v501 = vrot.slane %v487, 4
      %v502 = vrot.slane %v489, 4
      %v503 = vrot.slane %v491, 4
      %v504 = vrot.slane %v493, 4
      %v505 = vrot.slane %v495, 4
      %v506 = vrot.slane %v497, 4
      %v507 = vrot.slane %v499, 4
      %v508 = vsel %vm286, %v500, %v501
      %vm509 = vcmask 687104
      %v510 = vsel %vm509, %v485, %v508
      %v511 = vsel %vm286, %v501, %v502
      %v512 = vsel %vm509, %v487, %v511
      %v513 = vsel %vm286, %v502, %v503
      %v514 = vsel %vm509, %v489, %v513
      %v515 = vsel %vm286, %v503, %v504
      %v516 = vsel %vm509, %v491, %v515
      %v517 = vsel %vm286, %v504, %v505
      %v518 = vsel %vm509, %v493, %v517
      %v519 = vsel %vm286, %v505, %v506
      %v520 = vsel %vm509, %v495, %v519
      %v521 = vsel %vm286, %v506, %v507
      %v522 = vsel %vm509, %v497, %v521
      %531 = vst [vmem:[#allocation2 + $0x78] sm:$0xcc] %v510
      %532 = vst [vmem:[#allocation2 + $0x80] sm:$0xcc] %v512
      %533 = vst [vmem:[#allocation2 + $0x88] sm:$0xcc] %v514
      %534 = vst [vmem:[#allocation2 + $0x90] sm:$0xcc] %v516
      %535 = vst [vmem:[#allocation2 + $0x98] sm:$0xcc] %v518
      %536 = vst [vmem:[#allocation2 + $0xa0] sm:$0xcc] %v520
      %537 = vst [vmem:[#allocation2 + $0xa8] sm:$0xcc] %v522
      %538 = vst.msk [vmem:[#allocation2 + $0xb0] sm:$0xc] %vm317, %v499
      %539 = vrot.lane.b32.xlu0 %v160, 83
      %v540 = vpop.permute.xlu0 %539
      %541 = vrot.lane.b32.xlu0 %v167, 83
      %v542 = vpop.permute.xlu0 %541
      %543 = vrot.lane.b32.xlu0 %v175, 83
      %v544 = vpop.permute.xlu0 %543
      %545 = vrot.lane.b32.xlu0 %v182, 83
      %v546 = vpop.permute.xlu0 %545
      %547 = vrot.lane.b32.xlu0 %v190, 83
      %v548 = vpop.permute.xlu0 %547
      %549 = vrot.lane.b32.xlu0 %v197, 83
      %v550 = vpop.permute.xlu0 %549
      %551 = vrot.lane.b32.xlu0 %v205, 83
      %v552 = vpop.permute.xlu0 %551
      %553 = vrot.lane.b32.xlu0 %v212, 83
      %v554 = vpop.permute.xlu0 %553
      %v555 = vrot.slane %v540, 4
      %v556 = vrot.slane %v542, 4
      %v557 = vrot.slane %v544, 4
      %v558 = vrot.slane %v546, 4
      %v559 = vrot.slane %v548, 4
      %v560 = vrot.slane %v550, 4
      %v561 = vrot.slane %v552, 4
      %v562 = vrot.slane %v554, 4
      %v563 = vsel %vm286, %v555, %v556
      %vm564 = vcmask 678912
      %v565 = vsel %vm564, %v540, %v563
      %v566 = vsel %vm286, %v556, %v557
      %v567 = vsel %vm564, %v542, %v566
      %v568 = vsel %vm286, %v557, %v558
      %v569 = vsel %vm564, %v544, %v568
      %v570 = vsel %vm286, %v558, %v559
      %v571 = vsel %vm564, %v546, %v570
      %v572 = vsel %vm286, %v559, %v560
      %v573 = vsel %vm564, %v548, %v572
      %v574 = vsel %vm286, %v560, %v561
      %v575 = vsel %vm564, %v550, %v574
      %v576 = vsel %vm286, %v561, %v562
      %v577 = vsel %vm564, %v552, %v576
      %586 = vst [vmem:[#allocation2 + $0xb4] sm:$0x33] %v565
      %587 = vst [vmem:[#allocation2 + $0xbc] sm:$0x33] %v567
      %588 = vst [vmem:[#allocation2 + $0xc4] sm:$0x33] %v569
      %589 = vst [vmem:[#allocation2 + $0xcc] sm:$0x33] %v571
      %590 = vst [vmem:[#allocation2 + $0xd4] sm:$0x33] %v573
      %591 = vst [vmem:[#allocation2 + $0xdc] sm:$0x33] %v575
      %592 = vst [vmem:[#allocation2 + $0xe4] sm:$0x33] %v577
      %593 = vst.msk [vmem:[#allocation2 + $0xec] sm:$0x3] %vm228, %v554
      %594 = vrot.lane.b32.xlu0 %v237, 82
      %v595 = vpop.permute.xlu0 %594
      %596 = vrot.lane.b32.xlu0 %v160, 82
      %v597 = vpop.permute.xlu0 %596
      %598 = vrot.lane.b32.xlu0 %v245, 82
      %v599 = vpop.permute.xlu0 %598
      %600 = vrot.lane.b32.xlu0 %v175, 82
      %v601 = vpop.permute.xlu0 %600
      %602 = vrot.lane.b32.xlu0 %v253, 82
      %v603 = vpop.permute.xlu0 %602
      %604 = vrot.lane.b32.xlu0 %v190, 82
      %v605 = vpop.permute.xlu0 %604
      %606 = vrot.lane.b32.xlu0 %v261, 82
      %v607 = vpop.permute.xlu0 %606
      %608 = vrot.lane.b32.xlu0 %v205, 82
      %v609 = vpop.permute.xlu0 %608
      %v610 = vrot.slane %v595, 4
      %v611 = vrot.slane %v597, 4
      %v612 = vrot.slane %v599, 4
      %v613 = vrot.slane %v601, 4
      %v614 = vrot.slane %v603, 4
      %v615 = vrot.slane %v605, 4
      %v616 = vrot.slane %v607, 4
      %v617 = vrot.slane %v609, 4
      %v618 = vsel %vm286, %v610, %v611
      %vm619 = vcmask 670720
      %v620 = vsel %vm619, %v595, %v618
      %v621 = vsel %vm286, %v611, %v612
      %v622 = vsel %vm619, %v597, %v621
      %v623 = vsel %vm286, %v612, %v613
      %v624 = vsel %vm619, %v599, %v623
      %v625 = vsel %vm286, %v613, %v614
      %v626 = vsel %vm619, %v601, %v625
      %v627 = vsel %vm286, %v614, %v615
      %v628 = vsel %vm619, %v603, %v627
      %v629 = vsel %vm286, %v615, %v616
      %v630 = vsel %vm619, %v605, %v629
      %v631 = vsel %vm286, %v616, %v617
      %v632 = vsel %vm619, %v607, %v631
      %641 = vst [vmem:[#allocation2 + $0xb4] sm:$0xcc] %v620
      %642 = vst [vmem:[#allocation2 + $0xbc] sm:$0xcc] %v622
      %643 = vst [vmem:[#allocation2 + $0xc4] sm:$0xcc] %v624
      %644 = vst [vmem:[#allocation2 + $0xcc] sm:$0xcc] %v626
      %645 = vst [vmem:[#allocation2 + $0xd4] sm:$0xcc] %v628
      %646 = vst [vmem:[#allocation2 + $0xdc] sm:$0xcc] %v630
      %647 = vst [vmem:[#allocation2 + $0xe4] sm:$0xcc] %v632
      %648 = vst.msk [vmem:[#allocation2 + $0xec] sm:$0xc] %vm317, %v609
      %649 = vrot.lane.b32.xlu0 %v160, 81
      %v650 = vpop.permute.xlu0 %649
      %651 = vrot.lane.b32.xlu0 %v167, 81
      %v652 = vpop.permute.xlu0 %651
      %653 = vrot.lane.b32.xlu0 %v175, 81
      %v654 = vpop.permute.xlu0 %653
      %655 = vrot.lane.b32.xlu0 %v182, 81
      %v656 = vpop.permute.xlu0 %655
      %657 = vrot.lane.b32.xlu0 %v190, 81
      %v658 = vpop.permute.xlu0 %657
      %659 = vrot.lane.b32.xlu0 %v197, 81
      %v660 = vpop.permute.xlu0 %659
      %661 = vrot.lane.b32.xlu0 %v205, 81
      %v662 = vpop.permute.xlu0 %661
      %663 = vrot.lane.b32.xlu0 %v212, 81
      %v664 = vpop.permute.xlu0 %663
      %v665 = vrot.slane %v650, 4
      %v666 = vrot.slane %v652, 4
      %v667 = vrot.slane %v654, 4
      %v668 = vrot.slane %v656, 4
      %v669 = vrot.slane %v658, 4
      %v670 = vrot.slane %v660, 4
      %v671 = vrot.slane %v662, 4
      %v672 = vrot.slane %v664, 4
      %v673 = vsel %vm286, %v665, %v666
      %vm674 = vcmask 662528
      %v675 = vsel %vm674, %v650, %v673
      %v676 = vsel %vm286, %v666, %v667
      %v677 = vsel %vm674, %v652, %v676
      %v678 = vsel %vm286, %v667, %v668
      %v679 = vsel %vm674, %v654, %v678
      %v680 = vsel %vm286, %v668, %v669
      %v681 = vsel %vm674, %v656, %v680
      %v682 = vsel %vm286, %v669, %v670
      %v683 = vsel %vm674, %v658, %v682
      %v684 = vsel %vm286, %v670, %v671
      %v685 = vsel %vm674, %v660, %v684
      %v686 = vsel %vm286, %v671, %v672
      %v687 = vsel %vm674, %v662, %v686
      %696 = vst [vmem:[#allocation2 + $0xf0] sm:$0x33] %v675
      %697 = vst [vmem:[#allocation2 + $0xf8] sm:$0x33] %v677
      %698 = vst [vmem:[#allocation2 + $0x100] sm:$0x33] %v679
      %699 = vst [vmem:[#allocation2 + $0x108] sm:$0x33] %v681
      %700 = vst [vmem:[#allocation2 + $0x110] sm:$0x33] %v683
      %701 = vst [vmem:[#allocation2 + $0x118] sm:$0x33] %v685
      %702 = vst [vmem:[#allocation2 + $0x120] sm:$0x33] %v687
      %703 = vst.msk [vmem:[#allocation2 + $0x128] sm:$0x3] %vm228, %v664
      %704 = vrot.lane.b32.xlu0 %v237, 80
      %v705 = vpop.permute.xlu0 %704
      %706 = vrot.lane.b32.xlu0 %v160, 80
      %v707 = vpop.permute.xlu0 %706
      %708 = vrot.lane.b32.xlu0 %v245, 80
      %v709 = vpop.permute.xlu0 %708
      %710 = vrot.lane.b32.xlu0 %v175, 80
      %v711 = vpop.permute.xlu0 %710
      %712 = vrot.lane.b32.xlu0 %v253, 80
      %v713 = vpop.permute.xlu0 %712
      %714 = vrot.lane.b32.xlu0 %v190, 80
      %v715 = vpop.permute.xlu0 %714
      %716 = vrot.lane.b32.xlu0 %v261, 80
      %v717 = vpop.permute.xlu0 %716
      %718 = vrot.lane.b32.xlu0 %v205, 80
      %v719 = vpop.permute.xlu0 %718
      %v720 = vrot.slane %v705, 4
      %v721 = vrot.slane %v707, 4
      %v722 = vrot.slane %v709, 4
      %v723 = vrot.slane %v711, 4
      %v724 = vrot.slane %v713, 4
      %v725 = vrot.slane %v715, 4
      %v726 = vrot.slane %v717, 4
      %v727 = vrot.slane %v719, 4
      %v728 = vsel %vm286, %v720, %v721
      %vm729 = vcmask 654336
      %v730 = vsel %vm729, %v705, %v728
      %v731 = vsel %vm286, %v721, %v722
      %v732 = vsel %vm729, %v707, %v731
      %v733 = vsel %vm286, %v722, %v723
      %v734 = vsel %vm729, %v709, %v733
      %v735 = vsel %vm286, %v723, %v724
      %v736 = vsel %vm729, %v711, %v735
      %v737 = vsel %vm286, %v724, %v725
      %v738 = vsel %vm729, %v713, %v737
      %v739 = vsel %vm286, %v725, %v726
      %v740 = vsel %vm729, %v715, %v739
      %v741 = vsel %vm286, %v726, %v727
      %v742 = vsel %vm729, %v717, %v741
      %751 = vst [vmem:[#allocation2 + $0xf0] sm:$0xcc] %v730
      %752 = vst [vmem:[#allocation2 + $0xf8] sm:$0xcc] %v732
      %753 = vst [vmem:[#allocation2 + $0x100] sm:$0xcc] %v734
      %754 = vst [vmem:[#allocation2 + $0x108] sm:$0xcc] %v736
      %755 = vst [vmem:[#allocation2 + $0x110] sm:$0xcc] %v738
      %756 = vst [vmem:[#allocation2 + $0x118] sm:$0xcc] %v740
      %757 = vst [vmem:[#allocation2 + $0x120] sm:$0xcc] %v742
      %758 = vst.msk [vmem:[#allocation2 + $0x128] sm:$0xc] %vm317, %v719
      %759 = vrot.lane.b32.xlu0 %v160, 40
      %v760 = vpop.permute.xlu0 %759
      %761 = vrot.lane.b32.xlu0 %v167, 40
      %v762 = vpop.permute.xlu0 %761
      %763 = vrot.lane.b32.xlu0 %v175, 40
      %v764 = vpop.permute.xlu0 %763
      %765 = vrot.lane.b32.xlu0 %v182, 40
      %v766 = vpop.permute.xlu0 %765
      %767 = vrot.lane.b32.xlu0 %v190, 40
      %v768 = vpop.permute.xlu0 %767
      %769 = vrot.lane.b32.xlu0 %v197, 40
      %v770 = vpop.permute.xlu0 %769
      %771 = vrot.lane.b32.xlu0 %v205, 40
      %v772 = vpop.permute.xlu0 %771
      %773 = vrot.lane.b32.xlu0 %v212, 40
      %v774 = vpop.permute.xlu0 %773
      %v775 = vrot.slane %v760, 4
      %v776 = vrot.slane %v762, 4
      %v777 = vrot.slane %v764, 4
      %v778 = vrot.slane %v766, 4
      %v779 = vrot.slane %v768, 4
      %v780 = vrot.slane %v770, 4
      %v781 = vrot.slane %v772, 4
      %v782 = vrot.slane %v774, 4
      %v783 = vsel %vm286, %v775, %v776
      %vm784 = vcmask 326656
      %v785 = vsel %vm784, %v760, %v783
      %v786 = vsel %vm286, %v776, %v777
      %v787 = vsel %vm784, %v762, %v786
      %v788 = vsel %vm286, %v777, %v778
      %v789 = vsel %vm784, %v764, %v788
      %v790 = vsel %vm286, %v778, %v779
      %v791 = vsel %vm784, %v766, %v790
      %v792 = vsel %vm286, %v779, %v780
      %v793 = vsel %vm784, %v768, %v792
      %v794 = vsel %vm286, %v780, %v781
      %v795 = vsel %vm784, %v770, %v794
      %v796 = vsel %vm286, %v781, %v782
      %v797 = vsel %vm784, %v772, %v796
      %806 = vst [vmem:[#allocation2 + $0x12c] sm:$0x33] %v785
      %807 = vst [vmem:[#allocation2 + $0x134] sm:$0x33] %v787
      %808 = vst [vmem:[#allocation2 + $0x13c] sm:$0x33] %v789
      %809 = vst [vmem:[#allocation2 + $0x144] sm:$0x33] %v791
      %810 = vst [vmem:[#allocation2 + $0x14c] sm:$0x33] %v793
      %811 = vst [vmem:[#allocation2 + $0x154] sm:$0x33] %v795
      %812 = vst [vmem:[#allocation2 + $0x15c] sm:$0x33] %v797
      %813 = vst.msk [vmem:[#allocation2 + $0x164] sm:$0x3] %vm228, %v774
      %814 = vrot.lane.b32.xlu0 %v237, 39
      %v815 = vpop.permute.xlu0 %814
      %816 = vrot.lane.b32.xlu0 %v160, 39
      %v817 = vpop.permute.xlu0 %816
      %818 = vrot.lane.b32.xlu0 %v245, 39
      %v819 = vpop.permute.xlu0 %818
      %820 = vrot.lane.b32.xlu0 %v175, 39
      %v821 = vpop.permute.xlu0 %820
      %822 = vrot.lane.b32.xlu0 %v253, 39
      %v823 = vpop.permute.xlu0 %822
      %824 = vrot.lane.b32.xlu0 %v190, 39
      %v825 = vpop.permute.xlu0 %824
      %826 = vrot.lane.b32.xlu0 %v261, 39
      %v827 = vpop.permute.xlu0 %826
      %828 = vrot.lane.b32.xlu0 %v205, 39
      %v829 = vpop.permute.xlu0 %828
      %v830 = vrot.slane %v815, 4
      %v831 = vrot.slane %v817, 4
      %v832 = vrot.slane %v819, 4
      %v833 = vrot.slane %v821, 4
      %v834 = vrot.slane %v823, 4
      %v835 = vrot.slane %v825, 4
      %v836 = vrot.slane %v827, 4
      %v837 = vrot.slane %v829, 4
      %v838 = vsel %vm286, %v830, %v831
      %vm839 = vcmask 318464
      %v840 = vsel %vm839, %v815, %v838
      %v841 = vsel %vm286, %v831, %v832
      %v842 = vsel %vm839, %v817, %v841
      %v843 = vsel %vm286, %v832, %v833
      %v844 = vsel %vm839, %v819, %v843
      %v845 = vsel %vm286, %v833, %v834
      %v846 = vsel %vm839, %v821, %v845
      %v847 = vsel %vm286, %v834, %v835
      %v848 = vsel %vm839, %v823, %v847
      %v849 = vsel %vm286, %v835, %v836
      %v850 = vsel %vm839, %v825, %v849
      %v851 = vsel %vm286, %v836, %v837
      %v852 = vsel %vm839, %v827, %v851
      %861 = vst [vmem:[#allocation2 + $0x12c] sm:$0xcc] %v840
      %862 = vst [vmem:[#allocation2 + $0x134] sm:$0xcc] %v842
      %863 = vst [vmem:[#allocation2 + $0x13c] sm:$0xcc] %v844
      %864 = vst [vmem:[#allocation2 + $0x144] sm:$0xcc] %v846
      %865 = vst [vmem:[#allocation2 + $0x14c] sm:$0xcc] %v848
      %866 = vst [vmem:[#allocation2 + $0x154] sm:$0xcc] %v850
      %867 = vst [vmem:[#allocation2 + $0x15c] sm:$0xcc] %v852
      %868 = vst.msk [vmem:[#allocation2 + $0x164] sm:$0xc] %vm317, %v829
      %869 = vrot.lane.b32.xlu0 %v160, 38
      %v870 = vpop.permute.xlu0 %869
      %871 = vrot.lane.b32.xlu0 %v167, 38
      %v872 = vpop.permute.xlu0 %871
      %873 = vrot.lane.b32.xlu0 %v175, 38
      %v874 = vpop.permute.xlu0 %873
      %875 = vrot.lane.b32.xlu0 %v182, 38
      %v876 = vpop.permute.xlu0 %875
      %877 = vrot.lane.b32.xlu0 %v190, 38
      %v878 = vpop.permute.xlu0 %877
      %879 = vrot.lane.b32.xlu0 %v197, 38
      %v880 = vpop.permute.xlu0 %879
      %881 = vrot.lane.b32.xlu0 %v205, 38
      %v882 = vpop.permute.xlu0 %881
      %883 = vrot.lane.b32.xlu0 %v212, 38
      %v884 = vpop.permute.xlu0 %883
      %v885 = vrot.slane %v870, 4
      %v886 = vrot.slane %v872, 4
      %v887 = vrot.slane %v874, 4
      %v888 = vrot.slane %v876, 4
      %v889 = vrot.slane %v878, 4
      %v890 = vrot.slane %v880, 4
      %v891 = vrot.slane %v882, 4
      %v892 = vrot.slane %v884, 4
      %v893 = vsel %vm286, %v885, %v886
      %vm894 = vcmask 310272
      %v895 = vsel %vm894, %v870, %v893
      %v896 = vsel %vm286, %v886, %v887
      %v897 = vsel %vm894, %v872, %v896
      %v898 = vsel %vm286, %v887, %v888
      %v899 = vsel %vm894, %v874, %v898
      %v900 = vsel %vm286, %v888, %v889
      %v901 = vsel %vm894, %v876, %v900
      %v902 = vsel %vm286, %v889, %v890
      %v903 = vsel %vm894, %v878, %v902
      %v904 = vsel %vm286, %v890, %v891
      %v905 = vsel %vm894, %v880, %v904
      %v906 = vsel %vm286, %v891, %v892
      %v907 = vsel %vm894, %v882, %v906
      %916 = vst [vmem:[#allocation2 + $0x168] sm:$0x33] %v895
      %917 = vst [vmem:[#allocation2 + $0x170] sm:$0x33] %v897
      %918 = vst [vmem:[#allocation2 + $0x178] sm:$0x33] %v899
      %919 = vst [vmem:[#allocation2 + $0x180] sm:$0x33] %v901
      %920 = vst [vmem:[#allocation2 + $0x188] sm:$0x33] %v903
      %921 = vst [vmem:[#allocation2 + $0x190] sm:$0x33] %v905
      %922 = vst [vmem:[#allocation2 + $0x198] sm:$0x33] %v907
      %923 = vst.msk [vmem:[#allocation2 + $0x1a0] sm:$0x3] %vm228, %v884
      %924 = vrot.lane.b32.xlu0 %v237, 37
      %v925 = vpop.permute.xlu0 %924
      %926 = vrot.lane.b32.xlu0 %v160, 37
      %v927 = vpop.permute.xlu0 %926
      %928 = vrot.lane.b32.xlu0 %v245, 37
      %v929 = vpop.permute.xlu0 %928
      %930 = vrot.lane.b32.xlu0 %v175, 37
      %v931 = vpop.permute.xlu0 %930
      %932 = vrot.lane.b32.xlu0 %v253, 37
      %v933 = vpop.permute.xlu0 %932
      %934 = vrot.lane.b32.xlu0 %v190, 37
      %v935 = vpop.permute.xlu0 %934
      %936 = vrot.lane.b32.xlu0 %v261, 37
      %v937 = vpop.permute.xlu0 %936
      %938 = vrot.lane.b32.xlu0 %v205, 37
      %v939 = vpop.permute.xlu0 %938
      %v940 = vrot.slane %v925, 4
      %v941 = vrot.slane %v927, 4
      %v942 = vrot.slane %v929, 4
      %v943 = vrot.slane %v931, 4
      %v944 = vrot.slane %v933, 4
      %v945 = vrot.slane %v935, 4
      %v946 = vrot.slane %v937, 4
      %v947 = vrot.slane %v939, 4
      %v948 = vsel %vm286, %v940, %v941
      %vm949 = vcmask 302080
      %v950 = vsel %vm949, %v925, %v948
      %v951 = vsel %vm286, %v941, %v942
      %v952 = vsel %vm949, %v927, %v951
      %v953 = vsel %vm286, %v942, %v943
      %v954 = vsel %vm949, %v929, %v953
      %v955 = vsel %vm286, %v943, %v944
      %v956 = vsel %vm949, %v931, %v955
      %v957 = vsel %vm286, %v944, %v945
      %v958 = vsel %vm949, %v933, %v957
      %v959 = vsel %vm286, %v945, %v946
      %v960 = vsel %vm949, %v935, %v959
      %v961 = vsel %vm286, %v946, %v947
      %v962 = vsel %vm949, %v937, %v961
      %971 = vst [vmem:[#allocation2 + $0x168] sm:$0xcc] %v950
      %972 = vst [vmem:[#allocation2 + $0x170] sm:$0xcc] %v952
      %973 = vst [vmem:[#allocation2 + $0x178] sm:$0xcc] %v954
      %974 = vst [vmem:[#allocation2 + $0x180] sm:$0xcc] %v956
      %975 = vst [vmem:[#allocation2 + $0x188] sm:$0xcc] %v958
      %976 = vst [vmem:[#allocation2 + $0x190] sm:$0xcc] %v960
      %977 = vst [vmem:[#allocation2 + $0x198] sm:$0xcc] %v962
      %978 = vst.msk [vmem:[#allocation2 + $0x1a0] sm:$0xc] %vm317, %v939
      %979 = vrot.lane.b32.xlu0 %v160, 36
      %v980 = vpop.permute.xlu0 %979
      %981 = vrot.lane.b32.xlu0 %v167, 36
      %v982 = vpop.permute.xlu0 %981
      %983 = vrot.lane.b32.xlu0 %v175, 36
      %v984 = vpop.permute.xlu0 %983
      %985 = vrot.lane.b32.xlu0 %v182, 36
      %v986 = vpop.permute.xlu0 %985
      %987 = vrot.lane.b32.xlu0 %v190, 36
      %v988 = vpop.permute.xlu0 %987
      %989 = vrot.lane.b32.xlu0 %v197, 36
      %v990 = vpop.permute.xlu0 %989
      %991 = vrot.lane.b32.xlu0 %v205, 36
      %v992 = vpop.permute.xlu0 %991
      %993 = vrot.lane.b32.xlu0 %v212, 36
      %v994 = vpop.permute.xlu0 %993
      %v995 = vrot.slane %v980, 4
      %v996 = vrot.slane %v982, 4
      %v997 = vrot.slane %v984, 4
      %v998 = vrot.slane %v986, 4
      %v999 = vrot.slane %v988, 4
      %v1000 = vrot.slane %v990, 4
      %v1001 = vrot.slane %v992, 4
      %v1002 = vrot.slane %v994, 4
      %v1003 = vsel %vm286, %v995, %v996
      %vm1004 = vcmask 293888
      %v1005 = vsel %vm1004, %v980, %v1003
      %v1006 = vsel %vm286, %v996, %v997
      %v1007 = vsel %vm1004, %v982, %v1006
      %v1008 = vsel %vm286, %v997, %v998
      %v1009 = vsel %vm1004, %v984, %v1008
      %v1010 = vsel %vm286, %v998, %v999
      %v1011 = vsel %vm1004, %v986, %v1010
      %v1012 = vsel %vm286, %v999, %v1000
      %v1013 = vsel %vm1004, %v988, %v1012
      %v1014 = vsel %vm286, %v1000, %v1001
      %v1015 = vsel %vm1004, %v990, %v1014
      %v1016 = vsel %vm286, %v1001, %v1002
      %v1017 = vsel %vm1004, %v992, %v1016
      %1026 = vst [vmem:[#allocation2 + $0x1a4] sm:$0x33] %v1005
      %1027 = vst [vmem:[#allocation2 + $0x1ac] sm:$0x33] %v1007
      %1028 = vst [vmem:[#allocation2 + $0x1b4] sm:$0x33] %v1009
      %1029 = vst [vmem:[#allocation2 + $0x1bc] sm:$0x33] %v1011
      %1030 = vst [vmem:[#allocation2 + $0x1c4] sm:$0x33] %v1013
      %1031 = vst [vmem:[#allocation2 + $0x1cc] sm:$0x33] %v1015
      %1032 = vst [vmem:[#allocation2 + $0x1d4] sm:$0x33] %v1017
      %1033 = vst.msk [vmem:[#allocation2 + $0x1dc] sm:$0x3] %vm228, %v994
      %1034 = vrot.lane.b32.xlu0 %v237, 124
      %v1035 = vpop.permute.xlu0 %1034
      %1036 = vrot.lane.b32.xlu0 %v245, 124
      %v1037 = vpop.permute.xlu0 %1036
      %1038 = vrot.lane.b32.xlu0 %v253, 124
      %v1039 = vpop.permute.xlu0 %1038
      %1040 = vrot.lane.b32.xlu0 %v261, 124
      %v1041 = vpop.permute.xlu0 %1040
      %v1042 = vrot.slane %v1035, 4
      %v1043 = vrot.slane %v1037, 4
      %v1044 = vrot.slane %v1039, 4
      %v1045 = vrot.slane %v1041, 4
      %v1046 = vsel %vm286, %v1042, %v445
      %v1047 = vsel %vm454, %v1046, %v430
      %v1048 = vsel %vm286, %v445, %v1043
      %v1049 = vsel %vm454, %v1048, %v1037
      %v1050 = vsel %vm286, %v1043, %v447
      %v1051 = vsel %vm454, %v1050, %v434
      %v1052 = vsel %vm286, %v447, %v1044
      %v1053 = vsel %vm454, %v1052, %v1039
      %v1054 = vsel %vm286, %v1044, %v449
      %v1055 = vsel %vm454, %v1054, %v438
      %v1056 = vsel %vm286, %v449, %v1045
      %v1057 = vsel %vm454, %v1056, %v1041
      %v1058 = vsel %vm286, %v1045, %v451
      %v1059 = vsel %vm454, %v1058, %v442
      %1068 = vst [vmem:[#allocation2 + $0x1a4] sm:$0xcc] %v1047
      %1069 = vst [vmem:[#allocation2 + $0x1ac] sm:$0xcc] %v1049
      %1070 = vst [vmem:[#allocation2 + $0x1b4] sm:$0xcc] %v1051
      %1071 = vst [vmem:[#allocation2 + $0x1bc] sm:$0xcc] %v1053
      %1072 = vst [vmem:[#allocation2 + $0x1c4] sm:$0xcc] %v1055
      %1073 = vst [vmem:[#allocation2 + $0x1cc] sm:$0xcc] %v1057
      %1074 = vst [vmem:[#allocation2 + $0x1d4] sm:$0xcc] %v1059
      %1075 = vst.msk [vmem:[#allocation2 + $0x1dc] sm:$0xc] %vm317, %v451
      %1076 = vrot.lane.b32.xlu0 %v160, 123
      %v1077 = vpop.permute.xlu0 %1076
      %1078 = vrot.lane.b32.xlu0 %v167, 123
      %v1079 = vpop.permute.xlu0 %1078
      %1080 = vrot.lane.b32.xlu0 %v175, 123
      %v1081 = vpop.permute.xlu0 %1080
      %1082 = vrot.lane.b32.xlu0 %v182, 123
      %v1083 = vpop.permute.xlu0 %1082
      %1084 = vrot.lane.b32.xlu0 %v190, 123
      %v1085 = vpop.permute.xlu0 %1084
      %1086 = vrot.lane.b32.xlu0 %v197, 123
      %v1087 = vpop.permute.xlu0 %1086
      %1088 = vrot.lane.b32.xlu0 %v205, 123
      %v1089 = vpop.permute.xlu0 %1088
      %1090 = vrot.lane.b32.xlu0 %v212, 123
      %v1091 = vpop.permute.xlu0 %1090
      %v1092 = vrot.slane %v1077, 4
      %v1093 = vrot.slane %v1079, 4
      %v1094 = vrot.slane %v1081, 4
      %v1095 = vrot.slane %v1083, 4
      %v1096 = vrot.slane %v1085, 4
      %v1097 = vrot.slane %v1087, 4
      %v1098 = vrot.slane %v1089, 4
      %v1099 = vrot.slane %v1091, 4
      %v1100 = vsel %vm286, %v1092, %v1093
      %vm1101 = vcmask 1006592
      %v1102 = vsel %vm1101, %v1100, %v1079
      %v1103 = vsel %vm286, %v1093, %v1094
      %v1104 = vsel %vm1101, %v1103, %v1081
      %v1105 = vsel %vm286, %v1094, %v1095
      %v1106 = vsel %vm1101, %v1105, %v1083
      %v1107 = vsel %vm286, %v1095, %v1096
      %v1108 = vsel %vm1101, %v1107, %v1085
      %v1109 = vsel %vm286, %v1096, %v1097
      %v1110 = vsel %vm1101, %v1109, %v1087
      %v1111 = vsel %vm286, %v1097, %v1098
      %v1112 = vsel %vm1101, %v1111, %v1089
      %v1113 = vsel %vm286, %v1098, %v1099
      %v1114 = vsel %vm1101, %v1113, %v1091
      %1123 = vst [vmem:[#allocation2 + $0x1e0] sm:$0x33] %v1102
      %1124 = vst [vmem:[#allocation2 + $0x1e8] sm:$0x33] %v1104
      %1125 = vst [vmem:[#allocation2 + $0x1f0] sm:$0x33] %v1106
      %1126 = vst [vmem:[#allocation2 + $0x1f8] sm:$0x33] %v1108
      %1127 = vst [vmem:[#allocation2 + $0x200] sm:$0x33] %v1110
      %1128 = vst [vmem:[#allocation2 + $0x208] sm:$0x33] %v1112
      %1129 = vst [vmem:[#allocation2 + $0x210] sm:$0x33] %v1114
      %1130 = vst.msk [vmem:[#allocation2 + $0x218] sm:$0x3] %vm228, %v1099
      %1131 = vrot.lane.b32.xlu0 %v237, 122
      %v1132 = vpop.permute.xlu0 %1131
      %1133 = vrot.lane.b32.xlu0 %v160, 122
      %v1134 = vpop.permute.xlu0 %1133
      %1135 = vrot.lane.b32.xlu0 %v245, 122
      %v1136 = vpop.permute.xlu0 %1135
      %1137 = vrot.lane.b32.xlu0 %v175, 122
      %v1138 = vpop.permute.xlu0 %1137
      %1139 = vrot.lane.b32.xlu0 %v253, 122
      %v1140 = vpop.permute.xlu0 %1139
      %1141 = vrot.lane.b32.xlu0 %v190, 122
      %v1142 = vpop.permute.xlu0 %1141
      %1143 = vrot.lane.b32.xlu0 %v261, 122
      %v1144 = vpop.permute.xlu0 %1143
      %1145 = vrot.lane.b32.xlu0 %v205, 122
      %v1146 = vpop.permute.xlu0 %1145
      %v1147 = vrot.slane %v1132, 4
      %v1148 = vrot.slane %v1134, 4
      %v1149 = vrot.slane %v1136, 4
      %v1150 = vrot.slane %v1138, 4
      %v1151 = vrot.slane %v1140, 4
      %v1152 = vrot.slane %v1142, 4
      %v1153 = vrot.slane %v1144, 4
      %v1154 = vrot.slane %v1146, 4
      %v1155 = vsel %vm286, %v1147, %v1148
      %vm1156 = vcmask 998400
      %v1157 = vsel %vm1156, %v1155, %v1134
      %v1158 = vsel %vm286, %v1148, %v1149
      %v1159 = vsel %vm1156, %v1158, %v1136
      %v1160 = vsel %vm286, %v1149, %v1150
      %v1161 = vsel %vm1156, %v1160, %v1138
      %v1162 = vsel %vm286, %v1150, %v1151
      %v1163 = vsel %vm1156, %v1162, %v1140
      %v1164 = vsel %vm286, %v1151, %v1152
      %v1165 = vsel %vm1156, %v1164, %v1142
      %v1166 = vsel %vm286, %v1152, %v1153
      %v1167 = vsel %vm1156, %v1166, %v1144
      %v1168 = vsel %vm286, %v1153, %v1154
      %v1169 = vsel %vm1156, %v1168, %v1146
      %1178 = vst [vmem:[#allocation2 + $0x1e0] sm:$0xcc] %v1157
      %1179 = vst [vmem:[#allocation2 + $0x1e8] sm:$0xcc] %v1159
      %1180 = vst [vmem:[#allocation2 + $0x1f0] sm:$0xcc] %v1161
      %1181 = vst [vmem:[#allocation2 + $0x1f8] sm:$0xcc] %v1163
      %1182 = vst [vmem:[#allocation2 + $0x200] sm:$0xcc] %v1165
      %1183 = vst [vmem:[#allocation2 + $0x208] sm:$0xcc] %v1167
      %1184 = vst [vmem:[#allocation2 + $0x210] sm:$0xcc] %v1169
      %1185 = vst.msk [vmem:[#allocation2 + $0x218] sm:$0xc] %vm317, %v1154
      %1186 = vrot.lane.b32.xlu0 %v160, 121
      %v1187 = vpop.permute.xlu0 %1186
      %1188 = vrot.lane.b32.xlu0 %v167, 121
      %v1189 = vpop.permute.xlu0 %1188
      %1190 = vrot.lane.b32.xlu0 %v175, 121
      %v1191 = vpop.permute.xlu0 %1190
      %1192 = vrot.lane.b32.xlu0 %v182, 121
      %v1193 = vpop.permute.xlu0 %1192
      %1194 = vrot.lane.b32.xlu0 %v190, 121
      %v1195 = vpop.permute.xlu0 %1194
      %1196 = vrot.lane.b32.xlu0 %v197, 121
      %v1197 = vpop.permute.xlu0 %1196
      %1198 = vrot.lane.b32.xlu0 %v205, 121
      %v1199 = vpop.permute.xlu0 %1198
      %1200 = vrot.lane.b32.xlu0 %v212, 121
      %v1201 = vpop.permute.xlu0 %1200
      %v1202 = vrot.slane %v1187, 4
      %v1203 = vrot.slane %v1189, 4
      %v1204 = vrot.slane %v1191, 4
      %v1205 = vrot.slane %v1193, 4
      %v1206 = vrot.slane %v1195, 4
      %v1207 = vrot.slane %v1197, 4
      %v1208 = vrot.slane %v1199, 4
      %v1209 = vrot.slane %v1201, 4
      %v1210 = vsel %vm286, %v1202, %v1203
      %vm1211 = vcmask 990208
      %v1212 = vsel %vm1211, %v1210, %v1189
      %v1213 = vsel %vm286, %v1203, %v1204
      %v1214 = vsel %vm1211, %v1213, %v1191
      %v1215 = vsel %vm286, %v1204, %v1205
      %v1216 = vsel %vm1211, %v1215, %v1193
      %v1217 = vsel %vm286, %v1205, %v1206
      %v1218 = vsel %vm1211, %v1217, %v1195
      %v1219 = vsel %vm286, %v1206, %v1207
      %v1220 = vsel %vm1211, %v1219, %v1197
      %v1221 = vsel %vm286, %v1207, %v1208
      %v1222 = vsel %vm1211, %v1221, %v1199
      %v1223 = vsel %vm286, %v1208, %v1209
      %v1224 = vsel %vm1211, %v1223, %v1201
      %1233 = vst [vmem:[#allocation2 + $0x21c] sm:$0x33] %v1212
      %1234 = vst [vmem:[#allocation2 + $0x224] sm:$0x33] %v1214
      %1235 = vst [vmem:[#allocation2 + $0x22c] sm:$0x33] %v1216
      %1236 = vst [vmem:[#allocation2 + $0x234] sm:$0x33] %v1218
      %1237 = vst [vmem:[#allocation2 + $0x23c] sm:$0x33] %v1220
      %1238 = vst [vmem:[#allocation2 + $0x244] sm:$0x33] %v1222
      %1239 = vst [vmem:[#allocation2 + $0x24c] sm:$0x33] %v1224
      %1240 = vst.msk [vmem:[#allocation2 + $0x254] sm:$0x3] %vm228, %v1209
      %1241 = vrot.lane.b32.xlu0 %v237, 120
      %v1242 = vpop.permute.xlu0 %1241
      %1243 = vrot.lane.b32.xlu0 %v160, 120
      %v1244 = vpop.permute.xlu0 %1243
      %1245 = vrot.lane.b32.xlu0 %v245, 120
      %v1246 = vpop.permute.xlu0 %1245
      %1247 = vrot.lane.b32.xlu0 %v175, 120
      %v1248 = vpop.permute.xlu0 %1247
      %1249 = vrot.lane.b32.xlu0 %v253, 120
      %v1250 = vpop.permute.xlu0 %1249
      %1251 = vrot.lane.b32.xlu0 %v190, 120
      %v1252 = vpop.permute.xlu0 %1251
      %1253 = vrot.lane.b32.xlu0 %v261, 120
      %v1254 = vpop.permute.xlu0 %1253
      %1255 = vrot.lane.b32.xlu0 %v205, 120
      %v1256 = vpop.permute.xlu0 %1255
      %v1257 = vrot.slane %v1242, 4
      %v1258 = vrot.slane %v1244, 4
      %v1259 = vrot.slane %v1246, 4
      %v1260 = vrot.slane %v1248, 4
      %v1261 = vrot.slane %v1250, 4
      %v1262 = vrot.slane %v1252, 4
      %v1263 = vrot.slane %v1254, 4
      %v1264 = vrot.slane %v1256, 4
      %v1265 = vsel %vm286, %v1257, %v1258
      %vm1266 = vcmask 982016
      %v1267 = vsel %vm1266, %v1265, %v1244
      %v1268 = vsel %vm286, %v1258, %v1259
      %v1269 = vsel %vm1266, %v1268, %v1246
      %v1270 = vsel %vm286, %v1259, %v1260
      %v1271 = vsel %vm1266, %v1270, %v1248
      %v1272 = vsel %vm286, %v1260, %v1261
      %v1273 = vsel %vm1266, %v1272, %v1250
      %v1274 = vsel %vm286, %v1261, %v1262
      %v1275 = vsel %vm1266, %v1274, %v1252
      %v1276 = vsel %vm286, %v1262, %v1263
      %v1277 = vsel %vm1266, %v1276, %v1254
      %v1278 = vsel %vm286, %v1263, %v1264
      %v1279 = vsel %vm1266, %v1278, %v1256
      %1288 = vst [vmem:[#allocation2 + $0x21c] sm:$0xcc] %v1267
      %1289 = vst [vmem:[#allocation2 + $0x224] sm:$0xcc] %v1269
      %1290 = vst [vmem:[#allocation2 + $0x22c] sm:$0xcc] %v1271
      %1291 = vst [vmem:[#allocation2 + $0x234] sm:$0xcc] %v1273
      %1292 = vst [vmem:[#allocation2 + $0x23c] sm:$0xcc] %v1275
      %1293 = vst [vmem:[#allocation2 + $0x244] sm:$0xcc] %v1277
      %1294 = vst [vmem:[#allocation2 + $0x24c] sm:$0xcc] %v1279
      %1295 = vst.msk [vmem:[#allocation2 + $0x254] sm:$0xc] %vm317, %v1264
      %1296 = vrot.lane.b32.xlu0 %v167, 80
      %v1297 = vpop.permute.xlu0 %1296
      %1298 = vrot.lane.b32.xlu0 %v182, 80
      %v1299 = vpop.permute.xlu0 %1298
      %1300 = vrot.lane.b32.xlu0 %v197, 80
      %v1301 = vpop.permute.xlu0 %1300
      %1302 = vrot.lane.b32.xlu0 %v212, 80
      %v1303 = vpop.permute.xlu0 %1302
      %v1304 = vrot.slane %v1297, 4
      %v1305 = vrot.slane %v1299, 4
      %v1306 = vrot.slane %v1301, 4
      %v1307 = vrot.slane %v1303, 4
      %v1308 = vsel %vm286, %v721, %v1304
      %v1309 = vsel %vm729, %v1308, %v1297
      %v1310 = vsel %vm286, %v1304, %v723
      %v1311 = vsel %vm729, %v1310, %v711
      %v1312 = vsel %vm286, %v723, %v1305
      %v1313 = vsel %vm729, %v1312, %v1299
      %v1314 = vsel %vm286, %v1305, %v725
      %v1315 = vsel %vm729, %v1314, %v715
      %v1316 = vsel %vm286, %v725, %v1306
      %v1317 = vsel %vm729, %v1316, %v1301
      %v1318 = vsel %vm286, %v1306, %v727
      %v1319 = vsel %vm729, %v1318, %v719
      %v1320 = vsel %vm286, %v727, %v1307
      %v1321 = vsel %vm729, %v1320, %v1303
      %1330 = vst [vmem:[#allocation2 + $0x258] sm:$0x33] %v1309
      %1331 = vst [vmem:[#allocation2 + $0x260] sm:$0x33] %v1311
      %1332 = vst [vmem:[#allocation2 + $0x268] sm:$0x33] %v1313
      %1333 = vst [vmem:[#allocation2 + $0x270] sm:$0x33] %v1315
      %1334 = vst [vmem:[#allocation2 + $0x278] sm:$0x33] %v1317
      %1335 = vst [vmem:[#allocation2 + $0x280] sm:$0x33] %v1319
      %1336 = vst [vmem:[#allocation2 + $0x288] sm:$0x33] %v1321
      %1337 = vst.msk [vmem:[#allocation2 + $0x290] sm:$0x3] %vm228, %v1307
      %1338 = vrot.lane.b32.xlu0 %v237, 79
      %v1339 = vpop.permute.xlu0 %1338
      %1340 = vrot.lane.b32.xlu0 %v160, 79
      %v1341 = vpop.permute.xlu0 %1340
      %1342 = vrot.lane.b32.xlu0 %v245, 79
      %v1343 = vpop.permute.xlu0 %1342
      %1344 = vrot.lane.b32.xlu0 %v175, 79
      %v1345 = vpop.permute.xlu0 %1344
      %1346 = vrot.lane.b32.xlu0 %v253, 79
      %v1347 = vpop.permute.xlu0 %1346
      %1348 = vrot.lane.b32.xlu0 %v190, 79
      %v1349 = vpop.permute.xlu0 %1348
      %1350 = vrot.lane.b32.xlu0 %v261, 79
      %v1351 = vpop.permute.xlu0 %1350
      %1352 = vrot.lane.b32.xlu0 %v205, 79
      %v1353 = vpop.permute.xlu0 %1352
      %v1354 = vrot.slane %v1339, 4
      %v1355 = vrot.slane %v1341, 4
      %v1356 = vrot.slane %v1343, 4
      %v1357 = vrot.slane %v1345, 4
      %v1358 = vrot.slane %v1347, 4
      %v1359 = vrot.slane %v1349, 4
      %v1360 = vrot.slane %v1351, 4
      %v1361 = vrot.slane %v1353, 4
      %v1362 = vsel %vm286, %v1354, %v1355
      %vm1363 = vcmask 646144
      %v1364 = vsel %vm1363, %v1362, %v1341
      %v1365 = vsel %vm286, %v1355, %v1356
      %v1366 = vsel %vm1363, %v1365, %v1343
      %v1367 = vsel %vm286, %v1356, %v1357
      %v1368 = vsel %vm1363, %v1367, %v1345
      %v1369 = vsel %vm286, %v1357, %v1358
      %v1370 = vsel %vm1363, %v1369, %v1347
      %v1371 = vsel %vm286, %v1358, %v1359
      %v1372 = vsel %vm1363, %v1371, %v1349
      %v1373 = vsel %vm286, %v1359, %v1360
      %v1374 = vsel %vm1363, %v1373, %v1351
      %v1375 = vsel %vm286, %v1360, %v1361
      %v1376 = vsel %vm1363, %v1375, %v1353
      %1385 = vst [vmem:[#allocation2 + $0x258] sm:$0xcc] %v1364
      %1386 = vst [vmem:[#allocation2 + $0x260] sm:$0xcc] %v1366
      %1387 = vst [vmem:[#allocation2 + $0x268] sm:$0xcc] %v1368
      %1388 = vst [vmem:[#allocation2 + $0x270] sm:$0xcc] %v1370
      %1389 = vst [vmem:[#allocation2 + $0x278] sm:$0xcc] %v1372
      %1390 = vst [vmem:[#allocation2 + $0x280] sm:$0xcc] %v1374
      %1391 = vst [vmem:[#allocation2 + $0x288] sm:$0xcc] %v1376
      %1392 = vst.msk [vmem:[#allocation2 + $0x290] sm:$0xc] %vm317, %v1361
      %1393 = vrot.lane.b32.xlu0 %v160, 78
      %v1394 = vpop.permute.xlu0 %1393
      %1395 = vrot.lane.b32.xlu0 %v167, 78
      %v1396 = vpop.permute.xlu0 %1395
      %1397 = vrot.lane.b32.xlu0 %v175, 78
      %v1398 = vpop.permute.xlu0 %1397
      %1399 = vrot.lane.b32.xlu0 %v182, 78
      %v1400 = vpop.permute.xlu0 %1399
      %1401 = vrot.lane.b32.xlu0 %v190, 78
      %v1402 = vpop.permute.xlu0 %1401
      %1403 = vrot.lane.b32.xlu0 %v197, 78
      %v1404 = vpop.permute.xlu0 %1403
      %1405 = vrot.lane.b32.xlu0 %v205, 78
      %v1406 = vpop.permute.xlu0 %1405
      %1407 = vrot.lane.b32.xlu0 %v212, 78
      %v1408 = vpop.permute.xlu0 %1407
      %v1409 = vrot.slane %v1394, 4
      %v1410 = vrot.slane %v1396, 4
      %v1411 = vrot.slane %v1398, 4
      %v1412 = vrot.slane %v1400, 4
      %v1413 = vrot.slane %v1402, 4
      %v1414 = vrot.slane %v1404, 4
      %v1415 = vrot.slane %v1406, 4
      %v1416 = vrot.slane %v1408, 4
      %v1417 = vsel %vm286, %v1409, %v1410
      %vm1418 = vcmask 637952
      %v1419 = vsel %vm1418, %v1417, %v1396
      %v1420 = vsel %vm286, %v1410, %v1411
      %v1421 = vsel %vm1418, %v1420, %v1398
      %v1422 = vsel %vm286, %v1411, %v1412
      %v1423 = vsel %vm1418, %v1422, %v1400
      %v1424 = vsel %vm286, %v1412, %v1413
      %v1425 = vsel %vm1418, %v1424, %v1402
      %v1426 = vsel %vm286, %v1413, %v1414
      %v1427 = vsel %vm1418, %v1426, %v1404
      %v1428 = vsel %vm286, %v1414, %v1415
      %v1429 = vsel %vm1418, %v1428, %v1406
      %v1430 = vsel %vm286, %v1415, %v1416
      %v1431 = vsel %vm1418, %v1430, %v1408
      %1440 = vst [vmem:[#allocation2 + $0x294] sm:$0x33] %v1419
      %1441 = vst [vmem:[#allocation2 + $0x29c] sm:$0x33] %v1421
      %1442 = vst [vmem:[#allocation2 + $0x2a4] sm:$0x33] %v1423
      %1443 = vst [vmem:[#allocation2 + $0x2ac] sm:$0x33] %v1425
      %1444 = vst [vmem:[#allocation2 + $0x2b4] sm:$0x33] %v1427
      %1445 = vst [vmem:[#allocation2 + $0x2bc] sm:$0x33] %v1429
      %1446 = vst [vmem:[#allocation2 + $0x2c4] sm:$0x33] %v1431
      %1447 = vst.msk [vmem:[#allocation2 + $0x2cc] sm:$0x3] %vm228, %v1416
      %1448 = vrot.lane.b32.xlu0 %v237, 77
      %v1449 = vpop.permute.xlu0 %1448
      %1450 = vrot.lane.b32.xlu0 %v160, 77
      %v1451 = vpop.permute.xlu0 %1450
      %1452 = vrot.lane.b32.xlu0 %v245, 77
      %v1453 = vpop.permute.xlu0 %1452
      %1454 = vrot.lane.b32.xlu0 %v175, 77
      %v1455 = vpop.permute.xlu0 %1454
      %1456 = vrot.lane.b32.xlu0 %v253, 77
      %v1457 = vpop.permute.xlu0 %1456
      %1458 = vrot.lane.b32.xlu0 %v190, 77
      %v1459 = vpop.permute.xlu0 %1458
      %1460 = vrot.lane.b32.xlu0 %v261, 77
      %v1461 = vpop.permute.xlu0 %1460
      %1462 = vrot.lane.b32.xlu0 %v205, 77
      %v1463 = vpop.permute.xlu0 %1462
      %v1464 = vrot.slane %v1449, 4
      %v1465 = vrot.slane %v1451, 4
      %v1466 = vrot.slane %v1453, 4
      %v1467 = vrot.slane %v1455, 4
      %v1468 = vrot.slane %v1457, 4
      %v1469 = vrot.slane %v1459, 4
      %v1470 = vrot.slane %v1461, 4
      %v1471 = vrot.slane %v1463, 4
      %v1472 = vsel %vm286, %v1464, %v1465
      %vm1473 = vcmask 629760
      %v1474 = vsel %vm1473, %v1472, %v1451
      %v1475 = vsel %vm286, %v1465, %v1466
      %v1476 = vsel %vm1473, %v1475, %v1453
      %v1477 = vsel %vm286, %v1466, %v1467
      %v1478 = vsel %vm1473, %v1477, %v1455
      %v1479 = vsel %vm286, %v1467, %v1468
      %v1480 = vsel %vm1473, %v1479, %v1457
      %v1481 = vsel %vm286, %v1468, %v1469
      %v1482 = vsel %vm1473, %v1481, %v1459
      %v1483 = vsel %vm286, %v1469, %v1470
      %v1484 = vsel %vm1473, %v1483, %v1461
      %v1485 = vsel %vm286, %v1470, %v1471
      %v1486 = vsel %vm1473, %v1485, %v1463
      %1495 = vst [vmem:[#allocation2 + $0x294] sm:$0xcc] %v1474
      %1496 = vst [vmem:[#allocation2 + $0x29c] sm:$0xcc] %v1476
      %1497 = vst [vmem:[#allocation2 + $0x2a4] sm:$0xcc] %v1478
      %1498 = vst [vmem:[#allocation2 + $0x2ac] sm:$0xcc] %v1480
      %1499 = vst [vmem:[#allocation2 + $0x2b4] sm:$0xcc] %v1482
      %1500 = vst [vmem:[#allocation2 + $0x2bc] sm:$0xcc] %v1484
      %1501 = vst [vmem:[#allocation2 + $0x2c4] sm:$0xcc] %v1486
      %1502 = vst.msk [vmem:[#allocation2 + $0x2cc] sm:$0xc] %vm317, %v1471
      %1503 = vrot.lane.b32.xlu0 %v160, 76
      %v1504 = vpop.permute.xlu0 %1503
      %1505 = vrot.lane.b32.xlu0 %v167, 76
      %v1506 = vpop.permute.xlu0 %1505
      %1507 = vrot.lane.b32.xlu0 %v175, 76
      %v1508 = vpop.permute.xlu0 %1507
      %1509 = vrot.lane.b32.xlu0 %v182, 76
      %v1510 = vpop.permute.xlu0 %1509
      %1511 = vrot.lane.b32.xlu0 %v190, 76
      %v1512 = vpop.permute.xlu0 %1511
      %1513 = vrot.lane.b32.xlu0 %v197, 76
      %v1514 = vpop.permute.xlu0 %1513
      %1515 = vrot.lane.b32.xlu0 %v205, 76
      %v1516 = vpop.permute.xlu0 %1515
      %1517 = vrot.lane.b32.xlu0 %v212, 76
      %v1518 = vpop.permute.xlu0 %1517
      %v1519 = vrot.slane %v1504, 4
      %v1520 = vrot.slane %v1506, 4
      %v1521 = vrot.slane %v1508, 4
      %v1522 = vrot.slane %v1510, 4
      %v1523 = vrot.slane %v1512, 4
      %v1524 = vrot.slane %v1514, 4
      %v1525 = vrot.slane %v1516, 4
      %v1526 = vrot.slane %v1518, 4
      %v1527 = vsel %vm286, %v1519, %v1520
      %vm1528 = vcmask 621568
      %v1529 = vsel %vm1528, %v1527, %v1506
      %v1530 = vsel %vm286, %v1520, %v1521
      %v1531 = vsel %vm1528, %v1530, %v1508
      %v1532 = vsel %vm286, %v1521, %v1522
      %v1533 = vsel %vm1528, %v1532, %v1510
      %v1534 = vsel %vm286, %v1522, %v1523
      %v1535 = vsel %vm1528, %v1534, %v1512
      %v1536 = vsel %vm286, %v1523, %v1524
      %v1537 = vsel %vm1528, %v1536, %v1514
      %v1538 = vsel %vm286, %v1524, %v1525
      %v1539 = vsel %vm1528, %v1538, %v1516
      %v1540 = vsel %vm286, %v1525, %v1526
      %v1541 = vsel %vm1528, %v1540, %v1518
      %1550 = vst [vmem:[#allocation2 + $0x2d0] sm:$0x33] %v1529
      %1551 = vst [vmem:[#allocation2 + $0x2d8] sm:$0x33] %v1531
      %1552 = vst [vmem:[#allocation2 + $0x2e0] sm:$0x33] %v1533
      %1553 = vst [vmem:[#allocation2 + $0x2e8] sm:$0x33] %v1535
      %1554 = vst [vmem:[#allocation2 + $0x2f0] sm:$0x33] %v1537
      %1555 = vst [vmem:[#allocation2 + $0x2f8] sm:$0x33] %v1539
      %1556 = vst [vmem:[#allocation2 + $0x300] sm:$0x33] %v1541
      %1557 = vst.msk [vmem:[#allocation2 + $0x308] sm:$0x3] %vm228, %v1526
      %v1558 = vld [vmem:[%s1] sm:$0xf]
      %v1559 = vld [vmem:[%s1 + $0x4] sm:$0x3]
      %v1560 = vld [vmem:[#allocation2] sm:$0xff]
      %v1561 = vld [vmem:[#allocation2 + $0x8] sm:$0xff]
      %v1562 = vld [vmem:[#allocation2 + $0x10] sm:$0xff]
      %v1563 = vld [vmem:[#allocation2 + $0x18] sm:$0xff]
      %v1564 = vld [vmem:[#allocation2 + $0x20] sm:$0xff]
      %v1565 = vld [vmem:[#allocation2 + $0x28] sm:$0xff]
      %v1566 = vld [vmem:[#allocation2 + $0x30] sm:$0xff]
      %v1567 = vld [vmem:[#allocation2 + $0x38] sm:$0xf]
      %v1568 = vld [vmem:[#allocation2 + $0x3c] sm:$0xff]
      %v1569 = vld [vmem:[#allocation2 + $0x44] sm:$0xff]
      %v1570 = vld [vmem:[#allocation2 + $0x4c] sm:$0xff]
      %v1571 = vld [vmem:[#allocation2 + $0x54] sm:$0xff]
      %v1572 = vld [vmem:[#allocation2 + $0x5c] sm:$0xff]
      %v1573 = vld [vmem:[#allocation2 + $0x64] sm:$0xff]
      %v1574 = vld [vmem:[#allocation2 + $0x6c] sm:$0xff]
      %v1575 = vld [vmem:[#allocation2 + $0x74] sm:$0xf]
      %v1576 = vld [vmem:[#allocation2 + $0x78] sm:$0xff]
      %v1577 = vld [vmem:[#allocation2 + $0x80] sm:$0xff]
      %v1578 = vld [vmem:[#allocation2 + $0x88] sm:$0xff]
      %v1579 = vld [vmem:[#allocation2 + $0x90] sm:$0xff]
      %v1580 = vld [vmem:[#allocation2 + $0x98] sm:$0xff]
      %v1581 = vld [vmem:[#allocation2 + $0xa0] sm:$0xff]
      %v1582 = vld [vmem:[#allocation2 + $0xa8] sm:$0xff]
      %v1583 = vld [vmem:[#allocation2 + $0xb0] sm:$0xf]
      %v1584 = vld [vmem:[#allocation2 + $0xb4] sm:$0xff]
      %v1585 = vld [vmem:[#allocation2 + $0xbc] sm:$0xff]
      %v1586 = vld [vmem:[#allocation2 + $0xc4] sm:$0xff]
      %v1587 = vld [vmem:[#allocation2 + $0xcc] sm:$0xff]
      %v1588 = vld [vmem:[#allocation2 + $0xd4] sm:$0xff]
      %v1589 = vld [vmem:[#allocation2 + $0xdc] sm:$0xff]
      %v1590 = vld [vmem:[#allocation2 + $0xe4] sm:$0xff]
      %v1591 = vld [vmem:[#allocation2 + $0xec] sm:$0xf]
      %v1592 = vld [vmem:[#allocation2 + $0xf0] sm:$0xff]
      %v1593 = vld [vmem:[#allocation2 + $0xf8] sm:$0xff]
      %v1594 = vld [vmem:[#allocation2 + $0x100] sm:$0xff]
      %v1595 = vld [vmem:[#allocation2 + $0x108] sm:$0xff]
      %v1596 = vld [vmem:[#allocation2 + $0x110] sm:$0xff]
      %v1597 = vld [vmem:[#allocation2 + $0x118] sm:$0xff]
      %v1598 = vld [vmem:[#allocation2 + $0x120] sm:$0xff]
      %v1599 = vld [vmem:[#allocation2 + $0x128] sm:$0xf]
      %v1600 = vld [vmem:[#allocation2 + $0x12c] sm:$0xff]
      %v1601 = vld [vmem:[#allocation2 + $0x134] sm:$0xff]
      %v1602 = vld [vmem:[#allocation2 + $0x13c] sm:$0xff]
      %v1603 = vld [vmem:[#allocation2 + $0x144] sm:$0xff]
      %v1604 = vld [vmem:[#allocation2 + $0x14c] sm:$0xff]
      %v1605 = vld [vmem:[#allocation2 + $0x154] sm:$0xff]
      %v1606 = vld [vmem:[#allocation2 + $0x15c] sm:$0xff]
      %v1607 = vld [vmem:[#allocation2 + $0x164] sm:$0xf]
      %v1608 = vld [vmem:[#allocation2 + $0x168] sm:$0xff]
      %v1609 = vld [vmem:[#allocation2 + $0x170] sm:$0xff]
      %v1610 = vld [vmem:[#allocation2 + $0x178] sm:$0xff]
      %v1611 = vld [vmem:[#allocation2 + $0x180] sm:$0xff]
      %v1612 = vld [vmem:[#allocation2 + $0x188] sm:$0xff]
      %v1613 = vld [vmem:[#allocation2 + $0x190] sm:$0xff]
      %v1614 = vld [vmem:[#allocation2 + $0x198] sm:$0xff]
      %v1615 = vld [vmem:[#allocation2 + $0x1a0] sm:$0xf]
      %v1616 = vld [vmem:[#allocation2 + $0x1a4] sm:$0xff]
      %v1617 = vld [vmem:[#allocation2 + $0x1ac] sm:$0xff]
      %v1618 = vld [vmem:[#allocation2 + $0x1b4] sm:$0xff]
      %v1619 = vld [vmem:[#allocation2 + $0x1bc] sm:$0xff]
      %v1620 = vld [vmem:[#allocation2 + $0x1c4] sm:$0xff]
      %v1621 = vld [vmem:[#allocation2 + $0x1cc] sm:$0xff]
      %v1622 = vld [vmem:[#allocation2 + $0x1d4] sm:$0xff]
      %v1623 = vld [vmem:[#allocation2 + $0x1dc] sm:$0xf]
      %v1624 = vld [vmem:[#allocation2 + $0x1e0] sm:$0xff]
      %v1625 = vld [vmem:[#allocation2 + $0x1e8] sm:$0xff]
      %v1626 = vld [vmem:[#allocation2 + $0x1f0] sm:$0xff]
      %v1627 = vld [vmem:[#allocation2 + $0x1f8] sm:$0xff]
      %v1628 = vld [vmem:[#allocation2 + $0x200] sm:$0xff]
      %v1629 = vld [vmem:[#allocation2 + $0x208] sm:$0xff]
      %v1630 = vld [vmem:[#allocation2 + $0x210] sm:$0xff]
      %v1631 = vld [vmem:[#allocation2 + $0x218] sm:$0xf]
      %v1632 = vld [vmem:[#allocation2 + $0x21c] sm:$0xff]
      %v1633 = vld [vmem:[#allocation2 + $0x224] sm:$0xff]
      %v1634 = vld [vmem:[#allocation2 + $0x22c] sm:$0xff]
      %v1635 = vld [vmem:[#allocation2 + $0x234] sm:$0xff]
      %v1636 = vld [vmem:[#allocation2 + $0x23c] sm:$0xff]
      %v1637 = vld [vmem:[#allocation2 + $0x244] sm:$0xff]
      %v1638 = vld [vmem:[#allocation2 + $0x24c] sm:$0xff]
      %v1639 = vld [vmem:[#allocation2 + $0x254] sm:$0xf]
      %v1640 = vld [vmem:[#allocation2 + $0x258] sm:$0xff]
      %v1641 = vld [vmem:[#allocation2 + $0x260] sm:$0xff]
      %v1642 = vld [vmem:[#allocation2 + $0x268] sm:$0xff]
      %v1643 = vld [vmem:[#allocation2 + $0x270] sm:$0xff]
      %v1644 = vld [vmem:[#allocation2 + $0x278] sm:$0xff]
      %v1645 = vld [vmem:[#allocation2 + $0x280] sm:$0xff]
      %v1646 = vld [vmem:[#allocation2 + $0x288] sm:$0xff]
      %v1647 = vld [vmem:[#allocation2 + $0x290] sm:$0xf]
      %v1648 = vld [vmem:[#allocation2 + $0x294] sm:$0xff]
      %v1649 = vld [vmem:[#allocation2 + $0x29c] sm:$0xff]
      %v1650 = vld [vmem:[#allocation2 + $0x2a4] sm:$0xff]
      %v1651 = vld [vmem:[#allocation2 + $0x2ac] sm:$0xff]
      %v1652 = vld [vmem:[#allocation2 + $0x2b4] sm:$0xff]
      %v1653 = vld [vmem:[#allocation2 + $0x2bc] sm:$0xff]
      %v1654 = vld [vmem:[#allocation2 + $0x2c4] sm:$0xff]
      %v1655 = vld [vmem:[#allocation2 + $0x2cc] sm:$0xf]
      %v1656 = vld [vmem:[#allocation2 + $0x2d0] sm:$0x33]
      %v1657 = vld [vmem:[#allocation2 + $0x2d8] sm:$0x33]
      %v1658 = vld [vmem:[#allocation2 + $0x2e0] sm:$0x33]
      %v1659 = vld [vmem:[#allocation2 + $0x2e8] sm:$0x33]
      %v1660 = vld [vmem:[#allocation2 + $0x2f0] sm:$0x33]
      %v1661 = vld [vmem:[#allocation2 + $0x2f8] sm:$0x33]
      %v1662 = vld [vmem:[#allocation2 + $0x300] sm:$0x33]
      %v1663 = vld [vmem:[#allocation2 + $0x308] sm:$0x3]
      %v1666 = vunpack.c.l.b16 %v1558
      %v1667 = vunpack.c.l.b16 %v1559
      %v1668 = vpack.c.b16 %v1667, %v1666
      %v1773 = vunpack.c.l.b16 %v1560
      %v1774 = vunpack.c.h.b16 %v1560
      %v1775 = vunpack.c.l.b16 %v1561
      %v1776 = vunpack.c.h.b16 %v1561
      %v1777 = vunpack.c.l.b16 %v1562
      %v1778 = vunpack.c.h.b16 %v1562
      %v1779 = vunpack.c.l.b16 %v1563
      %v1780 = vunpack.c.h.b16 %v1563
      %v1781 = vunpack.c.l.b16 %v1564
      %v1782 = vunpack.c.h.b16 %v1564
      %v1783 = vunpack.c.l.b16 %v1565
      %v1784 = vunpack.c.h.b16 %v1565
      %v1785 = vunpack.c.l.b16 %v1566
      %v1786 = vunpack.c.h.b16 %v1566
      %v1787 = vunpack.c.l.b16 %v1567
      %v1788 = vunpack.c.l.b16 %v1568
      %v1789 = vunpack.c.h.b16 %v1568
      %v1790 = vunpack.c.l.b16 %v1569
      %v1791 = vunpack.c.h.b16 %v1569
      %v1792 = vunpack.c.l.b16 %v1570
      %v1793 = vunpack.c.h.b16 %v1570
      %v1794 = vunpack.c.l.b16 %v1571
      %v1795 = vunpack.c.h.b16 %v1571
      %v1796 = vunpack.c.l.b16 %v1572
      %v1797 = vunpack.c.h.b16 %v1572
      %v1798 = vunpack.c.l.b16 %v1573
      %v1799 = vunpack.c.h.b16 %v1573
      %v1800 = vunpack.c.l.b16 %v1574
      %v1801 = vunpack.c.h.b16 %v1574
      %v1802 = vunpack.c.l.b16 %v1575
      %v1803 = vunpack.c.l.b16 %v1576
      %v1804 = vunpack.c.h.b16 %v1576
      %v1805 = vunpack.c.l.b16 %v1577
      %v1806 = vunpack.c.h.b16 %v1577
      %v1807 = vunpack.c.l.b16 %v1578
      %v1808 = vunpack.c.h.b16 %v1578
      %v1809 = vunpack.c.l.b16 %v1579
      %v1810 = vunpack.c.h.b16 %v1579
      %v1811 = vunpack.c.l.b16 %v1580
      %v1812 = vunpack.c.h.b16 %v1580
      %v1813 = vunpack.c.l.b16 %v1581
      %v1814 = vunpack.c.h.b16 %v1581
      %v1815 = vunpack.c.l.b16 %v1582
      %v1816 = vunpack.c.h.b16 %v1582
      %v1817 = vunpack.c.l.b16 %v1583
      %v1818 = vunpack.c.l.b16 %v1584
      %v1819 = vunpack.c.h.b16 %v1584
      %v1820 = vunpack.c.l.b16 %v1585
      %v1821 = vunpack.c.h.b16 %v1585
      %v1822 = vunpack.c.l.b16 %v1586
      %v1823 = vunpack.c.h.b16 %v1586
      %v1824 = vunpack.c.l.b16 %v1587
      %v1825 = vunpack.c.h.b16 %v1587
      %v1826 = vunpack.c.l.b16 %v1588
      %v1827 = vunpack.c.h.b16 %v1588
      %v1828 = vunpack.c.l.b16 %v1589
      %v1829 = vunpack.c.h.b16 %v1589
      %v1830 = vunpack.c.l.b16 %v1590
      %v1831 = vunpack.c.h.b16 %v1590
      %v1832 = vunpack.c.l.b16 %v1591
      %v1833 = vunpack.c.l.b16 %v1592
      %v1834 = vunpack.c.h.b16 %v1592
      %v1835 = vunpack.c.l.b16 %v1593
      %v1836 = vunpack.c.h.b16 %v1593
      %v1837 = vunpack.c.l.b16 %v1594
      %v1838 = vunpack.c.h.b16 %v1594
      %v1839 = vunpack.c.l.b16 %v1595
      %v1840 = vunpack.c.h.b16 %v1595
      %v1841 = vunpack.c.l.b16 %v1596
      %v1842 = vunpack.c.h.b16 %v1596
      %v1843 = vunpack.c.l.b16 %v1597
      %v1844 = vunpack.c.h.b16 %v1597
      %v1845 = vunpack.c.l.b16 %v1598
      %v1846 = vunpack.c.h.b16 %v1598
      %v1847 = vunpack.c.l.b16 %v1599
      %v1848 = vunpack.c.l.b16 %v1600
      %v1849 = vunpack.c.h.b16 %v1600
      %v1850 = vunpack.c.l.b16 %v1601
      %v1851 = vunpack.c.h.b16 %v1601
      %v1852 = vunpack.c.l.b16 %v1602
      %v1853 = vunpack.c.h.b16 %v1602
      %v1854 = vunpack.c.l.b16 %v1603
      %v1855 = vunpack.c.h.b16 %v1603
      %v1856 = vunpack.c.l.b16 %v1604
      %v1857 = vunpack.c.h.b16 %v1604
      %v1858 = vunpack.c.l.b16 %v1605
      %v1859 = vunpack.c.h.b16 %v1605
      %v1860 = vunpack.c.l.b16 %v1606
      %v1861 = vunpack.c.h.b16 %v1606
      %v1862 = vunpack.c.l.b16 %v1607
      %v1863 = vunpack.c.l.b16 %v1608
      %v1864 = vunpack.c.h.b16 %v1608
      %v1865 = vunpack.c.l.b16 %v1609
      %v1866 = vunpack.c.h.b16 %v1609
      %v1867 = vunpack.c.l.b16 %v1610
      %v1868 = vunpack.c.h.b16 %v1610
      %v1869 = vunpack.c.l.b16 %v1611
      %v1870 = vunpack.c.h.b16 %v1611
      %v1871 = vunpack.c.l.b16 %v1612
      %v1872 = vunpack.c.h.b16 %v1612
      %v1873 = vunpack.c.l.b16 %v1613
      %v1874 = vunpack.c.h.b16 %v1613
      %v1875 = vunpack.c.l.b16 %v1614
      %v1876 = vunpack.c.h.b16 %v1614
      %v1877 = vunpack.c.l.b16 %v1615
      %v1878 = vunpack.c.l.b16 %v1616
      %v1879 = vunpack.c.h.b16 %v1616
      %v1880 = vunpack.c.l.b16 %v1617
      %v1881 = vunpack.c.h.b16 %v1617
      %v1882 = vunpack.c.l.b16 %v1618
      %v1883 = vunpack.c.h.b16 %v1618
      %v1884 = vunpack.c.l.b16 %v1619
      %v1885 = vunpack.c.h.b16 %v1619
      %v1886 = vunpack.c.l.b16 %v1620
      %v1887 = vunpack.c.h.b16 %v1620
      %v1888 = vunpack.c.l.b16 %v1621
      %v1889 = vunpack.c.h.b16 %v1621
      %v1890 = vunpack.c.l.b16 %v1622
      %v1891 = vunpack.c.h.b16 %v1622
      %v1892 = vunpack.c.l.b16 %v1623
      %v1893 = vunpack.c.l.b16 %v1624
      %v1894 = vunpack.c.h.b16 %v1624
      %v1895 = vunpack.c.l.b16 %v1625
      %v1896 = vunpack.c.h.b16 %v1625
      %v1897 = vunpack.c.l.b16 %v1626
      %v1898 = vunpack.c.h.b16 %v1626
      %v1899 = vunpack.c.l.b16 %v1627
      %v1900 = vunpack.c.h.b16 %v1627
      %v1901 = vunpack.c.l.b16 %v1628
      %v1902 = vunpack.c.h.b16 %v1628
      %v1903 = vunpack.c.l.b16 %v1629
      %v1904 = vunpack.c.h.b16 %v1629
      %v1905 = vunpack.c.l.b16 %v1630
      %v1906 = vunpack.c.h.b16 %v1630
      %v1907 = vunpack.c.l.b16 %v1631
      %v1908 = vunpack.c.l.b16 %v1632
      %v1909 = vunpack.c.h.b16 %v1632
      %v1910 = vunpack.c.l.b16 %v1633
      %v1911 = vunpack.c.h.b16 %v1633
      %v1912 = vunpack.c.l.b16 %v1634
      %v1913 = vunpack.c.h.b16 %v1634
      %v1914 = vunpack.c.l.b16 %v1635
      %v1915 = vunpack.c.h.b16 %v1635
      %v1916 = vunpack.c.l.b16 %v1636
      %v1917 = vunpack.c.h.b16 %v1636
      %v1918 = vunpack.c.l.b16 %v1637
      %v1919 = vunpack.c.h.b16 %v1637
      %v1920 = vunpack.c.l.b16 %v1638
      %v1921 = vunpack.c.h.b16 %v1638
      %v1922 = vunpack.c.l.b16 %v1639
      %v1923 = vunpack.c.l.b16 %v1640
      %v1924 = vunpack.c.h.b16 %v1640
      %v1925 = vunpack.c.l.b16 %v1641
      %v1926 = vunpack.c.h.b16 %v1641
      %v1927 = vunpack.c.l.b16 %v1642
      %v1928 = vunpack.c.h.b16 %v1642
      %v1929 = vunpack.c.l.b16 %v1643
      %v1930 = vunpack.c.h.b16 %v1643
      %v1931 = vunpack.c.l.b16 %v1644
      %v1932 = vunpack.c.h.b16 %v1644
      %v1933 = vunpack.c.l.b16 %v1645
      %v1934 = vunpack.c.h.b16 %v1645
      %v1935 = vunpack.c.l.b16 %v1646
      %v1936 = vunpack.c.h.b16 %v1646
      %v1937 = vunpack.c.l.b16 %v1647
      %v1938 = vunpack.c.l.b16 %v1648
      %v1939 = vunpack.c.h.b16 %v1648
      %v1940 = vunpack.c.l.b16 %v1649
      %v1941 = vunpack.c.h.b16 %v1649
      %v1942 = vunpack.c.l.b16 %v1650
      %v1943 = vunpack.c.h.b16 %v1650
      %v1944 = vunpack.c.l.b16 %v1651
      %v1945 = vunpack.c.h.b16 %v1651
      %v1946 = vunpack.c.l.b16 %v1652
      %v1947 = vunpack.c.h.b16 %v1652
      %v1948 = vunpack.c.l.b16 %v1653
      %v1949 = vunpack.c.h.b16 %v1653
      %v1950 = vunpack.c.l.b16 %v1654
      %v1951 = vunpack.c.h.b16 %v1654
      %v1952 = vunpack.c.l.b16 %v1655
      %v1953 = vunpack.c.l.b16 %v1656
      %v1954 = vunpack.c.h.b16 %v1656
      %v1955 = vunpack.c.l.b16 %v1657
      %v1956 = vunpack.c.h.b16 %v1657
      %v1957 = vunpack.c.l.b16 %v1658
      %v1958 = vunpack.c.h.b16 %v1658
      %v1959 = vunpack.c.l.b16 %v1659
      %v1960 = vunpack.c.h.b16 %v1659
      %v1961 = vunpack.c.l.b16 %v1660
      %v1962 = vunpack.c.h.b16 %v1660
      %v1963 = vunpack.c.l.b16 %v1661
      %v1964 = vunpack.c.h.b16 %v1661
      %v1965 = vunpack.c.l.b16 %v1662
      %v1966 = vunpack.c.h.b16 %v1662
      %v1967 = vunpack.c.l.b16 %v1663
      %v1968 = vpack.c.b16 %v1788, %v1773
      %v1969 = vpack.c.b16 %v1789, %v1774
      %v1970 = vpack.c.b16 %v1790, %v1775
      %v1971 = vpack.c.b16 %v1791, %v1776
      %v1972 = vpack.c.b16 %v1792, %v1777
      %v1973 = vpack.c.b16 %v1793, %v1778
      %v1974 = vpack.c.b16 %v1794, %v1779
      %v1975 = vpack.c.b16 %v1795, %v1780
      %v1976 = vpack.c.b16 %v1796, %v1781
      %v1977 = vpack.c.b16 %v1797, %v1782
      %v1978 = vpack.c.b16 %v1798, %v1783
      %v1979 = vpack.c.b16 %v1799, %v1784
      %v1980 = vpack.c.b16 %v1800, %v1785
      %v1981 = vpack.c.b16 %v1801, %v1786
      %v1982 = vpack.c.b16 %v1802, %v1787
      %v1983 = vpack.c.b16 %v1818, %v1803
      %v1984 = vpack.c.b16 %v1819, %v1804
      %v1985 = vpack.c.b16 %v1820, %v1805
      %v1986 = vpack.c.b16 %v1821, %v1806
      %v1987 = vpack.c.b16 %v1822, %v1807
      %v1988 = vpack.c.b16 %v1823, %v1808
      %v1989 = vpack.c.b16 %v1824, %v1809
      %v1990 = vpack.c.b16 %v1825, %v1810
      %v1991 = vpack.c.b16 %v1826, %v1811
      %v1992 = vpack.c.b16 %v1827, %v1812
      %v1993 = vpack.c.b16 %v1828, %v1813
      %v1994 = vpack.c.b16 %v1829, %v1814
      %v1995 = vpack.c.b16 %v1830, %v1815
      %v1996 = vpack.c.b16 %v1831, %v1816
      %v1997 = vpack.c.b16 %v1832, %v1817
      %v1998 = vpack.c.b16 %v1848, %v1833
      %v1999 = vpack.c.b16 %v1849, %v1834
      %v2000 = vpack.c.b16 %v1850, %v1835
      %v2001 = vpack.c.b16 %v1851, %v1836
      %v2002 = vpack.c.b16 %v1852, %v1837
      %v2003 = vpack.c.b16 %v1853, %v1838
      %v2004 = vpack.c.b16 %v1854, %v1839
      %v2005 = vpack.c.b16 %v1855, %v1840
      %v2006 = vpack.c.b16 %v1856, %v1841
      %v2007 = vpack.c.b16 %v1857, %v1842
      %v2008 = vpack.c.b16 %v1858, %v1843
      %v2009 = vpack.c.b16 %v1859, %v1844
      %v2010 = vpack.c.b16 %v1860, %v1845
      %v2011 = vpack.c.b16 %v1861, %v1846
      %v2012 = vpack.c.b16 %v1862, %v1847
      %v2013 = vpack.c.b16 %v1878, %v1863
      %v2014 = vpack.c.b16 %v1879, %v1864
      %v2015 = vpack.c.b16 %v1880, %v1865
      %v2016 = vpack.c.b16 %v1881, %v1866
      %v2017 = vpack.c.b16 %v1882, %v1867
      %v2018 = vpack.c.b16 %v1883, %v1868
      %v2019 = vpack.c.b16 %v1884, %v1869
      %v2020 = vpack.c.b16 %v1885, %v1870
      %v2021 = vpack.c.b16 %v1886, %v1871
      %v2022 = vpack.c.b16 %v1887, %v1872
      %v2023 = vpack.c.b16 %v1888, %v1873
      %v2024 = vpack.c.b16 %v1889, %v1874
      %v2025 = vpack.c.b16 %v1890, %v1875
      %v2026 = vpack.c.b16 %v1891, %v1876
      %v2027 = vpack.c.b16 %v1892, %v1877
      %v2028 = vpack.c.b16 %v1908, %v1893
      %v2029 = vpack.c.b16 %v1909, %v1894
      %v2030 = vpack.c.b16 %v1910, %v1895
      %v2031 = vpack.c.b16 %v1911, %v1896
      %v2032 = vpack.c.b16 %v1912, %v1897
      %v2033 = vpack.c.b16 %v1913, %v1898
      %v2034 = vpack.c.b16 %v1914, %v1899
      %v2035 = vpack.c.b16 %v1915, %v1900
      %v2036 = vpack.c.b16 %v1916, %v1901
      %v2037 = vpack.c.b16 %v1917, %v1902
      %v2038 = vpack.c.b16 %v1918, %v1903
      %v2039 = vpack.c.b16 %v1919, %v1904
      %v2040 = vpack.c.b16 %v1920, %v1905
      %v2041 = vpack.c.b16 %v1921, %v1906
      %v2042 = vpack.c.b16 %v1922, %v1907
      %v2043 = vpack.c.b16 %v1938, %v1923
      %v2044 = vpack.c.b16 %v1939, %v1924
      %v2045 = vpack.c.b16 %v1940, %v1925
      %v2046 = vpack.c.b16 %v1941, %v1926
      %v2047 = vpack.c.b16 %v1942, %v1927
      %v2048 = vpack.c.b16 %v1943, %v1928
      %v2049 = vpack.c.b16 %v1944, %v1929
      %v2050 = vpack.c.b16 %v1945, %v1930
      %v2051 = vpack.c.b16 %v1946, %v1931
      %v2052 = vpack.c.b16 %v1947, %v1932
      %v2053 = vpack.c.b16 %v1948, %v1933
      %v2054 = vpack.c.b16 %v1949, %v1934
      %v2055 = vpack.c.b16 %v1950, %v1935
      %v2056 = vpack.c.b16 %v1951, %v1936
      %v2057 = vpack.c.b16 %v1952, %v1937
      %v2058 = vpack.c.b16 %v1953, %v1953
      %v2059 = vpack.c.b16 %v1954, %v1954
      %v2060 = vpack.c.b16 %v1955, %v1955
      %v2061 = vpack.c.b16 %v1956, %v1956
      %v2062 = vpack.c.b16 %v1957, %v1957
      %v2063 = vpack.c.b16 %v1958, %v1958
      %v2064 = vpack.c.b16 %v1959, %v1959
      %v2065 = vpack.c.b16 %v1960, %v1960
      %v2066 = vpack.c.b16 %v1961, %v1961
      %v2067 = vpack.c.b16 %v1962, %v1962
      %v2068 = vpack.c.b16 %v1963, %v1963
      %v2069 = vpack.c.b16 %v1964, %v1964
      %v2070 = vpack.c.b16 %v1965, %v1965
      %v2071 = vpack.c.b16 %v1966, %v1966
      %v2072 = vpack.c.b16 %v1967, %v1967
      %vm2163 = vcmask 818176
      %v2165 = vsel %vm2163, %v1668, 0
      %vm2167 = vcmask 1041408
      %v2169 = vsel %vm2167, %v2058, 0
      %v2172 = vsel %vm2167, %v2059, 0
      %v2175 = vsel %vm2167, %v2060, 0
      %v2178 = vsel %vm2167, %v2061, 0
      %v2181 = vsel %vm2167, %v2062, 0
      %v2184 = vsel %vm2167, %v2063, 0
      %v2187 = vsel %vm2167, %v2064, 0
      %v2190 = vsel %vm2167, %v2065, 0
      %v2193 = vsel %vm2167, %v2066, 0
      %v2196 = vsel %vm2167, %v2067, 0
      %v2199 = vsel %vm2167, %v2068, 0
      %v2202 = vsel %vm2167, %v2069, 0
      %v2205 = vsel %vm2167, %v2070, 0
      %v2208 = vsel %vm2167, %v2071, 0
      %v2211 = vsel %vm2167, %v2072, 0
      %2213 = vmatprep.subr.bf16.mxu0 %v1969
      %2214 = vmatpush1.bf16.msra.mxu0 %v1968
      %2215 = vmatprep.subr.bf16.mxu0 %v1984
      %2216 = vmatpush1.bf16.msra.mxu0 %v1983
      %2217 = vmatprep.subr.bf16.mxu0 %v1999
      %2218 = vmatpush1.bf16.msra.mxu0 %v1998
      %2219 = vmatprep.subr.bf16.mxu0 %v2014
      %2220 = vmatpush1.bf16.msra.mxu0 %v2013
      %2221 = vmatprep.subr.bf16.mxu0 %v2029
      %2222 = vmatpush1.bf16.msra.mxu0 %v2028
      %2223 = vmatprep.subr.bf16.mxu0 %v2044
      %2224 = vmatpush1.bf16.msra.mxu0 %v2043
      %2225 = vmatprep.subr.bf16.mxu0 %v2172
      %2226 = vmatpush1.bf16.msra.mxu0 %v2169
      %2227 = vmatprep.subr.bf16.mxu0 0
      %2228 = vmatpush1.bf16.msra.mxu0 0
      %2229 = vmatprep.subr.bf16.mxu0 0
      %2230 = vmatpush1.bf16.msra.mxu0 0
      %2231 = vmatprep.subr.bf16.mxu0 0
      %2232 = vmatpush1.bf16.msra.mxu0 0
      %2233 = vmatprep.subr.bf16.mxu0 0
      %2234 = vmatpush1.bf16.msra.mxu0 0
      %2235 = vmatprep.subr.bf16.mxu0 0
      %2236 = vmatpush1.bf16.msra.mxu0 0
      %2237 = vmatprep.subr.bf16.mxu0 0
      %2238 = vmatpush1.bf16.msra.mxu0 0
      %2239 = vmatprep.subr.bf16.mxu0 0
      %2240 = vmatpush1.bf16.msra.mxu0 0
      %2241 = vmatprep.subr.bf16.mxu0 0
      %2242 = vmatpush1.bf16.msra.mxu0 0
      %2243 = vmatprep.subr.bf16.mxu0 0
      %2244 = vmatpush1.bf16.msra.mxu0 0
      %2245 = vmatprep.mubr.bf16.mxu0 0
      %2246 = vmatmul.mubr.bf16.gmra.mrb[0].mxu0 %v2165
      %v2247 = vpop.f32.mrb[0].mxu0
      %v2248 = vadd.f32 0.0, %v2247
      %v2249 = vpop.f32.mrb[0].mxu0
      %v2250 = vadd.f32 0.0, %v2249
      %v2251 = vpop.f32.mrb[0].mxu0
      %v2252 = vadd.f32 0.0, %v2251
      %v2253 = vpop.f32.mrb[0].mxu0
      %v2254 = vadd.f32 0.0, %v2253
      %2255 = vdwg.mxu0
      %2256 = vmatprep.subr.bf16.mxu0 %v1971
      %2257 = vmatpush1.bf16.msra.mxu0 %v1970
      %2258 = vmatprep.subr.bf16.mxu0 %v1986
      %2259 = vmatpush1.bf16.msra.mxu0 %v1985
      %2260 = vmatprep.subr.bf16.mxu0 %v2001
      %2261 = vmatpush1.bf16.msra.mxu0 %v2000
      %2262 = vmatprep.subr.bf16.mxu0 %v2016
      %2263 = vmatpush1.bf16.msra.mxu0 %v2015
      %2264 = vmatprep.subr.bf16.mxu0 %v2031
      %2265 = vmatpush1.bf16.msra.mxu0 %v2030
      %2266 = vmatprep.subr.bf16.mxu0 %v2046
      %2267 = vmatpush1.bf16.msra.mxu0 %v2045
      %2268 = vmatprep.subr.bf16.mxu0 %v2178
      %2269 = vmatpush1.bf16.msra.mxu0 %v2175
      %2270 = vmatprep.subr.bf16.mxu0 0
      %2271 = vmatpush1.bf16.msra.mxu0 0
      %2272 = vmatprep.subr.bf16.mxu0 0
      %2273 = vmatpush1.bf16.msra.mxu0 0
      %2274 = vmatprep.subr.bf16.mxu0 0
      %2275 = vmatpush1.bf16.msra.mxu0 0
      %2276 = vmatprep.subr.bf16.mxu0 0
      %2277 = vmatpush1.bf16.msra.mxu0 0
      %2278 = vmatprep.subr.bf16.mxu0 0
      %2279 = vmatpush1.bf16.msra.mxu0 0
      %2280 = vmatprep.subr.bf16.mxu0 0
      %2281 = vmatpush1.bf16.msra.mxu0 0
      %2282 = vmatprep.subr.bf16.mxu0 0
      %2283 = vmatpush1.bf16.msra.mxu0 0
      %2284 = vmatprep.subr.bf16.mxu0 0
      %2285 = vmatpush1.bf16.msra.mxu0 0
      %2286 = vmatprep.subr.bf16.mxu0 0
      %2287 = vmatpush1.bf16.msra.mxu0 0
      %2288 = vmatprep.mubr.bf16.mxu0 0
      %2289 = vmatmul.mubr.bf16.gmra.mrb[0].mxu0 %v2165
      %v2290 = vpop.f32.mrb[0].mxu0
      %v2291 = vadd.f32 0.0, %v2290
      %v2292 = vpop.f32.mrb[0].mxu0
      %v2293 = vadd.f32 0.0, %v2292
      %v2294 = vpop.f32.mrb[0].mxu0
      %v2295 = vadd.f32 0.0, %v2294
      %v2296 = vpop.f32.mrb[0].mxu0
      %v2297 = vadd.f32 0.0, %v2296
      %2298 = vdwg.mxu0
      %2299 = vmatprep.subr.bf16.mxu0 %v1973
      %2300 = vmatpush1.bf16.msra.mxu0 %v1972
      %2301 = vmatprep.subr.bf16.mxu0 %v1988
      %2302 = vmatpush1.bf16.msra.mxu0 %v1987
      %2303 = vmatprep.subr.bf16.mxu0 %v2003
      %2304 = vmatpush1.bf16.msra.mxu0 %v2002
      %2305 = vmatprep.subr.bf16.mxu0 %v2018
      %2306 = vmatpush1.bf16.msra.mxu0 %v2017
      %2307 = vmatprep.subr.bf16.mxu0 %v2033
      %2308 = vmatpush1.bf16.msra.mxu0 %v2032
      %2309 = vmatprep.subr.bf16.mxu0 %v2048
      %2310 = vmatpush1.bf16.msra.mxu0 %v2047
      %2311 = vmatprep.subr.bf16.mxu0 %v2184
      %2312 = vmatpush1.bf16.msra.mxu0 %v2181
      %2313 = vmatprep.subr.bf16.mxu0 0
      %2314 = vmatpush1.bf16.msra.mxu0 0
      %2315 = vmatprep.subr.bf16.mxu0 0
      %2316 = vmatpush1.bf16.msra.mxu0 0
      %2317 = vmatprep.subr.bf16.mxu0 0
      %2318 = vmatpush1.bf16.msra.mxu0 0
      %2319 = vmatprep.subr.bf16.mxu0 0
      %2320 = vmatpush1.bf16.msra.mxu0 0
      %2321 = vmatprep.subr.bf16.mxu0 0
      %2322 = vmatpush1.bf16.msra.mxu0 0
      %2323 = vmatprep.subr.bf16.mxu0 0
      %2324 = vmatpush1.bf16.msra.mxu0 0
      %2325 = vmatprep.subr.bf16.mxu0 0
      %2326 = vmatpush1.bf16.msra.mxu0 0
      %2327 = vmatprep.subr.bf16.mxu0 0
      %2328 = vmatpush1.bf16.msra.mxu0 0
      %2329 = vmatprep.subr.bf16.mxu0 0
      %2330 = vmatpush1.bf16.msra.mxu0 0
      %2331 = vmatprep.mubr.bf16.mxu0 0
      %2332 = vmatmul.mubr.bf16.gmra.mrb[0].mxu0 %v2165
      %v2333 = vpop.f32.mrb[0].mxu0
      %v2334 = vadd.f32 0.0, %v2333
      %v2335 = vpop.f32.mrb[0].mxu0
      %v2336 = vadd.f32 0.0, %v2335
      %v2337 = vpop.f32.mrb[0].mxu0
      %v2338 = vadd.f32 0.0, %v2337
      %v2339 = vpop.f32.mrb[0].mxu0
      %v2340 = vadd.f32 0.0, %v2339
      %2341 = vdwg.mxu0
      %2342 = vmatprep.subr.bf16.mxu0 %v1975
      %2343 = vmatpush1.bf16.msra.mxu0 %v1974
      %2344 = vmatprep.subr.bf16.mxu0 %v1990
      %2345 = vmatpush1.bf16.msra.mxu0 %v1989
      %2346 = vmatprep.subr.bf16.mxu0 %v2005
      %2347 = vmatpush1.bf16.msra.mxu0 %v2004
      %2348 = vmatprep.subr.bf16.mxu0 %v2020
      %2349 = vmatpush1.bf16.msra.mxu0 %v2019
      %2350 = vmatprep.subr.bf16.mxu0 %v2035
      %2351 = vmatpush1.bf16.msra.mxu0 %v2034
      %2352 = vmatprep.subr.bf16.mxu0 %v2050
      %2353 = vmatpush1.bf16.msra.mxu0 %v2049
      %2354 = vmatprep.subr.bf16.mxu0 %v2190
      %2355 = vmatpush1.bf16.msra.mxu0 %v2187
      %2356 = vmatprep.subr.bf16.mxu0 0
      %2357 = vmatpush1.bf16.msra.mxu0 0
      %2358 = vmatprep.subr.bf16.mxu0 0
      %2359 = vmatpush1.bf16.msra.mxu0 0
      %2360 = vmatprep.subr.bf16.mxu0 0
      %2361 = vmatpush1.bf16.msra.mxu0 0
      %2362 = vmatprep.subr.bf16.mxu0 0
      %2363 = vmatpush1.bf16.msra.mxu0 0
      %2364 = vmatprep.subr.bf16.mxu0 0
      %2365 = vmatpush1.bf16.msra.mxu0 0
      %2366 = vmatprep.subr.bf16.mxu0 0
      %2367 = vmatpush1.bf16.msra.mxu0 0
      %2368 = vmatprep.subr.bf16.mxu0 0
      %2369 = vmatpush1.bf16.msra.mxu0 0
      %2370 = vmatprep.subr.bf16.mxu0 0
      %2371 = vmatpush1.bf16.msra.mxu0 0
      %2372 = vmatprep.subr.bf16.mxu0 0
      %2373 = vmatpush1.bf16.msra.mxu0 0
      %2374 = vmatprep.mubr.bf16.mxu0 0
      %2375 = vmatmul.mubr.bf16.gmra.mrb[0].mxu0 %v2165
      %v2376 = vpop.f32.mrb[0].mxu0
      %v2377 = vadd.f32 0.0, %v2376
      %v2378 = vpop.f32.mrb[0].mxu0
      %v2379 = vadd.f32 0.0, %v2378
      %v2380 = vpop.f32.mrb[0].mxu0
      %v2381 = vadd.f32 0.0, %v2380
      %v2382 = vpop.f32.mrb[0].mxu0
      %v2383 = vadd.f32 0.0, %v2382
      %2384 = vdwg.mxu0
      %2385 = vmatprep.subr.bf16.mxu0 %v1977
      %2386 = vmatpush1.bf16.msra.mxu0 %v1976
      %2387 = vmatprep.subr.bf16.mxu0 %v1992
      %2388 = vmatpush1.bf16.msra.mxu0 %v1991
      %2389 = vmatprep.subr.bf16.mxu0 %v2007
      %2390 = vmatpush1.bf16.msra.mxu0 %v2006
      %2391 = vmatprep.subr.bf16.mxu0 %v2022
      %2392 = vmatpush1.bf16.msra.mxu0 %v2021
      %2393 = vmatprep.subr.bf16.mxu0 %v2037
      %2394 = vmatpush1.bf16.msra.mxu0 %v2036
      %2395 = vmatprep.subr.bf16.mxu0 %v2052
      %2396 = vmatpush1.bf16.msra.mxu0 %v2051
      %2397 = vmatprep.subr.bf16.mxu0 %v2196
      %2398 = vmatpush1.bf16.msra.mxu0 %v2193
      %2399 = vmatprep.subr.bf16.mxu0 0
      %2400 = vmatpush1.bf16.msra.mxu0 0
      %2401 = vmatprep.subr.bf16.mxu0 0
      %2402 = vmatpush1.bf16.msra.mxu0 0
      %2403 = vmatprep.subr.bf16.mxu0 0
      %2404 = vmatpush1.bf16.msra.mxu0 0
      %2405 = vmatprep.subr.bf16.mxu0 0
      %2406 = vmatpush1.bf16.msra.mxu0 0
      %2407 = vmatprep.subr.bf16.mxu0 0
      %2408 = vmatpush1.bf16.msra.mxu0 0
      %2409 = vmatprep.subr.bf16.mxu0 0
      %2410 = vmatpush1.bf16.msra.mxu0 0
      %2411 = vmatprep.subr.bf16.mxu0 0
      %2412 = vmatpush1.bf16.msra.mxu0 0
      %2413 = vmatprep.subr.bf16.mxu0 0
      %2414 = vmatpush1.bf16.msra.mxu0 0
      %2415 = vmatprep.subr.bf16.mxu0 0
      %2416 = vmatpush1.bf16.msra.mxu0 0
      %2417 = vmatprep.mubr.bf16.mxu0 0
      %2418 = vmatmul.mubr.bf16.gmra.mrb[0].mxu0 %v2165
      %v2419 = vpop.f32.mrb[0].mxu0
      %v2420 = vadd.f32 0.0, %v2419
      %v2421 = vpop.f32.mrb[0].mxu0
      %v2422 = vadd.f32 0.0, %v2421
      %v2423 = vpop.f32.mrb[0].mxu0
      %v2424 = vadd.f32 0.0, %v2423
      %v2425 = vpop.f32.mrb[0].mxu0
      %v2426 = vadd.f32 0.0, %v2425
      %2427 = vdwg.mxu0
      %2428 = vmatprep.subr.bf16.mxu0 %v1979
      %2429 = vmatpush1.bf16.msra.mxu0 %v1978
      %2430 = vmatprep.subr.bf16.mxu0 %v1994
      %2431 = vmatpush1.bf16.msra.mxu0 %v1993
      %2432 = vmatprep.subr.bf16.mxu0 %v2009
      %2433 = vmatpush1.bf16.msra.mxu0 %v2008
      %2434 = vmatprep.subr.bf16.mxu0 %v2024
      %2435 = vmatpush1.bf16.msra.mxu0 %v2023
      %2436 = vmatprep.subr.bf16.mxu0 %v2039
      %2437 = vmatpush1.bf16.msra.mxu0 %v2038
      %2438 = vmatprep.subr.bf16.mxu0 %v2054
      %2439 = vmatpush1.bf16.msra.mxu0 %v2053
      %2440 = vmatprep.subr.bf16.mxu0 %v2202
      %2441 = vmatpush1.bf16.msra.mxu0 %v2199
      %2442 = vmatprep.subr.bf16.mxu0 0
      %2443 = vmatpush1.bf16.msra.mxu0 0
      %2444 = vmatprep.subr.bf16.mxu0 0
      %2445 = vmatpush1.bf16.msra.mxu0 0
      %2446 = vmatprep.subr.bf16.mxu0 0
      %2447 = vmatpush1.bf16.msra.mxu0 0
      %2448 = vmatprep.subr.bf16.mxu0 0
      %2449 = vmatpush1.bf16.msra.mxu0 0
      %2450 = vmatprep.subr.bf16.mxu0 0
      %2451 = vmatpush1.bf16.msra.mxu0 0
      %2452 = vmatprep.subr.bf16.mxu0 0
      %2453 = vmatpush1.bf16.msra.mxu0 0
      %2454 = vmatprep.subr.bf16.mxu0 0
      %2455 = vmatpush1.bf16.msra.mxu0 0
      %2456 = vmatprep.subr.bf16.mxu0 0
      %2457 = vmatpush1.bf16.msra.mxu0 0
      %2458 = vmatprep.subr.bf16.mxu0 0
      %2459 = vmatpush1.bf16.msra.mxu0 0
      %2460 = vmatprep.mubr.bf16.mxu0 0
      %2461 = vmatmul.mubr.bf16.gmra.mrb[0].mxu0 %v2165
      %v2462 = vpop.f32.mrb[0].mxu0
      %v2463 = vadd.f32 0.0, %v2462
      %v2464 = vpop.f32.mrb[0].mxu0
      %v2465 = vadd.f32 0.0, %v2464
      %v2466 = vpop.f32.mrb[0].mxu0
      %v2467 = vadd.f32 0.0, %v2466
      %v2468 = vpop.f32.mrb[0].mxu0
      %v2469 = vadd.f32 0.0, %v2468
      %2470 = vdwg.mxu0
      %2471 = vmatprep.subr.bf16.mxu0 %v1981
      %2472 = vmatpush1.bf16.msra.mxu0 %v1980
      %2473 = vmatprep.subr.bf16.mxu0 %v1996
      %2474 = vmatpush1.bf16.msra.mxu0 %v1995
      %2475 = vmatprep.subr.bf16.mxu0 %v2011
      %2476 = vmatpush1.bf16.msra.mxu0 %v2010
      %2477 = vmatprep.subr.bf16.mxu0 %v2026
      %2478 = vmatpush1.bf16.msra.mxu0 %v2025
      %2479 = vmatprep.subr.bf16.mxu0 %v2041
      %2480 = vmatpush1.bf16.msra.mxu0 %v2040
      %2481 = vmatprep.subr.bf16.mxu0 %v2056
      %2482 = vmatpush1.bf16.msra.mxu0 %v2055
      %2483 = vmatprep.subr.bf16.mxu0 %v2208
      %2484 = vmatpush1.bf16.msra.mxu0 %v2205
      %2485 = vmatprep.subr.bf16.mxu0 0
      %2486 = vmatpush1.bf16.msra.mxu0 0
      %2487 = vmatprep.subr.bf16.mxu0 0
      %2488 = vmatpush1.bf16.msra.mxu0 0
      %2489 = vmatprep.subr.bf16.mxu0 0
      %2490 = vmatpush1.bf16.msra.mxu0 0
      %2491 = vmatprep.subr.bf16.mxu0 0
      %2492 = vmatpush1.bf16.msra.mxu0 0
      %2493 = vmatprep.subr.bf16.mxu0 0
      %2494 = vmatpush1.bf16.msra.mxu0 0
      %2495 = vmatprep.subr.bf16.mxu0 0
      %2496 = vmatpush1.bf16.msra.mxu0 0
      %2497 = vmatprep.subr.bf16.mxu0 0
      %2498 = vmatpush1.bf16.msra.mxu0 0
      %2499 = vmatprep.subr.bf16.mxu0 0
      %2500 = vmatpush1.bf16.msra.mxu0 0
      %2501 = vmatprep.subr.bf16.mxu0 0
      %2502 = vmatpush1.bf16.msra.mxu0 0
      %2503 = vmatprep.mubr.bf16.mxu0 0
      %2504 = vmatmul.mubr.bf16.gmra.mrb[0].mxu0 %v2165
      %v2505 = vpop.f32.mrb[0].mxu0
      %v2506 = vadd.f32 0.0, %v2505
      %v2507 = vpop.f32.mrb[0].mxu0
      %v2508 = vadd.f32 0.0, %v2507
      %v2509 = vpop.f32.mrb[0].mxu0
      %v2510 = vadd.f32 0.0, %v2509
      %v2511 = vpop.f32.mrb[0].mxu0
      %v2512 = vadd.f32 0.0, %v2511
      %2513 = vdwg.mxu0
      %2514 = vmatprep.subr.bf16.mxu0 0
      %2515 = vmatpush1.bf16.msra.mxu0 %v1982
      %2516 = vmatprep.subr.bf16.mxu0 0
      %2517 = vmatpush1.bf16.msra.mxu0 %v1997
      %2518 = vmatprep.subr.bf16.mxu0 0
      %2519 = vmatpush1.bf16.msra.mxu0 %v2012
      %2520 = vmatprep.subr.bf16.mxu0 0
      %2521 = vmatpush1.bf16.msra.mxu0 %v2027
      %2522 = vmatprep.subr.bf16.mxu0 0
      %2523 = vmatpush1.bf16.msra.mxu0 %v2042
      %2524 = vmatprep.subr.bf16.mxu0 0
      %2525 = vmatpush1.bf16.msra.mxu0 %v2057
      %2526 = vmatprep.subr.bf16.mxu0 0
      %2527 = vmatpush1.bf16.msra.mxu0 %v2211
      %2528 = vmatprep.subr.bf16.mxu0 0
      %2529 = vmatpush1.bf16.msra.mxu0 0
      %2530 = vmatprep.subr.bf16.mxu0 0
      %2531 = vmatpush1.bf16.msra.mxu0 0
      %2532 = vmatprep.subr.bf16.mxu0 0
      %2533 = vmatpush1.bf16.msra.mxu0 0
      %2534 = vmatprep.subr.bf16.mxu0 0
      %2535 = vmatpush1.bf16.msra.mxu0 0
      %2536 = vmatprep.subr.bf16.mxu0 0
      %2537 = vmatpush1.bf16.msra.mxu0 0
      %2538 = vmatprep.subr.bf16.mxu0 0
      %2539 = vmatpush1.bf16.msra.mxu0 0
      %2540 = vmatprep.subr.bf16.mxu0 0
      %2541 = vmatpush1.bf16.msra.mxu0 0
      %2542 = vmatprep.subr.bf16.mxu0 0
      %2543 = vmatpush1.bf16.msra.mxu0 0
      %2544 = vmatprep.subr.bf16.mxu0 0
      %2545 = vmatpush1.bf16.msra.mxu0 0
      %2546 = vmatprep.mubr.bf16.mxu0 0
      %2547 = vmatmul.mubr.bf16.gmra.mrb[0].mxu0 %v2165
      %v2548 = vpop.f32.mrb[0].mxu0
      %v2549 = vadd.f32 0.0, %v2548
      %v2550 = vpop.f32.mrb[0].mxu0
      %v2551 = vpop.f32.mrb[0].mxu0
      %v2552 = vadd.f32 0.0, %v2551
      %v2553 = vpop.f32.mrb[0].mxu0
      %2554 = vdwg.mxu0
      %2585 = vrot.lane.b32.xlu0 %v2248, 84
      %v2586 = vpop.permute.xlu0 %2585
      %2587 = vrot.lane.b32.xlu0 %v2250, 84
      %v2588 = vpop.permute.xlu0 %2587
      %2589 = vrot.lane.b32.xlu0 %v2291, 84
      %v2590 = vpop.permute.xlu0 %2589
      %2591 = vrot.lane.b32.xlu0 %v2293, 84
      %v2592 = vpop.permute.xlu0 %2591
      %2593 = vrot.lane.b32.xlu0 %v2334, 84
      %v2594 = vpop.permute.xlu0 %2593
      %2595 = vrot.lane.b32.xlu0 %v2336, 84
      %v2596 = vpop.permute.xlu0 %2595
      %2597 = vrot.lane.b32.xlu0 %v2377, 84
      %v2598 = vpop.permute.xlu0 %2597
      %2599 = vrot.lane.b32.xlu0 %v2379, 84
      %v2600 = vpop.permute.xlu0 %2599
      %2601 = vrot.lane.b32.xlu0 %v2420, 84
      %v2602 = vpop.permute.xlu0 %2601
      %2603 = vrot.lane.b32.xlu0 %v2422, 84
      %v2604 = vpop.permute.xlu0 %2603
      %2605 = vrot.lane.b32.xlu0 %v2463, 84
      %v2606 = vpop.permute.xlu0 %2605
      %2607 = vrot.lane.b32.xlu0 %v2465, 84
      %v2608 = vpop.permute.xlu0 %2607
      %2609 = vrot.lane.b32.xlu0 %v2506, 84
      %v2610 = vpop.permute.xlu0 %2609
      %2611 = vrot.lane.b32.xlu0 %v2508, 84
      %v2612 = vpop.permute.xlu0 %2611
      %2613 = vrot.lane.b32.xlu0 %v2549, 84
      %v2614 = vpop.permute.xlu0 %2613
      %2615 = vrot.lane.b32.xlu0 %v2252, 84
      %v2616 = vpop.permute.xlu0 %2615
      %2617 = vrot.lane.b32.xlu0 %v2254, 84
      %v2618 = vpop.permute.xlu0 %2617
      %2619 = vrot.lane.b32.xlu0 %v2295, 84
      %v2620 = vpop.permute.xlu0 %2619
      %2621 = vrot.lane.b32.xlu0 %v2297, 84
      %v2622 = vpop.permute.xlu0 %2621
      %2623 = vrot.lane.b32.xlu0 %v2338, 84
      %v2624 = vpop.permute.xlu0 %2623
      %2625 = vrot.lane.b32.xlu0 %v2340, 84
      %v2626 = vpop.permute.xlu0 %2625
      %2627 = vrot.lane.b32.xlu0 %v2381, 84
      %v2628 = vpop.permute.xlu0 %2627
      %2629 = vrot.lane.b32.xlu0 %v2383, 84
      %v2630 = vpop.permute.xlu0 %2629
      %2631 = vrot.lane.b32.xlu0 %v2424, 84
      %v2632 = vpop.permute.xlu0 %2631
      %2633 = vrot.lane.b32.xlu0 %v2426, 84
      %v2634 = vpop.permute.xlu0 %2633
      %2635 = vrot.lane.b32.xlu0 %v2467, 84
      %v2636 = vpop.permute.xlu0 %2635
      %2637 = vrot.lane.b32.xlu0 %v2469, 84
      %v2638 = vpop.permute.xlu0 %2637
      %2639 = vrot.lane.b32.xlu0 %v2510, 84
      %v2640 = vpop.permute.xlu0 %2639
      %2641 = vrot.lane.b32.xlu0 %v2512, 84
      %v2642 = vpop.permute.xlu0 %2641
      %2643 = vrot.lane.b32.xlu0 %v2552, 84
      %v2644 = vpop.permute.xlu0 %2643
      %vm2645 = vcmask 687104
      %v2646 = vsel %vm2645, %v2586, %v2588
      %v2647 = vsel %vm2645, %v2588, %v2590
      %v2648 = vsel %vm2645, %v2590, %v2592
      %v2649 = vsel %vm2645, %v2592, %v2594
      %v2650 = vsel %vm2645, %v2594, %v2596
      %v2651 = vsel %vm2645, %v2596, %v2598
      %v2652 = vsel %vm2645, %v2598, %v2600
      %v2653 = vsel %vm2645, %v2600, %v2602
      %v2654 = vsel %vm2645, %v2602, %v2604
      %v2655 = vsel %vm2645, %v2604, %v2606
      %v2656 = vsel %vm2645, %v2606, %v2608
      %v2657 = vsel %vm2645, %v2608, %v2610
      %v2658 = vsel %vm2645, %v2610, %v2612
      %v2659 = vsel %vm2645, %v2612, %v2614
      %v2660 = vsel %vm2645, %v2616, %v2618
      %v2661 = vsel %vm2645, %v2618, %v2620
      %v2662 = vsel %vm2645, %v2620, %v2622
      %v2663 = vsel %vm2645, %v2622, %v2624
      %v2664 = vsel %vm2645, %v2624, %v2626
      %v2665 = vsel %vm2645, %v2626, %v2628
      %v2666 = vsel %vm2645, %v2628, %v2630
      %v2667 = vsel %vm2645, %v2630, %v2632
      %v2668 = vsel %vm2645, %v2632, %v2634
      %v2669 = vsel %vm2645, %v2634, %v2636
      %v2670 = vsel %vm2645, %v2636, %v2638
      %v2671 = vsel %vm2645, %v2638, %v2640
      %v2672 = vsel %vm2645, %v2640, %v2642
      %v2673 = vsel %vm2645, %v2642, %v2644
      %v2702 = vadd.f32 %v2248, %v2646
      %v2703 = vadd.f32 %v2250, %v2647
      %v2704 = vadd.f32 %v2291, %v2648
      %v2705 = vadd.f32 %v2293, %v2649
      %v2706 = vadd.f32 %v2334, %v2650
      %v2707 = vadd.f32 %v2336, %v2651
      %v2708 = vadd.f32 %v2377, %v2652
      %v2709 = vadd.f32 %v2379, %v2653
      %v2710 = vadd.f32 %v2420, %v2654
      %v2711 = vadd.f32 %v2422, %v2655
      %v2712 = vadd.f32 %v2463, %v2656
      %v2713 = vadd.f32 %v2465, %v2657
      %v2714 = vadd.f32 %v2506, %v2658
      %v2715 = vadd.f32 %v2508, %v2659
      %v2716 = vadd.f32 %v2252, %v2660
      %v2717 = vadd.f32 %v2254, %v2661
      %v2718 = vadd.f32 %v2295, %v2662
      %v2719 = vadd.f32 %v2297, %v2663
      %v2720 = vadd.f32 %v2338, %v2664
      %v2721 = vadd.f32 %v2340, %v2665
      %v2722 = vadd.f32 %v2381, %v2666
      %v2723 = vadd.f32 %v2383, %v2667
      %v2724 = vadd.f32 %v2424, %v2668
      %v2725 = vadd.f32 %v2426, %v2669
      %v2726 = vadd.f32 %v2467, %v2670
      %v2727 = vadd.f32 %v2469, %v2671
      %v2728 = vadd.f32 %v2510, %v2672
      %v2729 = vadd.f32 %v2512, %v2673
      %2758 = vrot.lane.b32.xlu0 %v2702, 127
      %v2759 = vpop.permute.xlu0 %2758
      %2760 = vrot.lane.b32.xlu0 %v2703, 127
      %v2761 = vpop.permute.xlu0 %2760
      %2762 = vrot.lane.b32.xlu0 %v2704, 127
      %v2763 = vpop.permute.xlu0 %2762
      %2764 = vrot.lane.b32.xlu0 %v2705, 127
      %v2765 = vpop.permute.xlu0 %2764
      %2766 = vrot.lane.b32.xlu0 %v2706, 127
      %v2767 = vpop.permute.xlu0 %2766
      %2768 = vrot.lane.b32.xlu0 %v2707, 127
      %v2769 = vpop.permute.xlu0 %2768
      %2770 = vrot.lane.b32.xlu0 %v2708, 127
      %v2771 = vpop.permute.xlu0 %2770
      %2772 = vrot.lane.b32.xlu0 %v2709, 127
      %v2773 = vpop.permute.xlu0 %2772
      %2774 = vrot.lane.b32.xlu0 %v2710, 127
      %v2775 = vpop.permute.xlu0 %2774
      %2776 = vrot.lane.b32.xlu0 %v2711, 127
      %v2777 = vpop.permute.xlu0 %2776
      %2778 = vrot.lane.b32.xlu0 %v2712, 127
      %v2779 = vpop.permute.xlu0 %2778
      %2780 = vrot.lane.b32.xlu0 %v2713, 127
      %v2781 = vpop.permute.xlu0 %2780
      %2782 = vrot.lane.b32.xlu0 %v2714, 127
      %v2783 = vpop.permute.xlu0 %2782
      %2784 = vrot.lane.b32.xlu0 %v2715, 127
      %v2785 = vpop.permute.xlu0 %2784
      %2786 = vrot.lane.b32.xlu0 %v2716, 127
      %v2787 = vpop.permute.xlu0 %2786
      %2788 = vrot.lane.b32.xlu0 %v2717, 127
      %v2789 = vpop.permute.xlu0 %2788
      %2790 = vrot.lane.b32.xlu0 %v2718, 127
      %v2791 = vpop.permute.xlu0 %2790
      %2792 = vrot.lane.b32.xlu0 %v2719, 127
      %v2793 = vpop.permute.xlu0 %2792
      %2794 = vrot.lane.b32.xlu0 %v2720, 127
      %v2795 = vpop.permute.xlu0 %2794
      %2796 = vrot.lane.b32.xlu0 %v2721, 127
      %v2797 = vpop.permute.xlu0 %2796
      %2798 = vrot.lane.b32.xlu0 %v2722, 127
      %v2799 = vpop.permute.xlu0 %2798
      %2800 = vrot.lane.b32.xlu0 %v2723, 127
      %v2801 = vpop.permute.xlu0 %2800
      %2802 = vrot.lane.b32.xlu0 %v2724, 127
      %v2803 = vpop.permute.xlu0 %2802
      %2804 = vrot.lane.b32.xlu0 %v2725, 127
      %v2805 = vpop.permute.xlu0 %2804
      %2806 = vrot.lane.b32.xlu0 %v2726, 127
      %v2807 = vpop.permute.xlu0 %2806
      %2808 = vrot.lane.b32.xlu0 %v2727, 127
      %v2809 = vpop.permute.xlu0 %2808
      %2810 = vrot.lane.b32.xlu0 %v2728, 127
      %v2811 = vpop.permute.xlu0 %2810
      %2812 = vrot.lane.b32.xlu0 %v2729, 127
      %v2813 = vpop.permute.xlu0 %2812
      %vm2814 = vcmask 1039360
      %v2815 = vsel %vm2814, %v2759, %v2761
      %v2816 = vsel %vm2814, %v2761, %v2763
      %v2817 = vsel %vm2814, %v2763, %v2765
      %v2818 = vsel %vm2814, %v2765, %v2767
      %v2819 = vsel %vm2814, %v2767, %v2769
      %v2820 = vsel %vm2814, %v2769, %v2771
      %v2821 = vsel %vm2814, %v2771, %v2773
      %v2822 = vsel %vm2814, %v2773, %v2775
      %v2823 = vsel %vm2814, %v2775, %v2777
      %v2824 = vsel %vm2814, %v2777, %v2779
      %v2825 = vsel %vm2814, %v2779, %v2781
      %v2826 = vsel %vm2814, %v2781, %v2783
      %v2827 = vsel %vm2814, %v2783, %v2785
      %v2828 = vsel %vm2814, %v2787, %v2789
      %v2829 = vsel %vm2814, %v2789, %v2791
      %v2830 = vsel %vm2814, %v2791, %v2793
      %v2831 = vsel %vm2814, %v2793, %v2795
      %v2832 = vsel %vm2814, %v2795, %v2797
      %v2833 = vsel %vm2814, %v2797, %v2799
      %v2834 = vsel %vm2814, %v2799, %v2801
      %v2835 = vsel %vm2814, %v2801, %v2803
      %v2836 = vsel %vm2814, %v2803, %v2805
      %v2837 = vsel %vm2814, %v2805, %v2807
      %v2838 = vsel %vm2814, %v2807, %v2809
      %v2839 = vsel %vm2814, %v2809, %v2811
      %v2840 = vsel %vm2814, %v2811, %v2813
      %v2869 = vadd.f32 %v2702, %v2815
      %v2870 = vadd.f32 %v2703, %v2816
      %v2871 = vadd.f32 %v2704, %v2817
      %v2872 = vadd.f32 %v2705, %v2818
      %v2873 = vadd.f32 %v2706, %v2819
      %v2874 = vadd.f32 %v2707, %v2820
      %v2875 = vadd.f32 %v2708, %v2821
      %v2876 = vadd.f32 %v2709, %v2822
      %v2877 = vadd.f32 %v2710, %v2823
      %v2878 = vadd.f32 %v2711, %v2824
      %v2879 = vadd.f32 %v2712, %v2825
      %v2880 = vadd.f32 %v2713, %v2826
      %v2881 = vadd.f32 %v2714, %v2827
      %v2882 = vadd.f32 %v2715, %v2785
      %v2883 = vadd.f32 %v2716, %v2828
      %v2884 = vadd.f32 %v2717, %v2829
      %v2885 = vadd.f32 %v2718, %v2830
      %v2886 = vadd.f32 %v2719, %v2831
      %v2887 = vadd.f32 %v2720, %v2832
      %v2888 = vadd.f32 %v2721, %v2833
      %v2889 = vadd.f32 %v2722, %v2834
      %v2890 = vadd.f32 %v2723, %v2835
      %v2891 = vadd.f32 %v2724, %v2836
      %v2892 = vadd.f32 %v2725, %v2837
      %v2893 = vadd.f32 %v2726, %v2838
      %v2894 = vadd.f32 %v2727, %v2839
      %v2895 = vadd.f32 %v2728, %v2840
      %v2896 = vadd.f32 %v2729, %v2813
      %v2897 = vpack.c.bf16 %v2883, %v2869
      %v2898 = vpack.c.bf16 %v2884, %v2870
      %v2899 = vpack.c.bf16 %v2885, %v2871
      %v2900 = vpack.c.bf16 %v2886, %v2872
      %v2901 = vpack.c.bf16 %v2887, %v2873
      %v2902 = vpack.c.bf16 %v2888, %v2874
      %v2903 = vpack.c.bf16 %v2889, %v2875
      %v2904 = vpack.c.bf16 %v2890, %v2876
      %v2905 = vpack.c.bf16 %v2891, %v2877
      %v2906 = vpack.c.bf16 %v2892, %v2878
      %v2907 = vpack.c.bf16 %v2893, %v2879
      %v2908 = vpack.c.bf16 %v2894, %v2880
      %v2909 = vpack.c.bf16 %v2895, %v2881
      %v2910 = vpack.c.bf16 %v2896, %v2882
      %v2925 = vunpack.c.l.b16 %v2897
      %v2926 = vunpack.c.l.b16 %v2898
      %v2927 = vunpack.c.l.b16 %v2899
      %v2928 = vunpack.c.l.b16 %v2900
      %v2929 = vunpack.c.l.b16 %v2901
      %v2930 = vunpack.c.l.b16 %v2902
      %v2931 = vunpack.c.l.b16 %v2903
      %v2932 = vunpack.c.l.b16 %v2904
      %v2933 = vunpack.c.l.b16 %v2905
      %v2934 = vunpack.c.l.b16 %v2906
      %v2935 = vunpack.c.l.b16 %v2907
      %v2936 = vunpack.c.l.b16 %v2908
      %v2937 = vunpack.c.l.b16 %v2909
      %v2938 = vunpack.c.l.b16 %v2910
      %v2939 = vunpack.c.h.b16 %v2897
      %v2940 = vunpack.c.h.b16 %v2898
      %v2941 = vunpack.c.h.b16 %v2899
      %v2942 = vunpack.c.h.b16 %v2900
      %v2943 = vunpack.c.h.b16 %v2901
      %v2944 = vunpack.c.h.b16 %v2902
      %v2945 = vunpack.c.h.b16 %v2903
      %v2946 = vunpack.c.h.b16 %v2904
      %v2947 = vunpack.c.h.b16 %v2905
      %v2948 = vunpack.c.h.b16 %v2906
      %v2949 = vunpack.c.h.b16 %v2907
      %v2950 = vunpack.c.h.b16 %v2908
      %v2951 = vunpack.c.h.b16 %v2909
      %v2952 = vunpack.c.h.b16 %v2910
      %v2953 = vpack.c.b16 %v2926, %v2925
      %v2954 = vpack.c.b16 %v2928, %v2927
      %v2955 = vpack.c.b16 %v2930, %v2929
      %v2956 = vpack.c.b16 %v2932, %v2931
      %v2957 = vpack.c.b16 %v2934, %v2933
      %v2958 = vpack.c.b16 %v2936, %v2935
      %v2959 = vpack.c.b16 %v2938, %v2937
      %v2960 = vpack.c.b16 %v2940, %v2939
      %v2961 = vpack.c.b16 %v2942, %v2941
      %v2962 = vpack.c.b16 %v2944, %v2943
      %v2963 = vpack.c.b16 %v2946, %v2945
      %v2964 = vpack.c.b16 %v2948, %v2947
      %v2965 = vpack.c.b16 %v2950, %v2949
      %v2966 = vpack.c.b16 %v2952, %v2951
      %2981 = vst [vmem:[%s143] sm:$0xff] %v2953
      %2982 = vst [vmem:[%s143 + $0x8] sm:$0xff] %v2954
      %2983 = vst [vmem:[%s143 + $0x10] sm:$0xff] %v2955
      %2984 = vst [vmem:[%s143 + $0x18] sm:$0xff] %v2956
      %2985 = vst [vmem:[%s143 + $0x20] sm:$0xff] %v2957
      %2986 = vst [vmem:[%s143 + $0x28] sm:$0xff] %v2958
      %vm2987 = vcmask 1043456
      %vm2988 = vcmask 785412
      %vm2989 = vmor %vm2988, %vm2987
      %2990 = vst.msk [vmem:[%s143 + $0x30] sm:$0xff] %vm2989, %v2959
      %2991 = vst [vmem:[%s143 + $0x38] sm:$0x33] %v2960
      %2992 = vst [vmem:[%s143 + $0x40] sm:$0x33] %v2961
      %2993 = vst [vmem:[%s143 + $0x48] sm:$0x33] %v2962
      %2994 = vst [vmem:[%s143 + $0x50] sm:$0x33] %v2963
      %2995 = vst [vmem:[%s143 + $0x58] sm:$0x33] %v2964
      %2996 = vst [vmem:[%s143 + $0x60] sm:$0x33] %v2965
      %vm2997 = vcmask 783364
      %vm2998 = vmor %vm2997, %vm2167
      %2999 = vst.msk [vmem:[%s143 + $0x68] sm:$0x33] %vm2998, %v2966
      %p3000 = scmp.lt.s32.totalorder %s13, 7
      %s3001 = scalar_select %p3000, %s13, 7
      %s3002 = smul.addr %s3001, 28
      %s3003 = smul.addr %s3002, 4
      %s3004 = scalar_lea.vmem %s2, %s3003
      // Predicated region
      $region29: #{dof_cnn_lstm_forward.6} parent=27 // pred_check
        %p3005 = pneg %p78
      $region30: #{dof_cnn_lstm_forward.6} parent=27 // pred_check_branch
        %3007 = sbr.rel (%p3005) target = $region32
      $region31: #{dof_cnn_lstm_forward.6} parent=27 // pred_region
        _
      $region32: #{dof_cnn_lstm_forward.6} parent=27 // pred_fallthru
        _
    $region28: #{dof_cnn_lstm_forward.6} parent=5 // pred_fallthru
      _
    %p3008 = scmp.le.s32.totalorder 2, %s8
    // Predicated region
    $region33: #{dof_cnn_lstm_forward.6} parent=5 // pred_check
      %p3009 = pneg %p3008
    $region34: #{dof_cnn_lstm_forward.6} parent=5 // pred_check_branch
      %3011 = sbr.rel (%p3009) target = $region36
    $region35: #{dof_cnn_lstm_forward.6} parent=5 // pred_region
      %s3012 = ssub.s32 %s8, 2
      // Predicated region
      $region37: #{dof_cnn_lstm_forward.6} parent=35 // pred_check
        %p3013 = pneg %p84
      $region38: #{dof_cnn_lstm_forward.6} parent=35 // pred_check_branch
        %3015 = sbr.rel (%p3013) target = $region40
      $region39: #{dof_cnn_lstm_forward.6} parent=35 // pred_region
        %p3016 = scmp.lt.s32.totalorder %s14, 7
        %s3017 = scalar_select %p3016, %s14, 7
        %s3018 = smul.addr %s3017, 28
        %s3019 = smul.addr %s3018, 4
        %s3020 = scalar_lea.vmem %s2, %s3019
      $region40: #{dof_cnn_lstm_forward.6} parent=35 // pred_fallthru
        _
    $region36: #{dof_cnn_lstm_forward.6} parent=5 // pred_fallthru
      _
  $region6: #{dof_cnn_lstm_forward.6} parent=0 // loop_footer
    %s12 = sadd.s32 1, %s8
  $region7: #{dof_cnn_lstm_forward.6} parent=0 // loop_footer_branch
    %7 = sbr.rel target = $region3
  $region8: #{dof_cnn_lstm_forward.6} parent=0 // loop_exit
    _

// kernel: dof_cnn_lstm_forward.7
$region0: #{dof_cnn_lstm_forward.7}
  #allocation0 [shape = 'u32[]', space=smem, size = 0x4, offset = 0x4, fixed_abs, tag = 'smem constant byte address 0x4 - core index']
  #allocation1 [shape = 'u32[144,128]{1,0:T(1,128)}', space=vmem, size = 0x12000, scoped, tag = 'internal scratch']
  #allocation2 [shape = 'bf16[300,348]{1,0:T(8,128)(2,1)}', space=vmem, size = 0x39000, scoped, tag = 'scratch operand']
  %s0 = inlined_call_operand.vmem [shape: bf16[8,12,436], index: 0, kind: input, shape index: {}]
  %s1 = inlined_call_operand.vmem [shape: bf16[12,300], index: 1, kind: input, shape index: {}]
  %s2 = inlined_call_operand.vmem [shape: bf16[8,12,320], index: 2, kind: output, shape index: {}]
  %s3 = sld [smem:[#allocation0]]
  $region41: #{dof_cnn_lstm_forward.7} parent=0
    _
  %s5 = ssub.s32 1, %s3
  %s6 = scalar_select 0, %s5, %s3
  loop: start=0, step=1, limit=10
  $region2: #{dof_cnn_lstm_forward.7} parent=0 // loop_pre_header
    _
  $region3: #{dof_cnn_lstm_forward.7} parent=0 // loop_header
    %s8 = sphi 0, %s12
    %p9 = scmp.ge.s32.totalorder %s8, 10
    %s18 = sphi 0, %s20
    %s21 = sphi 0, %s18
    %s22 = sphi 0, %s21
    %s38 = sphi 0, %s22
    %s42 = sphi 0, %s42
    %s44 = sphi 0, %s42
    %s45 = sphi 0, %s44
    %s59 = sphi 0, %s45
    %s65 = sphi 0, %s67
    %s68 = sphi 0, %s65
    %s69 = sphi 0, %s68
    %s85 = sphi 0, %s69
  $region4: #{dof_cnn_lstm_forward.7} parent=0 // loop_header_branch
    %11 = sbr.rel (%p9) target = $region8
  $region5: #{dof_cnn_lstm_forward.7} parent=0 // loop_body
    %s13 = ssub.s32 %s8, 1
    %s14 = ssub.s32 %s8, 2
    %s15 = sadd.s32 %s8, 1
    %s16 = ssub.s32 %s8, %s15
    %p17 = scmp.eq.s32.totalorder %s16, 0
    %s19 = sadd.s32 %s18, 1
    %s20 = scalar_select %p17, %s18, %s19
    %p23 = pneg %p17
    %p24 = scmp.eq.s32.totalorder %s8, 7
    %p25 = por %p23, %p24
    %p26 = scmp.ne.s32.totalorder %s18, %s21
    %p27 = scmp.eq.s32.totalorder %s8, 0
    %p28 = por %p26, %p27
    %p29 = scmp.ne.s32.totalorder %s18, %s21
    %p30 = scmp.eq.s32.totalorder %s13, 7
    %p31 = por %p29, %p30
    %p32 = scmp.ne.s32.totalorder %s21, %s22
    %p33 = scmp.eq.s32.totalorder %s13, 0
    %p34 = por %p32, %p33
    %p35 = scmp.ne.s32.totalorder %s21, %s22
    %p36 = scmp.eq.s32.totalorder %s14, 7
    %p37 = por %p35, %p36
    %p39 = scmp.ne.s32.totalorder %s22, %s38
    %p40 = scmp.eq.s32.totalorder %s14, 0
    %p41 = por %p39, %p40
    %s43 = sadd.s32 %s42, 1
    %p46 = scmp.eq.s32.totalorder %s8, 7
    %p47 = scmp.ne.s32.totalorder %s42, %s44
    %p48 = scmp.eq.s32.totalorder %s8, 0
    %p49 = por %p47, %p48
    %p50 = scmp.ne.s32.totalorder %s42, %s44
    %p51 = scmp.eq.s32.totalorder %s13, 7
    %p52 = por %p50, %p51
    %p53 = scmp.ne.s32.totalorder %s44, %s45
    %p54 = scmp.eq.s32.totalorder %s13, 0
    %p55 = por %p53, %p54
    %p56 = scmp.ne.s32.totalorder %s44, %s45
    %p57 = scmp.eq.s32.totalorder %s14, 7
    %p58 = por %p56, %p57
    %p60 = scmp.ne.s32.totalorder %s45, %s59
    %p61 = scmp.eq.s32.totalorder %s14, 0
    %p62 = por %p60, %p61
    %s63 = ssub.s32 %s8, %s15
    %p64 = scmp.eq.s32.totalorder %s63, 0
    %s66 = sadd.s32 %s65, 1
    %s67 = scalar_select %p64, %s65, %s66
    %p70 = pneg %p64
    %p71 = scmp.eq.s32.totalorder %s8, 7
    %p72 = por %p70, %p71
    %p73 = scmp.ne.s32.totalorder %s65, %s68
    %p74 = scmp.eq.s32.totalorder %s8, 0
    %p75 = por %p73, %p74
    %p76 = scmp.ne.s32.totalorder %s65, %s68
    %p77 = scmp.eq.s32.totalorder %s13, 7
    %p78 = por %p76, %p77
    %p79 = scmp.ne.s32.totalorder %s68, %s69
    %p80 = scmp.eq.s32.totalorder %s13, 0
    %p81 = por %p79, %p80
    %p82 = scmp.ne.s32.totalorder %s68, %s69
    %p83 = scmp.eq.s32.totalorder %s14, 7
    %p84 = por %p82, %p83
    %p86 = scmp.ne.s32.totalorder %s69, %s85
    %p87 = scmp.eq.s32.totalorder %s14, 0
    %p88 = por %p86, %p87
    %p89 = scmp.le.s32.totalorder 1, %s8
    %p90 = scmp.lt.s32.totalorder %s8, 9
    %p91 = pnand %p89, %p90
    %p92 = pneg %p91
    // Predicated region
    $region9: #{dof_cnn_lstm_forward.7} parent=5 // pred_check
      _
    $region10: #{dof_cnn_lstm_forward.7} parent=5 // pred_check_branch
      %94 = sbr.rel (%p91) target = $region12
    $region11: #{dof_cnn_lstm_forward.7} parent=5 // pred_region
      %s95 = ssub.s32 %s8, 1
      // Predicated region
      $region13: #{dof_cnn_lstm_forward.7} parent=11 // pred_check
        %p96 = pneg %p55
      $region14: #{dof_cnn_lstm_forward.7} parent=11 // pred_check_branch
        %98 = sbr.rel (%p96) target = $region16
      $region15: #{dof_cnn_lstm_forward.7} parent=11 // pred_region
        _
      $region16: #{dof_cnn_lstm_forward.7} parent=11 // pred_fallthru
        _
    $region12: #{dof_cnn_lstm_forward.7} parent=5 // pred_fallthru
      _
    %p99 = scmp.lt.s32.totalorder %s8, 8
    // Predicated region
    $region17: #{dof_cnn_lstm_forward.7} parent=5 // pred_check
      %p100 = pneg %p99
    $region18: #{dof_cnn_lstm_forward.7} parent=5 // pred_check_branch
      %102 = sbr.rel (%p100) target = $region20
    $region19: #{dof_cnn_lstm_forward.7} parent=5 // pred_region
      // Predicated region
      $region21: #{dof_cnn_lstm_forward.7} parent=19 // pred_check
        %p103 = pneg %p28
      $region22: #{dof_cnn_lstm_forward.7} parent=19 // pred_check_branch
        %105 = sbr.rel (%p103) target = $region24
      $region23: #{dof_cnn_lstm_forward.7} parent=19 // pred_region
        %p106 = scmp.lt.s32.totalorder %s8, 7
        %s107 = scalar_select %p106, %s8, 7
        %s108 = smul.addr %s107, 8
        %s109 = smul.addr %s108, 4
        %s110 = scalar_lea.vmem %s0, %s109
      $region24: #{dof_cnn_lstm_forward.7} parent=19 // pred_fallthru
        _
    $region20: #{dof_cnn_lstm_forward.7} parent=5 // pred_fallthru
      _
    %p111 = scmp.le.s32.totalorder 1, %s8
    %p112 = scmp.lt.s32.totalorder %s8, 9
    %p113 = pnand %p111, %p112
    %p114 = pneg %p113
    // Predicated region
    $region25: #{dof_cnn_lstm_forward.7} parent=5 // pred_check
      _
    $region26: #{dof_cnn_lstm_forward.7} parent=5 // pred_check_branch
      %116 = sbr.rel (%p113) target = $region28
    $region27: #{dof_cnn_lstm_forward.7} parent=5 // pred_region
      %s117 = ssub.s32 %s8, 1
      %p118 = scmp.lt.s32.totalorder %s13, 7
      %s119 = scalar_select %p118, %s13, 7
      %s120 = smul.addr %s119, 8
      %s121 = smul.addr %s120, 4
      %s122 = scalar_lea.vmem %s0, %s121
      %p123 = pneg %p34
      %p124 = pneg %p31
      %p125 = pneg %p55
      %p126 = pneg %p52
      %p127 = pneg %p81
      %p128 = pneg %p78
      %p129 = scmp.lt.s32.totalorder %s13, 7
      %s130 = scalar_select %p129, %s13, 7
      %s131 = smul.addr %s130, 6
      %s132 = smul.addr %s131, 4
      %s133 = scalar_lea.vmem %s2, %s132
      %p134 = scmp.lt.s32.totalorder %s13, 7
      %s135 = scalar_select %p134, %s13, 7
      %s136 = smul.addr %s135, 8
      %s137 = smul.addr %s136, 4
      %s138 = scalar_lea.vmem %s0, %s137
      %p139 = scmp.lt.s32.totalorder %s13, 7
      %s140 = scalar_select %p139, %s13, 7
      %s141 = smul.addr %s140, 6
      %s142 = smul.addr %s141, 4
      %s143 = scalar_lea.vmem %s2, %s142
      %v145 = vld [vmem:[%s138] sm:$0xff]
      %v146 = vld [vmem:[%s138 + $0x8] sm:$0xff]
      %v147 = vld [vmem:[%s138 + $0x10] sm:$0x33]
      %v148 = vld [vmem:[%s138 + $0x18] sm:$0x33]
      %149 = vst [vmem:[#allocation2] sm:$0xff] %v145
      %vm150 = vcmask 748544
      %151 = vst.msk [vmem:[#allocation2 + $0x8] sm:$0xf] %vm150, %v146
      %152 = vst [vmem:[#allocation2 + $0xc] sm:$0x33] %v147
      %vm153 = vcmask 746496
      %154 = vst.msk [vmem:[#allocation2 + $0x14] sm:$0x3] %vm153, %v148
      %vm159 = vcmask 1041408
      %vm160 = vcmask 1045508
      %vm161 = vmor %vm159, %vm160
      %v162 = vrot.slane %v145, 6
      %v163 = vrot.slane %v146, 6
      %v164 = vrot.slane %v162, 4
      %v165 = vrot.slane %v147, 6
      %v166 = vsel %vm161, %v164, %v165
      %v167 = vrot.slane %v163, 4
      %v168 = vrot.slane %v148, 6
      %v169 = vsel %vm161, %v167, %v168
      %170 = vrot.lane.b32.xlu0 %v162, 127
      %v171 = vpop.permute.xlu0 %170
      %172 = vrot.lane.b32.xlu0 %v163, 127
      %v173 = vpop.permute.xlu0 %172
      %174 = vrot.lane.b32.xlu0 %v166, 127
      %v175 = vpop.permute.xlu0 %174
      %176 = vrot.lane.b32.xlu0 %v169, 127
      %v177 = vpop.permute.xlu0 %176
      %v178 = vrot.slane %v171, 4
      %v179 = vrot.slane %v173, 4
      %v180 = vrot.slane %v175, 4
      %v181 = vrot.slane %v177, 4
      %vm182 = vcmask 1043456
      %v183 = vsel %vm182, %v178, %v179
      %vm184 = vcmask 1039360
      %v185 = vsel %vm184, %v171, %v183
      %v186 = vsel %vm182, %v180, %v181
      %v187 = vsel %vm184, %v175, %v186
      %192 = vst [vmem:[#allocation2 + $0xc] sm:$0xcc] %v185
      %vm193 = vcmask 748546
      %194 = vst.msk [vmem:[#allocation2 + $0x14] sm:$0xc] %vm193, %v173
      %195 = vst [vmem:[#allocation2 + $0x18] sm:$0xff] %v187
      %196 = vst.msk [vmem:[#allocation2 + $0x20] sm:$0xf] %vm150, %v177
      %197 = vrot.lane.b32.xlu0 %v145, 126
      %v198 = vpop.permute.xlu0 %197
      %199 = vrot.lane.b32.xlu0 %v146, 126
      %v200 = vpop.permute.xlu0 %199
      %201 = vrot.lane.b32.xlu0 %v147, 126
      %v202 = vpop.permute.xlu0 %201
      %203 = vrot.lane.b32.xlu0 %v148, 126
      %v204 = vpop.permute.xlu0 %203
      %v205 = vrot.slane %v198, 4
      %v206 = vrot.slane %v200, 4
      %v207 = vrot.slane %v202, 4
      %v208 = vrot.slane %v204, 4
      %v209 = vsel %vm182, %v205, %v206
      %vm210 = vcmask 1031168
      %v211 = vsel %vm210, %v198, %v209
      %v212 = vsel %vm182, %v207, %v208
      %v213 = vsel %vm210, %v202, %v212
      %218 = vst [vmem:[#allocation2 + $0x24] sm:$0xff] %v211
      %219 = vst.msk [vmem:[#allocation2 + $0x2c] sm:$0xf] %vm150, %v200
      %220 = vst [vmem:[#allocation2 + $0x30] sm:$0x33] %v213
      %221 = vst.msk [vmem:[#allocation2 + $0x38] sm:$0x3] %vm153, %v204
      %222 = vrot.lane.b32.xlu0 %v162, 125
      %v223 = vpop.permute.xlu0 %222
      %224 = vrot.lane.b32.xlu0 %v163, 125
      %v225 = vpop.permute.xlu0 %224
      %226 = vrot.lane.b32.xlu0 %v166, 125
      %v227 = vpop.permute.xlu0 %226
      %228 = vrot.lane.b32.xlu0 %v169, 125
      %v229 = vpop.permute.xlu0 %228
      %v230 = vrot.slane %v223, 4
      %v231 = vrot.slane %v225, 4
      %v232 = vrot.slane %v227, 4
      %v233 = vrot.slane %v229, 4
      %v234 = vsel %vm182, %v230, %v231
      %vm235 = vcmask 1022976
      %v236 = vsel %vm235, %v223, %v234
      %v237 = vsel %vm182, %v232, %v233
      %v238 = vsel %vm235, %v227, %v237
      %243 = vst [vmem:[#allocation2 + $0x30] sm:$0xcc] %v236
      %244 = vst.msk [vmem:[#allocation2 + $0x38] sm:$0xc] %vm193, %v225
      %245 = vst [vmem:[#allocation2 + $0x3c] sm:$0xff] %v238
      %246 = vst.msk [vmem:[#allocation2 + $0x44] sm:$0xf] %vm150, %v229
      %247 = vrot.lane.b32.xlu0 %v145, 124
      %v248 = vpop.permute.xlu0 %247
      %249 = vrot.lane.b32.xlu0 %v146, 124
      %v250 = vpop.permute.xlu0 %249
      %251 = vrot.lane.b32.xlu0 %v147, 124
      %v252 = vpop.permute.xlu0 %251
      %253 = vrot.lane.b32.xlu0 %v148, 124
      %v254 = vpop.permute.xlu0 %253
      %v255 = vrot.slane %v248, 4
      %v256 = vrot.slane %v250, 4
      %v257 = vrot.slane %v252, 4
      %v258 = vrot.slane %v254, 4
      %v259 = vsel %vm182, %v255, %v256
      %vm260 = vcmask 1014784
      %v261 = vsel %vm260, %v248, %v259
      %v262 = vsel %vm182, %v257, %v258
      %v263 = vsel %vm260, %v252, %v262
      %268 = vst [vmem:[#allocation2 + $0x48] sm:$0xff] %v261
      %269 = vst.msk [vmem:[#allocation2 + $0x50] sm:$0xf] %vm150, %v250
      %270 = vst [vmem:[#allocation2 + $0x54] sm:$0x33] %v263
      %271 = vst.msk [vmem:[#allocation2 + $0x5c] sm:$0x3] %vm153, %v254
      %272 = vrot.lane.b32.xlu0 %v162, 108
      %v273 = vpop.permute.xlu0 %272
      %274 = vrot.lane.b32.xlu0 %v163, 108
      %v275 = vpop.permute.xlu0 %274
      %276 = vrot.lane.b32.xlu0 %v166, 108
      %v277 = vpop.permute.xlu0 %276
      %278 = vrot.lane.b32.xlu0 %v169, 108
      %v279 = vpop.permute.xlu0 %278
      %v280 = vrot.slane %v273, 4
      %v281 = vrot.slane %v275, 4
      %v282 = vrot.slane %v277, 4
      %v283 = vrot.slane %v279, 4
      %v284 = vsel %vm182, %v280, %v281
      %vm285 = vcmask 883712
      %v286 = vsel %vm285, %v273, %v284
      %v287 = vsel %vm182, %v282, %v283
      %v288 = vsel %vm285, %v277, %v287
      %293 = vst [vmem:[#allocation2 + $0x54] sm:$0xcc] %v286
      %294 = vst.msk [vmem:[#allocation2 + $0x5c] sm:$0xc] %vm193, %v275
      %295 = vst [vmem:[#allocation2 + $0x60] sm:$0xff] %v288
      %296 = vst.msk [vmem:[#allocation2 + $0x68] sm:$0xf] %vm150, %v279
      %297 = vrot.lane.b32.xlu0 %v145, 107
      %v298 = vpop.permute.xlu0 %297
      %299 = vrot.lane.b32.xlu0 %v146, 107
      %v300 = vpop.permute.xlu0 %299
      %301 = vrot.lane.b32.xlu0 %v147, 107
      %v302 = vpop.permute.xlu0 %301
      %303 = vrot.lane.b32.xlu0 %v148, 107
      %v304 = vpop.permute.xlu0 %303
      %v305 = vrot.slane %v298, 4
      %v306 = vrot.slane %v300, 4
      %v307 = vrot.slane %v302, 4
      %v308 = vrot.slane %v304, 4
      %v309 = vsel %vm182, %v305, %v306
      %vm310 = vcmask 875520
      %v311 = vsel %vm310, %v298, %v309
      %v312 = vsel %vm182, %v307, %v308
      %v313 = vsel %vm310, %v302, %v312
      %318 = vst [vmem:[#allocation2 + $0x6c] sm:$0xff] %v311
      %319 = vst.msk [vmem:[#allocation2 + $0x74] sm:$0xf] %vm150, %v300
      %320 = vst [vmem:[#allocation2 + $0x78] sm:$0x33] %v313
      %321 = vst.msk [vmem:[#allocation2 + $0x80] sm:$0x3] %vm153, %v304
      %322 = vrot.lane.b32.xlu0 %v162, 106
      %v323 = vpop.permute.xlu0 %322
      %324 = vrot.lane.b32.xlu0 %v163, 106
      %v325 = vpop.permute.xlu0 %324
      %326 = vrot.lane.b32.xlu0 %v166, 106
      %v327 = vpop.permute.xlu0 %326
      %328 = vrot.lane.b32.xlu0 %v169, 106
      %v329 = vpop.permute.xlu0 %328
      %v330 = vrot.slane %v323, 4
      %v331 = vrot.slane %v325, 4
      %v332 = vrot.slane %v327, 4
      %v333 = vrot.slane %v329, 4
      %v334 = vsel %vm182, %v330, %v331
      %vm335 = vcmask 867328
      %v336 = vsel %vm335, %v323, %v334
      %v337 = vsel %vm182, %v332, %v333
      %v338 = vsel %vm335, %v327, %v337
      %343 = vst [vmem:[#allocation2 + $0x78] sm:$0xcc] %v336
      %344 = vst.msk [vmem:[#allocation2 + $0x80] sm:$0xc] %vm193, %v325
      %345 = vst [vmem:[#allocation2 + $0x84] sm:$0xff] %v338
      %346 = vst.msk [vmem:[#allocation2 + $0x8c] sm:$0xf] %vm150, %v329
      %347 = vrot.lane.b32.xlu0 %v145, 105
      %v348 = vpop.permute.xlu0 %347
      %349 = vrot.lane.b32.xlu0 %v146, 105
      %v350 = vpop.permute.xlu0 %349
      %351 = vrot.lane.b32.xlu0 %v147, 105
      %v352 = vpop.permute.xlu0 %351
      %353 = vrot.lane.b32.xlu0 %v148, 105
      %v354 = vpop.permute.xlu0 %353
      %v355 = vrot.slane %v348, 4
      %v356 = vrot.slane %v350, 4
      %v357 = vrot.slane %v352, 4
      %v358 = vrot.slane %v354, 4
      %v359 = vsel %vm182, %v355, %v356
      %vm360 = vcmask 859136
      %v361 = vsel %vm360, %v348, %v359
      %v362 = vsel %vm182, %v357, %v358
      %v363 = vsel %vm360, %v352, %v362
      %368 = vst [vmem:[#allocation2 + $0x90] sm:$0xff] %v361
      %369 = vst.msk [vmem:[#allocation2 + $0x98] sm:$0xf] %vm150, %v350
      %370 = vst [vmem:[#allocation2 + $0x9c] sm:$0x33] %v363
      %371 = vst.msk [vmem:[#allocation2 + $0xa4] sm:$0x3] %vm153, %v354
      %372 = vrot.lane.b32.xlu0 %v162, 104
      %v373 = vpop.permute.xlu0 %372
      %374 = vrot.lane.b32.xlu0 %v163, 104
      %v375 = vpop.permute.xlu0 %374
      %376 = vrot.lane.b32.xlu0 %v166, 104
      %v377 = vpop.permute.xlu0 %376
      %378 = vrot.lane.b32.xlu0 %v169, 104
      %v379 = vpop.permute.xlu0 %378
      %v380 = vrot.slane %v373, 4
      %v381 = vrot.slane %v375, 4
      %v382 = vrot.slane %v377, 4
      %v383 = vrot.slane %v379, 4
      %v384 = vsel %vm182, %v380, %v381
      %vm385 = vcmask 850944
      %v386 = vsel %vm385, %v373, %v384
      %v387 = vsel %vm182, %v382, %v383
      %v388 = vsel %vm385, %v377, %v387
      %393 = vst [vmem:[#allocation2 + $0x9c] sm:$0xcc] %v386
      %394 = vst.msk [vmem:[#allocation2 + $0xa4] sm:$0xc] %vm193, %v375
      %395 = vst [vmem:[#allocation2 + $0xa8] sm:$0xff] %v388
      %396 = vst.msk [vmem:[#allocation2 + $0xb0] sm:$0xf] %vm150, %v379
      %397 = vrot.lane.b32.xlu0 %v145, 88
      %v398 = vpop.permute.xlu0 %397
      %399 = vrot.lane.b32.xlu0 %v146, 88
      %v400 = vpop.permute.xlu0 %399
      %401 = vrot.lane.b32.xlu0 %v147, 88
      %v402 = vpop.permute.xlu0 %401
      %403 = vrot.lane.b32.xlu0 %v148, 88
      %v404 = vpop.permute.xlu0 %403
      %v405 = vrot.slane %v398, 4
      %v406 = vrot.slane %v400, 4
      %v407 = vrot.slane %v402, 4
      %v408 = vrot.slane %v404, 4
      %v409 = vsel %vm182, %v405, %v406
      %vm410 = vcmask 719872
      %v411 = vsel %vm410, %v398, %v409
      %v412 = vsel %vm410, %v400, %v406
      %v413 = vsel %vm182, %v407, %v408
      %v414 = vsel %vm410, %v402, %v413
      %v415 = vsel %vm410, %v404, %v408
      %420 = vst [vmem:[#allocation2 + $0xb4] sm:$0xff] %v411
      %421 = vst.msk [vmem:[#allocation2 + $0xbc] sm:$0xf] %vm150, %v412
      %422 = vst [vmem:[#allocation2 + $0xc0] sm:$0x33] %v414
      %423 = vst.msk [vmem:[#allocation2 + $0xc8] sm:$0x3] %vm153, %v415
      %424 = vrot.lane.b32.xlu0 %v162, 87
      %v425 = vpop.permute.xlu0 %424
      %426 = vrot.lane.b32.xlu0 %v163, 87
      %v427 = vpop.permute.xlu0 %426
      %428 = vrot.lane.b32.xlu0 %v166, 87
      %v429 = vpop.permute.xlu0 %428
      %430 = vrot.lane.b32.xlu0 %v169, 87
      %v431 = vpop.permute.xlu0 %430
      %v432 = vrot.slane %v425, 4
      %v433 = vrot.slane %v427, 4
      %v434 = vrot.slane %v429, 4
      %v435 = vrot.slane %v431, 4
      %v436 = vsel %vm182, %v432, %v433
      %vm437 = vcmask 711680
      %v438 = vsel %vm437, %v425, %v436
      %v439 = vsel %vm437, %v427, %v433
      %v440 = vsel %vm182, %v434, %v435
      %v441 = vsel %vm437, %v429, %v440
      %v442 = vsel %vm437, %v431, %v435
      %447 = vst [vmem:[#allocation2 + $0xc0] sm:$0xcc] %v438
      %448 = vst.msk [vmem:[#allocation2 + $0xc8] sm:$0xc] %vm193, %v439
      %449 = vst [vmem:[#allocation2 + $0xcc] sm:$0xff] %v441
      %450 = vst.msk [vmem:[#allocation2 + $0xd4] sm:$0xf] %vm150, %v442
      %451 = vrot.lane.b32.xlu0 %v145, 86
      %v452 = vpop.permute.xlu0 %451
      %453 = vrot.lane.b32.xlu0 %v146, 86
      %v454 = vpop.permute.xlu0 %453
      %455 = vrot.lane.b32.xlu0 %v147, 86
      %v456 = vpop.permute.xlu0 %455
      %457 = vrot.lane.b32.xlu0 %v148, 86
      %v458 = vpop.permute.xlu0 %457
      %v459 = vrot.slane %v452, 4
      %v460 = vrot.slane %v454, 4
      %v461 = vrot.slane %v456, 4
      %v462 = vrot.slane %v458, 4
      %v463 = vsel %vm182, %v459, %v460
      %vm464 = vcmask 703488
      %v465 = vsel %vm464, %v452, %v463
      %v466 = vsel %vm464, %v454, %v460
      %v467 = vsel %vm182, %v461, %v462
      %v468 = vsel %vm464, %v456, %v467
      %v469 = vsel %vm464, %v458, %v462
      %474 = vst [vmem:[#allocation2 + $0xd8] sm:$0xff] %v465
      %475 = vst.msk [vmem:[#allocation2 + $0xe0] sm:$0xf] %vm150, %v466
      %476 = vst [vmem:[#allocation2 + $0xe4] sm:$0x33] %v468
      %477 = vst.msk [vmem:[#allocation2 + $0xec] sm:$0x3] %vm153, %v469
      %478 = vrot.lane.b32.xlu0 %v162, 85
      %v479 = vpop.permute.xlu0 %478
      %480 = vrot.lane.b32.xlu0 %v163, 85
      %v481 = vpop.permute.xlu0 %480
      %482 = vrot.lane.b32.xlu0 %v166, 85
      %v483 = vpop.permute.xlu0 %482
      %484 = vrot.lane.b32.xlu0 %v169, 85
      %v485 = vpop.permute.xlu0 %484
      %v486 = vrot.slane %v479, 4
      %v487 = vrot.slane %v481, 4
      %v488 = vrot.slane %v483, 4
      %v489 = vrot.slane %v485, 4
      %v490 = vsel %vm182, %v486, %v487
      %vm491 = vcmask 695296
      %v492 = vsel %vm491, %v479, %v490
      %v493 = vsel %vm491, %v481, %v487
      %v494 = vsel %vm182, %v488, %v489
      %v495 = vsel %vm491, %v483, %v494
      %v496 = vsel %vm491, %v485, %v489
      %501 = vst [vmem:[#allocation2 + $0xe4] sm:$0xcc] %v492
      %502 = vst.msk [vmem:[#allocation2 + $0xec] sm:$0xc] %vm193, %v493
      %503 = vst [vmem:[#allocation2 + $0xf0] sm:$0xff] %v495
      %504 = vst.msk [vmem:[#allocation2 + $0xf8] sm:$0xf] %vm150, %v496
      %505 = vrot.lane.b32.xlu0 %v145, 84
      %v506 = vpop.permute.xlu0 %505
      %507 = vrot.lane.b32.xlu0 %v146, 84
      %v508 = vpop.permute.xlu0 %507
      %509 = vrot.lane.b32.xlu0 %v147, 84
      %v510 = vpop.permute.xlu0 %509
      %511 = vrot.lane.b32.xlu0 %v148, 84
      %v512 = vpop.permute.xlu0 %511
      %v513 = vrot.slane %v506, 4
      %v514 = vrot.slane %v508, 4
      %v515 = vrot.slane %v510, 4
      %v516 = vrot.slane %v512, 4
      %v517 = vsel %vm182, %v513, %v514
      %vm518 = vcmask 687104
      %v519 = vsel %vm518, %v506, %v517
      %v520 = vsel %vm518, %v508, %v514
      %v521 = vsel %vm182, %v515, %v516
      %v522 = vsel %vm518, %v510, %v521
      %v523 = vsel %vm518, %v512, %v516
      %528 = vst [vmem:[#allocation2 + $0xfc] sm:$0xff] %v519
      %529 = vst.msk [vmem:[#allocation2 + $0x104] sm:$0xf] %vm150, %v520
      %530 = vst [vmem:[#allocation2 + $0x108] sm:$0x33] %v522
      %531 = vst.msk [vmem:[#allocation2 + $0x110] sm:$0x3] %vm153, %v523
      %532 = vrot.lane.b32.xlu0 %v162, 68
      %v533 = vpop.permute.xlu0 %532
      %534 = vrot.lane.b32.xlu0 %v163, 68
      %v535 = vpop.permute.xlu0 %534
      %536 = vrot.lane.b32.xlu0 %v166, 68
      %v537 = vpop.permute.xlu0 %536
      %538 = vrot.lane.b32.xlu0 %v169, 68
      %v539 = vpop.permute.xlu0 %538
      %v540 = vrot.slane %v533, 4
      %v541 = vrot.slane %v535, 4
      %v542 = vrot.slane %v537, 4
      %v543 = vrot.slane %v539, 4
      %v544 = vsel %vm182, %v540, %v541
      %vm545 = vcmask 556032
      %v546 = vsel %vm545, %v533, %v544
      %v547 = vsel %vm545, %v535, %v541
      %v548 = vsel %vm182, %v542, %v543
      %v549 = vsel %vm545, %v537, %v548
      %v550 = vsel %vm545, %v539, %v543
      %555 = vst [vmem:[#allocation2 + $0x108] sm:$0xcc] %v546
      %556 = vst.msk [vmem:[#allocation2 + $0x110] sm:$0xc] %vm193, %v547
      %557 = vst [vmem:[#allocation2 + $0x114] sm:$0xff] %v549
      %558 = vst.msk [vmem:[#allocation2 + $0x11c] sm:$0xf] %vm150, %v550
      %559 = vrot.lane.b32.xlu0 %v145, 67
      %v560 = vpop.permute.xlu0 %559
      %561 = vrot.lane.b32.xlu0 %v146, 67
      %v562 = vpop.permute.xlu0 %561
      %563 = vrot.lane.b32.xlu0 %v147, 67
      %v564 = vpop.permute.xlu0 %563
      %565 = vrot.lane.b32.xlu0 %v148, 67
      %v566 = vpop.permute.xlu0 %565
      %v567 = vrot.slane %v560, 4
      %v568 = vrot.slane %v562, 4
      %v569 = vrot.slane %v564, 4
      %v570 = vrot.slane %v566, 4
      %v571 = vsel %vm182, %v567, %v568
      %vm572 = vcmask 547840
      %v573 = vsel %vm572, %v560, %v571
      %v574 = vsel %vm572, %v562, %v568
      %v575 = vsel %vm182, %v569, %v570
      %v576 = vsel %vm572, %v564, %v575
      %v577 = vsel %vm572, %v566, %v570
      %582 = vst [vmem:[#allocation2 + $0x120] sm:$0xff] %v573
      %583 = vst.msk [vmem:[#allocation2 + $0x128] sm:$0xf] %vm150, %v574
      %584 = vst [vmem:[#allocation2 + $0x12c] sm:$0x33] %v576
      %585 = vst.msk [vmem:[#allocation2 + $0x134] sm:$0x3] %vm153, %v577
      %586 = vrot.lane.b32.xlu0 %v162, 66
      %v587 = vpop.permute.xlu0 %586
      %588 = vrot.lane.b32.xlu0 %v163, 66
      %v589 = vpop.permute.xlu0 %588
      %590 = vrot.lane.b32.xlu0 %v166, 66
      %v591 = vpop.permute.xlu0 %590
      %592 = vrot.lane.b32.xlu0 %v169, 66
      %v593 = vpop.permute.xlu0 %592
      %v594 = vrot.slane %v587, 4
      %v595 = vrot.slane %v589, 4
      %v596 = vrot.slane %v591, 4
      %v597 = vrot.slane %v593, 4
      %v598 = vsel %vm182, %v594, %v595
      %vm599 = vcmask 539648
      %v600 = vsel %vm599, %v587, %v598
      %v601 = vsel %vm599, %v589, %v595
      %v602 = vsel %vm182, %v596, %v597
      %v603 = vsel %vm599, %v591, %v602
      %v604 = vsel %vm599, %v593, %v597
      %609 = vst [vmem:[#allocation2 + $0x12c] sm:$0xcc] %v600
      %610 = vst.msk [vmem:[#allocation2 + $0x134] sm:$0xc] %vm193, %v601
      %611 = vst [vmem:[#allocation2 + $0x138] sm:$0xff] %v603
      %612 = vst.msk [vmem:[#allocation2 + $0x140] sm:$0xf] %vm150, %v604
      %613 = vrot.lane.b32.xlu0 %v145, 65
      %v614 = vpop.permute.xlu0 %613
      %615 = vrot.lane.b32.xlu0 %v146, 65
      %v616 = vpop.permute.xlu0 %615
      %617 = vrot.lane.b32.xlu0 %v147, 65
      %v618 = vpop.permute.xlu0 %617
      %619 = vrot.lane.b32.xlu0 %v148, 65
      %v620 = vpop.permute.xlu0 %619
      %v621 = vrot.slane %v614, 4
      %v622 = vrot.slane %v616, 4
      %v623 = vrot.slane %v618, 4
      %v624 = vrot.slane %v620, 4
      %v625 = vsel %vm182, %v621, %v622
      %vm626 = vcmask 531456
      %v627 = vsel %vm626, %v614, %v625
      %v628 = vsel %vm626, %v616, %v622
      %v629 = vsel %vm182, %v623, %v624
      %v630 = vsel %vm626, %v618, %v629
      %v631 = vsel %vm626, %v620, %v624
      %636 = vst [vmem:[#allocation2 + $0x144] sm:$0xff] %v627
      %637 = vst.msk [vmem:[#allocation2 + $0x14c] sm:$0xf] %vm150, %v628
      %638 = vst [vmem:[#allocation2 + $0x150] sm:$0x33] %v630
      %639 = vst.msk [vmem:[#allocation2 + $0x158] sm:$0x3] %vm153, %v631
      %640 = vrot.lane.b32.xlu0 %v162, 64
      %v641 = vpop.permute.xlu0 %640
      %642 = vrot.lane.b32.xlu0 %v163, 64
      %v643 = vpop.permute.xlu0 %642
      %644 = vrot.lane.b32.xlu0 %v166, 64
      %v645 = vpop.permute.xlu0 %644
      %646 = vrot.lane.b32.xlu0 %v169, 64
      %v647 = vpop.permute.xlu0 %646
      %v648 = vrot.slane %v641, 4
      %v649 = vrot.slane %v643, 4
      %v650 = vrot.slane %v645, 4
      %v651 = vrot.slane %v647, 4
      %v652 = vsel %vm182, %v648, %v649
      %vm653 = vcmask 523264
      %v654 = vsel %vm653, %v641, %v652
      %v655 = vsel %vm653, %v643, %v649
      %v656 = vsel %vm182, %v650, %v651
      %v657 = vsel %vm653, %v645, %v656
      %v658 = vsel %vm653, %v647, %v651
      %663 = vst [vmem:[#allocation2 + $0x150] sm:$0xcc] %v654
      %664 = vst.msk [vmem:[#allocation2 + $0x158] sm:$0xc] %vm193, %v655
      %665 = vst [vmem:[#allocation2 + $0x15c] sm:$0xff] %v657
      %666 = vst.msk [vmem:[#allocation2 + $0x164] sm:$0xf] %vm150, %v658
      %667 = vrot.lane.b32.xlu0 %v145, 48
      %v668 = vpop.permute.xlu0 %667
      %669 = vrot.lane.b32.xlu0 %v146, 48
      %v670 = vpop.permute.xlu0 %669
      %671 = vrot.lane.b32.xlu0 %v147, 48
      %v672 = vpop.permute.xlu0 %671
      %673 = vrot.lane.b32.xlu0 %v148, 48
      %v674 = vpop.permute.xlu0 %673
      %v675 = vrot.slane %v668, 4
      %v676 = vrot.slane %v670, 4
      %v677 = vrot.slane %v672, 4
      %v678 = vrot.slane %v674, 4
      %v679 = vsel %vm182, %v675, %v676
      %vm680 = vcmask 392192
      %v681 = vsel %vm680, %v668, %v679
      %v682 = vsel %vm680, %v670, %v676
      %v683 = vsel %vm182, %v677, %v678
      %v684 = vsel %vm680, %v672, %v683
      %v685 = vsel %vm680, %v674, %v678
      %690 = vst [vmem:[#allocation2 + $0x168] sm:$0xff] %v681
      %691 = vst.msk [vmem:[#allocation2 + $0x170] sm:$0xf] %vm150, %v682
      %692 = vst [vmem:[#allocation2 + $0x174] sm:$0x33] %v684
      %693 = vst.msk [vmem:[#allocation2 + $0x17c] sm:$0x3] %vm153, %v685
      %694 = vrot.lane.b32.xlu0 %v162, 47
      %v695 = vpop.permute.xlu0 %694
      %696 = vrot.lane.b32.xlu0 %v163, 47
      %v697 = vpop.permute.xlu0 %696
      %698 = vrot.lane.b32.xlu0 %v166, 47
      %v699 = vpop.permute.xlu0 %698
      %700 = vrot.lane.b32.xlu0 %v169, 47
      %v701 = vpop.permute.xlu0 %700
      %v702 = vrot.slane %v695, 4
      %v703 = vrot.slane %v697, 4
      %v704 = vrot.slane %v699, 4
      %v705 = vrot.slane %v701, 4
      %v706 = vsel %vm182, %v702, %v703
      %vm707 = vcmask 384000
      %v708 = vsel %vm707, %v695, %v706
      %v709 = vsel %vm707, %v697, %v703
      %v710 = vsel %vm182, %v704, %v705
      %v711 = vsel %vm707, %v699, %v710
      %v712 = vsel %vm707, %v701, %v705
      %717 = vst [vmem:[#allocation2 + $0x174] sm:$0xcc] %v708
      %718 = vst.msk [vmem:[#allocation2 + $0x17c] sm:$0xc] %vm193, %v709
      %719 = vst [vmem:[#allocation2 + $0x180] sm:$0xff] %v711
      %720 = vst.msk [vmem:[#allocation2 + $0x188] sm:$0xf] %vm150, %v712
      %721 = vrot.lane.b32.xlu0 %v145, 46
      %v722 = vpop.permute.xlu0 %721
      %723 = vrot.lane.b32.xlu0 %v146, 46
      %v724 = vpop.permute.xlu0 %723
      %725 = vrot.lane.b32.xlu0 %v147, 46
      %v726 = vpop.permute.xlu0 %725
      %727 = vrot.lane.b32.xlu0 %v148, 46
      %v728 = vpop.permute.xlu0 %727
      %v729 = vrot.slane %v722, 4
      %v730 = vrot.slane %v724, 4
      %v731 = vrot.slane %v726, 4
      %v732 = vrot.slane %v728, 4
      %v733 = vsel %vm182, %v729, %v730
      %vm734 = vcmask 375808
      %v735 = vsel %vm734, %v722, %v733
      %v736 = vsel %vm734, %v724, %v730
      %v737 = vsel %vm182, %v731, %v732
      %v738 = vsel %vm734, %v726, %v737
      %v739 = vsel %vm734, %v728, %v732
      %744 = vst [vmem:[#allocation2 + $0x18c] sm:$0xff] %v735
      %745 = vst.msk [vmem:[#allocation2 + $0x194] sm:$0xf] %vm150, %v736
      %746 = vst [vmem:[#allocation2 + $0x198] sm:$0x33] %v738
      %747 = vst.msk [vmem:[#allocation2 + $0x1a0] sm:$0x3] %vm153, %v739
      %748 = vrot.lane.b32.xlu0 %v162, 45
      %v749 = vpop.permute.xlu0 %748
      %750 = vrot.lane.b32.xlu0 %v163, 45
      %v751 = vpop.permute.xlu0 %750
      %752 = vrot.lane.b32.xlu0 %v166, 45
      %v753 = vpop.permute.xlu0 %752
      %754 = vrot.lane.b32.xlu0 %v169, 45
      %v755 = vpop.permute.xlu0 %754
      %v756 = vrot.slane %v749, 4
      %v757 = vrot.slane %v751, 4
      %v758 = vrot.slane %v753, 4
      %v759 = vrot.slane %v755, 4
      %v760 = vsel %vm182, %v756, %v757
      %vm761 = vcmask 367616
      %v762 = vsel %vm761, %v749, %v760
      %v763 = vsel %vm761, %v751, %v757
      %v764 = vsel %vm182, %v758, %v759
      %v765 = vsel %vm761, %v753, %v764
      %v766 = vsel %vm761, %v755, %v759
      %771 = vst [vmem:[#allocation2 + $0x198] sm:$0xcc] %v762
      %772 = vst.msk [vmem:[#allocation2 + $0x1a0] sm:$0xc] %vm193, %v763
      %773 = vst [vmem:[#allocation2 + $0x1a4] sm:$0xff] %v765
      %774 = vst.msk [vmem:[#allocation2 + $0x1ac] sm:$0xf] %vm150, %v766
      %775 = vrot.lane.b32.xlu0 %v145, 44
      %v776 = vpop.permute.xlu0 %775
      %777 = vrot.lane.b32.xlu0 %v146, 44
      %v778 = vpop.permute.xlu0 %777
      %779 = vrot.lane.b32.xlu0 %v147, 44
      %v780 = vpop.permute.xlu0 %779
      %781 = vrot.lane.b32.xlu0 %v148, 44
      %v782 = vpop.permute.xlu0 %781
      %v783 = vrot.slane %v776, 4
      %v784 = vrot.slane %v778, 4
      %v785 = vrot.slane %v780, 4
      %v786 = vrot.slane %v782, 4
      %v787 = vsel %vm182, %v783, %v784
      %vm788 = vcmask 359424
      %v789 = vsel %vm788, %v776, %v787
      %v790 = vsel %vm788, %v778, %v784
      %v791 = vsel %vm182, %v785, %v786
      %v792 = vsel %vm788, %v780, %v791
      %v793 = vsel %vm788, %v782, %v786
      %798 = vst [vmem:[#allocation2 + $0x1b0] sm:$0xff] %v789
      %799 = vst.msk [vmem:[#allocation2 + $0x1b8] sm:$0xf] %vm150, %v790
      %800 = vst [vmem:[#allocation2 + $0x1bc] sm:$0x33] %v792
      %801 = vst.msk [vmem:[#allocation2 + $0x1c4] sm:$0x3] %vm153, %v793
      %v802 = vld [vmem:[%s1] sm:$0xff]
      %v803 = vld [vmem:[%s1 + $0x8] sm:$0xf]
      %v804 = vld [vmem:[%s1 + $0xc] sm:$0x33]
      %v805 = vld [vmem:[%s1 + $0x14] sm:$0x3]
      %v806 = vld [vmem:[#allocation2] sm:$0xff]
      %v807 = vld [vmem:[#allocation2 + $0x8] sm:$0xf]
      %v808 = vld [vmem:[#allocation2 + $0xc] sm:$0xff]
      %v809 = vld [vmem:[#allocation2 + $0x14] sm:$0xf]
      %v810 = vld [vmem:[#allocation2 + $0x18] sm:$0xff]
      %v811 = vld [vmem:[#allocation2 + $0x20] sm:$0xf]
      %v812 = vld [vmem:[#allocation2 + $0x24] sm:$0xff]
      %v813 = vld [vmem:[#allocation2 + $0x2c] sm:$0xf]
      %v814 = vld [vmem:[#allocation2 + $0x30] sm:$0xff]
      %v815 = vld [vmem:[#allocation2 + $0x38] sm:$0xf]
      %v816 = vld [vmem:[#allocation2 + $0x3c] sm:$0xff]
      %v817 = vld [vmem:[#allocation2 + $0x44] sm:$0xf]
      %v818 = vld [vmem:[#allocation2 + $0x48] sm:$0xff]
      %v819 = vld [vmem:[#allocation2 + $0x50] sm:$0xf]
      %v820 = vld [vmem:[#allocation2 + $0x54] sm:$0xff]
      %v821 = vld [vmem:[#allocation2 + $0x5c] sm:$0xf]
      %v822 = vld [vmem:[#allocation2 + $0x60] sm:$0xff]
      %v823 = vld [vmem:[#allocation2 + $0x68] sm:$0xf]
      %v824 = vld [vmem:[#allocation2 + $0x6c] sm:$0xff]
      %v825 = vld [vmem:[#allocation2 + $0x74] sm:$0xf]
      %v826 = vld [vmem:[#allocation2 + $0x78] sm:$0xff]
      %v827 = vld [vmem:[#allocation2 + $0x80] sm:$0xf]
      %v828 = vld [vmem:[#allocation2 + $0x84] sm:$0xff]
      %v829 = vld [vmem:[#allocation2 + $0x8c] sm:$0xf]
      %v830 = vld [vmem:[#allocation2 + $0x90] sm:$0xff]
      %v831 = vld [vmem:[#allocation2 + $0x98] sm:$0xf]
      %v832 = vld [vmem:[#allocation2 + $0x9c] sm:$0xff]
      %v833 = vld [vmem:[#allocation2 + $0xa4] sm:$0xf]
      %v834 = vld [vmem:[#allocation2 + $0xa8] sm:$0xff]
      %v835 = vld [vmem:[#allocation2 + $0xb0] sm:$0xf]
      %v836 = vld [vmem:[#allocation2 + $0xb4] sm:$0xff]
      %v837 = vld [vmem:[#allocation2 + $0xbc] sm:$0xf]
      %v838 = vld [vmem:[#allocation2 + $0xc0] sm:$0xff]
      %v839 = vld [vmem:[#allocation2 + $0xc8] sm:$0xf]
      %v840 = vld [vmem:[#allocation2 + $0xcc] sm:$0xff]
      %v841 = vld [vmem:[#allocation2 + $0xd4] sm:$0xf]
      %v842 = vld [vmem:[#allocation2 + $0xd8] sm:$0xff]
      %v843 = vld [vmem:[#allocation2 + $0xe0] sm:$0xf]
      %v844 = vld [vmem:[#allocation2 + $0xe4] sm:$0xff]
      %v845 = vld [vmem:[#allocation2 + $0xec] sm:$0xf]
      %v846 = vld [vmem:[#allocation2 + $0xf0] sm:$0xff]
      %v847 = vld [vmem:[#allocation2 + $0xf8] sm:$0xf]
      %v848 = vld [vmem:[#allocation2 + $0xfc] sm:$0xff]
      %v849 = vld [vmem:[#allocation2 + $0x104] sm:$0xf]
      %v850 = vld [vmem:[#allocation2 + $0x108] sm:$0xff]
      %v851 = vld [vmem:[#allocation2 + $0x110] sm:$0xf]
      %v852 = vld [vmem:[#allocation2 + $0x114] sm:$0xff]
      %v853 = vld [vmem:[#allocation2 + $0x11c] sm:$0xf]
      %v854 = vld [vmem:[#allocation2 + $0x120] sm:$0xff]
      %v855 = vld [vmem:[#allocation2 + $0x128] sm:$0xf]
      %v856 = vld [vmem:[#allocation2 + $0x12c] sm:$0xff]
      %v857 = vld [vmem:[#allocation2 + $0x134] sm:$0xf]
      %v858 = vld [vmem:[#allocation2 + $0x138] sm:$0xff]
      %v859 = vld [vmem:[#allocation2 + $0x140] sm:$0xf]
      %v860 = vld [vmem:[#allocation2 + $0x144] sm:$0xff]
      %v861 = vld [vmem:[#allocation2 + $0x14c] sm:$0xf]
      %v862 = vld [vmem:[#allocation2 + $0x150] sm:$0xff]
      %v863 = vld [vmem:[#allocation2 + $0x158] sm:$0xf]
      %v864 = vld [vmem:[#allocation2 + $0x15c] sm:$0xff]
      %v865 = vld [vmem:[#allocation2 + $0x164] sm:$0xf]
      %v866 = vld [vmem:[#allocation2 + $0x168] sm:$0xff]
      %v867 = vld [vmem:[#allocation2 + $0x170] sm:$0xf]
      %v868 = vld [vmem:[#allocation2 + $0x174] sm:$0xff]
      %v869 = vld [vmem:[#allocation2 + $0x17c] sm:$0xf]
      %v870 = vld [vmem:[#allocation2 + $0x180] sm:$0xff]
      %v871 = vld [vmem:[#allocation2 + $0x188] sm:$0xf]
      %v872 = vld [vmem:[#allocation2 + $0x18c] sm:$0xff]
      %v873 = vld [vmem:[#allocation2 + $0x194] sm:$0xf]
      %v874 = vld [vmem:[#allocation2 + $0x198] sm:$0xff]
      %v875 = vld [vmem:[#allocation2 + $0x1a0] sm:$0xf]
      %v876 = vld [vmem:[#allocation2 + $0x1a4] sm:$0xff]
      %v877 = vld [vmem:[#allocation2 + $0x1ac] sm:$0xf]
      %v878 = vld [vmem:[#allocation2 + $0x1b0] sm:$0xff]
      %v879 = vld [vmem:[#allocation2 + $0x1b8] sm:$0xf]
      %v880 = vld [vmem:[#allocation2 + $0x1bc] sm:$0x33]
      %v881 = vld [vmem:[#allocation2 + $0x1c4] sm:$0x3]
      %v886 = vunpack.c.l.b16 %v802
      %v887 = vunpack.c.h.b16 %v802
      %v888 = vunpack.c.l.b16 %v803
      %v889 = vunpack.c.l.b16 %v804
      %v890 = vunpack.c.h.b16 %v804
      %v891 = vunpack.c.l.b16 %v805
      %v892 = vpack.c.b16 %v889, %v886
      %v893 = vpack.c.b16 %v890, %v887
      %v894 = vpack.c.b16 %v891, %v888
      %v973 = vunpack.c.l.b16 %v806
      %v974 = vunpack.c.h.b16 %v806
      %v975 = vunpack.c.l.b16 %v807
      %v976 = vunpack.c.l.b16 %v808
      %v977 = vunpack.c.h.b16 %v808
      %v978 = vunpack.c.l.b16 %v809
      %v979 = vunpack.c.l.b16 %v810
      %v980 = vunpack.c.h.b16 %v810
      %v981 = vunpack.c.l.b16 %v811
      %v982 = vunpack.c.l.b16 %v812
      %v983 = vunpack.c.h.b16 %v812
      %v984 = vunpack.c.l.b16 %v813
      %v985 = vunpack.c.l.b16 %v814
      %v986 = vunpack.c.h.b16 %v814
      %v987 = vunpack.c.l.b16 %v815
      %v988 = vunpack.c.l.b16 %v816
      %v989 = vunpack.c.h.b16 %v816
      %v990 = vunpack.c.l.b16 %v817
      %v991 = vunpack.c.l.b16 %v818
      %v992 = vunpack.c.h.b16 %v818
      %v993 = vunpack.c.l.b16 %v819
      %v994 = vunpack.c.l.b16 %v820
      %v995 = vunpack.c.h.b16 %v820
      %v996 = vunpack.c.l.b16 %v821
      %v997 = vunpack.c.l.b16 %v822
      %v998 = vunpack.c.h.b16 %v822
      %v999 = vunpack.c.l.b16 %v823
      %v1000 = vunpack.c.l.b16 %v824
      %v1001 = vunpack.c.h.b16 %v824
      %v1002 = vunpack.c.l.b16 %v825
      %v1003 = vunpack.c.l.b16 %v826
      %v1004 = vunpack.c.h.b16 %v826
      %v1005 = vunpack.c.l.b16 %v827
      %v1006 = vunpack.c.l.b16 %v828
      %v1007 = vunpack.c.h.b16 %v828
      %v1008 = vunpack.c.l.b16 %v829
      %v1009 = vunpack.c.l.b16 %v830
      %v1010 = vunpack.c.h.b16 %v830
      %v1011 = vunpack.c.l.b16 %v831
      %v1012 = vunpack.c.l.b16 %v832
      %v1013 = vunpack.c.h.b16 %v832
      %v1014 = vunpack.c.l.b16 %v833
      %v1015 = vunpack.c.l.b16 %v834
      %v1016 = vunpack.c.h.b16 %v834
      %v1017 = vunpack.c.l.b16 %v835
      %v1018 = vunpack.c.l.b16 %v836
      %v1019 = vunpack.c.h.b16 %v836
      %v1020 = vunpack.c.l.b16 %v837
      %v1021 = vunpack.c.l.b16 %v838
      %v1022 = vunpack.c.h.b16 %v838
      %v1023 = vunpack.c.l.b16 %v839
      %v1024 = vunpack.c.l.b16 %v840
      %v1025 = vunpack.c.h.b16 %v840
      %v1026 = vunpack.c.l.b16 %v841
      %v1027 = vunpack.c.l.b16 %v842
      %v1028 = vunpack.c.h.b16 %v842
      %v1029 = vunpack.c.l.b16 %v843
      %v1030 = vunpack.c.l.b16 %v844
      %v1031 = vunpack.c.h.b16 %v844
      %v1032 = vunpack.c.l.b16 %v845
      %v1033 = vunpack.c.l.b16 %v846
      %v1034 = vunpack.c.h.b16 %v846
      %v1035 = vunpack.c.l.b16 %v847
      %v1036 = vunpack.c.l.b16 %v848
      %v1037 = vunpack.c.h.b16 %v848
      %v1038 = vunpack.c.l.b16 %v849
      %v1039 = vunpack.c.l.b16 %v850
      %v1040 = vunpack.c.h.b16 %v850
      %v1041 = vunpack.c.l.b16 %v851
      %v1042 = vunpack.c.l.b16 %v852
      %v1043 = vunpack.c.h.b16 %v852
      %v1044 = vunpack.c.l.b16 %v853
      %v1045 = vunpack.c.l.b16 %v854
      %v1046 = vunpack.c.h.b16 %v854
      %v1047 = vunpack.c.l.b16 %v855
      %v1048 = vunpack.c.l.b16 %v856
      %v1049 = vunpack.c.h.b16 %v856
      %v1050 = vunpack.c.l.b16 %v857
      %v1051 = vunpack.c.l.b16 %v858
      %v1052 = vunpack.c.h.b16 %v858
      %v1053 = vunpack.c.l.b16 %v859
      %v1054 = vunpack.c.l.b16 %v860
      %v1055 = vunpack.c.h.b16 %v860
      %v1056 = vunpack.c.l.b16 %v861
      %v1057 = vunpack.c.l.b16 %v862
      %v1058 = vunpack.c.h.b16 %v862
      %v1059 = vunpack.c.l.b16 %v863
      %v1060 = vunpack.c.l.b16 %v864
      %v1061 = vunpack.c.h.b16 %v864
      %v1062 = vunpack.c.l.b16 %v865
      %v1063 = vunpack.c.l.b16 %v866
      %v1064 = vunpack.c.h.b16 %v866
      %v1065 = vunpack.c.l.b16 %v867
      %v1066 = vunpack.c.l.b16 %v868
      %v1067 = vunpack.c.h.b16 %v868
      %v1068 = vunpack.c.l.b16 %v869
      %v1069 = vunpack.c.l.b16 %v870
      %v1070 = vunpack.c.h.b16 %v870
      %v1071 = vunpack.c.l.b16 %v871
      %v1072 = vunpack.c.l.b16 %v872
      %v1073 = vunpack.c.h.b16 %v872
      %v1074 = vunpack.c.l.b16 %v873
      %v1075 = vunpack.c.l.b16 %v874
      %v1076 = vunpack.c.h.b16 %v874
      %v1077 = vunpack.c.l.b16 %v875
      %v1078 = vunpack.c.l.b16 %v876
      %v1079 = vunpack.c.h.b16 %v876
      %v1080 = vunpack.c.l.b16 %v877
      %v1081 = vunpack.c.l.b16 %v878
      %v1082 = vunpack.c.h.b16 %v878
      %v1083 = vunpack.c.l.b16 %v879
      %v1084 = vunpack.c.l.b16 %v880
      %v1085 = vunpack.c.h.b16 %v880
      %v1086 = vunpack.c.l.b16 %v881
      %v1087 = vpack.c.b16 %v976, %v973
      %v1088 = vpack.c.b16 %v977, %v974
      %v1089 = vpack.c.b16 %v978, %v975
      %v1090 = vpack.c.b16 %v982, %v979
      %v1091 = vpack.c.b16 %v983, %v980
      %v1092 = vpack.c.b16 %v984, %v981
      %v1093 = vpack.c.b16 %v988, %v985
      %v1094 = vpack.c.b16 %v989, %v986
      %v1095 = vpack.c.b16 %v990, %v987
      %v1096 = vpack.c.b16 %v994, %v991
      %v1097 = vpack.c.b16 %v995, %v992
      %v1098 = vpack.c.b16 %v996, %v993
      %v1099 = vpack.c.b16 %v1000, %v997
      %v1100 = vpack.c.b16 %v1001, %v998
      %v1101 = vpack.c.b16 %v1002, %v999
      %v1102 = vpack.c.b16 %v1006, %v1003
      %v1103 = vpack.c.b16 %v1007, %v1004
      %v1104 = vpack.c.b16 %v1008, %v1005
      %v1105 = vpack.c.b16 %v1012, %v1009
      %v1106 = vpack.c.b16 %v1013, %v1010
      %v1107 = vpack.c.b16 %v1014, %v1011
      %v1108 = vpack.c.b16 %v1018, %v1015
      %v1109 = vpack.c.b16 %v1019, %v1016
      %v1110 = vpack.c.b16 %v1020, %v1017
      %v1111 = vpack.c.b16 %v1024, %v1021
      %v1112 = vpack.c.b16 %v1025, %v1022
      %v1113 = vpack.c.b16 %v1026, %v1023
      %v1114 = vpack.c.b16 %v1030, %v1027
      %v1115 = vpack.c.b16 %v1031, %v1028
      %v1116 = vpack.c.b16 %v1032, %v1029
      %v1117 = vpack.c.b16 %v1036, %v1033
      %v1118 = vpack.c.b16 %v1037, %v1034
      %v1119 = vpack.c.b16 %v1038, %v1035
      %v1120 = vpack.c.b16 %v1042, %v1039
      %v1121 = vpack.c.b16 %v1043, %v1040
      %v1122 = vpack.c.b16 %v1044, %v1041
      %v1123 = vpack.c.b16 %v1048, %v1045
      %v1124 = vpack.c.b16 %v1049, %v1046
      %v1125 = vpack.c.b16 %v1050, %v1047
      %v1126 = vpack.c.b16 %v1054, %v1051
      %v1127 = vpack.c.b16 %v1055, %v1052
      %v1128 = vpack.c.b16 %v1056, %v1053
      %v1129 = vpack.c.b16 %v1060, %v1057
      %v1130 = vpack.c.b16 %v1061, %v1058
      %v1131 = vpack.c.b16 %v1062, %v1059
      %v1132 = vpack.c.b16 %v1066, %v1063
      %v1133 = vpack.c.b16 %v1067, %v1064
      %v1134 = vpack.c.b16 %v1068, %v1065
      %v1135 = vpack.c.b16 %v1072, %v1069
      %v1136 = vpack.c.b16 %v1073, %v1070
      %v1137 = vpack.c.b16 %v1074, %v1071
      %v1138 = vpack.c.b16 %v1078, %v1075
      %v1139 = vpack.c.b16 %v1079, %v1076
      %v1140 = vpack.c.b16 %v1080, %v1077
      %v1141 = vpack.c.b16 %v1084, %v1081
      %v1142 = vpack.c.b16 %v1085, %v1082
      %v1143 = vpack.c.b16 %v1086, %v1083
      %vm1198 = vcmask 359424
      %v1200 = vsel %vm1198, %v894, 0
      %vm1202 = vcmask 1045504
      %v1204 = vsel %vm1202, %v1141, 0
      %v1207 = vsel %vm1202, %v1142, 0
      %v1210 = vsel %vm1202, %v1143, 0
      %1212 = vmatprep.subr.bf16.mxu0 %v1088
      %1213 = vmatpush1.bf16.msra.mxu0 %v1087
      %1214 = vmatprep.subr.bf16.mxu0 %v1091
      %1215 = vmatpush1.bf16.msra.mxu0 %v1090
      %1216 = vmatprep.subr.bf16.mxu0 %v1094
      %1217 = vmatpush1.bf16.msra.mxu0 %v1093
      %1218 = vmatprep.subr.bf16.mxu0 %v1097
      %1219 = vmatpush1.bf16.msra.mxu0 %v1096
      %1220 = vmatprep.subr.bf16.mxu0 %v1100
      %1221 = vmatpush1.bf16.msra.mxu0 %v1099
      %1222 = vmatprep.subr.bf16.mxu0 %v1103
      %1223 = vmatpush1.bf16.msra.mxu0 %v1102
      %1224 = vmatprep.subr.bf16.mxu0 %v1106
      %1225 = vmatpush1.bf16.msra.mxu0 %v1105
      %1226 = vmatprep.subr.bf16.mxu0 %v1109
      %1227 = vmatpush1.bf16.msra.mxu0 %v1108
      %1228 = vmatprep.subr.bf16.mxu0 %v1112
      %1229 = vmatpush1.bf16.msra.mxu0 %v1111
      %1230 = vmatprep.subr.bf16.mxu0 %v1115
      %1231 = vmatpush1.bf16.msra.mxu0 %v1114
      %1232 = vmatprep.subr.bf16.mxu0 %v1118
      %1233 = vmatpush1.bf16.msra.mxu0 %v1117
      %1234 = vmatprep.subr.bf16.mxu0 %v1121
      %1235 = vmatpush1.bf16.msra.mxu0 %v1120
      %1236 = vmatprep.subr.bf16.mxu0 %v1124
      %1237 = vmatpush1.bf16.msra.mxu0 %v1123
      %1238 = vmatprep.subr.bf16.mxu0 %v1127
      %1239 = vmatpush1.bf16.msra.mxu0 %v1126
      %1240 = vmatprep.subr.bf16.mxu0 %v1130
      %1241 = vmatpush1.bf16.msra.mxu0 %v1129
      %1242 = vmatprep.subr.bf16.mxu0 %v1133
      %1243 = vmatpush1.bf16.msra.mxu0 %v1132
      %1244 = vmatprep.mubr.bf16.mxu0 %v893
      %1245 = vmatmul.mubr.bf16.gmra.mrb[0].mxu0 %v892
      %v1246 = vpop.f32.mrb[0].mxu0
      %v1247 = vadd.f32 0.0, %v1246
      %v1248 = vpop.f32.mrb[0].mxu0
      %v1249 = vadd.f32 0.0, %v1248
      %v1250 = vpop.f32.mrb[0].mxu0
      %v1251 = vadd.f32 0.0, %v1250
      %v1252 = vpop.f32.mrb[0].mxu0
      %v1253 = vadd.f32 0.0, %v1252
      %1254 = vdwg.mxu0
      %1255 = vmatprep.subr.bf16.mxu0 %v1136
      %1256 = vmatpush1.bf16.msra.mxu0 %v1135
      %1257 = vmatprep.subr.bf16.mxu0 %v1139
      %1258 = vmatpush1.bf16.msra.mxu0 %v1138
      %1259 = vmatprep.subr.bf16.mxu0 %v1207
      %1260 = vmatpush1.bf16.msra.mxu0 %v1204
      %1261 = vmatprep.subr.bf16.mxu0 0
      %1262 = vmatpush1.bf16.msra.mxu0 0
      %1263 = vmatprep.subr.bf16.mxu0 0
      %1264 = vmatpush1.bf16.msra.mxu0 0
      %1265 = vmatprep.subr.bf16.mxu0 0
      %1266 = vmatpush1.bf16.msra.mxu0 0
      %1267 = vmatprep.subr.bf16.mxu0 0
      %1268 = vmatpush1.bf16.msra.mxu0 0
      %1269 = vmatprep.subr.bf16.mxu0 0
      %1270 = vmatpush1.bf16.msra.mxu0 0
      %1271 = vmatprep.subr.bf16.mxu0 0
      %1272 = vmatpush1.bf16.msra.mxu0 0
      %1273 = vmatprep.subr.bf16.mxu0 0
      %1274 = vmatpush1.bf16.msra.mxu0 0
      %1275 = vmatprep.subr.bf16.mxu0 0
      %1276 = vmatpush1.bf16.msra.mxu0 0
      %1277 = vmatprep.subr.bf16.mxu0 0
      %1278 = vmatpush1.bf16.msra.mxu0 0
      %1279 = vmatprep.subr.bf16.mxu0 0
      %1280 = vmatpush1.bf16.msra.mxu0 0
      %1281 = vmatprep.subr.bf16.mxu0 0
      %1282 = vmatpush1.bf16.msra.mxu0 0
      %1283 = vmatprep.subr.bf16.mxu0 0
      %1284 = vmatpush1.bf16.msra.mxu0 0
      %1285 = vmatprep.subr.bf16.mxu0 0
      %1286 = vmatpush1.bf16.msra.mxu0 0
      %1287 = vmatprep.mubr.bf16.mxu0 0
      %1288 = vmatmul.mubr.bf16.gmra.mrb[0].mxu0 %v1200
      %v1289 = vpop.f32.mrb[0].mxu0
      %v1290 = vadd.f32 %v1247, %v1289
      %v1291 = vpop.f32.mrb[0].mxu0
      %v1292 = vadd.f32 %v1249, %v1291
      %v1293 = vpop.f32.mrb[0].mxu0
      %v1294 = vadd.f32 %v1251, %v1293
      %v1295 = vpop.f32.mrb[0].mxu0
      %v1296 = vadd.f32 %v1253, %v1295
      %1297 = vdwg.mxu0
      %1298 = vmatprep.subr.bf16.mxu0 0
      %1299 = vmatpush1.bf16.msra.mxu0 %v1089
      %1300 = vmatprep.subr.bf16.mxu0 0
      %1301 = vmatpush1.bf16.msra.mxu0 %v1092
      %1302 = vmatprep.subr.bf16.mxu0 0
      %1303 = vmatpush1.bf16.msra.mxu0 %v1095
      %1304 = vmatprep.subr.bf16.mxu0 0
      %1305 = vmatpush1.bf16.msra.mxu0 %v1098
      %1306 = vmatprep.subr.bf16.mxu0 0
      %1307 = vmatpush1.bf16.msra.mxu0 %v1101
      %1308 = vmatprep.subr.bf16.mxu0 0
      %1309 = vmatpush1.bf16.msra.mxu0 %v1104
      %1310 = vmatprep.subr.bf16.mxu0 0
      %1311 = vmatpush1.bf16.msra.mxu0 %v1107
      %1312 = vmatprep.subr.bf16.mxu0 0
      %1313 = vmatpush1.bf16.msra.mxu0 %v1110
      %1314 = vmatprep.subr.bf16.mxu0 0
      %1315 = vmatpush1.bf16.msra.mxu0 %v1113
      %1316 = vmatprep.subr.bf16.mxu0 0
      %1317 = vmatpush1.bf16.msra.mxu0 %v1116
      %1318 = vmatprep.subr.bf16.mxu0 0
      %1319 = vmatpush1.bf16.msra.mxu0 %v1119
      %1320 = vmatprep.subr.bf16.mxu0 0
      %1321 = vmatpush1.bf16.msra.mxu0 %v1122
      %1322 = vmatprep.subr.bf16.mxu0 0
      %1323 = vmatpush1.bf16.msra.mxu0 %v1125
      %1324 = vmatprep.subr.bf16.mxu0 0
      %1325 = vmatpush1.bf16.msra.mxu0 %v1128
      %1326 = vmatprep.subr.bf16.mxu0 0
      %1327 = vmatpush1.bf16.msra.mxu0 %v1131
      %1328 = vmatprep.subr.bf16.mxu0 0
      %1329 = vmatpush1.bf16.msra.mxu0 %v1134
      %1330 = vmatprep.mubr.bf16.mxu0 %v893
      %1331 = vmatmul.mubr.bf16.gmra.mrb[0].mxu0 %v892
      %v1332 = vpop.f32.mrb[0].mxu0
      %v1333 = vadd.f32 0.0, %v1332
      %v1334 = vpop.f32.mrb[0].mxu0
      %v1335 = vpop.f32.mrb[0].mxu0
      %v1336 = vadd.f32 0.0, %v1335
      %v1337 = vpop.f32.mrb[0].mxu0
      %1338 = vdwg.mxu0
      %1339 = vmatprep.subr.bf16.mxu0 0
      %1340 = vmatpush1.bf16.msra.mxu0 %v1137
      %1341 = vmatprep.subr.bf16.mxu0 0
      %1342 = vmatpush1.bf16.msra.mxu0 %v1140
      %1343 = vmatprep.subr.bf16.mxu0 0
      %1344 = vmatpush1.bf16.msra.mxu0 %v1210
      %1345 = vmatprep.subr.bf16.mxu0 0
      %1346 = vmatpush1.bf16.msra.mxu0 0
      %1347 = vmatprep.subr.bf16.mxu0 0
      %1348 = vmatpush1.bf16.msra.mxu0 0
      %1349 = vmatprep.subr.bf16.mxu0 0
      %1350 = vmatpush1.bf16.msra.mxu0 0
      %1351 = vmatprep.subr.bf16.mxu0 0
      %1352 = vmatpush1.bf16.msra.mxu0 0
      %1353 = vmatprep.subr.bf16.mxu0 0
      %1354 = vmatpush1.bf16.msra.mxu0 0
      %1355 = vmatprep.subr.bf16.mxu0 0
      %1356 = vmatpush1.bf16.msra.mxu0 0
      %1357 = vmatprep.subr.bf16.mxu0 0
      %1358 = vmatpush1.bf16.msra.mxu0 0
      %1359 = vmatprep.subr.bf16.mxu0 0
      %1360 = vmatpush1.bf16.msra.mxu0 0
      %1361 = vmatprep.subr.bf16.mxu0 0
      %1362 = vmatpush1.bf16.msra.mxu0 0
      %1363 = vmatprep.subr.bf16.mxu0 0
      %1364 = vmatpush1.bf16.msra.mxu0 0
      %1365 = vmatprep.subr.bf16.mxu0 0
      %1366 = vmatpush1.bf16.msra.mxu0 0
      %1367 = vmatprep.subr.bf16.mxu0 0
      %1368 = vmatpush1.bf16.msra.mxu0 0
      %1369 = vmatprep.subr.bf16.mxu0 0
      %1370 = vmatpush1.bf16.msra.mxu0 0
      %1371 = vmatprep.mubr.bf16.mxu0 0
      %1372 = vmatmul.mubr.bf16.gmra.mrb[0].mxu0 %v1200
      %v1373 = vpop.f32.mrb[0].mxu0
      %v1374 = vadd.f32 %v1333, %v1373
      %v1375 = vpop.f32.mrb[0].mxu0
      %v1376 = vpop.f32.mrb[0].mxu0
      %v1377 = vadd.f32 %v1336, %v1376
      %v1378 = vpop.f32.mrb[0].mxu0
      %1379 = vdwg.mxu0
      %1386 = vrot.lane.b32.xlu0 %v1290, 108
      %v1387 = vpop.permute.xlu0 %1386
      %1388 = vrot.lane.b32.xlu0 %v1292, 108
      %v1389 = vpop.permute.xlu0 %1388
      %1390 = vrot.lane.b32.xlu0 %v1374, 108
      %v1391 = vpop.permute.xlu0 %1390
      %1392 = vrot.lane.b32.xlu0 %v1294, 108
      %v1393 = vpop.permute.xlu0 %1392
      %1394 = vrot.lane.b32.xlu0 %v1296, 108
      %v1395 = vpop.permute.xlu0 %1394
      %1396 = vrot.lane.b32.xlu0 %v1377, 108
      %v1397 = vpop.permute.xlu0 %1396
      %vm1398 = vcmask 883712
      %v1399 = vsel %vm1398, %v1387, %v1389
      %v1400 = vsel %vm1398, %v1389, %v1391
      %v1401 = vsel %vm1398, %v1393, %v1395
      %v1402 = vsel %vm1398, %v1395, %v1397
      %v1409 = vadd.f32 %v1290, %v1399
      %v1410 = vadd.f32 %v1292, %v1400
      %v1411 = vadd.f32 %v1374, %v1391
      %v1412 = vadd.f32 %v1294, %v1401
      %v1413 = vadd.f32 %v1296, %v1402
      %v1414 = vadd.f32 %v1377, %v1397
      %1421 = vrot.lane.b32.xlu0 %v1409, 127
      %v1422 = vpop.permute.xlu0 %1421
      %1423 = vrot.lane.b32.xlu0 %v1410, 127
      %v1424 = vpop.permute.xlu0 %1423
      %1425 = vrot.lane.b32.xlu0 %v1411, 127
      %v1426 = vpop.permute.xlu0 %1425
      %1427 = vrot.lane.b32.xlu0 %v1412, 127
      %v1428 = vpop.permute.xlu0 %1427
      %1429 = vrot.lane.b32.xlu0 %v1413, 127
      %v1430 = vpop.permute.xlu0 %1429
      %1431 = vrot.lane.b32.xlu0 %v1414, 127
      %v1432 = vpop.permute.xlu0 %1431
      %vm1433 = vcmask 1039360
      %v1434 = vsel %vm1433, %v1422, %v1424
      %v1435 = vsel %vm1433, %v1424, %v1426
      %v1436 = vsel %vm1433, %v1428, %v1430
      %v1437 = vsel %vm1433, %v1430, %v1432
      %v1444 = vadd.f32 %v1409, %v1434
      %v1445 = vadd.f32 %v1410, %v1435
      %v1446 = vadd.f32 %v1411, %v1426
      %v1447 = vadd.f32 %v1412, %v1436
      %v1448 = vadd.f32 %v1413, %v1437
      %v1449 = vadd.f32 %v1414, %v1432
      %v1450 = vpack.c.bf16 %v1447, %v1444
      %v1451 = vpack.c.bf16 %v1448, %v1445
      %v1452 = vpack.c.bf16 %v1449, %v1446
      %v1456 = vunpack.c.l.b16 %v1450
      %v1457 = vunpack.c.l.b16 %v1451
      %v1458 = vunpack.c.l.b16 %v1452
      %v1459 = vunpack.c.h.b16 %v1450
      %v1460 = vunpack.c.h.b16 %v1451
      %v1461 = vunpack.c.h.b16 %v1452
      %v1462 = vpack.c.b16 %v1457, %v1456
      %v1463 = vpack.c.b16 %v1458, %v1458
      %v1464 = vpack.c.b16 %v1460, %v1459
      %v1465 = vpack.c.b16 %v1461, %v1461
      %1470 = vst [vmem:[%s143] sm:$0xff] %v1462
      %vm1471 = vcmask 519168
      %1472 = vst.msk [vmem:[%s143 + $0x8] sm:$0xf] %vm1471, %v1463
      %1473 = vst [vmem:[%s143 + $0xc] sm:$0x33] %v1464
      %vm1474 = vcmask 517120
      %1475 = vst.msk [vmem:[%s143 + $0x14] sm:$0x3] %vm1474, %v1465
      %p1476 = scmp.lt.s32.totalorder %s13, 7
      %s1477 = scalar_select %p1476, %s13, 7
      %s1478 = smul.addr %s1477, 6
      %s1479 = smul.addr %s1478, 4
      %s1480 = scalar_lea.vmem %s2, %s1479
      // Predicated region
      $region29: #{dof_cnn_lstm_forward.7} parent=27 // pred_check
        %p1481 = pneg %p78
      $region30: #{dof_cnn_lstm_forward.7} parent=27 // pred_check_branch
        %1483 = sbr.rel (%p1481) target = $region32
      $region31: #{dof_cnn_lstm_forward.7} parent=27 // pred_region
        _
      $region32: #{dof_cnn_lstm_forward.7} parent=27 // pred_fallthru
        _
    $region28: #{dof_cnn_lstm_forward.7} parent=5 // pred_fallthru
      _
    %p1484 = scmp.le.s32.totalorder 2, %s8
    // Predicated region
    $region33: #{dof_cnn_lstm_forward.7} parent=5 // pred_check
      %p1485 = pneg %p1484
    $region34: #{dof_cnn_lstm_forward.7} parent=5 // pred_check_branch
      %1487 = sbr.rel (%p1485) target = $region36
    $region35: #{dof_cnn_lstm_forward.7} parent=5 // pred_region
      %s1488 = ssub.s32 %s8, 2
      // Predicated region
      $region37: #{dof_cnn_lstm_forward.7} parent=35 // pred_check
        %p1489 = pneg %p84
      $region38: #{dof_cnn_lstm_forward.7} parent=35 // pred_check_branch
        %1491 = sbr.rel (%p1489) target = $region40
      $region39: #{dof_cnn_lstm_forward.7} parent=35 // pred_region
        %p1492 = scmp.lt.s32.totalorder %s14, 7
        %s1493 = scalar_select %p1492, %s14, 7
        %s1494 = smul.addr %s1493, 6
        %s1495 = smul.addr %s1494, 4
        %s1496 = scalar_lea.vmem %s2, %s1495
      $region40: #{dof_cnn_lstm_forward.7} parent=35 // pred_fallthru
        _
    $region36: #{dof_cnn_lstm_forward.7} parent=5 // pred_fallthru
      _
  $region6: #{dof_cnn_lstm_forward.7} parent=0 // loop_footer
    %s12 = sadd.s32 1, %s8
  $region7: #{dof_cnn_lstm_forward.7} parent=0 // loop_footer_branch
    %7 = sbr.rel target = $region3
  $region8: #{dof_cnn_lstm_forward.7} parent=0 // loop_exit
    _

// kernel: dof_cnn_lstm_forward.8
$region0: #{dof_cnn_lstm_forward.8}
  #allocation0 [shape = 'u32[]', space=smem, size = 0x4, offset = 0x4, fixed_abs, tag = 'smem constant byte address 0x4 - core index']
  #allocation1 [shape = 'u32[144,128]{1,0:T(1,128)}', space=vmem, size = 0x12000, scoped, tag = 'internal scratch']
  #allocation2 [shape = 'bf16[300,48]{1,0:T(8,128)(2,1)}', space=vmem, size = 0x13000, scoped, tag = 'scratch operand']
  %s0 = inlined_call_operand.vmem [shape: bf16[8,12,88], index: 0, kind: input, shape index: {}]
  %s1 = inlined_call_operand.vmem [shape: bf16[12,300], index: 1, kind: input, shape index: {}]
  %s2 = inlined_call_operand.vmem [shape: bf16[8,12,32], index: 2, kind: output, shape index: {}]
  %s3 = sld [smem:[#allocation0]]
  $region41: #{dof_cnn_lstm_forward.8} parent=0
    _
  %s5 = ssub.s32 1, %s3
  %s6 = scalar_select 0, %s5, %s3
  loop: start=0, step=1, limit=10
  $region2: #{dof_cnn_lstm_forward.8} parent=0 // loop_pre_header
    _
  $region3: #{dof_cnn_lstm_forward.8} parent=0 // loop_header
    %s8 = sphi 0, %s12
    %p9 = scmp.ge.s32.totalorder %s8, 10
    %s18 = sphi 0, %s20
    %s21 = sphi 0, %s18
    %s22 = sphi 0, %s21
    %s38 = sphi 0, %s22
    %s42 = sphi 0, %s42
    %s44 = sphi 0, %s42
    %s45 = sphi 0, %s44
    %s59 = sphi 0, %s45
    %s65 = sphi 0, %s67
    %s68 = sphi 0, %s65
    %s69 = sphi 0, %s68
    %s85 = sphi 0, %s69
  $region4: #{dof_cnn_lstm_forward.8} parent=0 // loop_header_branch
    %11 = sbr.rel (%p9) target = $region8
  $region5: #{dof_cnn_lstm_forward.8} parent=0 // loop_body
    %s13 = ssub.s32 %s8, 1
    %s14 = ssub.s32 %s8, 2
    %s15 = sadd.s32 %s8, 1
    %s16 = ssub.s32 %s8, %s15
    %p17 = scmp.eq.s32.totalorder %s16, 0
    %s19 = sadd.s32 %s18, 1
    %s20 = scalar_select %p17, %s18, %s19
    %p23 = pneg %p17
    %p24 = scmp.eq.s32.totalorder %s8, 7
    %p25 = por %p23, %p24
    %p26 = scmp.ne.s32.totalorder %s18, %s21
    %p27 = scmp.eq.s32.totalorder %s8, 0
    %p28 = por %p26, %p27
    %p29 = scmp.ne.s32.totalorder %s18, %s21
    %p30 = scmp.eq.s32.totalorder %s13, 7
    %p31 = por %p29, %p30
    %p32 = scmp.ne.s32.totalorder %s21, %s22
    %p33 = scmp.eq.s32.totalorder %s13, 0
    %p34 = por %p32, %p33
    %p35 = scmp.ne.s32.totalorder %s21, %s22
    %p36 = scmp.eq.s32.totalorder %s14, 7
    %p37 = por %p35, %p36
    %p39 = scmp.ne.s32.totalorder %s22, %s38
    %p40 = scmp.eq.s32.totalorder %s14, 0
    %p41 = por %p39, %p40
    %s43 = sadd.s32 %s42, 1
    %p46 = scmp.eq.s32.totalorder %s8, 7
    %p47 = scmp.ne.s32.totalorder %s42, %s44
    %p48 = scmp.eq.s32.totalorder %s8, 0
    %p49 = por %p47, %p48
    %p50 = scmp.ne.s32.totalorder %s42, %s44
    %p51 = scmp.eq.s32.totalorder %s13, 7
    %p52 = por %p50, %p51
    %p53 = scmp.ne.s32.totalorder %s44, %s45
    %p54 = scmp.eq.s32.totalorder %s13, 0
    %p55 = por %p53, %p54
    %p56 = scmp.ne.s32.totalorder %s44, %s45
    %p57 = scmp.eq.s32.totalorder %s14, 7
    %p58 = por %p56, %p57
    %p60 = scmp.ne.s32.totalorder %s45, %s59
    %p61 = scmp.eq.s32.totalorder %s14, 0
    %p62 = por %p60, %p61
    %s63 = ssub.s32 %s8, %s15
    %p64 = scmp.eq.s32.totalorder %s63, 0
    %s66 = sadd.s32 %s65, 1
    %s67 = scalar_select %p64, %s65, %s66
    %p70 = pneg %p64
    %p71 = scmp.eq.s32.totalorder %s8, 7
    %p72 = por %p70, %p71
    %p73 = scmp.ne.s32.totalorder %s65, %s68
    %p74 = scmp.eq.s32.totalorder %s8, 0
    %p75 = por %p73, %p74
    %p76 = scmp.ne.s32.totalorder %s65, %s68
    %p77 = scmp.eq.s32.totalorder %s13, 7
    %p78 = por %p76, %p77
    %p79 = scmp.ne.s32.totalorder %s68, %s69
    %p80 = scmp.eq.s32.totalorder %s13, 0
    %p81 = por %p79, %p80
    %p82 = scmp.ne.s32.totalorder %s68, %s69
    %p83 = scmp.eq.s32.totalorder %s14, 7
    %p84 = por %p82, %p83
    %p86 = scmp.ne.s32.totalorder %s69, %s85
    %p87 = scmp.eq.s32.totalorder %s14, 0
    %p88 = por %p86, %p87
    %p89 = scmp.le.s32.totalorder 1, %s8
    %p90 = scmp.lt.s32.totalorder %s8, 9
    %p91 = pnand %p89, %p90
    %p92 = pneg %p91
    // Predicated region
    $region9: #{dof_cnn_lstm_forward.8} parent=5 // pred_check
      _
    $region10: #{dof_cnn_lstm_forward.8} parent=5 // pred_check_branch
      %94 = sbr.rel (%p91) target = $region12
    $region11: #{dof_cnn_lstm_forward.8} parent=5 // pred_region
      %s95 = ssub.s32 %s8, 1
      // Predicated region
      $region13: #{dof_cnn_lstm_forward.8} parent=11 // pred_check
        %p96 = pneg %p55
      $region14: #{dof_cnn_lstm_forward.8} parent=11 // pred_check_branch
        %98 = sbr.rel (%p96) target = $region16
      $region15: #{dof_cnn_lstm_forward.8} parent=11 // pred_region
        _
      $region16: #{dof_cnn_lstm_forward.8} parent=11 // pred_fallthru
        _
    $region12: #{dof_cnn_lstm_forward.8} parent=5 // pred_fallthru
      _
    %p99 = scmp.lt.s32.totalorder %s8, 8
    // Predicated region
    $region17: #{dof_cnn_lstm_forward.8} parent=5 // pred_check
      %p100 = pneg %p99
    $region18: #{dof_cnn_lstm_forward.8} parent=5 // pred_check_branch
      %102 = sbr.rel (%p100) target = $region20
    $region19: #{dof_cnn_lstm_forward.8} parent=5 // pred_region
      // Predicated region
      $region21: #{dof_cnn_lstm_forward.8} parent=19 // pred_check
        %p103 = pneg %p28
      $region22: #{dof_cnn_lstm_forward.8} parent=19 // pred_check_branch
        %105 = sbr.rel (%p103) target = $region24
      $region23: #{dof_cnn_lstm_forward.8} parent=19 // pred_region
        %p106 = scmp.lt.s32.totalorder %s8, 7
        %s107 = scalar_select %p106, %s8, 7
        %s108 = smul.addr %s107, 2
        %s109 = smul.addr %s108, 4
        %s110 = scalar_lea.vmem %s0, %s109
      $region24: #{dof_cnn_lstm_forward.8} parent=19 // pred_fallthru
        _
    $region20: #{dof_cnn_lstm_forward.8} parent=5 // pred_fallthru
      _
    %p111 = scmp.le.s32.totalorder 1, %s8
    %p112 = scmp.lt.s32.totalorder %s8, 9
    %p113 = pnand %p111, %p112
    %p114 = pneg %p113
    // Predicated region
    $region25: #{dof_cnn_lstm_forward.8} parent=5 // pred_check
      _
    $region26: #{dof_cnn_lstm_forward.8} parent=5 // pred_check_branch
      %116 = sbr.rel (%p113) target = $region28
    $region27: #{dof_cnn_lstm_forward.8} parent=5 // pred_region
      %s117 = ssub.s32 %s8, 1
      %p118 = scmp.lt.s32.totalorder %s13, 7
      %s119 = scalar_select %p118, %s13, 7
      %s120 = smul.addr %s119, 2
      %s121 = smul.addr %s120, 4
      %s122 = scalar_lea.vmem %s0, %s121
      %p123 = pneg %p34
      %p124 = pneg %p31
      %p125 = pneg %p55
      %p126 = pneg %p52
      %p127 = pneg %p81
      %p128 = pneg %p78
      %p129 = scmp.lt.s32.totalorder %s13, 7
      %s130 = scalar_select %p129, %s13, 7
      %s131 = smul.addr %s130, 2
      %s132 = smul.addr %s131, 4
      %s133 = scalar_lea.vmem %s2, %s132
      %p134 = scmp.lt.s32.totalorder %s13, 7
      %s135 = scalar_select %p134, %s13, 7
      %s136 = smul.addr %s135, 2
      %s137 = smul.addr %s136, 4
      %s138 = scalar_lea.vmem %s0, %s137
      %p139 = scmp.lt.s32.totalorder %s13, 7
      %s140 = scalar_select %p139, %s13, 7
      %s141 = smul.addr %s140, 2
      %s142 = smul.addr %s141, 4
      %s143 = scalar_lea.vmem %s2, %s142
      %v145 = vld [vmem:[%s138] sm:$0xf]
      %v146 = vld [vmem:[%s138 + $0x4] sm:$0x3]
      %vm147 = vcmask 388096
      %148 = vst.msk [vmem:[#allocation2] sm:$0xf] %vm147, %v145
      %vm149 = vcmask 386048
      %150 = vst.msk [vmem:[#allocation2 + $0x4] sm:$0x3] %vm149, %v146
      %vm153 = vcmask 1041408
      %vm154 = vcmask 1045508
      %vm155 = vmor %vm153, %vm154
      %v156 = vrot.slane %v145, 6
      %v157 = vrot.slane %v156, 4
      %v158 = vrot.slane %v146, 6
      %v159 = vsel %vm155, %v157, %v158
      %160 = vrot.lane.b32.xlu0 %v156, 127
      %v161 = vpop.permute.xlu0 %160
      %162 = vrot.lane.b32.xlu0 %v159, 127
      %v163 = vpop.permute.xlu0 %162
      %vm166 = vcmask 388098
      %167 = vst.msk [vmem:[#allocation2 + $0x4] sm:$0xc] %vm166, %v161
      %168 = vst.msk [vmem:[#allocation2 + $0x8] sm:$0xf] %vm147, %v163
      %169 = vrot.lane.b32.xlu0 %v145, 126
      %v170 = vpop.permute.xlu0 %169
      %171 = vrot.lane.b32.xlu0 %v146, 126
      %v172 = vpop.permute.xlu0 %171
      %175 = vst.msk [vmem:[#allocation2 + $0xc] sm:$0xf] %vm147, %v170
      %176 = vst.msk [vmem:[#allocation2 + $0x10] sm:$0x3] %vm149, %v172
      %177 = vrot.lane.b32.xlu0 %v156, 125
      %v178 = vpop.permute.xlu0 %177
      %179 = vrot.lane.b32.xlu0 %v159, 125
      %v180 = vpop.permute.xlu0 %179
      %183 = vst.msk [vmem:[#allocation2 + $0x10] sm:$0xc] %vm166, %v178
      %184 = vst.msk [vmem:[#allocation2 + $0x14] sm:$0xf] %vm147, %v180
      %185 = vrot.lane.b32.xlu0 %v145, 124
      %v186 = vpop.permute.xlu0 %185
      %187 = vrot.lane.b32.xlu0 %v146, 124
      %v188 = vpop.permute.xlu0 %187
      %191 = vst.msk [vmem:[#allocation2 + $0x18] sm:$0xf] %vm147, %v186
      %192 = vst.msk [vmem:[#allocation2 + $0x1c] sm:$0x3] %vm149, %v188
      %193 = vrot.lane.b32.xlu0 %v156, 120
      %v194 = vpop.permute.xlu0 %193
      %195 = vrot.lane.b32.xlu0 %v159, 120
      %v196 = vpop.permute.xlu0 %195
      %199 = vst.msk [vmem:[#allocation2 + $0x1c] sm:$0xc] %vm166, %v194
      %200 = vst.msk [vmem:[#allocation2 + $0x20] sm:$0xf] %vm147, %v196
      %201 = vrot.lane.b32.xlu0 %v145, 119
      %v202 = vpop.permute.xlu0 %201
      %203 = vrot.lane.b32.xlu0 %v146, 119
      %v204 = vpop.permute.xlu0 %203
      %207 = vst.msk [vmem:[#allocation2 + $0x24] sm:$0xf] %vm147, %v202
      %208 = vst.msk [vmem:[#allocation2 + $0x28] sm:$0x3] %vm149, %v204
      %209 = vrot.lane.b32.xlu0 %v156, 118
      %v210 = vpop.permute.xlu0 %209
      %211 = vrot.lane.b32.xlu0 %v159, 118
      %v212 = vpop.permute.xlu0 %211
      %215 = vst.msk [vmem:[#allocation2 + $0x28] sm:$0xc] %vm166, %v210
      %216 = vst.msk [vmem:[#allocation2 + $0x2c] sm:$0xf] %vm147, %v212
      %217 = vrot.lane.b32.xlu0 %v145, 117
      %v218 = vpop.permute.xlu0 %217
      %219 = vrot.lane.b32.xlu0 %v146, 117
      %v220 = vpop.permute.xlu0 %219
      %223 = vst.msk [vmem:[#allocation2 + $0x30] sm:$0xf] %vm147, %v218
      %224 = vst.msk [vmem:[#allocation2 + $0x34] sm:$0x3] %vm149, %v220
      %225 = vrot.lane.b32.xlu0 %v156, 116
      %v226 = vpop.permute.xlu0 %225
      %227 = vrot.lane.b32.xlu0 %v159, 116
      %v228 = vpop.permute.xlu0 %227
      %231 = vst.msk [vmem:[#allocation2 + $0x34] sm:$0xc] %vm166, %v226
      %232 = vst.msk [vmem:[#allocation2 + $0x38] sm:$0xf] %vm147, %v228
      %233 = vrot.lane.b32.xlu0 %v145, 112
      %v234 = vpop.permute.xlu0 %233
      %235 = vrot.lane.b32.xlu0 %v146, 112
      %v236 = vpop.permute.xlu0 %235
      %239 = vst.msk [vmem:[#allocation2 + $0x3c] sm:$0xf] %vm147, %v234
      %240 = vst.msk [vmem:[#allocation2 + $0x40] sm:$0x3] %vm149, %v236
      %241 = vrot.lane.b32.xlu0 %v156, 111
      %v242 = vpop.permute.xlu0 %241
      %243 = vrot.lane.b32.xlu0 %v159, 111
      %v244 = vpop.permute.xlu0 %243
      %247 = vst.msk [vmem:[#allocation2 + $0x40] sm:$0xc] %vm166, %v242
      %248 = vst.msk [vmem:[#allocation2 + $0x44] sm:$0xf] %vm147, %v244
      %249 = vrot.lane.b32.xlu0 %v145, 110
      %v250 = vpop.permute.xlu0 %249
      %251 = vrot.lane.b32.xlu0 %v146, 110
      %v252 = vpop.permute.xlu0 %251
      %255 = vst.msk [vmem:[#allocation2 + $0x48] sm:$0xf] %vm147, %v250
      %256 = vst.msk [vmem:[#allocation2 + $0x4c] sm:$0x3] %vm149, %v252
      %257 = vrot.lane.b32.xlu0 %v156, 109
      %v258 = vpop.permute.xlu0 %257
      %259 = vrot.lane.b32.xlu0 %v159, 109
      %v260 = vpop.permute.xlu0 %259
      %263 = vst.msk [vmem:[#allocation2 + $0x4c] sm:$0xc] %vm166, %v258
      %264 = vst.msk [vmem:[#allocation2 + $0x50] sm:$0xf] %vm147, %v260
      %265 = vrot.lane.b32.xlu0 %v145, 108
      %v266 = vpop.permute.xlu0 %265
      %267 = vrot.lane.b32.xlu0 %v146, 108
      %v268 = vpop.permute.xlu0 %267
      %271 = vst.msk [vmem:[#allocation2 + $0x54] sm:$0xf] %vm147, %v266
      %272 = vst.msk [vmem:[#allocation2 + $0x58] sm:$0x3] %vm149, %v268
      %273 = vrot.lane.b32.xlu0 %v156, 104
      %v274 = vpop.permute.xlu0 %273
      %275 = vrot.lane.b32.xlu0 %v159, 104
      %v276 = vpop.permute.xlu0 %275
      %279 = vst.msk [vmem:[#allocation2 + $0x58] sm:$0xc] %vm166, %v274
      %280 = vst.msk [vmem:[#allocation2 + $0x5c] sm:$0xf] %vm147, %v276
      %281 = vrot.lane.b32.xlu0 %v145, 103
      %v282 = vpop.permute.xlu0 %281
      %283 = vrot.lane.b32.xlu0 %v146, 103
      %v284 = vpop.permute.xlu0 %283
      %287 = vst.msk [vmem:[#allocation2 + $0x60] sm:$0xf] %vm147, %v282
      %288 = vst.msk [vmem:[#allocation2 + $0x64] sm:$0x3] %vm149, %v284
      %289 = vrot.lane.b32.xlu0 %v156, 102
      %v290 = vpop.permute.xlu0 %289
      %291 = vrot.lane.b32.xlu0 %v159, 102
      %v292 = vpop.permute.xlu0 %291
      %295 = vst.msk [vmem:[#allocation2 + $0x64] sm:$0xc] %vm166, %v290
      %296 = vst.msk [vmem:[#allocation2 + $0x68] sm:$0xf] %vm147, %v292
      %297 = vrot.lane.b32.xlu0 %v145, 101
      %v298 = vpop.permute.xlu0 %297
      %299 = vrot.lane.b32.xlu0 %v146, 101
      %v300 = vpop.permute.xlu0 %299
      %303 = vst.msk [vmem:[#allocation2 + $0x6c] sm:$0xf] %vm147, %v298
      %304 = vst.msk [vmem:[#allocation2 + $0x70] sm:$0x3] %vm149, %v300
      %305 = vrot.lane.b32.xlu0 %v156, 100
      %v306 = vpop.permute.xlu0 %305
      %307 = vrot.lane.b32.xlu0 %v159, 100
      %v308 = vpop.permute.xlu0 %307
      %311 = vst.msk [vmem:[#allocation2 + $0x70] sm:$0xc] %vm166, %v306
      %312 = vst.msk [vmem:[#allocation2 + $0x74] sm:$0xf] %vm147, %v308
      %313 = vrot.lane.b32.xlu0 %v145, 96
      %v314 = vpop.permute.xlu0 %313
      %315 = vrot.lane.b32.xlu0 %v146, 96
      %v316 = vpop.permute.xlu0 %315
      %319 = vst.msk [vmem:[#allocation2 + $0x78] sm:$0xf] %vm147, %v314
      %320 = vst.msk [vmem:[#allocation2 + $0x7c] sm:$0x3] %vm149, %v316
      %321 = vrot.lane.b32.xlu0 %v156, 95
      %v322 = vpop.permute.xlu0 %321
      %323 = vrot.lane.b32.xlu0 %v159, 95
      %v324 = vpop.permute.xlu0 %323
      %327 = vst.msk [vmem:[#allocation2 + $0x7c] sm:$0xc] %vm166, %v322
      %328 = vst.msk [vmem:[#allocation2 + $0x80] sm:$0xf] %vm147, %v324
      %329 = vrot.lane.b32.xlu0 %v145, 94
      %v330 = vpop.permute.xlu0 %329
      %331 = vrot.lane.b32.xlu0 %v146, 94
      %v332 = vpop.permute.xlu0 %331
      %335 = vst.msk [vmem:[#allocation2 + $0x84] sm:$0xf] %vm147, %v330
      %336 = vst.msk [vmem:[#allocation2 + $0x88] sm:$0x3] %vm149, %v332
      %337 = vrot.lane.b32.xlu0 %v156, 93
      %v338 = vpop.permute.xlu0 %337
      %339 = vrot.lane.b32.xlu0 %v159, 93
      %v340 = vpop.permute.xlu0 %339
      %343 = vst.msk [vmem:[#allocation2 + $0x88] sm:$0xc] %vm166, %v338
      %344 = vst.msk [vmem:[#allocation2 + $0x8c] sm:$0xf] %vm147, %v340
      %345 = vrot.lane.b32.xlu0 %v145, 92
      %v346 = vpop.permute.xlu0 %345
      %347 = vrot.lane.b32.xlu0 %v146, 92
      %v348 = vpop.permute.xlu0 %347
      %351 = vst.msk [vmem:[#allocation2 + $0x90] sm:$0xf] %vm147, %v346
      %352 = vst.msk [vmem:[#allocation2 + $0x94] sm:$0x3] %vm149, %v348
      %v353 = vld [vmem:[%s1] sm:$0xff]
      %v354 = vld [vmem:[%s1 + $0x8] sm:$0xf]
      %v355 = vld [vmem:[%s1 + $0xc] sm:$0x33]
      %v356 = vld [vmem:[%s1 + $0x14] sm:$0x3]
      %v357 = vld [vmem:[#allocation2] sm:$0xf]
      %v358 = vld [vmem:[#allocation2 + $0x4] sm:$0xf]
      %v359 = vld [vmem:[#allocation2 + $0x8] sm:$0xf]
      %v360 = vld [vmem:[#allocation2 + $0xc] sm:$0xf]
      %v361 = vld [vmem:[#allocation2 + $0x10] sm:$0xf]
      %v362 = vld [vmem:[#allocation2 + $0x14] sm:$0xf]
      %v363 = vld [vmem:[#allocation2 + $0x18] sm:$0xf]
      %v364 = vld [vmem:[#allocation2 + $0x1c] sm:$0xf]
      %v365 = vld [vmem:[#allocation2 + $0x20] sm:$0xf]
      %v366 = vld [vmem:[#allocation2 + $0x24] sm:$0xf]
      %v367 = vld [vmem:[#allocation2 + $0x28] sm:$0xf]
      %v368 = vld [vmem:[#allocation2 + $0x2c] sm:$0xf]
      %v369 = vld [vmem:[#allocation2 + $0x30] sm:$0xf]
      %v370 = vld [vmem:[#allocation2 + $0x34] sm:$0xf]
      %v371 = vld [vmem:[#allocation2 + $0x38] sm:$0xf]
      %v372 = vld [vmem:[#allocation2 + $0x3c] sm:$0xf]
      %v373 = vld [vmem:[#allocation2 + $0x40] sm:$0xf]
      %v374 = vld [vmem:[#allocation2 + $0x44] sm:$0xf]
      %v375 = vld [vmem:[#allocation2 + $0x48] sm:$0xf]
      %v376 = vld [vmem:[#allocation2 + $0x4c] sm:$0xf]
      %v377 = vld [vmem:[#allocation2 + $0x50] sm:$0xf]
      %v378 = vld [vmem:[#allocation2 + $0x54] sm:$0xf]
      %v379 = vld [vmem:[#allocation2 + $0x58] sm:$0xf]
      %v380 = vld [vmem:[#allocation2 + $0x5c] sm:$0xf]
      %v381 = vld [vmem:[#allocation2 + $0x60] sm:$0xf]
      %v382 = vld [vmem:[#allocation2 + $0x64] sm:$0xf]
      %v383 = vld [vmem:[#allocation2 + $0x68] sm:$0xf]
      %v384 = vld [vmem:[#allocation2 + $0x6c] sm:$0xf]
      %v385 = vld [vmem:[#allocation2 + $0x70] sm:$0xf]
      %v386 = vld [vmem:[#allocation2 + $0x74] sm:$0xf]
      %v387 = vld [vmem:[#allocation2 + $0x78] sm:$0xf]
      %v388 = vld [vmem:[#allocation2 + $0x7c] sm:$0xf]
      %v389 = vld [vmem:[#allocation2 + $0x80] sm:$0xf]
      %v390 = vld [vmem:[#allocation2 + $0x84] sm:$0xf]
      %v391 = vld [vmem:[#allocation2 + $0x88] sm:$0xf]
      %v392 = vld [vmem:[#allocation2 + $0x8c] sm:$0xf]
      %v393 = vld [vmem:[#allocation2 + $0x90] sm:$0xf]
      %v394 = vld [vmem:[#allocation2 + $0x94] sm:$0x3]
      %v399 = vunpack.c.l.b16 %v353
      %v400 = vunpack.c.h.b16 %v353
      %v401 = vunpack.c.l.b16 %v354
      %v402 = vunpack.c.l.b16 %v355
      %v403 = vunpack.c.h.b16 %v355
      %v404 = vunpack.c.l.b16 %v356
      %v405 = vpack.c.b16 %v402, %v399
      %v406 = vpack.c.b16 %v403, %v400
      %v407 = vpack.c.b16 %v404, %v401
      %v448 = vunpack.c.l.b16 %v357
      %v449 = vunpack.c.l.b16 %v358
      %v450 = vunpack.c.l.b16 %v359
      %v451 = vunpack.c.l.b16 %v360
      %v452 = vunpack.c.l.b16 %v361
      %v453 = vunpack.c.l.b16 %v362
      %v454 = vunpack.c.l.b16 %v363
      %v455 = vunpack.c.l.b16 %v364
      %v456 = vunpack.c.l.b16 %v365
      %v457 = vunpack.c.l.b16 %v366
      %v458 = vunpack.c.l.b16 %v367
      %v459 = vunpack.c.l.b16 %v368
      %v460 = vunpack.c.l.b16 %v369
      %v461 = vunpack.c.l.b16 %v370
      %v462 = vunpack.c.l.b16 %v371
      %v463 = vunpack.c.l.b16 %v372
      %v464 = vunpack.c.l.b16 %v373
      %v465 = vunpack.c.l.b16 %v374
      %v466 = vunpack.c.l.b16 %v375
      %v467 = vunpack.c.l.b16 %v376
      %v468 = vunpack.c.l.b16 %v377
      %v469 = vunpack.c.l.b16 %v378
      %v470 = vunpack.c.l.b16 %v379
      %v471 = vunpack.c.l.b16 %v380
      %v472 = vunpack.c.l.b16 %v381
      %v473 = vunpack.c.l.b16 %v382
      %v474 = vunpack.c.l.b16 %v383
      %v475 = vunpack.c.l.b16 %v384
      %v476 = vunpack.c.l.b16 %v385
      %v477 = vunpack.c.l.b16 %v386
      %v478 = vunpack.c.l.b16 %v387
      %v479 = vunpack.c.l.b16 %v388
      %v480 = vunpack.c.l.b16 %v389
      %v481 = vunpack.c.l.b16 %v390
      %v482 = vunpack.c.l.b16 %v391
      %v483 = vunpack.c.l.b16 %v392
      %v484 = vunpack.c.l.b16 %v393
      %v485 = vunpack.c.l.b16 %v394
      %v486 = vpack.c.b16 %v449, %v448
      %v487 = vpack.c.b16 %v451, %v450
      %v488 = vpack.c.b16 %v453, %v452
      %v489 = vpack.c.b16 %v455, %v454
      %v490 = vpack.c.b16 %v457, %v456
      %v491 = vpack.c.b16 %v459, %v458
      %v492 = vpack.c.b16 %v461, %v460
      %v493 = vpack.c.b16 %v463, %v462
      %v494 = vpack.c.b16 %v465, %v464
      %v495 = vpack.c.b16 %v467, %v466
      %v496 = vpack.c.b16 %v469, %v468
      %v497 = vpack.c.b16 %v471, %v470
      %v498 = vpack.c.b16 %v473, %v472
      %v499 = vpack.c.b16 %v475, %v474
      %v500 = vpack.c.b16 %v477, %v476
      %v501 = vpack.c.b16 %v479, %v478
      %v502 = vpack.c.b16 %v481, %v480
      %v503 = vpack.c.b16 %v483, %v482
      %v504 = vpack.c.b16 %v485, %v484
      %vm523 = vcmask 359424
      %v525 = vsel %vm523, %v407, 0
      %vm527 = vcmask 1045504
      %v529 = vsel %vm527, %v504, 0
      %531 = vmatprep.subr.bf16.mxu0 0
      %532 = vmatpush1.bf16.msra.mxu0 %v486
      %533 = vmatprep.subr.bf16.mxu0 0
      %534 = vmatpush1.bf16.msra.mxu0 %v487
      %535 = vmatprep.subr.bf16.mxu0 0
      %536 = vmatpush1.bf16.msra.mxu0 %v488
      %537 = vmatprep.subr.bf16.mxu0 0
      %538 = vmatpush1.bf16.msra.mxu0 %v489
      %539 = vmatprep.subr.bf16.mxu0 0
      %540 = vmatpush1.bf16.msra.mxu0 %v490
      %541 = vmatprep.subr.bf16.mxu0 0
      %542 = vmatpush1.bf16.msra.mxu0 %v491
      %543 = vmatprep.subr.bf16.mxu0 0
      %544 = vmatpush1.bf16.msra.mxu0 %v492
      %545 = vmatprep.subr.bf16.mxu0 0
      %546 = vmatpush1.bf16.msra.mxu0 %v493
      %547 = vmatprep.subr.bf16.mxu0 0
      %548 = vmatpush1.bf16.msra.mxu0 %v494
      %549 = vmatprep.subr.bf16.mxu0 0
      %550 = vmatpush1.bf16.msra.mxu0 %v495
      %551 = vmatprep.subr.bf16.mxu0 0
      %552 = vmatpush1.bf16.msra.mxu0 %v496
      %553 = vmatprep.subr.bf16.mxu0 0
      %554 = vmatpush1.bf16.msra.mxu0 %v497
      %555 = vmatprep.subr.bf16.mxu0 0
      %556 = vmatpush1.bf16.msra.mxu0 %v498
      %557 = vmatprep.subr.bf16.mxu0 0
      %558 = vmatpush1.bf16.msra.mxu0 %v499
      %559 = vmatprep.subr.bf16.mxu0 0
      %560 = vmatpush1.bf16.msra.mxu0 %v500
      %561 = vmatprep.subr.bf16.mxu0 0
      %562 = vmatpush1.bf16.msra.mxu0 %v501
      %563 = vmatprep.mubr.bf16.mxu0 %v406
      %564 = vmatmul.mubr.bf16.gmra.mrb[0].mxu0 %v405
      %v565 = vpop.f32.mrb[0].mxu0
      %v566 = vadd.f32 0.0, %v565
      %v567 = vpop.f32.mrb[0].mxu0
      %v568 = vpop.f32.mrb[0].mxu0
      %v569 = vadd.f32 0.0, %v568
      %v570 = vpop.f32.mrb[0].mxu0
      %571 = vdwg.mxu0
      %572 = vmatprep.subr.bf16.mxu0 0
      %573 = vmatpush1.bf16.msra.mxu0 %v502
      %574 = vmatprep.subr.bf16.mxu0 0
      %575 = vmatpush1.bf16.msra.mxu0 %v503
      %576 = vmatprep.subr.bf16.mxu0 0
      %577 = vmatpush1.bf16.msra.mxu0 %v529
      %578 = vmatprep.subr.bf16.mxu0 0
      %579 = vmatpush1.bf16.msra.mxu0 0
      %580 = vmatprep.subr.bf16.mxu0 0
      %581 = vmatpush1.bf16.msra.mxu0 0
      %582 = vmatprep.subr.bf16.mxu0 0
      %583 = vmatpush1.bf16.msra.mxu0 0
      %584 = vmatprep.subr.bf16.mxu0 0
      %585 = vmatpush1.bf16.msra.mxu0 0
      %586 = vmatprep.subr.bf16.mxu0 0
      %587 = vmatpush1.bf16.msra.mxu0 0
      %588 = vmatprep.subr.bf16.mxu0 0
      %589 = vmatpush1.bf16.msra.mxu0 0
      %590 = vmatprep.subr.bf16.mxu0 0
      %591 = vmatpush1.bf16.msra.mxu0 0
      %592 = vmatprep.subr.bf16.mxu0 0
      %593 = vmatpush1.bf16.msra.mxu0 0
      %594 = vmatprep.subr.bf16.mxu0 0
      %595 = vmatpush1.bf16.msra.mxu0 0
      %596 = vmatprep.subr.bf16.mxu0 0
      %597 = vmatpush1.bf16.msra.mxu0 0
      %598 = vmatprep.subr.bf16.mxu0 0
      %599 = vmatpush1.bf16.msra.mxu0 0
      %600 = vmatprep.subr.bf16.mxu0 0
      %601 = vmatpush1.bf16.msra.mxu0 0
      %602 = vmatprep.subr.bf16.mxu0 0
      %603 = vmatpush1.bf16.msra.mxu0 0
      %604 = vmatprep.mubr.bf16.mxu0 0
      %605 = vmatmul.mubr.bf16.gmra.mrb[0].mxu0 %v525
      %v606 = vpop.f32.mrb[0].mxu0
      %v607 = vadd.f32 %v566, %v606
      %v608 = vpop.f32.mrb[0].mxu0
      %v609 = vpop.f32.mrb[0].mxu0
      %v610 = vadd.f32 %v569, %v609
      %v611 = vpop.f32.mrb[0].mxu0
      %612 = vdwg.mxu0
      %615 = vrot.lane.b32.xlu0 %v607, 120
      %v616 = vpop.permute.xlu0 %615
      %617 = vrot.lane.b32.xlu0 %v610, 120
      %v618 = vpop.permute.xlu0 %617
      %v621 = vadd.f32 %v607, %v616
      %v622 = vadd.f32 %v610, %v618
      %625 = vrot.lane.b32.xlu0 %v621, 127
      %v626 = vpop.permute.xlu0 %625
      %627 = vrot.lane.b32.xlu0 %v622, 127
      %v628 = vpop.permute.xlu0 %627
      %v631 = vadd.f32 %v621, %v626
      %v632 = vadd.f32 %v622, %v628
      %v633 = vpack.c.bf16 %v632, %v631
      %v635 = vunpack.c.l.b16 %v633
      %v636 = vunpack.c.h.b16 %v633
      %v637 = vpack.c.b16 %v635, %v635
      %v638 = vpack.c.b16 %v636, %v636
      %vm641 = vcmask 257024
      %642 = vst.msk [vmem:[%s143] sm:$0xf] %vm641, %v637
      %vm643 = vcmask 254976
      %644 = vst.msk [vmem:[%s143 + $0x4] sm:$0x3] %vm643, %v638
      %p645 = scmp.lt.s32.totalorder %s13, 7
      %s646 = scalar_select %p645, %s13, 7
      %s647 = smul.addr %s646, 2
      %s648 = smul.addr %s647, 4
      %s649 = scalar_lea.vmem %s2, %s648
      // Predicated region
      $region29: #{dof_cnn_lstm_forward.8} parent=27 // pred_check
        %p650 = pneg %p78
      $region30: #{dof_cnn_lstm_forward.8} parent=27 // pred_check_branch
        %652 = sbr.rel (%p650) target = $region32
      $region31: #{dof_cnn_lstm_forward.8} parent=27 // pred_region
        _
      $region32: #{dof_cnn_lstm_forward.8} parent=27 // pred_fallthru
        _
    $region28: #{dof_cnn_lstm_forward.8} parent=5 // pred_fallthru
      _
    %p653 = scmp.le.s32.totalorder 2, %s8
    // Predicated region
    $region33: #{dof_cnn_lstm_forward.8} parent=5 // pred_check
      %p654 = pneg %p653
    $region34: #{dof_cnn_lstm_forward.8} parent=5 // pred_check_branch
      %656 = sbr.rel (%p654) target = $region36
    $region35: #{dof_cnn_lstm_forward.8} parent=5 // pred_region
      %s657 = ssub.s32 %s8, 2
      // Predicated region
      $region37: #{dof_cnn_lstm_forward.8} parent=35 // pred_check
        %p658 = pneg %p84
      $region38: #{dof_cnn_lstm_forward.8} parent=35 // pred_check_branch
        %660 = sbr.rel (%p658) target = $region40
      $region39: #{dof_cnn_lstm_forward.8} parent=35 // pred_region
        %p661 = scmp.lt.s32.totalorder %s14, 7
        %s662 = scalar_select %p661, %s14, 7
        %s663 = smul.addr %s662, 2
        %s664 = smul.addr %s663, 4
        %s665 = scalar_lea.vmem %s2, %s664
      $region40: #{dof_cnn_lstm_forward.8} parent=35 // pred_fallthru
        _
    $region36: #{dof_cnn_lstm_forward.8} parent=5 // pred_fallthru
      _
  $region6: #{dof_cnn_lstm_forward.8} parent=0 // loop_footer
    %s12 = sadd.s32 1, %s8
  $region7: #{dof_cnn_lstm_forward.8} parent=0 // loop_footer_branch
    %7 = sbr.rel target = $region3
  $region8: #{dof_cnn_lstm_forward.8} parent=0 // loop_exit
    _

// kernel: dof_cnn_lstm_forward.11
$region0: #{dof_cnn_lstm_forward.11}
  #allocation0 [shape = 'u32[]', space=smem, size = 0x4, offset = 0x4, fixed_abs, tag = 'smem constant byte address 0x4 - core index']
  #allocation1 [shape = 'u32[144,128]{1,0:T(1,128)}', space=vmem, size = 0x12000, scoped, tag = 'internal scratch']
  #allocation2 [shape = 'f32[1,1]{1,0:T(1,128)S(1)}', space=vmem, size = 0x200, scoped, tag = 'scoped memory for dof_cnn_lstm_forward.11']
  %s0 = inlined_call_operand.vmem [shape: f32[256,64], index: 0, kind: input, shape index: {}]
  %s1 = inlined_call_operand.vmem [shape: f32[64,64], index: 1, kind: input, shape index: {}]
  %s2 = inlined_call_operand.vmem [shape: f32[1,64], index: 2, kind: input, shape index: {}]
  %s3 = inlined_call_operand.vmem [shape: f32[1,64], index: 3, kind: input, shape index: {}]
  %s4 = inlined_call_operand.<no memory space> [shape: f32[1,1], index: 4, kind: input, shape index: {}]
  %s5 = inlined_call_operand.vmem [shape: f32[256,1], index: 5, kind: output, shape index: {}]
  %s6 = sld [smem:[#allocation0]]
  $region30: #{dof_cnn_lstm_forward.11} parent=0
    _
  %s8 = ssub.s32 1, %s6
  %s9 = scalar_select 0, %s8, %s6
  %v10 = vstv %s4
  %11 = vst [vmem:[#allocation2] sm:$0x1] %v10
  // Predicated region
  $region2: #{dof_cnn_lstm_forward.11} parent=0 // pred_check
    _
  $region3: #{dof_cnn_lstm_forward.11} parent=0 // pred_check_branch
    %13 = sbr.rel (0) target = $region5
  $region4: #{dof_cnn_lstm_forward.11} parent=0 // pred_region
    _
  $region5: #{dof_cnn_lstm_forward.11} parent=0 // pred_fallthru
    _
  // Predicated region
  $region6: #{dof_cnn_lstm_forward.11} parent=0 // pred_check
    _
  $region7: #{dof_cnn_lstm_forward.11} parent=0 // pred_check_branch
    %15 = sbr.rel (0) target = $region9
  $region8: #{dof_cnn_lstm_forward.11} parent=0 // pred_region
    _
  $region9: #{dof_cnn_lstm_forward.11} parent=0 // pred_fallthru
    _
  // Predicated region
  $region10: #{dof_cnn_lstm_forward.11} parent=0 // pred_check
    _
  $region11: #{dof_cnn_lstm_forward.11} parent=0 // pred_check_branch
    %17 = sbr.rel (0) target = $region13
  $region12: #{dof_cnn_lstm_forward.11} parent=0 // pred_region
    _
  $region13: #{dof_cnn_lstm_forward.11} parent=0 // pred_fallthru
    _
  // Predicated region
  $region14: #{dof_cnn_lstm_forward.11} parent=0 // pred_check
    _
  $region15: #{dof_cnn_lstm_forward.11} parent=0 // pred_check_branch
    %19 = sbr.rel (0) target = $region17
  $region16: #{dof_cnn_lstm_forward.11} parent=0 // pred_region
    _
  $region17: #{dof_cnn_lstm_forward.11} parent=0 // pred_fallthru
    _
  // Predicated region
  $region18: #{dof_cnn_lstm_forward.11} parent=0 // pred_check
    _
  $region19: #{dof_cnn_lstm_forward.11} parent=0 // pred_check_branch
    %21 = sbr.rel (0) target = $region21
  $region20: #{dof_cnn_lstm_forward.11} parent=0 // pred_region
    _
  $region21: #{dof_cnn_lstm_forward.11} parent=0 // pred_fallthru
    _
  %v22 = vld [vmem:[%s0] sm:$0xff]
  %v23 = vld [vmem:[%s0 + $0x8] sm:$0xff]
  %v24 = vld [vmem:[%s0 + $0x10] sm:$0xff]
  %v25 = vld [vmem:[%s0 + $0x18] sm:$0xff]
  %v26 = vld [vmem:[%s0 + $0x20] sm:$0xff]
  %v27 = vld [vmem:[%s0 + $0x28] sm:$0xff]
  %v28 = vld [vmem:[%s0 + $0x30] sm:$0xff]
  %v29 = vld [vmem:[%s0 + $0x38] sm:$0xff]
  %v30 = vld [vmem:[%s0 + $0x40] sm:$0xff]
  %v31 = vld [vmem:[%s0 + $0x48] sm:$0xff]
  %v32 = vld [vmem:[%s0 + $0x50] sm:$0xff]
  %v33 = vld [vmem:[%s0 + $0x58] sm:$0xff]
  %v34 = vld [vmem:[%s0 + $0x60] sm:$0xff]
  %v35 = vld [vmem:[%s0 + $0x68] sm:$0xff]
  %v36 = vld [vmem:[%s0 + $0x70] sm:$0xff]
  %v37 = vld [vmem:[%s0 + $0x78] sm:$0xff]
  %v38 = vld [vmem:[%s0 + $0x80] sm:$0xff]
  %v39 = vld [vmem:[%s0 + $0x88] sm:$0xff]
  %v40 = vld [vmem:[%s0 + $0x90] sm:$0xff]
  %v41 = vld [vmem:[%s0 + $0x98] sm:$0xff]
  %v42 = vld [vmem:[%s0 + $0xa0] sm:$0xff]
  %v43 = vld [vmem:[%s0 + $0xa8] sm:$0xff]
  %v44 = vld [vmem:[%s0 + $0xb0] sm:$0xff]
  %v45 = vld [vmem:[%s0 + $0xb8] sm:$0xff]
  %v46 = vld [vmem:[%s0 + $0xc0] sm:$0xff]
  %v47 = vld [vmem:[%s0 + $0xc8] sm:$0xff]
  %v48 = vld [vmem:[%s0 + $0xd0] sm:$0xff]
  %v49 = vld [vmem:[%s0 + $0xd8] sm:$0xff]
  %v50 = vld [vmem:[%s0 + $0xe0] sm:$0xff]
  %v51 = vld [vmem:[%s0 + $0xe8] sm:$0xff]
  %v52 = vld [vmem:[%s0 + $0xf0] sm:$0xff]
  %v53 = vld [vmem:[%s0 + $0xf8] sm:$0xff]
  %v54 = vld [vmem:[%s1] sm:$0xff]
  %v55 = vld [vmem:[%s1 + $0x8] sm:$0xff]
  %v56 = vld [vmem:[%s1 + $0x10] sm:$0xff]
  %v57 = vld [vmem:[%s1 + $0x18] sm:$0xff]
  %v58 = vld [vmem:[%s1 + $0x20] sm:$0xff]
  %v59 = vld [vmem:[%s1 + $0x28] sm:$0xff]
  %v60 = vld [vmem:[%s1 + $0x30] sm:$0xff]
  %v61 = vld [vmem:[%s1 + $0x38] sm:$0xff]
  %v62 = vld [vmem:[%s2] sm:$0x1]
  %v64 = vlaneseq
  %v65 = vshrl.u32 %v64, 7
  %v66 = vsub.s32 0, %v65
  %v67 = vrot.slane %v62, %v66
  %vm69 = vcmask 523264
  %v71 = vsel %vm69, %v22, 0
  %v74 = vsel %vm69, %v23, 0
  %v77 = vsel %vm69, %v24, 0
  %v80 = vsel %vm69, %v25, 0
  %v83 = vsel %vm69, %v26, 0
  %v86 = vsel %vm69, %v27, 0
  %v89 = vsel %vm69, %v28, 0
  %v92 = vsel %vm69, %v29, 0
  %v95 = vsel %vm69, %v30, 0
  %v98 = vsel %vm69, %v31, 0
  %v101 = vsel %vm69, %v32, 0
  %v104 = vsel %vm69, %v33, 0
  %v107 = vsel %vm69, %v34, 0
  %v110 = vsel %vm69, %v35, 0
  %v113 = vsel %vm69, %v36, 0
  %v116 = vsel %vm69, %v37, 0
  %v119 = vsel %vm69, %v38, 0
  %v122 = vsel %vm69, %v39, 0
  %v125 = vsel %vm69, %v40, 0
  %v128 = vsel %vm69, %v41, 0
  %v131 = vsel %vm69, %v42, 0
  %v134 = vsel %vm69, %v43, 0
  %v137 = vsel %vm69, %v44, 0
  %v140 = vsel %vm69, %v45, 0
  %v143 = vsel %vm69, %v46, 0
  %v146 = vsel %vm69, %v47, 0
  %v149 = vsel %vm69, %v48, 0
  %v152 = vsel %vm69, %v49, 0
  %v155 = vsel %vm69, %v50, 0
  %v158 = vsel %vm69, %v51, 0
  %v161 = vsel %vm69, %v52, 0
  %v164 = vsel %vm69, %v53, 0
  %166 = vmatprep.subr.mxu0 0.0
  %167 = vmatpush1.msra.mxu0 %v54
  %168 = vmatprep.subr.mxu0 0.0
  %169 = vmatpush1.msra.mxu0 %v55
  %170 = vmatprep.subr.mxu0 0.0
  %171 = vmatpush1.msra.mxu0 %v56
  %172 = vmatprep.subr.mxu0 0.0
  %173 = vmatpush1.msra.mxu0 %v57
  %174 = vmatprep.subr.mxu0 0.0
  %175 = vmatpush1.msra.mxu0 %v58
  %176 = vmatprep.subr.mxu0 0.0
  %177 = vmatpush1.msra.mxu0 %v59
  %178 = vmatprep.subr.mxu0 0.0
  %179 = vmatpush1.msra.mxu0 %v60
  %180 = vmatprep.subr.mxu0 0.0
  %181 = vmatpush1.msra.mxu0 %v61
  %182 = vmatprep.subr.mxu0 0.0
  %183 = vmatpush1.msra.mxu0 0.0
  %184 = vmatprep.subr.mxu0 0.0
  %185 = vmatpush1.msra.mxu0 0.0
  %186 = vmatprep.subr.mxu0 0.0
  %187 = vmatpush1.msra.mxu0 0.0
  %188 = vmatprep.subr.mxu0 0.0
  %189 = vmatpush1.msra.mxu0 0.0
  %190 = vmatprep.subr.mxu0 0.0
  %191 = vmatpush1.msra.mxu0 0.0
  %192 = vmatprep.subr.mxu0 0.0
  %193 = vmatpush1.msra.mxu0 0.0
  %194 = vmatprep.subr.mxu0 0.0
  %195 = vmatpush1.msra.mxu0 0.0
  %196 = vmatprep.subr.mxu0 0.0
  %197 = vmatpush1.msra.mxu0 0.0
  %198 = vmatprep.subr.mxu0 0.0
  %199 = vmatpush1.msra.mxu0 0.0
  %200 = vmatprep.subr.mxu0 0.0
  %201 = vmatpush1.msra.mxu0 0.0
  %202 = vmatprep.subr.mxu0 0.0
  %203 = vmatpush1.msra.mxu0 0.0
  %204 = vmatprep.subr.mxu0 0.0
  %205 = vmatpush1.msra.mxu0 0.0
  %206 = vmatprep.subr.mxu0 0.0
  %207 = vmatpush1.msra.mxu0 0.0
  %208 = vmatprep.subr.mxu0 0.0
  %209 = vmatpush1.msra.mxu0 0.0
  %210 = vmatprep.subr.mxu0 0.0
  %211 = vmatpush1.msra.mxu0 0.0
  %212 = vmatprep.subr.mxu0 0.0
  %213 = vmatpush1.msra.mxu0 0.0
  %214 = vmatprep.subr.mxu0 0.0
  %215 = vmatpush1.msra.mxu0 0.0
  %216 = vmatprep.subr.mxu0 0.0
  %217 = vmatpush1.msra.mxu0 0.0
  %218 = vmatprep.subr.mxu0 0.0
  %219 = vmatpush1.msra.mxu0 0.0
  %220 = vmatprep.subr.mxu0 0.0
  %221 = vmatpush1.msra.mxu0 0.0
  %222 = vmatprep.subr.mxu0 0.0
  %223 = vmatpush1.msra.mxu0 0.0
  %224 = vmatprep.subr.mxu0 0.0
  %225 = vmatpush1.msra.mxu0 0.0
  %226 = vmatprep.subr.mxu0 0.0
  %227 = vmatpush1.msra.mxu0 0.0
  %228 = vmatprep.subr.mxu0 0.0
  %229 = vmatpush1.msra.mxu0 0.0
  %230 = vmatprep.mubr.f32.mxu0 0.0
  %231 = vmatmul.mubr.f32.gmra.mrb[0].mxu0 %v71
  %v232 = vpop.f32.mrb[0].mxu0
  %v233 = vadd.f32 %v67, %v232
  %v234 = vpop.f32.mrb[0].mxu0
  %235 = vmatprep.mubr.f32.mxu0 0.0
  %236 = vmatmul.mubr.f32.gmra.mrb[0].mxu0 %v74
  %v237 = vpop.f32.mrb[0].mxu0
  %v238 = vadd.f32 %v67, %v237
  %v239 = vpop.f32.mrb[0].mxu0
  %240 = vmatprep.mubr.f32.mxu0 0.0
  %241 = vmatmul.mubr.f32.gmra.mrb[0].mxu0 %v77
  %v242 = vpop.f32.mrb[0].mxu0
  %v243 = vadd.f32 %v67, %v242
  %v244 = vpop.f32.mrb[0].mxu0
  %245 = vmatprep.mubr.f32.mxu0 0.0
  %246 = vmatmul.mubr.f32.gmra.mrb[0].mxu0 %v80
  %v247 = vpop.f32.mrb[0].mxu0
  %v248 = vadd.f32 %v67, %v247
  %v249 = vpop.f32.mrb[0].mxu0
  %250 = vmatprep.mubr.f32.mxu0 0.0
  %251 = vmatmul.mubr.f32.gmra.mrb[0].mxu0 %v83
  %v252 = vpop.f32.mrb[0].mxu0
  %v253 = vadd.f32 %v67, %v252
  %v254 = vpop.f32.mrb[0].mxu0
  %255 = vmatprep.mubr.f32.mxu0 0.0
  %256 = vmatmul.mubr.f32.gmra.mrb[0].mxu0 %v86
  %v257 = vpop.f32.mrb[0].mxu0
  %v258 = vadd.f32 %v67, %v257
  %v259 = vpop.f32.mrb[0].mxu0
  %260 = vmatprep.mubr.f32.mxu0 0.0
  %261 = vmatmul.mubr.f32.gmra.mrb[0].mxu0 %v89
  %v262 = vpop.f32.mrb[0].mxu0
  %v263 = vadd.f32 %v67, %v262
  %v264 = vpop.f32.mrb[0].mxu0
  %265 = vmatprep.mubr.f32.mxu0 0.0
  %266 = vmatmul.mubr.f32.gmra.mrb[0].mxu0 %v92
  %v267 = vpop.f32.mrb[0].mxu0
  %v268 = vadd.f32 %v67, %v267
  %v269 = vpop.f32.mrb[0].mxu0
  %270 = vmatprep.mubr.f32.mxu0 0.0
  %271 = vmatmul.mubr.f32.gmra.mrb[0].mxu0 %v95
  %v272 = vpop.f32.mrb[0].mxu0
  %v273 = vadd.f32 %v67, %v272
  %v274 = vpop.f32.mrb[0].mxu0
  %275 = vmatprep.mubr.f32.mxu0 0.0
  %276 = vmatmul.mubr.f32.gmra.mrb[0].mxu0 %v98
  %v277 = vpop.f32.mrb[0].mxu0
  %v278 = vadd.f32 %v67, %v277
  %v279 = vpop.f32.mrb[0].mxu0
  %280 = vmatprep.mubr.f32.mxu0 0.0
  %281 = vmatmul.mubr.f32.gmra.mrb[0].mxu0 %v101
  %v282 = vpop.f32.mrb[0].mxu0
  %v283 = vadd.f32 %v67, %v282
  %v284 = vpop.f32.mrb[0].mxu0
  %285 = vmatprep.mubr.f32.mxu0 0.0
  %286 = vmatmul.mubr.f32.gmra.mrb[0].mxu0 %v104
  %v287 = vpop.f32.mrb[0].mxu0
  %v288 = vadd.f32 %v67, %v287
  %v289 = vpop.f32.mrb[0].mxu0
  %290 = vmatprep.mubr.f32.mxu0 0.0
  %291 = vmatmul.mubr.f32.gmra.mrb[0].mxu0 %v107
  %v292 = vpop.f32.mrb[0].mxu0
  %v293 = vadd.f32 %v67, %v292
  %v294 = vpop.f32.mrb[0].mxu0
  %295 = vmatprep.mubr.f32.mxu0 0.0
  %296 = vmatmul.mubr.f32.gmra.mrb[0].mxu0 %v110
  %v297 = vpop.f32.mrb[0].mxu0
  %v298 = vadd.f32 %v67, %v297
  %v299 = vpop.f32.mrb[0].mxu0
  %300 = vmatprep.mubr.f32.mxu0 0.0
  %301 = vmatmul.mubr.f32.gmra.mrb[0].mxu0 %v113
  %v302 = vpop.f32.mrb[0].mxu0
  %v303 = vadd.f32 %v67, %v302
  %v304 = vpop.f32.mrb[0].mxu0
  %305 = vmatprep.mubr.f32.mxu0 0.0
  %306 = vmatmul.mubr.f32.gmra.mrb[0].mxu0 %v116
  %v307 = vpop.f32.mrb[0].mxu0
  %v308 = vadd.f32 %v67, %v307
  %v309 = vpop.f32.mrb[0].mxu0
  %310 = vmatprep.mubr.f32.mxu0 0.0
  %311 = vmatmul.mubr.f32.gmra.mrb[0].mxu0 %v119
  %v312 = vpop.f32.mrb[0].mxu0
  %v313 = vadd.f32 %v67, %v312
  %v314 = vpop.f32.mrb[0].mxu0
  %315 = vmatprep.mubr.f32.mxu0 0.0
  %316 = vmatmul.mubr.f32.gmra.mrb[0].mxu0 %v122
  %v317 = vpop.f32.mrb[0].mxu0
  %v318 = vadd.f32 %v67, %v317
  %v319 = vpop.f32.mrb[0].mxu0
  %320 = vmatprep.mubr.f32.mxu0 0.0
  %321 = vmatmul.mubr.f32.gmra.mrb[0].mxu0 %v125
  %v322 = vpop.f32.mrb[0].mxu0
  %v323 = vadd.f32 %v67, %v322
  %v324 = vpop.f32.mrb[0].mxu0
  %325 = vmatprep.mubr.f32.mxu0 0.0
  %326 = vmatmul.mubr.f32.gmra.mrb[0].mxu0 %v128
  %v327 = vpop.f32.mrb[0].mxu0
  %v328 = vadd.f32 %v67, %v327
  %v329 = vpop.f32.mrb[0].mxu0
  %330 = vmatprep.mubr.f32.mxu0 0.0
  %331 = vmatmul.mubr.f32.gmra.mrb[0].mxu0 %v131
  %v332 = vpop.f32.mrb[0].mxu0
  %v333 = vadd.f32 %v67, %v332
  %v334 = vpop.f32.mrb[0].mxu0
  %335 = vmatprep.mubr.f32.mxu0 0.0
  %336 = vmatmul.mubr.f32.gmra.mrb[0].mxu0 %v134
  %v337 = vpop.f32.mrb[0].mxu0
  %v338 = vadd.f32 %v67, %v337
  %v339 = vpop.f32.mrb[0].mxu0
  %340 = vmatprep.mubr.f32.mxu0 0.0
  %341 = vmatmul.mubr.f32.gmra.mrb[0].mxu0 %v137
  %v342 = vpop.f32.mrb[0].mxu0
  %v343 = vadd.f32 %v67, %v342
  %v344 = vpop.f32.mrb[0].mxu0
  %345 = vmatprep.mubr.f32.mxu0 0.0
  %346 = vmatmul.mubr.f32.gmra.mrb[0].mxu0 %v140
  %v347 = vpop.f32.mrb[0].mxu0
  %v348 = vadd.f32 %v67, %v347
  %v349 = vpop.f32.mrb[0].mxu0
  %350 = vmatprep.mubr.f32.mxu0 0.0
  %351 = vmatmul.mubr.f32.gmra.mrb[0].mxu0 %v143
  %v352 = vpop.f32.mrb[0].mxu0
  %v353 = vadd.f32 %v67, %v352
  %v354 = vpop.f32.mrb[0].mxu0
  %355 = vmatprep.mubr.f32.mxu0 0.0
  %356 = vmatmul.mubr.f32.gmra.mrb[0].mxu0 %v146
  %v357 = vpop.f32.mrb[0].mxu0
  %v358 = vadd.f32 %v67, %v357
  %v359 = vpop.f32.mrb[0].mxu0
  %360 = vmatprep.mubr.f32.mxu0 0.0
  %361 = vmatmul.mubr.f32.gmra.mrb[0].mxu0 %v149
  %v362 = vpop.f32.mrb[0].mxu0
  %v363 = vadd.f32 %v67, %v362
  %v364 = vpop.f32.mrb[0].mxu0
  %365 = vmatprep.mubr.f32.mxu0 0.0
  %366 = vmatmul.mubr.f32.gmra.mrb[0].mxu0 %v152
  %v367 = vpop.f32.mrb[0].mxu0
  %v368 = vadd.f32 %v67, %v367
  %v369 = vpop.f32.mrb[0].mxu0
  %370 = vmatprep.mubr.f32.mxu0 0.0
  %371 = vmatmul.mubr.f32.gmra.mrb[0].mxu0 %v155
  %v372 = vpop.f32.mrb[0].mxu0
  %v373 = vadd.f32 %v67, %v372
  %v374 = vpop.f32.mrb[0].mxu0
  %375 = vmatprep.mubr.f32.mxu0 0.0
  %376 = vmatmul.mubr.f32.gmra.mrb[0].mxu0 %v158
  %v377 = vpop.f32.mrb[0].mxu0
  %v378 = vadd.f32 %v67, %v377
  %v379 = vpop.f32.mrb[0].mxu0
  %380 = vmatprep.mubr.f32.mxu0 0.0
  %381 = vmatmul.mubr.f32.gmra.mrb[0].mxu0 %v161
  %v382 = vpop.f32.mrb[0].mxu0
  %v383 = vadd.f32 %v67, %v382
  %v384 = vpop.f32.mrb[0].mxu0
  %385 = vmatprep.mubr.f32.mxu0 0.0
  %386 = vmatmul.mubr.f32.gmra.mrb[0].mxu0 %v164
  %v387 = vpop.f32.mrb[0].mxu0
  %v388 = vadd.f32 %v67, %v387
  %v389 = vpop.f32.mrb[0].mxu0
  %390 = vdwg.mxu0
  %v391 = vmax.f32 %v233, 0.0
  %v392 = vmax.f32 %v238, 0.0
  %v393 = vmax.f32 %v243, 0.0
  %v394 = vmax.f32 %v248, 0.0
  %v395 = vmax.f32 %v253, 0.0
  %v396 = vmax.f32 %v258, 0.0
  %v397 = vmax.f32 %v263, 0.0
  %v398 = vmax.f32 %v268, 0.0
  %v399 = vmax.f32 %v273, 0.0
  %v400 = vmax.f32 %v278, 0.0
  %v401 = vmax.f32 %v283, 0.0
  %v402 = vmax.f32 %v288, 0.0
  %v403 = vmax.f32 %v293, 0.0
  %v404 = vmax.f32 %v298, 0.0
  %v405 = vmax.f32 %v303, 0.0
  %v406 = vmax.f32 %v308, 0.0
  %v407 = vmax.f32 %v313, 0.0
  %v408 = vmax.f32 %v318, 0.0
  %v409 = vmax.f32 %v323, 0.0
  %v410 = vmax.f32 %v328, 0.0
  %v411 = vmax.f32 %v333, 0.0
  %v412 = vmax.f32 %v338, 0.0
  %v413 = vmax.f32 %v343, 0.0
  %v414 = vmax.f32 %v348, 0.0
  %v415 = vmax.f32 %v353, 0.0
  %v416 = vmax.f32 %v358, 0.0
  %v417 = vmax.f32 %v363, 0.0
  %v418 = vmax.f32 %v368, 0.0
  %v419 = vmax.f32 %v373, 0.0
  %v420 = vmax.f32 %v378, 0.0
  %v421 = vmax.f32 %v383, 0.0
  %v422 = vmax.f32 %v388, 0.0
  %v423 = vld [vmem:[%s3] sm:$0x1]
  %v425 = vlaneseq
  %v426 = vshrl.u32 %v425, 7
  %v427 = vsub.s32 0, %v426
  %v428 = vrot.slane %v423, %v427
  %v430 = vmul.f32 %v391, %v428
  %v431 = vmul.f32 %v392, %v428
  %v432 = vmul.f32 %v393, %v428
  %v433 = vmul.f32 %v394, %v428
  %v434 = vmul.f32 %v395, %v428
  %v435 = vmul.f32 %v396, %v428
  %v436 = vmul.f32 %v397, %v428
  %v437 = vmul.f32 %v398, %v428
  %v438 = vmul.f32 %v399, %v428
  %v439 = vmul.f32 %v400, %v428
  %v440 = vmul.f32 %v401, %v428
  %v441 = vmul.f32 %v402, %v428
  %v442 = vmul.f32 %v403, %v428
  %v443 = vmul.f32 %v404, %v428
  %v444 = vmul.f32 %v405, %v428
  %v445 = vmul.f32 %v406, %v428
  %v446 = vmul.f32 %v407, %v428
  %v447 = vmul.f32 %v408, %v428
  %v448 = vmul.f32 %v409, %v428
  %v449 = vmul.f32 %v410, %v428
  %v450 = vmul.f32 %v411, %v428
  %v451 = vmul.f32 %v412, %v428
  %v452 = vmul.f32 %v413, %v428
  %v453 = vmul.f32 %v414, %v428
  %v454 = vmul.f32 %v415, %v428
  %v455 = vmul.f32 %v416, %v428
  %v456 = vmul.f32 %v417, %v428
  %v457 = vmul.f32 %v418, %v428
  %v458 = vmul.f32 %v419, %v428
  %v459 = vmul.f32 %v420, %v428
  %v460 = vmul.f32 %v421, %v428
  %v461 = vmul.f32 %v422, %v428
  %v462 = vsel %vm69, %v430, 0.0
  %463 = vadd.xlane.f32.xlu0 %v462
  %v464 = vpop.xlane.xlu0 %463
  %v465 = vsel %vm69, %v431, 0.0
  %466 = vadd.xlane.f32.xlu0 %v465
  %v467 = vpop.xlane.xlu0 %466
  %v468 = vsel %vm69, %v432, 0.0
  %469 = vadd.xlane.f32.xlu0 %v468
  %v470 = vpop.xlane.xlu0 %469
  %v471 = vsel %vm69, %v433, 0.0
  %472 = vadd.xlane.f32.xlu0 %v471
  %v473 = vpop.xlane.xlu0 %472
  %v474 = vsel %vm69, %v434, 0.0
  %475 = vadd.xlane.f32.xlu0 %v474
  %v476 = vpop.xlane.xlu0 %475
  %v477 = vsel %vm69, %v435, 0.0
  %478 = vadd.xlane.f32.xlu0 %v477
  %v479 = vpop.xlane.xlu0 %478
  %v480 = vsel %vm69, %v436, 0.0
  %481 = vadd.xlane.f32.xlu0 %v480
  %v482 = vpop.xlane.xlu0 %481
  %v483 = vsel %vm69, %v437, 0.0
  %484 = vadd.xlane.f32.xlu0 %v483
  %v485 = vpop.xlane.xlu0 %484
  %v486 = vsel %vm69, %v438, 0.0
  %487 = vadd.xlane.f32.xlu0 %v486
  %v488 = vpop.xlane.xlu0 %487
  %v489 = vsel %vm69, %v439, 0.0
  %490 = vadd.xlane.f32.xlu0 %v489
  %v491 = vpop.xlane.xlu0 %490
  %v492 = vsel %vm69, %v440, 0.0
  %493 = vadd.xlane.f32.xlu0 %v492
  %v494 = vpop.xlane.xlu0 %493
  %v495 = vsel %vm69, %v441, 0.0
  %496 = vadd.xlane.f32.xlu0 %v495
  %v497 = vpop.xlane.xlu0 %496
  %v498 = vsel %vm69, %v442, 0.0
  %499 = vadd.xlane.f32.xlu0 %v498
  %v500 = vpop.xlane.xlu0 %499
  %v501 = vsel %vm69, %v443, 0.0
  %502 = vadd.xlane.f32.xlu0 %v501
  %v503 = vpop.xlane.xlu0 %502
  %v504 = vsel %vm69, %v444, 0.0
  %505 = vadd.xlane.f32.xlu0 %v504
  %v506 = vpop.xlane.xlu0 %505
  %v507 = vsel %vm69, %v445, 0.0
  %508 = vadd.xlane.f32.xlu0 %v507
  %v509 = vpop.xlane.xlu0 %508
  %v510 = vsel %vm69, %v446, 0.0
  %511 = vadd.xlane.f32.xlu0 %v510
  %v512 = vpop.xlane.xlu0 %511
  %v513 = vsel %vm69, %v447, 0.0
  %514 = vadd.xlane.f32.xlu0 %v513
  %v515 = vpop.xlane.xlu0 %514
  %v516 = vsel %vm69, %v448, 0.0
  %517 = vadd.xlane.f32.xlu0 %v516
  %v518 = vpop.xlane.xlu0 %517
  %v519 = vsel %vm69, %v449, 0.0
  %520 = vadd.xlane.f32.xlu0 %v519
  %v521 = vpop.xlane.xlu0 %520
  %v522 = vsel %vm69, %v450, 0.0
  %523 = vadd.xlane.f32.xlu0 %v522
  %v524 = vpop.xlane.xlu0 %523
  %v525 = vsel %vm69, %v451, 0.0
  %526 = vadd.xlane.f32.xlu0 %v525
  %v527 = vpop.xlane.xlu0 %526
  %v528 = vsel %vm69, %v452, 0.0
  %529 = vadd.xlane.f32.xlu0 %v528
  %v530 = vpop.xlane.xlu0 %529
  %v531 = vsel %vm69, %v453, 0.0
  %532 = vadd.xlane.f32.xlu0 %v531
  %v533 = vpop.xlane.xlu0 %532
  %v534 = vsel %vm69, %v454, 0.0
  %535 = vadd.xlane.f32.xlu0 %v534
  %v536 = vpop.xlane.xlu0 %535
  %v537 = vsel %vm69, %v455, 0.0
  %538 = vadd.xlane.f32.xlu0 %v537
  %v539 = vpop.xlane.xlu0 %538
  %v540 = vsel %vm69, %v456, 0.0
  %541 = vadd.xlane.f32.xlu0 %v540
  %v542 = vpop.xlane.xlu0 %541
  %v543 = vsel %vm69, %v457, 0.0
  %544 = vadd.xlane.f32.xlu0 %v543
  %v545 = vpop.xlane.xlu0 %544
  %v546 = vsel %vm69, %v458, 0.0
  %547 = vadd.xlane.f32.xlu0 %v546
  %v548 = vpop.xlane.xlu0 %547
  %v549 = vsel %vm69, %v459, 0.0
  %550 = vadd.xlane.f32.xlu0 %v549
  %v551 = vpop.xlane.xlu0 %550
  %v552 = vsel %vm69, %v460, 0.0
  %553 = vadd.xlane.f32.xlu0 %v552
  %v554 = vpop.xlane.xlu0 %553
  %v555 = vsel %vm69, %v461, 0.0
  %556 = vadd.xlane.f32.xlu0 %v555
  %v557 = vpop.xlane.xlu0 %556
  %v558 = vld [vmem:[#allocation2] sm:$0x1]
  %v560 = vlaneseq
  %v561 = vshrl.u32 %v560, 7
  %v562 = vsub.s32 0, %v561
  %v563 = vrot.slane %v558, %v562
  %v565 = vadd.f32 %v464, %v563
  %v566 = vadd.f32 %v467, %v563
  %v567 = vadd.f32 %v470, %v563
  %v568 = vadd.f32 %v473, %v563
  %v569 = vadd.f32 %v476, %v563
  %v570 = vadd.f32 %v479, %v563
  %v571 = vadd.f32 %v482, %v563
  %v572 = vadd.f32 %v485, %v563
  %v573 = vadd.f32 %v488, %v563
  %v574 = vadd.f32 %v491, %v563
  %v575 = vadd.f32 %v494, %v563
  %v576 = vadd.f32 %v497, %v563
  %v577 = vadd.f32 %v500, %v563
  %v578 = vadd.f32 %v503, %v563
  %v579 = vadd.f32 %v506, %v563
  %v580 = vadd.f32 %v509, %v563
  %v581 = vadd.f32 %v512, %v563
  %v582 = vadd.f32 %v515, %v563
  %v583 = vadd.f32 %v518, %v563
  %v584 = vadd.f32 %v521, %v563
  %v585 = vadd.f32 %v524, %v563
  %v586 = vadd.f32 %v527, %v563
  %v587 = vadd.f32 %v530, %v563
  %v588 = vadd.f32 %v533, %v563
  %v589 = vadd.f32 %v536, %v563
  %v590 = vadd.f32 %v539, %v563
  %v591 = vadd.f32 %v542, %v563
  %v592 = vadd.f32 %v545, %v563
  %v593 = vadd.f32 %v548, %v563
  %v594 = vadd.f32 %v551, %v563
  %v595 = vadd.f32 %v554, %v563
  %v596 = vadd.f32 %v557, %v563
  %v597 = vmax.f32 %v565, 0.0
  %v598 = vmax.f32 %v566, 0.0
  %v599 = vmax.f32 %v567, 0.0
  %v600 = vmax.f32 %v568, 0.0
  %v601 = vmax.f32 %v569, 0.0
  %v602 = vmax.f32 %v570, 0.0
  %v603 = vmax.f32 %v571, 0.0
  %v604 = vmax.f32 %v572, 0.0
  %v605 = vmax.f32 %v573, 0.0
  %v606 = vmax.f32 %v574, 0.0
  %v607 = vmax.f32 %v575, 0.0
  %v608 = vmax.f32 %v576, 0.0
  %v609 = vmax.f32 %v577, 0.0
  %v610 = vmax.f32 %v578, 0.0
  %v611 = vmax.f32 %v579, 0.0
  %v612 = vmax.f32 %v580, 0.0
  %v613 = vmax.f32 %v581, 0.0
  %v614 = vmax.f32 %v582, 0.0
  %v615 = vmax.f32 %v583, 0.0
  %v616 = vmax.f32 %v584, 0.0
  %v617 = vmax.f32 %v585, 0.0
  %v618 = vmax.f32 %v586, 0.0
  %v619 = vmax.f32 %v587, 0.0
  %v620 = vmax.f32 %v588, 0.0
  %v621 = vmax.f32 %v589, 0.0
  %v622 = vmax.f32 %v590, 0.0
  %v623 = vmax.f32 %v591, 0.0
  %v624 = vmax.f32 %v592, 0.0
  %v625 = vmax.f32 %v593, 0.0
  %v626 = vmax.f32 %v594, 0.0
  %v627 = vmax.f32 %v595, 0.0
  %v628 = vmax.f32 %v596, 0.0
  %vm629 = vcmask 7168
  %630 = vst.msk [vmem:[%s5] sm:$0xff] %vm629, %v597
  %631 = vst.msk [vmem:[%s5 + $0x8] sm:$0xff] %vm629, %v598
  %632 = vst.msk [vmem:[%s5 + $0x10] sm:$0xff] %vm629, %v599
  %633 = vst.msk [vmem:[%s5 + $0x18] sm:$0xff] %vm629, %v600
  %634 = vst.msk [vmem:[%s5 + $0x20] sm:$0xff] %vm629, %v601
  %635 = vst.msk [vmem:[%s5 + $0x28] sm:$0xff] %vm629, %v602
  %636 = vst.msk [vmem:[%s5 + $0x30] sm:$0xff] %vm629, %v603
  %637 = vst.msk [vmem:[%s5 + $0x38] sm:$0xff] %vm629, %v604
  %638 = vst.msk [vmem:[%s5 + $0x40] sm:$0xff] %vm629, %v605
  %639 = vst.msk [vmem:[%s5 + $0x48] sm:$0xff] %vm629, %v606
  %640 = vst.msk [vmem:[%s5 + $0x50] sm:$0xff] %vm629, %v607
  %641 = vst.msk [vmem:[%s5 + $0x58] sm:$0xff] %vm629, %v608
  %642 = vst.msk [vmem:[%s5 + $0x60] sm:$0xff] %vm629, %v609
  %643 = vst.msk [vmem:[%s5 + $0x68] sm:$0xff] %vm629, %v610
  %644 = vst.msk [vmem:[%s5 + $0x70] sm:$0xff] %vm629, %v611
  %645 = vst.msk [vmem:[%s5 + $0x78] sm:$0xff] %vm629, %v612
  %646 = vst.msk [vmem:[%s5 + $0x80] sm:$0xff] %vm629, %v613
  %647 = vst.msk [vmem:[%s5 + $0x88] sm:$0xff] %vm629, %v614
  %648 = vst.msk [vmem:[%s5 + $0x90] sm:$0xff] %vm629, %v615
  %649 = vst.msk [vmem:[%s5 + $0x98] sm:$0xff] %vm629, %v616
  %650 = vst.msk [vmem:[%s5 + $0xa0] sm:$0xff] %vm629, %v617
  %651 = vst.msk [vmem:[%s5 + $0xa8] sm:$0xff] %vm629, %v618
  %652 = vst.msk [vmem:[%s5 + $0xb0] sm:$0xff] %vm629, %v619
  %653 = vst.msk [vmem:[%s5 + $0xb8] sm:$0xff] %vm629, %v620
  %654 = vst.msk [vmem:[%s5 + $0xc0] sm:$0xff] %vm629, %v621
  %655 = vst.msk [vmem:[%s5 + $0xc8] sm:$0xff] %vm629, %v622
  %656 = vst.msk [vmem:[%s5 + $0xd0] sm:$0xff] %vm629, %v623
  %657 = vst.msk [vmem:[%s5 + $0xd8] sm:$0xff] %vm629, %v624
  %658 = vst.msk [vmem:[%s5 + $0xe0] sm:$0xff] %vm629, %v625
  %659 = vst.msk [vmem:[%s5 + $0xe8] sm:$0xff] %vm629, %v626
  %660 = vst.msk [vmem:[%s5 + $0xf0] sm:$0xff] %vm629, %v627
  %661 = vst.msk [vmem:[%s5 + $0xf8] sm:$0xff] %vm629, %v628
  // Predicated region
  $region22: #{dof_cnn_lstm_forward.11} parent=0 // pred_check
    _
  $region23: #{dof_cnn_lstm_forward.11} parent=0 // pred_check_branch
    %663 = sbr.rel (0) target = $region25
  $region24: #{dof_cnn_lstm_forward.11} parent=0 // pred_region
    _
  $region25: #{dof_cnn_lstm_forward.11} parent=0 // pred_fallthru
    _
  // Predicated region
  $region26: #{dof_cnn_lstm_forward.11} parent=0 // pred_check
    _
  $region27: #{dof_cnn_lstm_forward.11} parent=0 // pred_check_branch
    %665 = sbr.rel (0) target = $region29
  $region28: #{dof_cnn_lstm_forward.11} parent=0 // pred_region
    _
  $region29: #{dof_cnn_lstm_forward.11} parent=0 // pred_fallthru
    _

// kernel: dof_cnn_lstm_forward.10
$region0: #{dof_cnn_lstm_forward.10}
  #allocation0 [shape = 'u32[]', space=smem, size = 0x4, offset = 0x4, fixed_abs, tag = 'smem constant byte address 0x4 - core index']
  #allocation1 [shape = 'u32[144,128]{1,0:T(1,128)}', space=vmem, size = 0x12000, scoped, tag = 'internal scratch']
  #allocation2 [shape = 'f32[1,64]{1,0:T(1,128)}', space=vmem, size = 0x200, scoped, tag = 'scratch operand']
  #allocation3 [shape = 'f32[1,64]{1,0:T(1,128)}', space=vmem, size = 0x200, scoped, tag = 'scratch operand']
  %s0 = inlined_call_operand.vmem [shape: f32[2,4,4,64], index: 0, kind: input, shape index: {}]
  %s1 = inlined_call_operand.vmem [shape: f32[256,64], index: 1, kind: input, shape index: {}]
  %s2 = inlined_call_operand.vmem [shape: f32[2,4,1,64], index: 2, kind: output, shape index: {}]
  %s3 = sld [smem:[#allocation0]]
  $region45: #{dof_cnn_lstm_forward.10} parent=0
    _
  %s5 = ssub.s32 1, %s3
  %s6 = scalar_select 0, %s5, %s3
  loop: start=0, step=1, limit=10
  $region2: #{dof_cnn_lstm_forward.10} parent=0 // loop_pre_header
    _
  $region3: #{dof_cnn_lstm_forward.10} parent=0 // loop_header
    %s8 = sphi 0, %s12
    %p9 = scmp.ge.s32.totalorder %s8, 10
    %s15 = sphi 0, %s27
    %s16 = sphi 0, %s23
    %s17 = sphi 0, %s15
    %s18 = sphi 0, %s16
    %s19 = sphi 0, %s17
    %s20 = sphi 0, %s18
    %s32 = sphi 0, %s34
    %s35 = sphi 0, %s32
    %s36 = sphi 0, %s35
    %s52 = sphi 0, %s36
    %s56 = sphi 0, %s56
    %s58 = sphi 0, %s56
    %s59 = sphi 0, %s58
    %s73 = sphi 0, %s59
    %s81 = sphi 0, %s83
    %s84 = sphi 0, %s81
    %s85 = sphi 0, %s84
    %s101 = sphi 0, %s85
  $region4: #{dof_cnn_lstm_forward.10} parent=0 // loop_header_branch
    %11 = sbr.rel (%p9) target = $region8
  $region5: #{dof_cnn_lstm_forward.10} parent=0 // loop_body
    %s13 = ssub.s32 %s8, 1
    %s14 = ssub.s32 %s8, 2
    %s21 = sadd.s32 1, %s16
    %p22 = scmp.ge.s32.totalorder %s21, 4
    %s23 = scalar_select %p22, 0, %s21
    %s24 = sadd.s32 1, %s15
    %s25 = scalar_select %p22, %s24, %s15
    %p26 = scmp.ge.s32.totalorder %s25, 2
    %s27 = scalar_select %p26, 0, %s25
    %s28 = ssub.s32 %s15, %s27
    %s29 = ssub.s32 %s16, %s23
    %s30 = sor.u32 %s28, %s29
    %p31 = scmp.eq.s32.totalorder %s30, 0
    %s33 = sadd.s32 %s32, 1
    %s34 = scalar_select %p31, %s32, %s33
    %p37 = pneg %p31
    %p38 = scmp.eq.s32.totalorder %s8, 7
    %p39 = por %p37, %p38
    %p40 = scmp.ne.s32.totalorder %s32, %s35
    %p41 = scmp.eq.s32.totalorder %s8, 0
    %p42 = por %p40, %p41
    %p43 = scmp.ne.s32.totalorder %s32, %s35
    %p44 = scmp.eq.s32.totalorder %s13, 7
    %p45 = por %p43, %p44
    %p46 = scmp.ne.s32.totalorder %s35, %s36
    %p47 = scmp.eq.s32.totalorder %s13, 0
    %p48 = por %p46, %p47
    %p49 = scmp.ne.s32.totalorder %s35, %s36
    %p50 = scmp.eq.s32.totalorder %s14, 7
    %p51 = por %p49, %p50
    %p53 = scmp.ne.s32.totalorder %s36, %s52
    %p54 = scmp.eq.s32.totalorder %s14, 0
    %p55 = por %p53, %p54
    %s57 = sadd.s32 %s56, 1
    %p60 = scmp.eq.s32.totalorder %s8, 7
    %p61 = scmp.ne.s32.totalorder %s56, %s58
    %p62 = scmp.eq.s32.totalorder %s8, 0
    %p63 = por %p61, %p62
    %p64 = scmp.ne.s32.totalorder %s56, %s58
    %p65 = scmp.eq.s32.totalorder %s13, 7
    %p66 = por %p64, %p65
    %p67 = scmp.ne.s32.totalorder %s58, %s59
    %p68 = scmp.eq.s32.totalorder %s13, 0
    %p69 = por %p67, %p68
    %p70 = scmp.ne.s32.totalorder %s58, %s59
    %p71 = scmp.eq.s32.totalorder %s14, 7
    %p72 = por %p70, %p71
    %p74 = scmp.ne.s32.totalorder %s59, %s73
    %p75 = scmp.eq.s32.totalorder %s14, 0
    %p76 = por %p74, %p75
    %s77 = ssub.s32 %s15, %s27
    %s78 = ssub.s32 %s16, %s23
    %s79 = sor.u32 %s77, %s78
    %p80 = scmp.eq.s32.totalorder %s79, 0
    %s82 = sadd.s32 %s81, 1
    %s83 = scalar_select %p80, %s81, %s82
    %p86 = pneg %p80
    %p87 = scmp.eq.s32.totalorder %s8, 7
    %p88 = por %p86, %p87
    %p89 = scmp.ne.s32.totalorder %s81, %s84
    %p90 = scmp.eq.s32.totalorder %s8, 0
    %p91 = por %p89, %p90
    %p92 = scmp.ne.s32.totalorder %s81, %s84
    %p93 = scmp.eq.s32.totalorder %s13, 7
    %p94 = por %p92, %p93
    %p95 = scmp.ne.s32.totalorder %s84, %s85
    %p96 = scmp.eq.s32.totalorder %s13, 0
    %p97 = por %p95, %p96
    %p98 = scmp.ne.s32.totalorder %s84, %s85
    %p99 = scmp.eq.s32.totalorder %s14, 7
    %p100 = por %p98, %p99
    %p102 = scmp.ne.s32.totalorder %s85, %s101
    %p103 = scmp.eq.s32.totalorder %s14, 0
    %p104 = por %p102, %p103
    %p105 = scmp.le.s32.totalorder 1, %s8
    %p106 = scmp.lt.s32.totalorder %s8, 9
    %p107 = pnand %p105, %p106
    %p108 = pneg %p107
    // Predicated region
    $region9: #{dof_cnn_lstm_forward.10} parent=5 // pred_check
      _
    $region10: #{dof_cnn_lstm_forward.10} parent=5 // pred_check_branch
      %110 = sbr.rel (%p107) target = $region12
    $region11: #{dof_cnn_lstm_forward.10} parent=5 // pred_region
      %s111 = ssub.s32 %s8, 1
      // Predicated region
      $region13: #{dof_cnn_lstm_forward.10} parent=11 // pred_check
        %p112 = pneg %p69
      $region14: #{dof_cnn_lstm_forward.10} parent=11 // pred_check_branch
        %114 = sbr.rel (%p112) target = $region16
      $region15: #{dof_cnn_lstm_forward.10} parent=11 // pred_region
        _
      $region16: #{dof_cnn_lstm_forward.10} parent=11 // pred_fallthru
        _
    $region12: #{dof_cnn_lstm_forward.10} parent=5 // pred_fallthru
      _
    %p115 = scmp.lt.s32.totalorder %s8, 8
    // Predicated region
    $region17: #{dof_cnn_lstm_forward.10} parent=5 // pred_check
      %p116 = pneg %p115
    $region18: #{dof_cnn_lstm_forward.10} parent=5 // pred_check_branch
      %118 = sbr.rel (%p116) target = $region20
    $region19: #{dof_cnn_lstm_forward.10} parent=5 // pred_region
      // Predicated region
      $region21: #{dof_cnn_lstm_forward.10} parent=19 // pred_check
        %p119 = pneg %p42
      $region22: #{dof_cnn_lstm_forward.10} parent=19 // pred_check_branch
        %121 = sbr.rel (%p119) target = $region24
      $region23: #{dof_cnn_lstm_forward.10} parent=19 // pred_region
        %p122 = scmp.lt.s32.totalorder %s15, 1
        %s123 = scalar_select %p122, %s15, 1
        %p124 = scmp.lt.s32.totalorder %s16, 3
        %s125 = scalar_select %p124, %s16, 3
        %s126 = smul.addr %s123, 4
        %s127 = sadd.s32 %s125, %s126
        %s128 = smul.addr %s127, 4
        %s129 = scalar_lea.vmem %s0, %s128
      $region24: #{dof_cnn_lstm_forward.10} parent=19 // pred_fallthru
        _
    $region20: #{dof_cnn_lstm_forward.10} parent=5 // pred_fallthru
      _
    %p130 = scmp.le.s32.totalorder 1, %s8
    %p131 = scmp.lt.s32.totalorder %s8, 9
    %p132 = pnand %p130, %p131
    %p133 = pneg %p132
    // Predicated region
    $region25: #{dof_cnn_lstm_forward.10} parent=5 // pred_check
      _
    $region26: #{dof_cnn_lstm_forward.10} parent=5 // pred_check_branch
      %135 = sbr.rel (%p132) target = $region28
    $region27: #{dof_cnn_lstm_forward.10} parent=5 // pred_region
      %s136 = ssub.s32 %s8, 1
      %p137 = scmp.lt.s32.totalorder %s17, 1
      %s138 = scalar_select %p137, %s17, 1
      %p139 = scmp.lt.s32.totalorder %s18, 3
      %s140 = scalar_select %p139, %s18, 3
      %s141 = smul.addr %s138, 4
      %s142 = sadd.s32 %s140, %s141
      %s143 = smul.addr %s142, 4
      %s144 = scalar_lea.vmem %s0, %s143
      %p145 = pneg %p48
      %p146 = pneg %p45
      %p147 = pneg %p69
      %p148 = pneg %p66
      %p149 = pneg %p97
      %p150 = pneg %p94
      %p151 = scmp.lt.s32.totalorder %s17, 1
      %s152 = scalar_select %p151, %s17, 1
      %p153 = scmp.lt.s32.totalorder %s18, 3
      %s154 = scalar_select %p153, %s18, 3
      %s155 = smul.addr %s152, 4
      %s156 = sadd.s32 %s154, %s155
      %s157 = scalar_lea.vmem %s2, %s156
      %p158 = scmp.lt.s32.totalorder %s17, 1
      %s159 = scalar_select %p158, %s17, 1
      %p160 = scmp.lt.s32.totalorder %s18, 3
      %s161 = scalar_select %p160, %s18, 3
      %s162 = smul.addr %s159, 4
      %s163 = sadd.s32 %s161, %s162
      %s164 = smul.addr %s163, 4
      %s165 = scalar_lea.vmem %s0, %s164
      %p166 = scmp.lt.s32.totalorder %s17, 1
      %s167 = scalar_select %p166, %s17, 1
      %p168 = scmp.lt.s32.totalorder %s18, 3
      %s169 = scalar_select %p168, %s18, 3
      %s170 = smul.addr %s167, 4
      %s171 = sadd.s32 %s169, %s170
      %s172 = scalar_lea.vmem %s2, %s171
      %p173 = scmp.eq.s32.totalorder %s18, 0
      // Predicated region
      $region29: #{dof_cnn_lstm_forward.10} parent=27 // pred_check
        %p174 = pneg %p173
      $region30: #{dof_cnn_lstm_forward.10} parent=27 // pred_check_branch
        %176 = sbr.rel (%p174) target = $region32
      $region31: #{dof_cnn_lstm_forward.10} parent=27 // pred_region
        %vm177 = vcmask 516096
        %178 = vst.msk [vmem:[#allocation2] sm:$0x1] %vm177, 0.0
        %179 = vst.msk [vmem:[#allocation3] sm:$0x1] %vm177, 0.0
      $region32: #{dof_cnn_lstm_forward.10} parent=27 // pred_fallthru
        _
      %v180 = vld [vmem:[#allocation2] sm:$0x1]
      %v181 = vld [vmem:[%s165] sm:$0xf]
      %v182 = vld [vmem:[%s1] sm:$0xff]
      %v183 = vld [vmem:[%s1 + $0x8] sm:$0xff]
      %v184 = vld [vmem:[%s1 + $0x10] sm:$0xff]
      %v185 = vld [vmem:[%s1 + $0x18] sm:$0xff]
      %v186 = vld [vmem:[%s1 + $0x20] sm:$0xff]
      %v187 = vld [vmem:[%s1 + $0x28] sm:$0xff]
      %v188 = vld [vmem:[%s1 + $0x30] sm:$0xff]
      %v189 = vld [vmem:[%s1 + $0x38] sm:$0xff]
      %v190 = vld [vmem:[%s1 + $0x40] sm:$0xff]
      %v191 = vld [vmem:[%s1 + $0x48] sm:$0xff]
      %v192 = vld [vmem:[%s1 + $0x50] sm:$0xff]
      %v193 = vld [vmem:[%s1 + $0x58] sm:$0xff]
      %v194 = vld [vmem:[%s1 + $0x60] sm:$0xff]
      %v195 = vld [vmem:[%s1 + $0x68] sm:$0xff]
      %v196 = vld [vmem:[%s1 + $0x70] sm:$0xff]
      %v197 = vld [vmem:[%s1 + $0x78] sm:$0xff]
      %v198 = vld [vmem:[%s1 + $0x80] sm:$0xff]
      %v199 = vld [vmem:[%s1 + $0x88] sm:$0xff]
      %v200 = vld [vmem:[%s1 + $0x90] sm:$0xff]
      %v201 = vld [vmem:[%s1 + $0x98] sm:$0xff]
      %v202 = vld [vmem:[%s1 + $0xa0] sm:$0xff]
      %v203 = vld [vmem:[%s1 + $0xa8] sm:$0xff]
      %v204 = vld [vmem:[%s1 + $0xb0] sm:$0xff]
      %v205 = vld [vmem:[%s1 + $0xb8] sm:$0xff]
      %v206 = vld [vmem:[%s1 + $0xc0] sm:$0xff]
      %v207 = vld [vmem:[%s1 + $0xc8] sm:$0xff]
      %v208 = vld [vmem:[%s1 + $0xd0] sm:$0xff]
      %v209 = vld [vmem:[%s1 + $0xd8] sm:$0xff]
      %v210 = vld [vmem:[%s1 + $0xe0] sm:$0xff]
      %v211 = vld [vmem:[%s1 + $0xe8] sm:$0xff]
      %v212 = vld [vmem:[%s1 + $0xf0] sm:$0xff]
      %v213 = vld [vmem:[%s1 + $0xf8] sm:$0xff]
      %vm214 = vcmask 523264
      %v216 = vsel %vm214, %v180, 0
      %218 = vmatprep.subr.mxu0 0.0
      %219 = vmatpush1.msra.mxu0 %v182
      %220 = vmatprep.subr.mxu0 0.0
      %221 = vmatpush1.msra.mxu0 %v183
      %222 = vmatprep.subr.mxu0 0.0
      %223 = vmatpush1.msra.mxu0 %v184
      %224 = vmatprep.subr.mxu0 0.0
      %225 = vmatpush1.msra.mxu0 %v185
      %226 = vmatprep.subr.mxu0 0.0
      %227 = vmatpush1.msra.mxu0 %v186
      %228 = vmatprep.subr.mxu0 0.0
      %229 = vmatpush1.msra.mxu0 %v187
      %230 = vmatprep.subr.mxu0 0.0
      %231 = vmatpush1.msra.mxu0 %v188
      %232 = vmatprep.subr.mxu0 0.0
      %233 = vmatpush1.msra.mxu0 %v189
      %234 = vmatprep.subr.mxu0 0.0
      %235 = vmatpush1.msra.mxu0 0.0
      %236 = vmatprep.subr.mxu0 0.0
      %237 = vmatpush1.msra.mxu0 0.0
      %238 = vmatprep.subr.mxu0 0.0
      %239 = vmatpush1.msra.mxu0 0.0
      %240 = vmatprep.subr.mxu0 0.0
      %241 = vmatpush1.msra.mxu0 0.0
      %242 = vmatprep.subr.mxu0 0.0
      %243 = vmatpush1.msra.mxu0 0.0
      %244 = vmatprep.subr.mxu0 0.0
      %245 = vmatpush1.msra.mxu0 0.0
      %246 = vmatprep.subr.mxu0 0.0
      %247 = vmatpush1.msra.mxu0 0.0
      %248 = vmatprep.subr.mxu0 0.0
      %249 = vmatpush1.msra.mxu0 0.0
      %250 = vmatprep.subr.mxu0 0.0
      %251 = vmatpush1.msra.mxu0 0.0
      %252 = vmatprep.subr.mxu0 0.0
      %253 = vmatpush1.msra.mxu0 0.0
      %254 = vmatprep.subr.mxu0 0.0
      %255 = vmatpush1.msra.mxu0 0.0
      %256 = vmatprep.subr.mxu0 0.0
      %257 = vmatpush1.msra.mxu0 0.0
      %258 = vmatprep.subr.mxu0 0.0
      %259 = vmatpush1.msra.mxu0 0.0
      %260 = vmatprep.subr.mxu0 0.0
      %261 = vmatpush1.msra.mxu0 0.0
      %262 = vmatprep.subr.mxu0 0.0
      %263 = vmatpush1.msra.mxu0 0.0
      %264 = vmatprep.subr.mxu0 0.0
      %265 = vmatpush1.msra.mxu0 0.0
      %266 = vmatprep.subr.mxu0 0.0
      %267 = vmatpush1.msra.mxu0 0.0
      %268 = vmatprep.subr.mxu0 0.0
      %269 = vmatpush1.msra.mxu0 0.0
      %270 = vmatprep.subr.mxu0 0.0
      %271 = vmatpush1.msra.mxu0 0.0
      %272 = vmatprep.subr.mxu0 0.0
      %273 = vmatpush1.msra.mxu0 0.0
      %274 = vmatprep.subr.mxu0 0.0
      %275 = vmatpush1.msra.mxu0 0.0
      %276 = vmatprep.subr.mxu0 0.0
      %277 = vmatpush1.msra.mxu0 0.0
      %278 = vmatprep.subr.mxu0 0.0
      %279 = vmatpush1.msra.mxu0 0.0
      %280 = vmatprep.subr.mxu0 0.0
      %281 = vmatpush1.msra.mxu0 0.0
      %282 = vmatprep.mubr.f32.mxu0 0.0
      %283 = vmatmul.mubr.f32.gmra.mrb[0].mxu0 %v216
      %v284 = vpop.f32.mrb[0].mxu0
      %v285 = vadd.f32 0.0, %v284
      %v286 = vpop.f32.mrb[0].mxu0
      %287 = vdwg.mxu0
      %v288 = vadd.f32 %v181, %v285
      %v289 = vxor.u32 %v288, 2147483648
      %v290 = vmul.f32 %v289, 1.442695
      %v291 = vpow.pop %v290
      %v292 = vadd.f32 %v291, 1.0
      %v293 = vrcp.pop %v292
      %v294 = vmul.f32 1.0, %v293
      %295 = vmatprep.subr.mxu0 0.0
      %296 = vmatpush1.msra.mxu0 %v190
      %297 = vmatprep.subr.mxu0 0.0
      %298 = vmatpush1.msra.mxu0 %v191
      %299 = vmatprep.subr.mxu0 0.0
      %300 = vmatpush1.msra.mxu0 %v192
      %301 = vmatprep.subr.mxu0 0.0
      %302 = vmatpush1.msra.mxu0 %v193
      %303 = vmatprep.subr.mxu0 0.0
      %304 = vmatpush1.msra.mxu0 %v194
      %305 = vmatprep.subr.mxu0 0.0
      %306 = vmatpush1.msra.mxu0 %v195
      %307 = vmatprep.subr.mxu0 0.0
      %308 = vmatpush1.msra.mxu0 %v196
      %309 = vmatprep.subr.mxu0 0.0
      %310 = vmatpush1.msra.mxu0 %v197
      %311 = vmatprep.subr.mxu0 0.0
      %312 = vmatpush1.msra.mxu0 0.0
      %313 = vmatprep.subr.mxu0 0.0
      %314 = vmatpush1.msra.mxu0 0.0
      %315 = vmatprep.subr.mxu0 0.0
      %316 = vmatpush1.msra.mxu0 0.0
      %317 = vmatprep.subr.mxu0 0.0
      %318 = vmatpush1.msra.mxu0 0.0
      %319 = vmatprep.subr.mxu0 0.0
      %320 = vmatpush1.msra.mxu0 0.0
      %321 = vmatprep.subr.mxu0 0.0
      %322 = vmatpush1.msra.mxu0 0.0
      %323 = vmatprep.subr.mxu0 0.0
      %324 = vmatpush1.msra.mxu0 0.0
      %325 = vmatprep.subr.mxu0 0.0
      %326 = vmatpush1.msra.mxu0 0.0
      %327 = vmatprep.subr.mxu0 0.0
      %328 = vmatpush1.msra.mxu0 0.0
      %329 = vmatprep.subr.mxu0 0.0
      %330 = vmatpush1.msra.mxu0 0.0
      %331 = vmatprep.subr.mxu0 0.0
      %332 = vmatpush1.msra.mxu0 0.0
      %333 = vmatprep.subr.mxu0 0.0
      %334 = vmatpush1.msra.mxu0 0.0
      %335 = vmatprep.subr.mxu0 0.0
      %336 = vmatpush1.msra.mxu0 0.0
      %337 = vmatprep.subr.mxu0 0.0
      %338 = vmatpush1.msra.mxu0 0.0
      %339 = vmatprep.subr.mxu0 0.0
      %340 = vmatpush1.msra.mxu0 0.0
      %341 = vmatprep.subr.mxu0 0.0
      %342 = vmatpush1.msra.mxu0 0.0
      %343 = vmatprep.subr.mxu0 0.0
      %344 = vmatpush1.msra.mxu0 0.0
      %345 = vmatprep.subr.mxu0 0.0
      %346 = vmatpush1.msra.mxu0 0.0
      %347 = vmatprep.subr.mxu0 0.0
      %348 = vmatpush1.msra.mxu0 0.0
      %349 = vmatprep.subr.mxu0 0.0
      %350 = vmatpush1.msra.mxu0 0.0
      %351 = vmatprep.subr.mxu0 0.0
      %352 = vmatpush1.msra.mxu0 0.0
      %353 = vmatprep.subr.mxu0 0.0
      %354 = vmatpush1.msra.mxu0 0.0
      %355 = vmatprep.subr.mxu0 0.0
      %356 = vmatpush1.msra.mxu0 0.0
      %357 = vmatprep.subr.mxu0 0.0
      %358 = vmatpush1.msra.mxu0 0.0
      %359 = vmatprep.mubr.f32.mxu0 0.0
      %360 = vmatmul.mubr.f32.gmra.mrb[0].mxu0 %v216
      %v361 = vpop.f32.mrb[0].mxu0
      %v362 = vadd.f32 0.0, %v361
      %v363 = vpop.f32.mrb[0].mxu0
      %364 = vdwg.mxu0
      %v366 = vrot.slane %v362, 7
      %v368 = vadd.f32 %v181, %v366
      %v369 = vxor.u32 %v368, 2147483648
      %v370 = vmul.f32 %v369, 1.442695
      %v371 = vpow.pop %v370
      %v372 = vadd.f32 %v371, 1.0
      %v373 = vrcp.pop %v372
      %v374 = vmul.f32 1.0, %v373
      %375 = vmatprep.subr.mxu0 0.0
      %376 = vmatpush1.msra.mxu0 %v198
      %377 = vmatprep.subr.mxu0 0.0
      %378 = vmatpush1.msra.mxu0 %v199
      %379 = vmatprep.subr.mxu0 0.0
      %380 = vmatpush1.msra.mxu0 %v200
      %381 = vmatprep.subr.mxu0 0.0
      %382 = vmatpush1.msra.mxu0 %v201
      %383 = vmatprep.subr.mxu0 0.0
      %384 = vmatpush1.msra.mxu0 %v202
      %385 = vmatprep.subr.mxu0 0.0
      %386 = vmatpush1.msra.mxu0 %v203
      %387 = vmatprep.subr.mxu0 0.0
      %388 = vmatpush1.msra.mxu0 %v204
      %389 = vmatprep.subr.mxu0 0.0
      %390 = vmatpush1.msra.mxu0 %v205
      %391 = vmatprep.subr.mxu0 0.0
      %392 = vmatpush1.msra.mxu0 0.0
      %393 = vmatprep.subr.mxu0 0.0
      %394 = vmatpush1.msra.mxu0 0.0
      %395 = vmatprep.subr.mxu0 0.0
      %396 = vmatpush1.msra.mxu0 0.0
      %397 = vmatprep.subr.mxu0 0.0
      %398 = vmatpush1.msra.mxu0 0.0
      %399 = vmatprep.subr.mxu0 0.0
      %400 = vmatpush1.msra.mxu0 0.0
      %401 = vmatprep.subr.mxu0 0.0
      %402 = vmatpush1.msra.mxu0 0.0
      %403 = vmatprep.subr.mxu0 0.0
      %404 = vmatpush1.msra.mxu0 0.0
      %405 = vmatprep.subr.mxu0 0.0
      %406 = vmatpush1.msra.mxu0 0.0
      %407 = vmatprep.subr.mxu0 0.0
      %408 = vmatpush1.msra.mxu0 0.0
      %409 = vmatprep.subr.mxu0 0.0
      %410 = vmatpush1.msra.mxu0 0.0
      %411 = vmatprep.subr.mxu0 0.0
      %412 = vmatpush1.msra.mxu0 0.0
      %413 = vmatprep.subr.mxu0 0.0
      %414 = vmatpush1.msra.mxu0 0.0
      %415 = vmatprep.subr.mxu0 0.0
      %416 = vmatpush1.msra.mxu0 0.0
      %417 = vmatprep.subr.mxu0 0.0
      %418 = vmatpush1.msra.mxu0 0.0
      %419 = vmatprep.subr.mxu0 0.0
      %420 = vmatpush1.msra.mxu0 0.0
      %421 = vmatprep.subr.mxu0 0.0
      %422 = vmatpush1.msra.mxu0 0.0
      %423 = vmatprep.subr.mxu0 0.0
      %424 = vmatpush1.msra.mxu0 0.0
      %425 = vmatprep.subr.mxu0 0.0
      %426 = vmatpush1.msra.mxu0 0.0
      %427 = vmatprep.subr.mxu0 0.0
      %428 = vmatpush1.msra.mxu0 0.0
      %429 = vmatprep.subr.mxu0 0.0
      %430 = vmatpush1.msra.mxu0 0.0
      %431 = vmatprep.subr.mxu0 0.0
      %432 = vmatpush1.msra.mxu0 0.0
      %433 = vmatprep.subr.mxu0 0.0
      %434 = vmatpush1.msra.mxu0 0.0
      %435 = vmatprep.subr.mxu0 0.0
      %436 = vmatpush1.msra.mxu0 0.0
      %437 = vmatprep.subr.mxu0 0.0
      %438 = vmatpush1.msra.mxu0 0.0
      %439 = vmatprep.mubr.f32.mxu0 0.0
      %440 = vmatmul.mubr.f32.gmra.mrb[0].mxu0 %v216
      %v441 = vpop.f32.mrb[0].mxu0
      %v442 = vadd.f32 0.0, %v441
      %v443 = vpop.f32.mrb[0].mxu0
      %444 = vdwg.mxu0
      %v446 = vrot.slane %v442, 6
      %v448 = vadd.f32 %v181, %v446
      %v449 = vtanh.pop %v448
      %450 = vmatprep.subr.mxu0 0.0
      %451 = vmatpush1.msra.mxu0 %v206
      %452 = vmatprep.subr.mxu0 0.0
      %453 = vmatpush1.msra.mxu0 %v207
      %454 = vmatprep.subr.mxu0 0.0
      %455 = vmatpush1.msra.mxu0 %v208
      %456 = vmatprep.subr.mxu0 0.0
      %457 = vmatpush1.msra.mxu0 %v209
      %458 = vmatprep.subr.mxu0 0.0
      %459 = vmatpush1.msra.mxu0 %v210
      %460 = vmatprep.subr.mxu0 0.0
      %461 = vmatpush1.msra.mxu0 %v211
      %462 = vmatprep.subr.mxu0 0.0
      %463 = vmatpush1.msra.mxu0 %v212
      %464 = vmatprep.subr.mxu0 0.0
      %465 = vmatpush1.msra.mxu0 %v213
      %466 = vmatprep.subr.mxu0 0.0
      %467 = vmatpush1.msra.mxu0 0.0
      %468 = vmatprep.subr.mxu0 0.0
      %469 = vmatpush1.msra.mxu0 0.0
      %470 = vmatprep.subr.mxu0 0.0
      %471 = vmatpush1.msra.mxu0 0.0
      %472 = vmatprep.subr.mxu0 0.0
      %473 = vmatpush1.msra.mxu0 0.0
      %474 = vmatprep.subr.mxu0 0.0
      %475 = vmatpush1.msra.mxu0 0.0
      %476 = vmatprep.subr.mxu0 0.0
      %477 = vmatpush1.msra.mxu0 0.0
      %478 = vmatprep.subr.mxu0 0.0
      %479 = vmatpush1.msra.mxu0 0.0
      %480 = vmatprep.subr.mxu0 0.0
      %481 = vmatpush1.msra.mxu0 0.0
      %482 = vmatprep.subr.mxu0 0.0
      %483 = vmatpush1.msra.mxu0 0.0
      %484 = vmatprep.subr.mxu0 0.0
      %485 = vmatpush1.msra.mxu0 0.0
      %486 = vmatprep.subr.mxu0 0.0
      %487 = vmatpush1.msra.mxu0 0.0
      %488 = vmatprep.subr.mxu0 0.0
      %489 = vmatpush1.msra.mxu0 0.0
      %490 = vmatprep.subr.mxu0 0.0
      %491 = vmatpush1.msra.mxu0 0.0
      %492 = vmatprep.subr.mxu0 0.0
      %493 = vmatpush1.msra.mxu0 0.0
      %494 = vmatprep.subr.mxu0 0.0
      %495 = vmatpush1.msra.mxu0 0.0
      %496 = vmatprep.subr.mxu0 0.0
      %497 = vmatpush1.msra.mxu0 0.0
      %498 = vmatprep.subr.mxu0 0.0
      %499 = vmatpush1.msra.mxu0 0.0
      %500 = vmatprep.subr.mxu0 0.0
      %501 = vmatpush1.msra.mxu0 0.0
      %502 = vmatprep.subr.mxu0 0.0
      %503 = vmatpush1.msra.mxu0 0.0
      %504 = vmatprep.subr.mxu0 0.0
      %505 = vmatpush1.msra.mxu0 0.0
      %506 = vmatprep.subr.mxu0 0.0
      %507 = vmatpush1.msra.mxu0 0.0
      %508 = vmatprep.subr.mxu0 0.0
      %509 = vmatpush1.msra.mxu0 0.0
      %510 = vmatprep.subr.mxu0 0.0
      %511 = vmatpush1.msra.mxu0 0.0
      %512 = vmatprep.subr.mxu0 0.0
      %513 = vmatpush1.msra.mxu0 0.0
      %514 = vmatprep.mubr.f32.mxu0 0.0
      %515 = vmatmul.mubr.f32.gmra.mrb[0].mxu0 %v216
      %v516 = vpop.f32.mrb[0].mxu0
      %v517 = vadd.f32 0.0, %v516
      %v518 = vpop.f32.mrb[0].mxu0
      %519 = vdwg.mxu0
      %v521 = vrot.slane %v517, 5
      %v523 = vadd.f32 %v181, %v521
      %v524 = vxor.u32 %v523, 2147483648
      %v525 = vmul.f32 %v524, 1.442695
      %v526 = vpow.pop %v525
      %v527 = vadd.f32 %v526, 1.0
      %v528 = vrcp.pop %v527
      %v529 = vmul.f32 1.0, %v528
      %v530 = vld [vmem:[#allocation3] sm:$0x1]
      %v532 = vlaneseq
      %v533 = vshrl.u32 %v532, 7
      %v534 = vsub.s32 0, %v533
      %v535 = vrot.slane %v530, %v534
      %v537 = vmul.f32 %v374, %v535
      %v539 = vrot.slane %v449, 2
      %v541 = vmul.f32 %v294, %v539
      %v543 = vrot.slane %v541, 7
      %v545 = vadd.f32 %v537, %v543
      %v546 = vtanh.pop %v545
      %v548 = vrot.slane %v546, 6
      %v550 = vmul.f32 %v529, %v548
      %vm551 = vcmask 517121
      %552 = vst.msk [vmem:[#allocation3 - $0x1] sm:$0x2] %vm551, %v545
      %vm553 = vcmask 519171
      %554 = vst.msk [vmem:[#allocation2 - $0x3] sm:$0x8] %vm553, %v550
      %555 = vst.msk [vmem:[%s172 - $0x3] sm:$0x8] %vm553, %v550
      %p556 = scmp.lt.s32.totalorder %s17, 1
      %s557 = scalar_select %p556, %s17, 1
      %p558 = scmp.lt.s32.totalorder %s18, 3
      %s559 = scalar_select %p558, %s18, 3
      %s560 = smul.addr %s557, 4
      %s561 = sadd.s32 %s559, %s560
      %s562 = scalar_lea.vmem %s2, %s561
      // Predicated region
      $region33: #{dof_cnn_lstm_forward.10} parent=27 // pred_check
        %p563 = pneg %p94
      $region34: #{dof_cnn_lstm_forward.10} parent=27 // pred_check_branch
        %565 = sbr.rel (%p563) target = $region36
      $region35: #{dof_cnn_lstm_forward.10} parent=27 // pred_region
        _
      $region36: #{dof_cnn_lstm_forward.10} parent=27 // pred_fallthru
        _
    $region28: #{dof_cnn_lstm_forward.10} parent=5 // pred_fallthru
      _
    %p566 = scmp.le.s32.totalorder 2, %s8
    // Predicated region
    $region37: #{dof_cnn_lstm_forward.10} parent=5 // pred_check
      %p567 = pneg %p566
    $region38: #{dof_cnn_lstm_forward.10} parent=5 // pred_check_branch
      %569 = sbr.rel (%p567) target = $region40
    $region39: #{dof_cnn_lstm_forward.10} parent=5 // pred_region
      %s570 = ssub.s32 %s8, 2
      // Predicated region
      $region41: #{dof_cnn_lstm_forward.10} parent=39 // pred_check
        %p571 = pneg %p100
      $region42: #{dof_cnn_lstm_forward.10} parent=39 // pred_check_branch
        %573 = sbr.rel (%p571) target = $region44
      $region43: #{dof_cnn_lstm_forward.10} parent=39 // pred_region
        %p574 = scmp.lt.s32.totalorder %s19, 1
        %s575 = scalar_select %p574, %s19, 1
        %p576 = scmp.lt.s32.totalorder %s20, 3
        %s577 = scalar_select %p576, %s20, 3
        %s578 = smul.addr %s575, 4
        %s579 = sadd.s32 %s577, %s578
        %s580 = scalar_lea.vmem %s2, %s579
      $region44: #{dof_cnn_lstm_forward.10} parent=39 // pred_fallthru
        _
    $region40: #{dof_cnn_lstm_forward.10} parent=5 // pred_fallthru
      _
  $region6: #{dof_cnn_lstm_forward.10} parent=0 // loop_footer
    %s12 = sadd.s32 1, %s8
  $region7: #{dof_cnn_lstm_forward.10} parent=0 // loop_footer_branch
    %7 = sbr.rel target = $region3
  $region8: #{dof_cnn_lstm_forward.10} parent=0 // loop_exit
    _

// kernel: dof_cnn_lstm_forward.9
$region0: #{dof_cnn_lstm_forward.9}
  #allocation0 [shape = 'u32[]', space=smem, size = 0x4, offset = 0x4, fixed_abs, tag = 'smem constant byte address 0x4 - core index']
  #allocation1 [shape = 'u32[144,128]{1,0:T(1,128)}', space=vmem, size = 0x12000, scoped, tag = 'internal scratch']
  %s0 = inlined_call_operand.vmem [shape: bf16[256,48], index: 0, kind: input, shape index: {}]
  %s1 = inlined_call_operand.vmem [shape: bf16[48,256], index: 1, kind: input, shape index: {}]
  %s2 = inlined_call_operand.vmem [shape: f32[1,256], index: 2, kind: input, shape index: {}]
  %s3 = inlined_call_operand.vmem [shape: f32[256,256], index: 3, kind: output, shape index: {}]
  %s4 = sld [smem:[#allocation0]]
  $region22: #{dof_cnn_lstm_forward.9} parent=0
    _
  %s6 = ssub.s32 1, %s4
  %s7 = scalar_select 0, %s6, %s4
  // Predicated region
  $region2: #{dof_cnn_lstm_forward.9} parent=0 // pred_check
    _
  $region3: #{dof_cnn_lstm_forward.9} parent=0 // pred_check_branch
    %9 = sbr.rel (0) target = $region5
  $region4: #{dof_cnn_lstm_forward.9} parent=0 // pred_region
    _
  $region5: #{dof_cnn_lstm_forward.9} parent=0 // pred_fallthru
    _
  // Predicated region
  $region6: #{dof_cnn_lstm_forward.9} parent=0 // pred_check
    _
  $region7: #{dof_cnn_lstm_forward.9} parent=0 // pred_check_branch
    %11 = sbr.rel (0) target = $region9
  $region8: #{dof_cnn_lstm_forward.9} parent=0 // pred_region
    _
  $region9: #{dof_cnn_lstm_forward.9} parent=0 // pred_fallthru
    _
  // Predicated region
  $region10: #{dof_cnn_lstm_forward.9} parent=0 // pred_check
    _
  $region11: #{dof_cnn_lstm_forward.9} parent=0 // pred_check_branch
    %13 = sbr.rel (0) target = $region13
  $region12: #{dof_cnn_lstm_forward.9} parent=0 // pred_region
    _
  $region13: #{dof_cnn_lstm_forward.9} parent=0 // pred_fallthru
    _
  %v15 = vld [vmem:[%s0] sm:$0xf]
  %v16 = vld [vmem:[%s0 + $0x4] sm:$0xf]
  %v17 = vld [vmem:[%s0 + $0x8] sm:$0xf]
  %v18 = vld [vmem:[%s0 + $0xc] sm:$0xf]
  %v19 = vld [vmem:[%s0 + $0x10] sm:$0xf]
  %v20 = vld [vmem:[%s0 + $0x14] sm:$0xf]
  %v21 = vld [vmem:[%s0 + $0x18] sm:$0xf]
  %v22 = vld [vmem:[%s0 + $0x1c] sm:$0xf]
  %v23 = vld [vmem:[%s0 + $0x20] sm:$0xf]
  %v24 = vld [vmem:[%s0 + $0x24] sm:$0xf]
  %v25 = vld [vmem:[%s0 + $0x28] sm:$0xf]
  %v26 = vld [vmem:[%s0 + $0x2c] sm:$0xf]
  %v27 = vld [vmem:[%s0 + $0x30] sm:$0xf]
  %v28 = vld [vmem:[%s0 + $0x34] sm:$0xf]
  %v29 = vld [vmem:[%s0 + $0x38] sm:$0xf]
  %v30 = vld [vmem:[%s0 + $0x3c] sm:$0xf]
  %v31 = vld [vmem:[%s0 + $0x40] sm:$0xf]
  %v32 = vld [vmem:[%s0 + $0x44] sm:$0xf]
  %v33 = vld [vmem:[%s0 + $0x48] sm:$0xf]
  %v34 = vld [vmem:[%s0 + $0x4c] sm:$0xf]
  %v35 = vld [vmem:[%s0 + $0x50] sm:$0xf]
  %v36 = vld [vmem:[%s0 + $0x54] sm:$0xf]
  %v37 = vld [vmem:[%s0 + $0x58] sm:$0xf]
  %v38 = vld [vmem:[%s0 + $0x5c] sm:$0xf]
  %v39 = vld [vmem:[%s0 + $0x60] sm:$0xf]
  %v40 = vld [vmem:[%s0 + $0x64] sm:$0xf]
  %v41 = vld [vmem:[%s0 + $0x68] sm:$0xf]
  %v42 = vld [vmem:[%s0 + $0x6c] sm:$0xf]
  %v43 = vld [vmem:[%s0 + $0x70] sm:$0xf]
  %v44 = vld [vmem:[%s0 + $0x74] sm:$0xf]
  %v45 = vld [vmem:[%s0 + $0x78] sm:$0xf]
  %v46 = vld [vmem:[%s0 + $0x7c] sm:$0xf]
  %v47 = vld [vmem:[%s1] sm:$0xff]
  %v48 = vld [vmem:[%s1 + $0x8] sm:$0xff]
  %v49 = vld [vmem:[%s1 + $0x10] sm:$0xff]
  %v50 = vld [vmem:[%s1 + $0x18] sm:$0xff]
  %v51 = vld [vmem:[%s1 + $0x20] sm:$0xff]
  %v52 = vld [vmem:[%s1 + $0x28] sm:$0xff]
  %v53 = vld [vmem:[%s2] sm:$0x3]
  %v55 = vlaneseq
  %v56 = vshrl.u32 %v55, 7
  %v57 = vsub.s32 0, %v56
  %v58 = vrot.slane %v53, %v57
  %v59 = vlaneseq
  %v60 = vshrl.u32 %v59, 7
  %v61 = vsub.s32 1, %v60
  %v62 = vrot.slane %v53, %v61
  %v97 = vunpack.c.l.b16 %v15
  %v98 = vunpack.c.l.b16 %v16
  %v99 = vunpack.c.l.b16 %v17
  %v100 = vunpack.c.l.b16 %v18
  %v101 = vunpack.c.l.b16 %v19
  %v102 = vunpack.c.l.b16 %v20
  %v103 = vunpack.c.l.b16 %v21
  %v104 = vunpack.c.l.b16 %v22
  %v105 = vunpack.c.l.b16 %v23
  %v106 = vunpack.c.l.b16 %v24
  %v107 = vunpack.c.l.b16 %v25
  %v108 = vunpack.c.l.b16 %v26
  %v109 = vunpack.c.l.b16 %v27
  %v110 = vunpack.c.l.b16 %v28
  %v111 = vunpack.c.l.b16 %v29
  %v112 = vunpack.c.l.b16 %v30
  %v113 = vunpack.c.l.b16 %v31
  %v114 = vunpack.c.l.b16 %v32
  %v115 = vunpack.c.l.b16 %v33
  %v116 = vunpack.c.l.b16 %v34
  %v117 = vunpack.c.l.b16 %v35
  %v118 = vunpack.c.l.b16 %v36
  %v119 = vunpack.c.l.b16 %v37
  %v120 = vunpack.c.l.b16 %v38
  %v121 = vunpack.c.l.b16 %v39
  %v122 = vunpack.c.l.b16 %v40
  %v123 = vunpack.c.l.b16 %v41
  %v124 = vunpack.c.l.b16 %v42
  %v125 = vunpack.c.l.b16 %v43
  %v126 = vunpack.c.l.b16 %v44
  %v127 = vunpack.c.l.b16 %v45
  %v128 = vunpack.c.l.b16 %v46
  %v129 = vpack.c.b16 %v98, %v97
  %v130 = vpack.c.b16 %v100, %v99
  %v131 = vpack.c.b16 %v102, %v101
  %v132 = vpack.c.b16 %v104, %v103
  %v133 = vpack.c.b16 %v106, %v105
  %v134 = vpack.c.b16 %v108, %v107
  %v135 = vpack.c.b16 %v110, %v109
  %v136 = vpack.c.b16 %v112, %v111
  %v137 = vpack.c.b16 %v114, %v113
  %v138 = vpack.c.b16 %v116, %v115
  %v139 = vpack.c.b16 %v118, %v117
  %v140 = vpack.c.b16 %v120, %v119
  %v141 = vpack.c.b16 %v122, %v121
  %v142 = vpack.c.b16 %v124, %v123
  %v143 = vpack.c.b16 %v126, %v125
  %v144 = vpack.c.b16 %v128, %v127
  %v151 = vunpack.c.l.b16 %v47
  %v152 = vunpack.c.h.b16 %v47
  %v153 = vunpack.c.l.b16 %v48
  %v154 = vunpack.c.h.b16 %v48
  %v155 = vunpack.c.l.b16 %v49
  %v156 = vunpack.c.h.b16 %v49
  %v157 = vunpack.c.l.b16 %v50
  %v158 = vunpack.c.h.b16 %v50
  %v159 = vunpack.c.l.b16 %v51
  %v160 = vunpack.c.h.b16 %v51
  %v161 = vunpack.c.l.b16 %v52
  %v162 = vunpack.c.h.b16 %v52
  %v163 = vpack.c.b16 %v153, %v151
  %v164 = vpack.c.b16 %v154, %v152
  %v165 = vpack.c.b16 %v157, %v155
  %v166 = vpack.c.b16 %v158, %v156
  %v167 = vpack.c.b16 %v161, %v159
  %v168 = vpack.c.b16 %v162, %v160
  %vm175 = vcmask 392192
  %v177 = vsel %vm175, %v129, 0
  %v180 = vsel %vm175, %v130, 0
  %v183 = vsel %vm175, %v131, 0
  %v186 = vsel %vm175, %v132, 0
  %v189 = vsel %vm175, %v133, 0
  %v192 = vsel %vm175, %v134, 0
  %v195 = vsel %vm175, %v135, 0
  %v198 = vsel %vm175, %v136, 0
  %v201 = vsel %vm175, %v137, 0
  %v204 = vsel %vm175, %v138, 0
  %v207 = vsel %vm175, %v139, 0
  %v210 = vsel %vm175, %v140, 0
  %v213 = vsel %vm175, %v141, 0
  %v216 = vsel %vm175, %v142, 0
  %v219 = vsel %vm175, %v143, 0
  %v222 = vsel %vm175, %v144, 0
  %224 = vmatprep.subr.bf16.mxu0 %v164
  %225 = vmatpush1.bf16.msra.mxu0 %v163
  %226 = vmatprep.subr.bf16.mxu0 %v166
  %227 = vmatpush1.bf16.msra.mxu0 %v165
  %228 = vmatprep.subr.bf16.mxu0 %v168
  %229 = vmatpush1.bf16.msra.mxu0 %v167
  %230 = vmatprep.subr.bf16.mxu0 0
  %231 = vmatpush1.bf16.msra.mxu0 0
  %232 = vmatprep.subr.bf16.mxu0 0
  %233 = vmatpush1.bf16.msra.mxu0 0
  %234 = vmatprep.subr.bf16.mxu0 0
  %235 = vmatpush1.bf16.msra.mxu0 0
  %236 = vmatprep.subr.bf16.mxu0 0
  %237 = vmatpush1.bf16.msra.mxu0 0
  %238 = vmatprep.subr.bf16.mxu0 0
  %239 = vmatpush1.bf16.msra.mxu0 0
  %240 = vmatprep.subr.bf16.mxu0 0
  %241 = vmatpush1.bf16.msra.mxu0 0
  %242 = vmatprep.subr.bf16.mxu0 0
  %243 = vmatpush1.bf16.msra.mxu0 0
  %244 = vmatprep.subr.bf16.mxu0 0
  %245 = vmatpush1.bf16.msra.mxu0 0
  %246 = vmatprep.subr.bf16.mxu0 0
  %247 = vmatpush1.bf16.msra.mxu0 0
  %248 = vmatprep.subr.bf16.mxu0 0
  %249 = vmatpush1.bf16.msra.mxu0 0
  %250 = vmatprep.subr.bf16.mxu0 0
  %251 = vmatpush1.bf16.msra.mxu0 0
  %252 = vmatprep.subr.bf16.mxu0 0
  %253 = vmatpush1.bf16.msra.mxu0 0
  %254 = vmatprep.subr.bf16.mxu0 0
  %255 = vmatpush1.bf16.msra.mxu0 0
  %256 = vmatprep.mubr.bf16.mxu0 0
  %257 = vmatmul.mubr.bf16.gmra.mrb[0].mxu0 %v177
  %v258 = vpop.f32.mrb[0].mxu0
  %v259 = vadd.f32 %v58, %v258
  %v260 = vpop.f32.mrb[0].mxu0
  %v261 = vadd.f32 %v62, %v260
  %v262 = vpop.f32.mrb[0].mxu0
  %v263 = vadd.f32 %v58, %v262
  %v264 = vpop.f32.mrb[0].mxu0
  %v265 = vadd.f32 %v62, %v264
  %266 = vmatprep.mubr.bf16.mxu0 0
  %267 = vmatmul.mubr.bf16.gmra.mrb[0].mxu0 %v180
  %v268 = vpop.f32.mrb[0].mxu0
  %v269 = vadd.f32 %v58, %v268
  %v270 = vpop.f32.mrb[0].mxu0
  %v271 = vadd.f32 %v62, %v270
  %v272 = vpop.f32.mrb[0].mxu0
  %v273 = vadd.f32 %v58, %v272
  %v274 = vpop.f32.mrb[0].mxu0
  %v275 = vadd.f32 %v62, %v274
  %276 = vmatprep.mubr.bf16.mxu0 0
  %277 = vmatmul.mubr.bf16.gmra.mrb[0].mxu0 %v183
  %v278 = vpop.f32.mrb[0].mxu0
  %v279 = vadd.f32 %v58, %v278
  %v280 = vpop.f32.mrb[0].mxu0
  %v281 = vadd.f32 %v62, %v280
  %v282 = vpop.f32.mrb[0].mxu0
  %v283 = vadd.f32 %v58, %v282
  %v284 = vpop.f32.mrb[0].mxu0
  %v285 = vadd.f32 %v62, %v284
  %286 = vmatprep.mubr.bf16.mxu0 0
  %287 = vmatmul.mubr.bf16.gmra.mrb[0].mxu0 %v186
  %v288 = vpop.f32.mrb[0].mxu0
  %v289 = vadd.f32 %v58, %v288
  %v290 = vpop.f32.mrb[0].mxu0
  %v291 = vadd.f32 %v62, %v290
  %v292 = vpop.f32.mrb[0].mxu0
  %v293 = vadd.f32 %v58, %v292
  %v294 = vpop.f32.mrb[0].mxu0
  %v295 = vadd.f32 %v62, %v294
  %296 = vmatprep.mubr.bf16.mxu0 0
  %297 = vmatmul.mubr.bf16.gmra.mrb[0].mxu0 %v189
  %v298 = vpop.f32.mrb[0].mxu0
  %v299 = vadd.f32 %v58, %v298
  %v300 = vpop.f32.mrb[0].mxu0
  %v301 = vadd.f32 %v62, %v300
  %v302 = vpop.f32.mrb[0].mxu0
  %v303 = vadd.f32 %v58, %v302
  %v304 = vpop.f32.mrb[0].mxu0
  %v305 = vadd.f32 %v62, %v304
  %306 = vmatprep.mubr.bf16.mxu0 0
  %307 = vmatmul.mubr.bf16.gmra.mrb[0].mxu0 %v192
  %v308 = vpop.f32.mrb[0].mxu0
  %v309 = vadd.f32 %v58, %v308
  %v310 = vpop.f32.mrb[0].mxu0
  %v311 = vadd.f32 %v62, %v310
  %v312 = vpop.f32.mrb[0].mxu0
  %v313 = vadd.f32 %v58, %v312
  %v314 = vpop.f32.mrb[0].mxu0
  %v315 = vadd.f32 %v62, %v314
  %316 = vmatprep.mubr.bf16.mxu0 0
  %317 = vmatmul.mubr.bf16.gmra.mrb[0].mxu0 %v195
  %v318 = vpop.f32.mrb[0].mxu0
  %v319 = vadd.f32 %v58, %v318
  %v320 = vpop.f32.mrb[0].mxu0
  %v321 = vadd.f32 %v62, %v320
  %v322 = vpop.f32.mrb[0].mxu0
  %v323 = vadd.f32 %v58, %v322
  %v324 = vpop.f32.mrb[0].mxu0
  %v325 = vadd.f32 %v62, %v324
  %326 = vmatprep.mubr.bf16.mxu0 0
  %327 = vmatmul.mubr.bf16.gmra.mrb[0].mxu0 %v198
  %v328 = vpop.f32.mrb[0].mxu0
  %v329 = vadd.f32 %v58, %v328
  %v330 = vpop.f32.mrb[0].mxu0
  %v331 = vadd.f32 %v62, %v330
  %v332 = vpop.f32.mrb[0].mxu0
  %v333 = vadd.f32 %v58, %v332
  %v334 = vpop.f32.mrb[0].mxu0
  %v335 = vadd.f32 %v62, %v334
  %336 = vmatprep.mubr.bf16.mxu0 0
  %337 = vmatmul.mubr.bf16.gmra.mrb[0].mxu0 %v201
  %v338 = vpop.f32.mrb[0].mxu0
  %v339 = vadd.f32 %v58, %v338
  %v340 = vpop.f32.mrb[0].mxu0
  %v341 = vadd.f32 %v62, %v340
  %v342 = vpop.f32.mrb[0].mxu0
  %v343 = vadd.f32 %v58, %v342
  %v344 = vpop.f32.mrb[0].mxu0
  %v345 = vadd.f32 %v62, %v344
  %346 = vmatprep.mubr.bf16.mxu0 0
  %347 = vmatmul.mubr.bf16.gmra.mrb[0].mxu0 %v204
  %v348 = vpop.f32.mrb[0].mxu0
  %v349 = vadd.f32 %v58, %v348
  %v350 = vpop.f32.mrb[0].mxu0
  %v351 = vadd.f32 %v62, %v350
  %v352 = vpop.f32.mrb[0].mxu0
  %v353 = vadd.f32 %v58, %v352
  %v354 = vpop.f32.mrb[0].mxu0
  %v355 = vadd.f32 %v62, %v354
  %356 = vmatprep.mubr.bf16.mxu0 0
  %357 = vmatmul.mubr.bf16.gmra.mrb[0].mxu0 %v207
  %v358 = vpop.f32.mrb[0].mxu0
  %v359 = vadd.f32 %v58, %v358
  %v360 = vpop.f32.mrb[0].mxu0
  %v361 = vadd.f32 %v62, %v360
  %v362 = vpop.f32.mrb[0].mxu0
  %v363 = vadd.f32 %v58, %v362
  %v364 = vpop.f32.mrb[0].mxu0
  %v365 = vadd.f32 %v62, %v364
  %366 = vmatprep.mubr.bf16.mxu0 0
  %367 = vmatmul.mubr.bf16.gmra.mrb[0].mxu0 %v210
  %v368 = vpop.f32.mrb[0].mxu0
  %v369 = vadd.f32 %v58, %v368
  %v370 = vpop.f32.mrb[0].mxu0
  %v371 = vadd.f32 %v62, %v370
  %v372 = vpop.f32.mrb[0].mxu0
  %v373 = vadd.f32 %v58, %v372
  %v374 = vpop.f32.mrb[0].mxu0
  %v375 = vadd.f32 %v62, %v374
  %376 = vmatprep.mubr.bf16.mxu0 0
  %377 = vmatmul.mubr.bf16.gmra.mrb[0].mxu0 %v213
  %v378 = vpop.f32.mrb[0].mxu0
  %v379 = vadd.f32 %v58, %v378
  %v380 = vpop.f32.mrb[0].mxu0
  %v381 = vadd.f32 %v62, %v380
  %v382 = vpop.f32.mrb[0].mxu0
  %v383 = vadd.f32 %v58, %v382
  %v384 = vpop.f32.mrb[0].mxu0
  %v385 = vadd.f32 %v62, %v384
  %386 = vmatprep.mubr.bf16.mxu0 0
  %387 = vmatmul.mubr.bf16.gmra.mrb[0].mxu0 %v216
  %v388 = vpop.f32.mrb[0].mxu0
  %v389 = vadd.f32 %v58, %v388
  %v390 = vpop.f32.mrb[0].mxu0
  %v391 = vadd.f32 %v62, %v390
  %v392 = vpop.f32.mrb[0].mxu0
  %v393 = vadd.f32 %v58, %v392
  %v394 = vpop.f32.mrb[0].mxu0
  %v395 = vadd.f32 %v62, %v394
  %396 = vmatprep.mubr.bf16.mxu0 0
  %397 = vmatmul.mubr.bf16.gmra.mrb[0].mxu0 %v219
  %v398 = vpop.f32.mrb[0].mxu0
  %v399 = vadd.f32 %v58, %v398
  %v400 = vpop.f32.mrb[0].mxu0
  %v401 = vadd.f32 %v62, %v400
  %v402 = vpop.f32.mrb[0].mxu0
  %v403 = vadd.f32 %v58, %v402
  %v404 = vpop.f32.mrb[0].mxu0
  %v405 = vadd.f32 %v62, %v404
  %406 = vmatprep.mubr.bf16.mxu0 0
  %407 = vmatmul.mubr.bf16.gmra.mrb[0].mxu0 %v222
  %v408 = vpop.f32.mrb[0].mxu0
  %v409 = vadd.f32 %v58, %v408
  %v410 = vpop.f32.mrb[0].mxu0
  %v411 = vadd.f32 %v62, %v410
  %v412 = vpop.f32.mrb[0].mxu0
  %v413 = vadd.f32 %v58, %v412
  %v414 = vpop.f32.mrb[0].mxu0
  %v415 = vadd.f32 %v62, %v414
  %416 = vdwg.mxu0
  %417 = vst [vmem:[%s3] sm:$0xff] %v259
  %418 = vst [vmem:[%s3 + $0x8] sm:$0xff] %v261
  %419 = vst [vmem:[%s3 + $0x10] sm:$0xff] %v263
  %420 = vst [vmem:[%s3 + $0x18] sm:$0xff] %v265
  %421 = vst [vmem:[%s3 + $0x20] sm:$0xff] %v269
  %422 = vst [vmem:[%s3 + $0x28] sm:$0xff] %v271
  %423 = vst [vmem:[%s3 + $0x30] sm:$0xff] %v273
  %424 = vst [vmem:[%s3 + $0x38] sm:$0xff] %v275
  %425 = vst [vmem:[%s3 + $0x40] sm:$0xff] %v279
  %426 = vst [vmem:[%s3 + $0x48] sm:$0xff] %v281
  %427 = vst [vmem:[%s3 + $0x50] sm:$0xff] %v283
  %428 = vst [vmem:[%s3 + $0x58] sm:$0xff] %v285
  %429 = vst [vmem:[%s3 + $0x60] sm:$0xff] %v289
  %430 = vst [vmem:[%s3 + $0x68] sm:$0xff] %v291
  %431 = vst [vmem:[%s3 + $0x70] sm:$0xff] %v293
  %432 = vst [vmem:[%s3 + $0x78] sm:$0xff] %v295
  %433 = vst [vmem:[%s3 + $0x80] sm:$0xff] %v299
  %434 = vst [vmem:[%s3 + $0x88] sm:$0xff] %v301
  %435 = vst [vmem:[%s3 + $0x90] sm:$0xff] %v303
  %436 = vst [vmem:[%s3 + $0x98] sm:$0xff] %v305
  %437 = vst [vmem:[%s3 + $0xa0] sm:$0xff] %v309
  %438 = vst [vmem:[%s3 + $0xa8] sm:$0xff] %v311
  %439 = vst [vmem:[%s3 + $0xb0] sm:$0xff] %v313
  %440 = vst [vmem:[%s3 + $0xb8] sm:$0xff] %v315
  %441 = vst [vmem:[%s3 + $0xc0] sm:$0xff] %v319
  %442 = vst [vmem:[%s3 + $0xc8] sm:$0xff] %v321
  %443 = vst [vmem:[%s3 + $0xd0] sm:$0xff] %v323
  %444 = vst [vmem:[%s3 + $0xd8] sm:$0xff] %v325
  %445 = vst [vmem:[%s3 + $0xe0] sm:$0xff] %v329
  %446 = vst [vmem:[%s3 + $0xe8] sm:$0xff] %v331
  %447 = vst [vmem:[%s3 + $0xf0] sm:$0xff] %v333
  %448 = vst [vmem:[%s3 + $0xf8] sm:$0xff] %v335
  %449 = vst [vmem:[%s3 + $0x100] sm:$0xff] %v339
  %450 = vst [vmem:[%s3 + $0x108] sm:$0xff] %v341
  %451 = vst [vmem:[%s3 + $0x110] sm:$0xff] %v343
  %452 = vst [vmem:[%s3 + $0x118] sm:$0xff] %v345
  %453 = vst [vmem:[%s3 + $0x120] sm:$0xff] %v349
  %454 = vst [vmem:[%s3 + $0x128] sm:$0xff] %v351
  %455 = vst [vmem:[%s3 + $0x130] sm:$0xff] %v353
  %456 = vst [vmem:[%s3 + $0x138] sm:$0xff] %v355
  %457 = vst [vmem:[%s3 + $0x140] sm:$0xff] %v359
  %458 = vst [vmem:[%s3 + $0x148] sm:$0xff] %v361
  %459 = vst [vmem:[%s3 + $0x150] sm:$0xff] %v363
  %460 = vst [vmem:[%s3 + $0x158] sm:$0xff] %v365
  %461 = vst [vmem:[%s3 + $0x160] sm:$0xff] %v369
  %462 = vst [vmem:[%s3 + $0x168] sm:$0xff] %v371
  %463 = vst [vmem:[%s3 + $0x170] sm:$0xff] %v373
  %464 = vst [vmem:[%s3 + $0x178] sm:$0xff] %v375
  %465 = vst [vmem:[%s3 + $0x180] sm:$0xff] %v379
  %466 = vst [vmem:[%s3 + $0x188] sm:$0xff] %v381
  %467 = vst [vmem:[%s3 + $0x190] sm:$0xff] %v383
  %468 = vst [vmem:[%s3 + $0x198] sm:$0xff] %v385
  %469 = vst [vmem:[%s3 + $0x1a0] sm:$0xff] %v389
  %470 = vst [vmem:[%s3 + $0x1a8] sm:$0xff] %v391
  %471 = vst [vmem:[%s3 + $0x1b0] sm:$0xff] %v393
  %472 = vst [vmem:[%s3 + $0x1b8] sm:$0xff] %v395
  %473 = vst [vmem:[%s3 + $0x1c0] sm:$0xff] %v399
  %474 = vst [vmem:[%s3 + $0x1c8] sm:$0xff] %v401
  %475 = vst [vmem:[%s3 + $0x1d0] sm:$0xff] %v403
  %476 = vst [vmem:[%s3 + $0x1d8] sm:$0xff] %v405
  %477 = vst [vmem:[%s3 + $0x1e0] sm:$0xff] %v409
  %478 = vst [vmem:[%s3 + $0x1e8] sm:$0xff] %v411
  %479 = vst [vmem:[%s3 + $0x1f0] sm:$0xff] %v413
  %480 = vst [vmem:[%s3 + $0x1f8] sm:$0xff] %v415
  // Predicated region
  $region14: #{dof_cnn_lstm_forward.9} parent=0 // pred_check
    _
  $region15: #{dof_cnn_lstm_forward.9} parent=0 // pred_check_branch
    %482 = sbr.rel (0) target = $region17
  $region16: #{dof_cnn_lstm_forward.9} parent=0 // pred_region
    _
  $region17: #{dof_cnn_lstm_forward.9} parent=0 // pred_fallthru
    _
  // Predicated region
  $region18: #{dof_cnn_lstm_forward.9} parent=0 // pred_check
    _
  $region19: #{dof_cnn_lstm_forward.9} parent=0 // pred_check_branch
    %484 = sbr.rel (0) target = $region21
  $region20: #{dof_cnn_lstm_forward.9} parent=0 // pred_region
    _
  $region21: #{dof_cnn_lstm_forward.9} parent=0 // pred_fallthru
    _

</llo_original>
